<compile_context>
chip_gen: v6e
topology: v6e:2x2x1
jax: 0.10.0
libtpu: 0.0.40
codegen_flags: <defaults>
</compile_context>

<pallas_src>
import functools
import math

import numpy as np
import jax
import jax.numpy as jnp
from jax.experimental import pallas as pl
from jax.experimental.pallas import tpu as pltpu


def _round_up(x, m):
    return ((x + m - 1) // m) * m


# ----------------------------------------------------------------------------
# Pallas kernel 1: tiled matmul with fused bias + activation epilogue
# ----------------------------------------------------------------------------
def _matmul_kernel(x_ref, w_ref, b_ref, o_ref, acc_ref, *, act):
    """Grid (Mb, Nb, Kb); K is the trailing 'arbitrary' reduction axis."""
    @pl.when(pl.program_id(2) == 0)
    def _():
        acc_ref[...] = jnp.zeros_like(acc_ref)

    acc_ref[...] += jnp.dot(x_ref[...], w_ref[...],
                            preferred_element_type=jnp.float32)

    @pl.when(pl.program_id(2) == pl.num_programs(2) - 1)
    def _():
        acc = acc_ref[...] + b_ref[...]          # f32 epilogue
        if act == "relu":
            acc = jnp.maximum(acc, 0.0)
        elif act == "sigmoid":
            acc = jax.nn.sigmoid(acc)
        o_ref[...] = acc.astype(o_ref.dtype)


def matmul_pallas(x, w, b, act="none", *, tm=256, tn=256, tk=512):
    """act(x @ w + b).  x:[M,K] f32, w:[K,N] f32, b:[N] f32 -> [M,N] f32.

    Operands are zero-padded to tile multiples (N up to a multiple of 128 for
    lane-dense stores), cast to bf16 for the MXU, and accumulated in f32.
    """
    M, K = x.shape
    K2, N = w.shape
    assert K == K2, (K, K2)

    Mp = _round_up(max(M, 16), 16)     # bf16-friendly sublane granularity
    Np = _round_up(N, 128)             # lane-dense output stores
    Kp = _round_up(K, 128)
    tm = min(tm, Mp)
    tn = min(tn, Np)
    tk = min(tk, Kp)
    Mp = _round_up(Mp, tm)
    Np = _round_up(Np, tn)
    Kp = _round_up(Kp, tk)

    xp = jnp.pad(x.astype(jnp.bfloat16), ((0, Mp - M), (0, Kp - K)))
    wp = jnp.pad(w.astype(jnp.bfloat16), ((0, Kp - K), (0, Np - N)))
    bp = jnp.pad(b.astype(jnp.float32).reshape(1, N), ((0, 0), (0, Np - N)))

    grid = (Mp // tm, Np // tn, Kp // tk)
    out = pl.pallas_call(
        functools.partial(_matmul_kernel, act=act),
        out_shape=jax.ShapeDtypeStruct((Mp, Np), jnp.float32),
        grid_spec=pltpu.PrefetchScalarGridSpec(
            num_scalar_prefetch=0,
            grid=grid,
            in_specs=[
                pl.BlockSpec((tm, tk), lambda i, j, k: (i, k)),
                pl.BlockSpec((tk, tn), lambda i, j, k: (k, j)),
                pl.BlockSpec((1, tn), lambda i, j, k: (0, j)),
            ],
            out_specs=pl.BlockSpec((tm, tn), lambda i, j, k: (i, j)),
            scratch_shapes=[pltpu.VMEM((tm, tn), jnp.float32)],
        ),
        compiler_params=pltpu.CompilerParams(
            dimension_semantics=("parallel", "parallel", "arbitrary")),
    )(xp, wp, bp)
    return out[:M, :N]


# ----------------------------------------------------------------------------
# Pallas kernel 2: fused latent path
#   mu/logvar (fc11|fc12 as one matmul), reparameterize, both LogSoftmax heads, fc2
# ----------------------------------------------------------------------------
def _latent_kernel(h_ref, wmlv_ref, bmlv_ref, eps_ref,
                   wa_ref, ba_ref, wo_ref, bo_ref, w2_ref, b2_ref,
                   mu_ref, lv_ref, z_ref, la_ref, lo_ref, h2_ref, *, z_dim):
    ml = jnp.dot(h_ref[...], wmlv_ref[...],
                 preferred_element_type=jnp.float32) + bmlv_ref[...]
    mu = ml[:, :z_dim]
    lv = ml[:, z_dim:]
    std = jnp.exp(0.5 * lv)
    z = mu + eps_ref[...] * std

    mu_ref[...] = mu
    lv_ref[...] = lv
    z_ref[...] = z

    def logsoftmax(t):
        m = jnp.max(t, axis=-1, keepdims=True)
        s = t - m
        return s - jnp.log(jnp.sum(jnp.exp(s), axis=-1, keepdims=True))

    la = jnp.dot(z, wa_ref[...], preferred_element_type=jnp.float32) + ba_ref[...]
    la_ref[...] = logsoftmax(la)
    lo = jnp.dot(z, wo_ref[...], preferred_element_type=jnp.float32) + bo_ref[...]
    lo_ref[...] = logsoftmax(lo)
    h2_ref[...] = jnp.dot(z, w2_ref[...],
                          preferred_element_type=jnp.float32) + b2_ref[...]


def latent_pallas(h, w_mlv, b_mlv, eps, wa, ba, wo, bo, w2, b2, *, z_dim):
    B = h.shape[0]
    h_dim = w2.shape[1]
    out_shape = (
        jax.ShapeDtypeStruct((B, z_dim), jnp.float32),   # mu
        jax.ShapeDtypeStruct((B, z_dim), jnp.float32),   # logvar
        jax.ShapeDtypeStruct((B, z_dim), jnp.float32),   # z
        jax.ShapeDtypeStruct((B, 7), jnp.float32),       # log-softmax anatomy
        jax.ShapeDtypeStruct((B, 2), jnp.float32),       # log-softmax anomaly
        jax.ShapeDtypeStruct((B, h_dim), jnp.float32),   # fc2(z)
    )
    return pl.pallas_call(
        functools.partial(_latent_kernel, z_dim=z_dim),
        out_shape=out_shape,
        in_specs=[pl.BlockSpec(memory_space=pltpu.MemorySpace.VMEM)] * 10,
        out_specs=tuple(pl.BlockSpec(memory_space=pltpu.MemorySpace.VMEM)
                        for _ in range(6)),
    )(h, w_mlv, b_mlv, eps, wa, ba, wo, bo, w2, b2)


# ----------------------------------------------------------------------------
# Glue: im2col + stride-2 ConvTranspose parity decomposition (pure rearrangement)
# ----------------------------------------------------------------------------
def _im2col(x, kh, kw):
    """Stride-1 patches. x:[B,H,W,C] -> ([B*Ho*Wo, kh*kw*C], (B,Ho,Wo)); K order (kh,kw,c)."""
    B, H, W, C = x.shape
    ho, wo = H - kh + 1, W - kw + 1
    cols = []
    for i in range(kh):
        for j in range(kw):
            cols.append(x[:, i:i + ho, j:j + wo, :])
    cols = jnp.concatenate(cols, axis=-1)
    return cols.reshape(B * ho * wo, kh * kw * C), (B, ho, wo)


def _parity_taps(K, stride, padding, r):
    """For output parity r: kernel taps (torch index order), and input offset delta.

    y[s*m + r] = sum_u x[m + u + delta] * w[taps[u]]   (OOB x -> 0).
    Assumes padding <= K - 1 (true for all layers of this module).
    """
    ph = K - 1 - padding
    c = (ph - r) % stride
    n = (K - c + stride - 1) // stride
    taps = [K - 1 - c - stride * u for u in range(n)]
    delta = (r + c - ph) // stride
    return taps, delta


def _extract_windows(x, delta, mo, n, axis):
    """Return length (mo+n-1) along `axis` with produced[q] = x[q + delta] (0 if OOB)."""
    L = mo + n - 1
    H = x.shape[axis]
    lo = delta
    hi = delta + L - 1
    pad_left = max(0, -lo)
    pad_right = max(0, hi - (H - 1))
    pads = [(0, 0)] * x.ndim
    pads[axis] = (pad_left, pad_right)
    xp = jnp.pad(x, pads)
    start = lo + pad_left
    return jax.lax.slice_in_dim(xp, start, start + L, axis=axis)


def conv_transpose_pallas(x, w_t, b, *, stride, padding, act):
    """PyTorch-equivalent ConvTranspose2d, NHWC activations.

    x:[B,H,W,Cin]; w_t:[Cin,Cout,KH,KW] (PyTorch ConvTranspose2d weight layout).
    Decomposed into one stride-1 sub-convolution per output parity (rh, rw), so only
    kernel taps that hit real inputs are evaluated; each sub-conv is im2col (glue) +
    tiled Pallas matmul with fused bias/activation.
    """
    # TODO(synk): patch gather (im2col) is still materialized by XLA in HBM; folding the
    # (kh,kw) taps into the matmul grid's reduction axis would remove that traffic.
    Cin, Cout, KH, KW = w_t.shape
    B, H, W, C = x.shape
    assert C == Cin
    s = stride
    Ho = (H - 1) * s - 2 * padding + KH
    Wo = (W - 1) * s - 2 * padding + KW
    w_hwio = jnp.transpose(w_t, (2, 3, 0, 1))            # [KH,KW,Cin,Cout]

    parts = {}
    for rh in range(s):
        Mh = max(0, (Ho - rh + s - 1) // s)              # outputs with row-parity rh
        if Mh == 0:
            continue
        taps_h, dh = _parity_taps(KH, s, padding, rh)
        nh = len(taps_h)
        xs_h = _extract_windows(x, dh, Mh, nh, axis=1)
        for rw in range(s):
            Mw = max(0, (Wo - rw + s - 1) // s)
            if Mw == 0:
                continue
            taps_w, dw = _parity_taps(KW, s, padding, rw)
            nw = len(taps_w)
            xs = _extract_windows(xs_h, dw, Mw, nw, axis=2)
            wsub = w_hwio[np.array(taps_h)][:, np.array(taps_w)]   # [nh,nw,Cin,Cout]
            wsub = wsub.reshape(nh * nw * Cin, Cout)
            cols, _ = _im2col(xs, nh, nw)                # [B*Mh*Mw, nh*nw*Cin]
            y = matmul_pallas(cols, wsub, b, act=act)    # [B*Mh*Mw, Cout]
            parts[(rh, rw)] = y.reshape(B, Mh, Mw, Cout)

    if s == 1:
        return parts[(0, 0)]
    out = jnp.zeros((B, Ho, Wo, Cout), jnp.float32)
    for (rh, rw), y in parts.items():
        out = out.at[:, rh::s, rw::s, :].set(y)
    return out


# ----------------------------------------------------------------------------
# Parameters (deterministic synthetic init; shapes follow the PyTorch module)
# ----------------------------------------------------------------------------
def init_params(key, *, z_dim, img_channels, img_size, patch):
    feat_c = 1024                       # DenseNet-121 feature channels
    hb = img_size // patch
    h_dim = feat_c * hb * hb            # Flatten() output width
    keys = iter(jax.random.split(key, 32))

    def dense(fan_in, fan_out):
        w = (1.0 / math.sqrt(fan_in)) * jax.random.normal(
            next(keys), (fan_in, fan_out), jnp.float32)
        b = jnp.zeros((fan_out,), jnp.float32)
        return w, b

    def convT(cin, cout, k):
        fan = cout * k * k
        w = (1.0 / math.sqrt(fan)) * jax.random.normal(
            next(keys), (cin, cout, k, k), jnp.float32)
        b = jnp.zeros((cout,), jnp.float32)
        return w, b

    p = {}
    p["enc_w"], p["enc_b"] = dense(patch * patch * img_channels, feat_c)
    p["fc11_w"], p["fc11_b"] = dense(h_dim, z_dim)       # mu head
    p["fc12_w"], p["fc12_b"] = dense(h_dim, z_dim)       # logvar head
    p["anat_w"], p["anat_b"] = dense(z_dim, 7)           # classifier_anatomy
    p["anom_w"], p["anom_b"] = dense(z_dim, 2)           # classifier_anomaly
    p["fc2_w"], p["fc2_b"] = dense(z_dim, h_dim)
    p["d1_w"], p["d1_b"] = convT(1024, 64, 5)
    p["d2_w"], p["d2_b"] = convT(64, 32, 5)
    p["d3_w"], p["d3_b"] = convT(32, 16, 5)
    p["d4_w"], p["d4_b"] = convT(16, 8, 5)
    p["d5_w"], p["d5_b"] = convT(8, 8, 5)
    p["d6_w"], p["d6_b"] = convT(8, img_channels, 6)
    return p


# ----------------------------------------------------------------------------
# Forward pass (mirrors SVAE_Conv.forward)
# ----------------------------------------------------------------------------
def svae_conv_forward(params, x, rng, *, patch, z_dim):
    B, C, H, W = x.shape
    x_nhwc = jnp.transpose(x, (0, 2, 3, 1))

    # --- encoder ---
    # TODO(synk): reference uses a pretrained DenseNet-121 feature extractor; replaced by a
    # synthetic stride-`patch` patchify linear + ReLU producing the same [B,1024,H/32,W/32] map.
    Hb, Wb = H // patch, W // patch
    patches = x_nhwc.reshape(B, Hb, patch, Wb, patch, C).transpose(0, 1, 3, 2, 4, 5)
    patches = patches.reshape(B * Hb * Wb, patch * patch * C)
    feat = matmul_pallas(patches, params["enc_w"], params["enc_b"], act="relu")
    feat = feat.reshape(B, Hb, Wb, -1)
    h = jnp.transpose(feat, (0, 3, 1, 2)).reshape(B, -1)   # Flatten() on NCHW feature map
    h_dim = h.shape[1]

    # --- fused latent path: fc11|fc12, reparameterize, heads, fc2 ---
    w_mlv = jnp.concatenate([params["fc11_w"], params["fc12_w"]], axis=1)
    b_mlv = jnp.concatenate([params["fc11_b"], params["fc12_b"]]).reshape(1, -1)
    eps = jax.random.normal(rng, (B, z_dim), jnp.float32)   # torch.randn_like(std)
    mu, logvar, z, logits_anatomy, logits_anomaly, h2 = latent_pallas(
        h, w_mlv, b_mlv, eps,
        params["anat_w"], params["anat_b"].reshape(1, -1),
        params["anom_w"], params["anom_b"].reshape(1, -1),
        params["fc2_w"], params["fc2_b"].reshape(1, -1),
        z_dim=z_dim)

    # --- decoder ---
    size = math.isqrt(h_dim // 1024)
    d = h2.reshape(B, 1024, size, size)                     # UnFlatten(1024), NCHW
    d = jnp.transpose(d, (0, 2, 3, 1))                      # -> NHWC

    d = conv_transpose_pallas(d, params["d1_w"], params["d1_b"], stride=2, padding=2, act="relu")
    d = conv_transpose_pallas(d, params["d2_w"], params["d2_b"], stride=2, padding=1, act="relu")
    d = conv_transpose_pallas(d, params["d3_w"], params["d3_b"], stride=2, padding=1, act="relu")
    d = conv_transpose_pallas(d, params["d4_w"], params["d4_b"], stride=2, padding=1, act="relu")
    d = conv_transpose_pallas(d, params["d5_w"], params["d5_b"], stride=2, padding=1, act="relu")
    d = conv_transpose_pallas(d, params["d6_w"], params["d6_b"], stride=1, padding=2, act="sigmoid")

    x_hat = jnp.transpose(d, (0, 3, 1, 2))                  # back to NCHW

    return {
        "x_hat": x_hat,
        "mu": mu,
        "log_var": logvar,
        "logits_anomaly": logits_anomaly,
        "logits_anatomy": logits_anatomy,
    }


# ----------------------------------------------------------------------------
if __name__ == "__main__":
    key = jax.random.PRNGKey(0)
    z_dim, img_channels, img_size, patch = 32, 3, 32, 32   # 1x1 feature map -> h_dim=1024
    B = 2

    k_param, k_x, k_eps = jax.random.split(key, 3)
    params = init_params(k_param, z_dim=z_dim, img_channels=img_channels,
                         img_size=img_size, patch=patch)
    x = jax.random.uniform(k_x, (B, img_channels, img_size, img_size), jnp.float32)

    fwd = jax.jit(functools.partial(svae_conv_forward, patch=patch, z_dim=z_dim))
    out = jax.block_until_ready(fwd(params, x, k_eps))

    assert out["x_hat"].shape == (B, img_channels, img_size, img_size)
    assert out["mu"].shape == (B, z_dim)
    assert out["log_var"].shape == (B, z_dim)
    assert out["logits_anatomy"].shape == (B, 7)
    assert out["logits_anomaly"].shape == (B, 2)
    assert bool(jnp.all(out["x_hat"] >= 0.0) & jnp.all(out["x_hat"] <= 1.0))
    assert bool(jnp.all(jnp.isfinite(out["x_hat"])))

    print("KERNEL_OK")
</pallas_src>

<mosaic_0001>
module attributes {stable_mosaic.version = 11 : i64} {
  func.func @_matmul_kernel(%arg0: i32, %arg1: i32, %arg2: i32, %arg3: memref<16x512xbf16, #tpu.memory_space<vmem>>, %arg4: memref<512x256xbf16, #tpu.memory_space<vmem>>, %arg5: memref<1x256xf32, #tpu.memory_space<vmem>>, %arg6: memref<16x256xf32, #tpu.memory_space<vmem>>, %arg7: memref<16x256xf32, #tpu.memory_space<vmem>>) attributes {dimension_semantics = [#tpu.dimension_semantics<parallel>, #tpu.dimension_semantics<parallel>, #tpu.dimension_semantics<arbitrary>], iteration_bounds = array<i64: 1, 4, 6>, scalar_prefetch = 0 : i64, scratch_operands = 1 : i64, tpu.core_type = #tpu.core_type<tc>, window_params = [{transform_indices = @transform_0, window_bounds = array<i64: 16, 512>}, {transform_indices = @transform_1, window_bounds = array<i64: 512, 256>}, {transform_indices = @transform_2, window_bounds = array<i64: 1, 256>}, {transform_indices = @transform_3, window_bounds = array<i64: 16, 256>}]} {
    %c0_i32 = arith.constant 0 : i32
    %0 = arith.cmpi eq, %arg2, %c0_i32 : i32
    %1 = arith.extui %0 : i1 to i32
    %c0_i32_0 = arith.constant 0 : i32
    %2 = arith.cmpi ne, %1, %c0_i32_0 : i32
    scf.if %2 {
      %cst_9 = arith.constant 0.000000e+00 : f32
      %12 = vector.broadcast %cst_9 : f32 to vector<16x256xf32>
      %c0_10 = arith.constant 0 : index
      %c0_11 = arith.constant 0 : index
      %13 = vector.load %arg7[%c0_10, %c0_11] : memref<16x256xf32, #tpu.memory_space<vmem>>, vector<16x256xf32>
      tpu.vector_store %arg7[%c0_10, %c0_11], %12 {strides = array<i32>} : memref<16x256xf32, #tpu.memory_space<vmem>>, vector<16x256xf32>,
    } else {
    }
    %c0 = arith.constant 0 : index
    %c0_1 = arith.constant 0 : index
    %3 = vector.load %arg7[%c0, %c0_1] : memref<16x256xf32, #tpu.memory_space<vmem>>, vector<16x256xf32>
    %c0_2 = arith.constant 0 : index
    %c0_3 = arith.constant 0 : index
    %4 = vector.load %arg3[%c0_2, %c0_3] : memref<16x512xbf16, #tpu.memory_space<vmem>>, vector<16x512xbf16>
    %c0_4 = arith.constant 0 : index
    %c0_5 = arith.constant 0 : index
    %5 = vector.load %arg4[%c0_4, %c0_5] : memref<512x256xbf16, #tpu.memory_space<vmem>>, vector<512x256xbf16>
    %cst = arith.constant dense<0.000000e+00> : vector<16x256xf32>
    %6 = tpu.matmul %4, %5, %cst {dimension_numbers = #tpu.dot_dimension_numbers<[1], [0], [0], [1], [0, 0, 1, 1], [], []>} : vector<16x512xbf16>, vector<512x256xbf16>, vector<16x256xf32> -> vector<16x256xf32>
    %7 = arith.addf %3, %6 : vector<16x256xf32>
    %c0_6 = arith.constant 0 : index
    %c0_7 = arith.constant 0 : index
    %8 = vector.load %arg7[%c0_6, %c0_7] : memref<16x256xf32, #tpu.memory_space<vmem>>, vector<16x256xf32>
    tpu.vector_store %arg7[%c0_6, %c0_7], %7 {strides = array<i32>} : memref<16x256xf32, #tpu.memory_space<vmem>>, vector<16x256xf32>,
    %c5_i32 = arith.constant 5 : i32
    %9 = arith.cmpi eq, %arg2, %c5_i32 : i32
    %10 = arith.extui %9 : i1 to i32
    %c0_i32_8 = arith.constant 0 : i32
    %11 = arith.cmpi ne, %10, %c0_i32_8 : i32
    scf.if %11 {
      %c0_9 = arith.constant 0 : index
      %c0_10 = arith.constant 0 : index
      %12 = vector.load %arg7[%c0_9, %c0_10] : memref<16x256xf32, #tpu.memory_space<vmem>>, vector<16x256xf32>
      %c0_11 = arith.constant 0 : index
      %c0_12 = arith.constant 0 : index
      %13 = vector.load %arg5[%c0_11, %c0_12] : memref<1x256xf32, #tpu.memory_space<vmem>>, vector<1x256xf32>
      %14 = vector.broadcast %13 : vector<1x256xf32> to vector<16x256xf32>
      %15 = arith.addf %12, %14 : vector<16x256xf32>
      %cst_13 = arith.constant 0.000000e+00 : f32
      %16 = vector.broadcast %cst_13 : f32 to vector<16x256xf32>
      %17 = arith.maximumf %15, %16 : vector<16x256xf32>
      %c0_14 = arith.constant 0 : index
      %c0_15 = arith.constant 0 : index
      %18 = vector.load %arg6[%c0_14, %c0_15] : memref<16x256xf32, #tpu.memory_space<vmem>>, vector<16x256xf32>
      tpu.vector_store %arg6[%c0_14, %c0_15], %17 {strides = array<i32>} : memref<16x256xf32, #tpu.memory_space<vmem>>, vector<16x256xf32>,
    } else {
    }
    return
  }
  func.func @transform_0(%arg0: i32, %arg1: i32, %arg2: i32) -> (i32, i32) {
    %c0_i32 = arith.constant 0 : i32
    return %arg0, %arg2 : i32, i32
  }
  func.func @transform_1(%arg0: i32, %arg1: i32, %arg2: i32) -> (i32, i32) {
    %c0_i32 = arith.constant 0 : i32
    return %arg2, %arg1 : i32, i32
  }
  func.func @transform_2(%arg0: i32, %arg1: i32, %arg2: i32) -> (i32, i32) {
    %c0_i32 = arith.constant 0 : i32
    %c0_i32_0 = arith.constant 0 : i32
    return %c0_i32, %arg1 : i32, i32
  }
  func.func @transform_3(%arg0: i32, %arg1: i32, %arg2: i32) -> (i32, i32) {
    %c0_i32 = arith.constant 0 : i32
    return %arg0, %arg1 : i32, i32
  }
}

module attributes {stable_mosaic.version = 11 : i64} {
  func.func @_latent_kernel(%arg0: memref<2x1024xf32, #tpu.memory_space<vmem>>, %arg1: memref<1024x64xf32, #tpu.memory_space<vmem>>, %arg2: memref<1x64xf32, #tpu.memory_space<vmem>>, %arg3: memref<2x32xf32, #tpu.memory_space<vmem>>, %arg4: memref<32x7xf32, #tpu.memory_space<vmem>>, %arg5: memref<1x7xf32, #tpu.memory_space<vmem>>, %arg6: memref<32x2xf32, #tpu.memory_space<vmem>>, %arg7: memref<1x2xf32, #tpu.memory_space<vmem>>, %arg8: memref<32x1024xf32, #tpu.memory_space<vmem>>, %arg9: memref<1x1024xf32, #tpu.memory_space<vmem>>, %arg10: memref<2x32xf32, #tpu.memory_space<vmem>>, %arg11: memref<2x32xf32, #tpu.memory_space<vmem>>, %arg12: memref<2x32xf32, #tpu.memory_space<vmem>>, %arg13: memref<2x7xf32, #tpu.memory_space<vmem>>, %arg14: memref<2x2xf32, #tpu.memory_space<vmem>>, %arg15: memref<2x1024xf32, #tpu.memory_space<vmem>>) attributes {dimension_semantics = [], scalar_prefetch = 0 : i64, scratch_operands = 0 : i64, tpu.core_type = #tpu.core_type<tc>} {
    %c0 = arith.constant 0 : index
    %c0_0 = arith.constant 0 : index
    %0 = vector.load %arg0[%c0, %c0_0] : memref<2x1024xf32, #tpu.memory_space<vmem>>, vector<2x1024xf32>
    %c0_1 = arith.constant 0 : index
    %c0_2 = arith.constant 0 : index
    %1 = vector.load %arg1[%c0_1, %c0_2] : memref<1024x64xf32, #tpu.memory_space<vmem>>, vector<1024x64xf32>
    %cst = arith.constant dense<0.000000e+00> : vector<2x64xf32>
    %2 = tpu.matmul %0, %1, %cst {dimension_numbers = #tpu.dot_dimension_numbers<[1], [0], [0], [1], [0, 0, 1, 1], [], []>} : vector<2x1024xf32>, vector<1024x64xf32>, vector<2x64xf32> -> vector<2x64xf32>
    %c0_3 = arith.constant 0 : index
    %c0_4 = arith.constant 0 : index
    %3 = vector.load %arg2[%c0_3, %c0_4] : memref<1x64xf32, #tpu.memory_space<vmem>>, vector<1x64xf32>
    %4 = vector.broadcast %3 : vector<1x64xf32> to vector<2x64xf32>
    %5 = arith.addf %2, %4 : vector<2x64xf32>
    %6 = vector.extract_strided_slice %5 {offsets = [0, 0], sizes = [2, 32], strides = [1, 1]} : vector<2x64xf32> to vector<2x32xf32>
    %7 = vector.extract_strided_slice %5 {offsets = [0, 32], sizes = [2, 32], strides = [1, 1]} : vector<2x64xf32> to vector<2x32xf32>
    %cst_5 = arith.constant 5.000000e-01 : f32
    %8 = vector.broadcast %cst_5 : f32 to vector<2x32xf32>
    %9 = arith.mulf %8, %7 : vector<2x32xf32>
    %10 = math.exp %9 : vector<2x32xf32>
    %c0_6 = arith.constant 0 : index
    %c0_7 = arith.constant 0 : index
    %11 = vector.load %arg3[%c0_6, %c0_7] : memref<2x32xf32, #tpu.memory_space<vmem>>, vector<2x32xf32>
    %12 = arith.mulf %11, %10 : vector<2x32xf32>
    %13 = arith.addf %6, %12 : vector<2x32xf32>
    %c0_8 = arith.constant 0 : index
    %c0_9 = arith.constant 0 : index
    %14 = vector.load %arg10[%c0_8, %c0_9] : memref<2x32xf32, #tpu.memory_space<vmem>>, vector<2x32xf32>
    tpu.vector_store %arg10[%c0_8, %c0_9], %6 {strides = array<i32>} : memref<2x32xf32, #tpu.memory_space<vmem>>, vector<2x32xf32>,
    %c0_10 = arith.constant 0 : index
    %c0_11 = arith.constant 0 : index
    %15 = vector.load %arg11[%c0_10, %c0_11] : memref<2x32xf32, #tpu.memory_space<vmem>>, vector<2x32xf32>
    tpu.vector_store %arg11[%c0_10, %c0_11], %7 {strides = array<i32>} : memref<2x32xf32, #tpu.memory_space<vmem>>, vector<2x32xf32>,
    %c0_12 = arith.constant 0 : index
    %c0_13 = arith.constant 0 : index
    %16 = vector.load %arg12[%c0_12, %c0_13] : memref<2x32xf32, #tpu.memory_space<vmem>>, vector<2x32xf32>
    tpu.vector_store %arg12[%c0_12, %c0_13], %13 {strides = array<i32>} : memref<2x32xf32, #tpu.memory_space<vmem>>, vector<2x32xf32>,
    %c0_14 = arith.constant 0 : index
    %c0_15 = arith.constant 0 : index
    %17 = vector.load %arg4[%c0_14, %c0_15] : memref<32x7xf32, #tpu.memory_space<vmem>>, vector<32x7xf32>
    %cst_16 = arith.constant dense<0.000000e+00> : vector<2x7xf32>
    %18 = tpu.matmul %13, %17, %cst_16 {dimension_numbers = #tpu.dot_dimension_numbers<[1], [0], [0], [1], [0, 0, 1, 1], [], []>} : vector<2x32xf32>, vector<32x7xf32>, vector<2x7xf32> -> vector<2x7xf32>
    %c0_17 = arith.constant 0 : index
    %c0_18 = arith.constant 0 : index
    %19 = vector.load %arg5[%c0_17, %c0_18] : memref<1x7xf32, #tpu.memory_space<vmem>>, vector<1x7xf32>
    %20 = vector.broadcast %19 : vector<1x7xf32> to vector<2x7xf32>
    %21 = arith.addf %18, %20 : vector<2x7xf32>
    %cst_19 = arith.constant dense<0xFF800000> : vector<2xf32>
    %22 = vector.multi_reduction <maximumf>, %21, %cst_19 [1] : vector<2x7xf32> to vector<2xf32>
    %23 = vector.shape_cast %22 : vector<2xf32> to vector<2x1xf32>
    %24 = vector.broadcast %23 : vector<2x1xf32> to vector<2x7xf32>
    %25 = arith.subf %21, %24 : vector<2x7xf32>
    %26 = math.exp %25 : vector<2x7xf32>
    %cst_20 = arith.constant dense<0.000000e+00> : vector<2xf32>
    %27 = vector.multi_reduction <add>, %26, %cst_20 [1] : vector<2x7xf32> to vector<2xf32>
    %28 = vector.shape_cast %27 : vector<2xf32> to vector<2x1xf32>
    %29 = math.log %28 : vector<2x1xf32>
    %30 = vector.broadcast %29 : vector<2x1xf32> to vector<2x7xf32>
    %31 = arith.subf %25, %30 : vector<2x7xf32>
    %c0_21 = arith.constant 0 : index
    %c0_22 = arith.constant 0 : index
    %32 = vector.load %arg13[%c0_21, %c0_22] : memref<2x7xf32, #tpu.memory_space<vmem>>, vector<2x7xf32>
    tpu.vector_store %arg13[%c0_21, %c0_22], %31 {strides = array<i32>} : memref<2x7xf32, #tpu.memory_space<vmem>>, vector<2x7xf32>,
    %c0_23 = arith.constant 0 : index
    %c0_24 = arith.constant 0 : index
    %33 = vector.load %arg6[%c0_23, %c0_24] : memref<32x2xf32, #tpu.memory_space<vmem>>, vector<32x2xf32>
    %cst_25 = arith.constant dense<0.000000e+00> : vector<2x2xf32>
    %34 = tpu.matmul %13, %33, %cst_25 {dimension_numbers = #tpu.dot_dimension_numbers<[1], [0], [0], [1], [0, 0, 1, 1], [], []>} : vector<2x32xf32>, vector<32x2xf32>, vector<2x2xf32> -> vector<2x2xf32>
    %c0_26 = arith.constant 0 : index
    %c0_27 = arith.constant 0 : index
    %35 = vector.load %arg7[%c0_26, %c0_27] : memref<1x2xf32, #tpu.memory_space<vmem>>, vector<1x2xf32>
    %36 = vector.broadcast %35 : vector<1x2xf32> to vector<2x2xf32>
    %37 = arith.addf %34, %36 : vector<2x2xf32>
    %cst_28 = arith.constant dense<0xFF800000> : vector<2xf32>
    %38 = vector.multi_reduction <maximumf>, %37, %cst_28 [1] : vector<2x2xf32> to vector<2xf32>
    %39 = vector.shape_cast %38 : vector<2xf32> to vector<2x1xf32>
    %40 = vector.broadcast %39 : vector<2x1xf32> to vector<2x2xf32>
    %41 = arith.subf %37, %40 : vector<2x2xf32>
    %42 = math.exp %41 : vector<2x2xf32>
    %cst_29 = arith.constant dense<0.000000e+00> : vector<2xf32>
    %43 = vector.multi_reduction <add>, %42, %cst_29 [1] : vector<2x2xf32> to vector<2xf32>
    %44 = vector.shape_cast %43 : vector<2xf32> to vector<2x1xf32>
    %45 = math.log %44 : vector<2x1xf32>
    %46 = vector.broadcast %45 : vector<2x1xf32> to vector<2x2xf32>
    %47 = arith.subf %41, %46 : vector<2x2xf32>
    %c0_30 = arith.constant 0 : index
    %c0_31 = arith.constant 0 : index
    %48 = vector.load %arg14[%c0_30, %c0_31] : memref<2x2xf32, #tpu.memory_space<vmem>>, vector<2x2xf32>
    tpu.vector_store %arg14[%c0_30, %c0_31], %47 {strides = array<i32>} : memref<2x2xf32, #tpu.memory_space<vmem>>, vector<2x2xf32>,
    %c0_32 = arith.constant 0 : index
    %c0_33 = arith.constant 0 : index
    %49 = vector.load %arg8[%c0_32, %c0_33] : memref<32x1024xf32, #tpu.memory_space<vmem>>, vector<32x1024xf32>
    %cst_34 = arith.constant dense<0.000000e+00> : vector<2x1024xf32>
    %50 = tpu.matmul %13, %49, %cst_34 {dimension_numbers = #tpu.dot_dimension_numbers<[1], [0], [0], [1], [0, 0, 1, 1], [], []>} : vector<2x32xf32>, vector<32x1024xf32>, vector<2x1024xf32> -> vector<2x1024xf32>
    %c0_35 = arith.constant 0 : index
    %c0_36 = arith.constant 0 : index
    %51 = vector.load %arg9[%c0_35, %c0_36] : memref<1x1024xf32, #tpu.memory_space<vmem>>, vector<1x1024xf32>
    %52 = vector.broadcast %51 : vector<1x1024xf32> to vector<2x1024xf32>
    %53 = arith.addf %50, %52 : vector<2x1024xf32>
    %c0_37 = arith.constant 0 : index
    %c0_38 = arith.constant 0 : index
    %54 = vector.load %arg15[%c0_37, %c0_38] : memref<2x1024xf32, #tpu.memory_space<vmem>>, vector<2x1024xf32>
    tpu.vector_store %arg15[%c0_37, %c0_38], %53 {strides = array<i32>} : memref<2x1024xf32, #tpu.memory_space<vmem>>, vector<2x1024xf32>,
    return
  }
}

module attributes {stable_mosaic.version = 11 : i64} {
  func.func @_matmul_kernel(%arg0: i32, %arg1: i32, %arg2: i32, %arg3: memref<16x512xbf16, #tpu.memory_space<vmem>>, %arg4: memref<512x128xbf16, #tpu.memory_space<vmem>>, %arg5: memref<1x128xf32, #tpu.memory_space<vmem>>, %arg6: memref<16x128xf32, #tpu.memory_space<vmem>>, %arg7: memref<16x128xf32, #tpu.memory_space<vmem>>) attributes {dimension_semantics = [#tpu.dimension_semantics<parallel>, #tpu.dimension_semantics<parallel>, #tpu.dimension_semantics<arbitrary>], iteration_bounds = array<i64: 1, 1, 18>, scalar_prefetch = 0 : i64, scratch_operands = 1 : i64, tpu.core_type = #tpu.core_type<tc>, window_params = [{transform_indices = @transform_0, window_bounds = array<i64: 16, 512>}, {transform_indices = @transform_1, window_bounds = array<i64: 512, 128>}, {transform_indices = @transform_2, window_bounds = array<i64: 1, 128>}, {transform_indices = @transform_3, window_bounds = array<i64: 16, 128>}]} {
    %c0_i32 = arith.constant 0 : i32
    %0 = arith.cmpi eq, %arg2, %c0_i32 : i32
    %1 = arith.extui %0 : i1 to i32
    %c0_i32_0 = arith.constant 0 : i32
    %2 = arith.cmpi ne, %1, %c0_i32_0 : i32
    scf.if %2 {
      %cst_9 = arith.constant 0.000000e+00 : f32
      %12 = vector.broadcast %cst_9 : f32 to vector<16x128xf32>
      %c0_10 = arith.constant 0 : index
      %c0_11 = arith.constant 0 : index
      %13 = vector.load %arg7[%c0_10, %c0_11] : memref<16x128xf32, #tpu.memory_space<vmem>>, vector<16x128xf32>
      tpu.vector_store %arg7[%c0_10, %c0_11], %12 {strides = array<i32>} : memref<16x128xf32, #tpu.memory_space<vmem>>, vector<16x128xf32>,
    } else {
    }
    %c0 = arith.constant 0 : index
    %c0_1 = arith.constant 0 : index
    %3 = vector.load %arg7[%c0, %c0_1] : memref<16x128xf32, #tpu.memory_space<vmem>>, vector<16x128xf32>
    %c0_2 = arith.constant 0 : index
    %c0_3 = arith.constant 0 : index
    %4 = vector.load %arg3[%c0_2, %c0_3] : memref<16x512xbf16, #tpu.memory_space<vmem>>, vector<16x512xbf16>
    %c0_4 = arith.constant 0 : index
    %c0_5 = arith.constant 0 : index
    %5 = vector.load %arg4[%c0_4, %c0_5] : memref<512x128xbf16, #tpu.memory_space<vmem>>, vector<512x128xbf16>
    %cst = arith.constant dense<0.000000e+00> : vector<16x128xf32>
    %6 = tpu.matmul %4, %5, %cst {dimension_numbers = #tpu.dot_dimension_numbers<[1], [0], [0], [1], [0, 0, 1, 1], [], []>} : vector<16x512xbf16>, vector<512x128xbf16>, vector<16x128xf32> -> vector<16x128xf32>
    %7 = arith.addf %3, %6 : vector<16x128xf32>
    %c0_6 = arith.constant 0 : index
    %c0_7 = arith.constant 0 : index
    %8 = vector.load %arg7[%c0_6, %c0_7] : memref<16x128xf32, #tpu.memory_space<vmem>>, vector<16x128xf32>
    tpu.vector_store %arg7[%c0_6, %c0_7], %7 {strides = array<i32>} : memref<16x128xf32, #tpu.memory_space<vmem>>, vector<16x128xf32>,
    %c17_i32 = arith.constant 17 : i32
    %9 = arith.cmpi eq, %arg2, %c17_i32 : i32
    %10 = arith.extui %9 : i1 to i32
    %c0_i32_8 = arith.constant 0 : i32
    %11 = arith.cmpi ne, %10, %c0_i32_8 : i32
    scf.if %11 {
      %c0_9 = arith.constant 0 : index
      %c0_10 = arith.constant 0 : index
      %12 = vector.load %arg7[%c0_9, %c0_10] : memref<16x128xf32, #tpu.memory_space<vmem>>, vector<16x128xf32>
      %c0_11 = arith.constant 0 : index
      %c0_12 = arith.constant 0 : index
      %13 = vector.load %arg5[%c0_11, %c0_12] : memref<1x128xf32, #tpu.memory_space<vmem>>, vector<1x128xf32>
      %14 = vector.broadcast %13 : vector<1x128xf32> to vector<16x128xf32>
      %15 = arith.addf %12, %14 : vector<16x128xf32>
      %cst_13 = arith.constant 0.000000e+00 : f32
      %16 = vector.broadcast %cst_13 : f32 to vector<16x128xf32>
      %17 = arith.maximumf %15, %16 : vector<16x128xf32>
      %c0_14 = arith.constant 0 : index
      %c0_15 = arith.constant 0 : index
      %18 = vector.load %arg6[%c0_14, %c0_15] : memref<16x128xf32, #tpu.memory_space<vmem>>, vector<16x128xf32>
      tpu.vector_store %arg6[%c0_14, %c0_15], %17 {strides = array<i32>} : memref<16x128xf32, #tpu.memory_space<vmem>>, vector<16x128xf32>,
    } else {
    }
    return
  }
  func.func @transform_0(%arg0: i32, %arg1: i32, %arg2: i32) -> (i32, i32) {
    %c0_i32 = arith.constant 0 : i32
    return %arg0, %arg2 : i32, i32
  }
  func.func @transform_1(%arg0: i32, %arg1: i32, %arg2: i32) -> (i32, i32) {
    %c0_i32 = arith.constant 0 : i32
    return %arg2, %arg1 : i32, i32
  }
  func.func @transform_2(%arg0: i32, %arg1: i32, %arg2: i32) -> (i32, i32) {
    %c0_i32 = arith.constant 0 : i32
    %c0_i32_0 = arith.constant 0 : i32
    return %c0_i32, %arg1 : i32, i32
  }
  func.func @transform_3(%arg0: i32, %arg1: i32, %arg2: i32) -> (i32, i32) {
    %c0_i32 = arith.constant 0 : i32
    return %arg0, %arg1 : i32, i32
  }
}

module attributes {stable_mosaic.version = 11 : i64} {
  func.func @_matmul_kernel(%arg0: i32, %arg1: i32, %arg2: i32, %arg3: memref<16x256xbf16, #tpu.memory_space<vmem>>, %arg4: memref<256x128xbf16, #tpu.memory_space<vmem>>, %arg5: memref<1x128xf32, #tpu.memory_space<vmem>>, %arg6: memref<16x128xf32, #tpu.memory_space<vmem>>, %arg7: memref<16x128xf32, #tpu.memory_space<vmem>>) attributes {dimension_semantics = [#tpu.dimension_semantics<parallel>, #tpu.dimension_semantics<parallel>, #tpu.dimension_semantics<arbitrary>], iteration_bounds = array<i64: 1, 1, 1>, scalar_prefetch = 0 : i64, scratch_operands = 1 : i64, tpu.core_type = #tpu.core_type<tc>, window_params = [{transform_indices = @transform_0, window_bounds = array<i64: 16, 256>}, {transform_indices = @transform_1, window_bounds = array<i64: 256, 128>}, {transform_indices = @transform_2, window_bounds = array<i64: 1, 128>}, {transform_indices = @transform_3, window_bounds = array<i64: 16, 128>}]} {
    %c0_i32 = arith.constant 0 : i32
    %0 = arith.cmpi eq, %arg2, %c0_i32 : i32
    %1 = arith.extui %0 : i1 to i32
    %c0_i32_0 = arith.constant 0 : i32
    %2 = arith.cmpi ne, %1, %c0_i32_0 : i32
    scf.if %2 {
      %cst_10 = arith.constant 0.000000e+00 : f32
      %12 = vector.broadcast %cst_10 : f32 to vector<16x128xf32>
      %c0_11 = arith.constant 0 : index
      %c0_12 = arith.constant 0 : index
      %13 = vector.load %arg7[%c0_11, %c0_12] : memref<16x128xf32, #tpu.memory_space<vmem>>, vector<16x128xf32>
      tpu.vector_store %arg7[%c0_11, %c0_12], %12 {strides = array<i32>} : memref<16x128xf32, #tpu.memory_space<vmem>>, vector<16x128xf32>,
    } else {
    }
    %c0 = arith.constant 0 : index
    %c0_1 = arith.constant 0 : index
    %3 = vector.load %arg7[%c0, %c0_1] : memref<16x128xf32, #tpu.memory_space<vmem>>, vector<16x128xf32>
    %c0_2 = arith.constant 0 : index
    %c0_3 = arith.constant 0 : index
    %4 = vector.load %arg3[%c0_2, %c0_3] : memref<16x256xbf16, #tpu.memory_space<vmem>>, vector<16x256xbf16>
    %c0_4 = arith.constant 0 : index
    %c0_5 = arith.constant 0 : index
    %5 = vector.load %arg4[%c0_4, %c0_5] : memref<256x128xbf16, #tpu.memory_space<vmem>>, vector<256x128xbf16>
    %cst = arith.constant dense<0.000000e+00> : vector<16x128xf32>
    %6 = tpu.matmul %4, %5, %cst {dimension_numbers = #tpu.dot_dimension_numbers<[1], [0], [0], [1], [0, 0, 1, 1], [], []>} : vector<16x256xbf16>, vector<256x128xbf16>, vector<16x128xf32> -> vector<16x128xf32>
    %7 = arith.addf %3, %6 : vector<16x128xf32>
    %c0_6 = arith.constant 0 : index
    %c0_7 = arith.constant 0 : index
    %8 = vector.load %arg7[%c0_6, %c0_7] : memref<16x128xf32, #tpu.memory_space<vmem>>, vector<16x128xf32>
    tpu.vector_store %arg7[%c0_6, %c0_7], %7 {strides = array<i32>} : memref<16x128xf32, #tpu.memory_space<vmem>>, vector<16x128xf32>,
    %c0_i32_8 = arith.constant 0 : i32
    %9 = arith.cmpi eq, %arg2, %c0_i32_8 : i32
    %10 = arith.extui %9 : i1 to i32
    %c0_i32_9 = arith.constant 0 : i32
    %11 = arith.cmpi ne, %10, %c0_i32_9 : i32
    scf.if %11 {
      %c0_10 = arith.constant 0 : index
      %c0_11 = arith.constant 0 : index
      %12 = vector.load %arg7[%c0_10, %c0_11] : memref<16x128xf32, #tpu.memory_space<vmem>>, vector<16x128xf32>
      %c0_12 = arith.constant 0 : index
      %c0_13 = arith.constant 0 : index
      %13 = vector.load %arg5[%c0_12, %c0_13] : memref<1x128xf32, #tpu.memory_space<vmem>>, vector<1x128xf32>
      %14 = vector.broadcast %13 : vector<1x128xf32> to vector<16x128xf32>
      %15 = arith.addf %12, %14 : vector<16x128xf32>
      %cst_14 = arith.constant 0.000000e+00 : f32
      %16 = vector.broadcast %cst_14 : f32 to vector<16x128xf32>
      %17 = arith.maximumf %15, %16 : vector<16x128xf32>
      %c0_15 = arith.constant 0 : index
      %c0_16 = arith.constant 0 : index
      %18 = vector.load %arg6[%c0_15, %c0_16] : memref<16x128xf32, #tpu.memory_space<vmem>>, vector<16x128xf32>
      tpu.vector_store %arg6[%c0_15, %c0_16], %17 {strides = array<i32>} : memref<16x128xf32, #tpu.memory_space<vmem>>, vector<16x128xf32>,
    } else {
    }
    return
  }
  func.func @transform_0(%arg0: i32, %arg1: i32, %arg2: i32) -> (i32, i32) {
    %c0_i32 = arith.constant 0 : i32
    return %arg0, %arg2 : i32, i32
  }
  func.func @transform_1(%arg0: i32, %arg1: i32, %arg2: i32) -> (i32, i32) {
    %c0_i32 = arith.constant 0 : i32
    return %arg2, %arg1 : i32, i32
  }
  func.func @transform_2(%arg0: i32, %arg1: i32, %arg2: i32) -> (i32, i32) {
    %c0_i32 = arith.constant 0 : i32
    %c0_i32_0 = arith.constant 0 : i32
    return %c0_i32, %arg1 : i32, i32
  }
  func.func @transform_3(%arg0: i32, %arg1: i32, %arg2: i32) -> (i32, i32) {
    %c0_i32 = arith.constant 0 : i32
    return %arg0, %arg1 : i32, i32
  }
}

module attributes {stable_mosaic.version = 11 : i64} {
  func.func @_matmul_kernel(%arg0: i32, %arg1: i32, %arg2: i32, %arg3: memref<16x384xbf16, #tpu.memory_space<vmem>>, %arg4: memref<384x128xbf16, #tpu.memory_space<vmem>>, %arg5: memref<1x128xf32, #tpu.memory_space<vmem>>, %arg6: memref<16x128xf32, #tpu.memory_space<vmem>>, %arg7: memref<16x128xf32, #tpu.memory_space<vmem>>) attributes {dimension_semantics = [#tpu.dimension_semantics<parallel>, #tpu.dimension_semantics<parallel>, #tpu.dimension_semantics<arbitrary>], iteration_bounds = array<i64: 1, 1, 1>, scalar_prefetch = 0 : i64, scratch_operands = 1 : i64, tpu.core_type = #tpu.core_type<tc>, window_params = [{transform_indices = @transform_0, window_bounds = array<i64: 16, 384>}, {transform_indices = @transform_1, window_bounds = array<i64: 384, 128>}, {transform_indices = @transform_2, window_bounds = array<i64: 1, 128>}, {transform_indices = @transform_3, window_bounds = array<i64: 16, 128>}]} {
    %c0_i32 = arith.constant 0 : i32
    %0 = arith.cmpi eq, %arg2, %c0_i32 : i32
    %1 = arith.extui %0 : i1 to i32
    %c0_i32_0 = arith.constant 0 : i32
    %2 = arith.cmpi ne, %1, %c0_i32_0 : i32
    scf.if %2 {
      %cst_10 = arith.constant 0.000000e+00 : f32
      %12 = vector.broadcast %cst_10 : f32 to vector<16x128xf32>
      %c0_11 = arith.constant 0 : index
      %c0_12 = arith.constant 0 : index
      %13 = vector.load %arg7[%c0_11, %c0_12] : memref<16x128xf32, #tpu.memory_space<vmem>>, vector<16x128xf32>
      tpu.vector_store %arg7[%c0_11, %c0_12], %12 {strides = array<i32>} : memref<16x128xf32, #tpu.memory_space<vmem>>, vector<16x128xf32>,
    } else {
    }
    %c0 = arith.constant 0 : index
    %c0_1 = arith.constant 0 : index
    %3 = vector.load %arg7[%c0, %c0_1] : memref<16x128xf32, #tpu.memory_space<vmem>>, vector<16x128xf32>
    %c0_2 = arith.constant 0 : index
    %c0_3 = arith.constant 0 : index
    %4 = vector.load %arg3[%c0_2, %c0_3] : memref<16x384xbf16, #tpu.memory_space<vmem>>, vector<16x384xbf16>
    %c0_4 = arith.constant 0 : index
    %c0_5 = arith.constant 0 : index
    %5 = vector.load %arg4[%c0_4, %c0_5] : memref<384x128xbf16, #tpu.memory_space<vmem>>, vector<384x128xbf16>
    %cst = arith.constant dense<0.000000e+00> : vector<16x128xf32>
    %6 = tpu.matmul %4, %5, %cst {dimension_numbers = #tpu.dot_dimension_numbers<[1], [0], [0], [1], [0, 0, 1, 1], [], []>} : vector<16x384xbf16>, vector<384x128xbf16>, vector<16x128xf32> -> vector<16x128xf32>
    %7 = arith.addf %3, %6 : vector<16x128xf32>
    %c0_6 = arith.constant 0 : index
    %c0_7 = arith.constant 0 : index
    %8 = vector.load %arg7[%c0_6, %c0_7] : memref<16x128xf32, #tpu.memory_space<vmem>>, vector<16x128xf32>
    tpu.vector_store %arg7[%c0_6, %c0_7], %7 {strides = array<i32>} : memref<16x128xf32, #tpu.memory_space<vmem>>, vector<16x128xf32>,
    %c0_i32_8 = arith.constant 0 : i32
    %9 = arith.cmpi eq, %arg2, %c0_i32_8 : i32
    %10 = arith.extui %9 : i1 to i32
    %c0_i32_9 = arith.constant 0 : i32
    %11 = arith.cmpi ne, %10, %c0_i32_9 : i32
    scf.if %11 {
      %c0_10 = arith.constant 0 : index
      %c0_11 = arith.constant 0 : index
      %12 = vector.load %arg7[%c0_10, %c0_11] : memref<16x128xf32, #tpu.memory_space<vmem>>, vector<16x128xf32>
      %c0_12 = arith.constant 0 : index
      %c0_13 = arith.constant 0 : index
      %13 = vector.load %arg5[%c0_12, %c0_13] : memref<1x128xf32, #tpu.memory_space<vmem>>, vector<1x128xf32>
      %14 = vector.broadcast %13 : vector<1x128xf32> to vector<16x128xf32>
      %15 = arith.addf %12, %14 : vector<16x128xf32>
      %cst_14 = arith.constant 0.000000e+00 : f32
      %16 = vector.broadcast %cst_14 : f32 to vector<16x128xf32>
      %17 = arith.maximumf %15, %16 : vector<16x128xf32>
      %c0_15 = arith.constant 0 : index
      %c0_16 = arith.constant 0 : index
      %18 = vector.load %arg6[%c0_15, %c0_16] : memref<16x128xf32, #tpu.memory_space<vmem>>, vector<16x128xf32>
      tpu.vector_store %arg6[%c0_15, %c0_16], %17 {strides = array<i32>} : memref<16x128xf32, #tpu.memory_space<vmem>>, vector<16x128xf32>,
    } else {
    }
    return
  }
  func.func @transform_0(%arg0: i32, %arg1: i32, %arg2: i32) -> (i32, i32) {
    %c0_i32 = arith.constant 0 : i32
    return %arg0, %arg2 : i32, i32
  }
  func.func @transform_1(%arg0: i32, %arg1: i32, %arg2: i32) -> (i32, i32) {
    %c0_i32 = arith.constant 0 : i32
    return %arg2, %arg1 : i32, i32
  }
  func.func @transform_2(%arg0: i32, %arg1: i32, %arg2: i32) -> (i32, i32) {
    %c0_i32 = arith.constant 0 : i32
    %c0_i32_0 = arith.constant 0 : i32
    return %c0_i32, %arg1 : i32, i32
  }
  func.func @transform_3(%arg0: i32, %arg1: i32, %arg2: i32) -> (i32, i32) {
    %c0_i32 = arith.constant 0 : i32
    return %arg0, %arg1 : i32, i32
  }
}

module attributes {stable_mosaic.version = 11 : i64} {
  func.func @_matmul_kernel(%arg0: i32, %arg1: i32, %arg2: i32, %arg3: memref<16x512xbf16, #tpu.memory_space<vmem>>, %arg4: memref<512x128xbf16, #tpu.memory_space<vmem>>, %arg5: memref<1x128xf32, #tpu.memory_space<vmem>>, %arg6: memref<16x128xf32, #tpu.memory_space<vmem>>, %arg7: memref<16x128xf32, #tpu.memory_space<vmem>>) attributes {dimension_semantics = [#tpu.dimension_semantics<parallel>, #tpu.dimension_semantics<parallel>, #tpu.dimension_semantics<arbitrary>], iteration_bounds = array<i64: 1, 1, 2>, scalar_prefetch = 0 : i64, scratch_operands = 1 : i64, tpu.core_type = #tpu.core_type<tc>, window_params = [{transform_indices = @transform_0, window_bounds = array<i64: 16, 512>}, {transform_indices = @transform_1, window_bounds = array<i64: 512, 128>}, {transform_indices = @transform_2, window_bounds = array<i64: 1, 128>}, {transform_indices = @transform_3, window_bounds = array<i64: 16, 128>}]} {
    %c0_i32 = arith.constant 0 : i32
    %0 = arith.cmpi eq, %arg2, %c0_i32 : i32
    %1 = arith.extui %0 : i1 to i32
    %c0_i32_0 = arith.constant 0 : i32
    %2 = arith.cmpi ne, %1, %c0_i32_0 : i32
    scf.if %2 {
      %cst_9 = arith.constant 0.000000e+00 : f32
      %12 = vector.broadcast %cst_9 : f32 to vector<16x128xf32>
      %c0_10 = arith.constant 0 : index
      %c0_11 = arith.constant 0 : index
      %13 = vector.load %arg7[%c0_10, %c0_11] : memref<16x128xf32, #tpu.memory_space<vmem>>, vector<16x128xf32>
      tpu.vector_store %arg7[%c0_10, %c0_11], %12 {strides = array<i32>} : memref<16x128xf32, #tpu.memory_space<vmem>>, vector<16x128xf32>,
    } else {
    }
    %c0 = arith.constant 0 : index
    %c0_1 = arith.constant 0 : index
    %3 = vector.load %arg7[%c0, %c0_1] : memref<16x128xf32, #tpu.memory_space<vmem>>, vector<16x128xf32>
    %c0_2 = arith.constant 0 : index
    %c0_3 = arith.constant 0 : index
    %4 = vector.load %arg3[%c0_2, %c0_3] : memref<16x512xbf16, #tpu.memory_space<vmem>>, vector<16x512xbf16>
    %c0_4 = arith.constant 0 : index
    %c0_5 = arith.constant 0 : index
    %5 = vector.load %arg4[%c0_4, %c0_5] : memref<512x128xbf16, #tpu.memory_space<vmem>>, vector<512x128xbf16>
    %cst = arith.constant dense<0.000000e+00> : vector<16x128xf32>
    %6 = tpu.matmul %4, %5, %cst {dimension_numbers = #tpu.dot_dimension_numbers<[1], [0], [0], [1], [0, 0, 1, 1], [], []>} : vector<16x512xbf16>, vector<512x128xbf16>, vector<16x128xf32> -> vector<16x128xf32>
    %7 = arith.addf %3, %6 : vector<16x128xf32>
    %c0_6 = arith.constant 0 : index
    %c0_7 = arith.constant 0 : index
    %8 = vector.load %arg7[%c0_6, %c0_7] : memref<16x128xf32, #tpu.memory_space<vmem>>, vector<16x128xf32>
    tpu.vector_store %arg7[%c0_6, %c0_7], %7 {strides = array<i32>} : memref<16x128xf32, #tpu.memory_space<vmem>>, vector<16x128xf32>,
    %c1_i32 = arith.constant 1 : i32
    %9 = arith.cmpi eq, %arg2, %c1_i32 : i32
    %10 = arith.extui %9 : i1 to i32
    %c0_i32_8 = arith.constant 0 : i32
    %11 = arith.cmpi ne, %10, %c0_i32_8 : i32
    scf.if %11 {
      %c0_9 = arith.constant 0 : index
      %c0_10 = arith.constant 0 : index
      %12 = vector.load %arg7[%c0_9, %c0_10] : memref<16x128xf32, #tpu.memory_space<vmem>>, vector<16x128xf32>
      %c0_11 = arith.constant 0 : index
      %c0_12 = arith.constant 0 : index
      %13 = vector.load %arg5[%c0_11, %c0_12] : memref<1x128xf32, #tpu.memory_space<vmem>>, vector<1x128xf32>
      %14 = vector.broadcast %13 : vector<1x128xf32> to vector<16x128xf32>
      %15 = arith.addf %12, %14 : vector<16x128xf32>
      %cst_13 = arith.constant 0.000000e+00 : f32
      %16 = vector.broadcast %cst_13 : f32 to vector<16x128xf32>
      %17 = arith.maximumf %15, %16 : vector<16x128xf32>
      %c0_14 = arith.constant 0 : index
      %c0_15 = arith.constant 0 : index
      %18 = vector.load %arg6[%c0_14, %c0_15] : memref<16x128xf32, #tpu.memory_space<vmem>>, vector<16x128xf32>
      tpu.vector_store %arg6[%c0_14, %c0_15], %17 {strides = array<i32>} : memref<16x128xf32, #tpu.memory_space<vmem>>, vector<16x128xf32>,
    } else {
    }
    return
  }
  func.func @transform_0(%arg0: i32, %arg1: i32, %arg2: i32) -> (i32, i32) {
    %c0_i32 = arith.constant 0 : i32
    return %arg0, %arg2 : i32, i32
  }
  func.func @transform_1(%arg0: i32, %arg1: i32, %arg2: i32) -> (i32, i32) {
    %c0_i32 = arith.constant 0 : i32
    return %arg2, %arg1 : i32, i32
  }
  func.func @transform_2(%arg0: i32, %arg1: i32, %arg2: i32) -> (i32, i32) {
    %c0_i32 = arith.constant 0 : i32
    %c0_i32_0 = arith.constant 0 : i32
    return %c0_i32, %arg1 : i32, i32
  }
  func.func @transform_3(%arg0: i32, %arg1: i32, %arg2: i32) -> (i32, i32) {
    %c0_i32 = arith.constant 0 : i32
    return %arg0, %arg1 : i32, i32
  }
}

module attributes {stable_mosaic.version = 11 : i64} {
  func.func @_matmul_kernel(%arg0: i32, %arg1: i32, %arg2: i32, %arg3: memref<32x128xbf16, #tpu.memory_space<vmem>>, %arg4: memref<128x128xbf16, #tpu.memory_space<vmem>>, %arg5: memref<1x128xf32, #tpu.memory_space<vmem>>, %arg6: memref<32x128xf32, #tpu.memory_space<vmem>>, %arg7: memref<32x128xf32, #tpu.memory_space<vmem>>) attributes {dimension_semantics = [#tpu.dimension_semantics<parallel>, #tpu.dimension_semantics<parallel>, #tpu.dimension_semantics<arbitrary>], iteration_bounds = array<i64: 1, 1, 1>, scalar_prefetch = 0 : i64, scratch_operands = 1 : i64, tpu.core_type = #tpu.core_type<tc>, window_params = [{transform_indices = @transform_0, window_bounds = array<i64: 32, 128>}, {transform_indices = @transform_1, window_bounds = array<i64: 128, 128>}, {transform_indices = @transform_2, window_bounds = array<i64: 1, 128>}, {transform_indices = @transform_3, window_bounds = array<i64: 32, 128>}]} {
    %c0_i32 = arith.constant 0 : i32
    %0 = arith.cmpi eq, %arg2, %c0_i32 : i32
    %1 = arith.extui %0 : i1 to i32
    %c0_i32_0 = arith.constant 0 : i32
    %2 = arith.cmpi ne, %1, %c0_i32_0 : i32
    scf.if %2 {
      %cst_10 = arith.constant 0.000000e+00 : f32
      %12 = vector.broadcast %cst_10 : f32 to vector<32x128xf32>
      %c0_11 = arith.constant 0 : index
      %c0_12 = arith.constant 0 : index
      %13 = vector.load %arg7[%c0_11, %c0_12] : memref<32x128xf32, #tpu.memory_space<vmem>>, vector<32x128xf32>
      tpu.vector_store %arg7[%c0_11, %c0_12], %12 {strides = array<i32>} : memref<32x128xf32, #tpu.memory_space<vmem>>, vector<32x128xf32>,
    } else {
    }
    %c0 = arith.constant 0 : index
    %c0_1 = arith.constant 0 : index
    %3 = vector.load %arg7[%c0, %c0_1] : memref<32x128xf32, #tpu.memory_space<vmem>>, vector<32x128xf32>
    %c0_2 = arith.constant 0 : index
    %c0_3 = arith.constant 0 : index
    %4 = vector.load %arg3[%c0_2, %c0_3] : memref<32x128xbf16, #tpu.memory_space<vmem>>, vector<32x128xbf16>
    %c0_4 = arith.constant 0 : index
    %c0_5 = arith.constant 0 : index
    %5 = vector.load %arg4[%c0_4, %c0_5] : memref<128x128xbf16, #tpu.memory_space<vmem>>, vector<128x128xbf16>
    %cst = arith.constant dense<0.000000e+00> : vector<32x128xf32>
    %6 = tpu.matmul %4, %5, %cst {dimension_numbers = #tpu.dot_dimension_numbers<[1], [0], [0], [1], [0, 0, 1, 1], [], []>} : vector<32x128xbf16>, vector<128x128xbf16>, vector<32x128xf32> -> vector<32x128xf32>
    %7 = arith.addf %3, %6 : vector<32x128xf32>
    %c0_6 = arith.constant 0 : index
    %c0_7 = arith.constant 0 : index
    %8 = vector.load %arg7[%c0_6, %c0_7] : memref<32x128xf32, #tpu.memory_space<vmem>>, vector<32x128xf32>
    tpu.vector_store %arg7[%c0_6, %c0_7], %7 {strides = array<i32>} : memref<32x128xf32, #tpu.memory_space<vmem>>, vector<32x128xf32>,
    %c0_i32_8 = arith.constant 0 : i32
    %9 = arith.cmpi eq, %arg2, %c0_i32_8 : i32
    %10 = arith.extui %9 : i1 to i32
    %c0_i32_9 = arith.constant 0 : i32
    %11 = arith.cmpi ne, %10, %c0_i32_9 : i32
    scf.if %11 {
      %c0_10 = arith.constant 0 : index
      %c0_11 = arith.constant 0 : index
      %12 = vector.load %arg7[%c0_10, %c0_11] : memref<32x128xf32, #tpu.memory_space<vmem>>, vector<32x128xf32>
      %c0_12 = arith.constant 0 : index
      %c0_13 = arith.constant 0 : index
      %13 = vector.load %arg5[%c0_12, %c0_13] : memref<1x128xf32, #tpu.memory_space<vmem>>, vector<1x128xf32>
      %14 = vector.broadcast %13 : vector<1x128xf32> to vector<32x128xf32>
      %15 = arith.addf %12, %14 : vector<32x128xf32>
      %cst_14 = arith.constant 0.000000e+00 : f32
      %16 = vector.broadcast %cst_14 : f32 to vector<32x128xf32>
      %17 = arith.maximumf %15, %16 : vector<32x128xf32>
      %c0_15 = arith.constant 0 : index
      %c0_16 = arith.constant 0 : index
      %18 = vector.load %arg6[%c0_15, %c0_16] : memref<32x128xf32, #tpu.memory_space<vmem>>, vector<32x128xf32>
      tpu.vector_store %arg6[%c0_15, %c0_16], %17 {strides = array<i32>} : memref<32x128xf32, #tpu.memory_space<vmem>>, vector<32x128xf32>,
    } else {
    }
    return
  }
  func.func @transform_0(%arg0: i32, %arg1: i32, %arg2: i32) -> (i32, i32) {
    %c0_i32 = arith.constant 0 : i32
    return %arg0, %arg2 : i32, i32
  }
  func.func @transform_1(%arg0: i32, %arg1: i32, %arg2: i32) -> (i32, i32) {
    %c0_i32 = arith.constant 0 : i32
    return %arg2, %arg1 : i32, i32
  }
  func.func @transform_2(%arg0: i32, %arg1: i32, %arg2: i32) -> (i32, i32) {
    %c0_i32 = arith.constant 0 : i32
    %c0_i32_0 = arith.constant 0 : i32
    return %c0_i32, %arg1 : i32, i32
  }
  func.func @transform_3(%arg0: i32, %arg1: i32, %arg2: i32) -> (i32, i32) {
    %c0_i32 = arith.constant 0 : i32
    return %arg0, %arg1 : i32, i32
  }
}

module attributes {stable_mosaic.version = 11 : i64} {
  func.func @_matmul_kernel(%arg0: i32, %arg1: i32, %arg2: i32, %arg3: memref<32x256xbf16, #tpu.memory_space<vmem>>, %arg4: memref<256x128xbf16, #tpu.memory_space<vmem>>, %arg5: memref<1x128xf32, #tpu.memory_space<vmem>>, %arg6: memref<32x128xf32, #tpu.memory_space<vmem>>, %arg7: memref<32x128xf32, #tpu.memory_space<vmem>>) attributes {dimension_semantics = [#tpu.dimension_semantics<parallel>, #tpu.dimension_semantics<parallel>, #tpu.dimension_semantics<arbitrary>], iteration_bounds = array<i64: 1, 1, 1>, scalar_prefetch = 0 : i64, scratch_operands = 1 : i64, tpu.core_type = #tpu.core_type<tc>, window_params = [{transform_indices = @transform_0, window_bounds = array<i64: 32, 256>}, {transform_indices = @transform_1, window_bounds = array<i64: 256, 128>}, {transform_indices = @transform_2, window_bounds = array<i64: 1, 128>}, {transform_indices = @transform_3, window_bounds = array<i64: 32, 128>}]} {
    %c0_i32 = arith.constant 0 : i32
    %0 = arith.cmpi eq, %arg2, %c0_i32 : i32
    %1 = arith.extui %0 : i1 to i32
    %c0_i32_0 = arith.constant 0 : i32
    %2 = arith.cmpi ne, %1, %c0_i32_0 : i32
    scf.if %2 {
      %cst_10 = arith.constant 0.000000e+00 : f32
      %12 = vector.broadcast %cst_10 : f32 to vector<32x128xf32>
      %c0_11 = arith.constant 0 : index
      %c0_12 = arith.constant 0 : index
      %13 = vector.load %arg7[%c0_11, %c0_12] : memref<32x128xf32, #tpu.memory_space<vmem>>, vector<32x128xf32>
      tpu.vector_store %arg7[%c0_11, %c0_12], %12 {strides = array<i32>} : memref<32x128xf32, #tpu.memory_space<vmem>>, vector<32x128xf32>,
    } else {
    }
    %c0 = arith.constant 0 : index
    %c0_1 = arith.constant 0 : index
    %3 = vector.load %arg7[%c0, %c0_1] : memref<32x128xf32, #tpu.memory_space<vmem>>, vector<32x128xf32>
    %c0_2 = arith.constant 0 : index
    %c0_3 = arith.constant 0 : index
    %4 = vector.load %arg3[%c0_2, %c0_3] : memref<32x256xbf16, #tpu.memory_space<vmem>>, vector<32x256xbf16>
    %c0_4 = arith.constant 0 : index
    %c0_5 = arith.constant 0 : index
    %5 = vector.load %arg4[%c0_4, %c0_5] : memref<256x128xbf16, #tpu.memory_space<vmem>>, vector<256x128xbf16>
    %cst = arith.constant dense<0.000000e+00> : vector<32x128xf32>
    %6 = tpu.matmul %4, %5, %cst {dimension_numbers = #tpu.dot_dimension_numbers<[1], [0], [0], [1], [0, 0, 1, 1], [], []>} : vector<32x256xbf16>, vector<256x128xbf16>, vector<32x128xf32> -> vector<32x128xf32>
    %7 = arith.addf %3, %6 : vector<32x128xf32>
    %c0_6 = arith.constant 0 : index
    %c0_7 = arith.constant 0 : index
    %8 = vector.load %arg7[%c0_6, %c0_7] : memref<32x128xf32, #tpu.memory_space<vmem>>, vector<32x128xf32>
    tpu.vector_store %arg7[%c0_6, %c0_7], %7 {strides = array<i32>} : memref<32x128xf32, #tpu.memory_space<vmem>>, vector<32x128xf32>,
    %c0_i32_8 = arith.constant 0 : i32
    %9 = arith.cmpi eq, %arg2, %c0_i32_8 : i32
    %10 = arith.extui %9 : i1 to i32
    %c0_i32_9 = arith.constant 0 : i32
    %11 = arith.cmpi ne, %10, %c0_i32_9 : i32
    scf.if %11 {
      %c0_10 = arith.constant 0 : index
      %c0_11 = arith.constant 0 : index
      %12 = vector.load %arg7[%c0_10, %c0_11] : memref<32x128xf32, #tpu.memory_space<vmem>>, vector<32x128xf32>
      %c0_12 = arith.constant 0 : index
      %c0_13 = arith.constant 0 : index
      %13 = vector.load %arg5[%c0_12, %c0_13] : memref<1x128xf32, #tpu.memory_space<vmem>>, vector<1x128xf32>
      %14 = vector.broadcast %13 : vector<1x128xf32> to vector<32x128xf32>
      %15 = arith.addf %12, %14 : vector<32x128xf32>
      %cst_14 = arith.constant 0.000000e+00 : f32
      %16 = vector.broadcast %cst_14 : f32 to vector<32x128xf32>
      %17 = arith.maximumf %15, %16 : vector<32x128xf32>
      %c0_15 = arith.constant 0 : index
      %c0_16 = arith.constant 0 : index
      %18 = vector.load %arg6[%c0_15, %c0_16] : memref<32x128xf32, #tpu.memory_space<vmem>>, vector<32x128xf32>
      tpu.vector_store %arg6[%c0_15, %c0_16], %17 {strides = array<i32>} : memref<32x128xf32, #tpu.memory_space<vmem>>, vector<32x128xf32>,
    } else {
    }
    return
  }
  func.func @transform_0(%arg0: i32, %arg1: i32, %arg2: i32) -> (i32, i32) {
    %c0_i32 = arith.constant 0 : i32
    return %arg0, %arg2 : i32, i32
  }
  func.func @transform_1(%arg0: i32, %arg1: i32, %arg2: i32) -> (i32, i32) {
    %c0_i32 = arith.constant 0 : i32
    return %arg2, %arg1 : i32, i32
  }
  func.func @transform_2(%arg0: i32, %arg1: i32, %arg2: i32) -> (i32, i32) {
    %c0_i32 = arith.constant 0 : i32
    %c0_i32_0 = arith.constant 0 : i32
    return %c0_i32, %arg1 : i32, i32
  }
  func.func @transform_3(%arg0: i32, %arg1: i32, %arg2: i32) -> (i32, i32) {
    %c0_i32 = arith.constant 0 : i32
    return %arg0, %arg1 : i32, i32
  }
}

module attributes {stable_mosaic.version = 11 : i64} {
  func.func @_matmul_kernel(%arg0: i32, %arg1: i32, %arg2: i32, %arg3: memref<32x384xbf16, #tpu.memory_space<vmem>>, %arg4: memref<384x128xbf16, #tpu.memory_space<vmem>>, %arg5: memref<1x128xf32, #tpu.memory_space<vmem>>, %arg6: memref<32x128xf32, #tpu.memory_space<vmem>>, %arg7: memref<32x128xf32, #tpu.memory_space<vmem>>) attributes {dimension_semantics = [#tpu.dimension_semantics<parallel>, #tpu.dimension_semantics<parallel>, #tpu.dimension_semantics<arbitrary>], iteration_bounds = array<i64: 1, 1, 1>, scalar_prefetch = 0 : i64, scratch_operands = 1 : i64, tpu.core_type = #tpu.core_type<tc>, window_params = [{transform_indices = @transform_0, window_bounds = array<i64: 32, 384>}, {transform_indices = @transform_1, window_bounds = array<i64: 384, 128>}, {transform_indices = @transform_2, window_bounds = array<i64: 1, 128>}, {transform_indices = @transform_3, window_bounds = array<i64: 32, 128>}]} {
    %c0_i32 = arith.constant 0 : i32
    %0 = arith.cmpi eq, %arg2, %c0_i32 : i32
    %1 = arith.extui %0 : i1 to i32
    %c0_i32_0 = arith.constant 0 : i32
    %2 = arith.cmpi ne, %1, %c0_i32_0 : i32
    scf.if %2 {
      %cst_10 = arith.constant 0.000000e+00 : f32
      %12 = vector.broadcast %cst_10 : f32 to vector<32x128xf32>
      %c0_11 = arith.constant 0 : index
      %c0_12 = arith.constant 0 : index
      %13 = vector.load %arg7[%c0_11, %c0_12] : memref<32x128xf32, #tpu.memory_space<vmem>>, vector<32x128xf32>
      tpu.vector_store %arg7[%c0_11, %c0_12], %12 {strides = array<i32>} : memref<32x128xf32, #tpu.memory_space<vmem>>, vector<32x128xf32>,
    } else {
    }
    %c0 = arith.constant 0 : index
    %c0_1 = arith.constant 0 : index
    %3 = vector.load %arg7[%c0, %c0_1] : memref<32x128xf32, #tpu.memory_space<vmem>>, vector<32x128xf32>
    %c0_2 = arith.constant 0 : index
    %c0_3 = arith.constant 0 : index
    %4 = vector.load %arg3[%c0_2, %c0_3] : memref<32x384xbf16, #tpu.memory_space<vmem>>, vector<32x384xbf16>
    %c0_4 = arith.constant 0 : index
    %c0_5 = arith.constant 0 : index
    %5 = vector.load %arg4[%c0_4, %c0_5] : memref<384x128xbf16, #tpu.memory_space<vmem>>, vector<384x128xbf16>
    %cst = arith.constant dense<0.000000e+00> : vector<32x128xf32>
    %6 = tpu.matmul %4, %5, %cst {dimension_numbers = #tpu.dot_dimension_numbers<[1], [0], [0], [1], [0, 0, 1, 1], [], []>} : vector<32x384xbf16>, vector<384x128xbf16>, vector<32x128xf32> -> vector<32x128xf32>
    %7 = arith.addf %3, %6 : vector<32x128xf32>
    %c0_6 = arith.constant 0 : index
    %c0_7 = arith.constant 0 : index
    %8 = vector.load %arg7[%c0_6, %c0_7] : memref<32x128xf32, #tpu.memory_space<vmem>>, vector<32x128xf32>
    tpu.vector_store %arg7[%c0_6, %c0_7], %7 {strides = array<i32>} : memref<32x128xf32, #tpu.memory_space<vmem>>, vector<32x128xf32>,
    %c0_i32_8 = arith.constant 0 : i32
    %9 = arith.cmpi eq, %arg2, %c0_i32_8 : i32
    %10 = arith.extui %9 : i1 to i32
    %c0_i32_9 = arith.constant 0 : i32
    %11 = arith.cmpi ne, %10, %c0_i32_9 : i32
    scf.if %11 {
      %c0_10 = arith.constant 0 : index
      %c0_11 = arith.constant 0 : index
      %12 = vector.load %arg7[%c0_10, %c0_11] : memref<32x128xf32, #tpu.memory_space<vmem>>, vector<32x128xf32>
      %c0_12 = arith.constant 0 : index
      %c0_13 = arith.constant 0 : index
      %13 = vector.load %arg5[%c0_12, %c0_13] : memref<1x128xf32, #tpu.memory_space<vmem>>, vector<1x128xf32>
      %14 = vector.broadcast %13 : vector<1x128xf32> to vector<32x128xf32>
      %15 = arith.addf %12, %14 : vector<32x128xf32>
      %cst_14 = arith.constant 0.000000e+00 : f32
      %16 = vector.broadcast %cst_14 : f32 to vector<32x128xf32>
      %17 = arith.maximumf %15, %16 : vector<32x128xf32>
      %c0_15 = arith.constant 0 : index
      %c0_16 = arith.constant 0 : index
      %18 = vector.load %arg6[%c0_15, %c0_16] : memref<32x128xf32, #tpu.memory_space<vmem>>, vector<32x128xf32>
      tpu.vector_store %arg6[%c0_15, %c0_16], %17 {strides = array<i32>} : memref<32x128xf32, #tpu.memory_space<vmem>>, vector<32x128xf32>,
    } else {
    }
    return
  }
  func.func @transform_0(%arg0: i32, %arg1: i32, %arg2: i32) -> (i32, i32) {
    %c0_i32 = arith.constant 0 : i32
    return %arg0, %arg2 : i32, i32
  }
  func.func @transform_1(%arg0: i32, %arg1: i32, %arg2: i32) -> (i32, i32) {
    %c0_i32 = arith.constant 0 : i32
    return %arg2, %arg1 : i32, i32
  }
  func.func @transform_2(%arg0: i32, %arg1: i32, %arg2: i32) -> (i32, i32) {
    %c0_i32 = arith.constant 0 : i32
    %c0_i32_0 = arith.constant 0 : i32
    return %c0_i32, %arg1 : i32, i32
  }
  func.func @transform_3(%arg0: i32, %arg1: i32, %arg2: i32) -> (i32, i32) {
    %c0_i32 = arith.constant 0 : i32
    return %arg0, %arg1 : i32, i32
  }
}

module attributes {stable_mosaic.version = 11 : i64} {
  func.func @_matmul_kernel(%arg0: i32, %arg1: i32, %arg2: i32, %arg3: memref<128x128xbf16, #tpu.memory_space<vmem>>, %arg4: memref<128x128xbf16, #tpu.memory_space<vmem>>, %arg5: memref<1x128xf32, #tpu.memory_space<vmem>>, %arg6: memref<128x128xf32, #tpu.memory_space<vmem>>, %arg7: memref<128x128xf32, #tpu.memory_space<vmem>>) attributes {dimension_semantics = [#tpu.dimension_semantics<parallel>, #tpu.dimension_semantics<parallel>, #tpu.dimension_semantics<arbitrary>], iteration_bounds = array<i64: 1, 1, 1>, scalar_prefetch = 0 : i64, scratch_operands = 1 : i64, tpu.core_type = #tpu.core_type<tc>, window_params = [{transform_indices = @transform_0, window_bounds = array<i64: 128, 128>}, {transform_indices = @transform_1, window_bounds = array<i64: 128, 128>}, {transform_indices = @transform_2, window_bounds = array<i64: 1, 128>}, {transform_indices = @transform_3, window_bounds = array<i64: 128, 128>}]} {
    %c0_i32 = arith.constant 0 : i32
    %0 = arith.cmpi eq, %arg2, %c0_i32 : i32
    %1 = arith.extui %0 : i1 to i32
    %c0_i32_0 = arith.constant 0 : i32
    %2 = arith.cmpi ne, %1, %c0_i32_0 : i32
    scf.if %2 {
      %cst_10 = arith.constant 0.000000e+00 : f32
      %12 = vector.broadcast %cst_10 : f32 to vector<128x128xf32>
      %c0_11 = arith.constant 0 : index
      %c0_12 = arith.constant 0 : index
      %13 = vector.load %arg7[%c0_11, %c0_12] : memref<128x128xf32, #tpu.memory_space<vmem>>, vector<128x128xf32>
      tpu.vector_store %arg7[%c0_11, %c0_12], %12 {strides = array<i32>} : memref<128x128xf32, #tpu.memory_space<vmem>>, vector<128x128xf32>,
    } else {
    }
    %c0 = arith.constant 0 : index
    %c0_1 = arith.constant 0 : index
    %3 = vector.load %arg7[%c0, %c0_1] : memref<128x128xf32, #tpu.memory_space<vmem>>, vector<128x128xf32>
    %c0_2 = arith.constant 0 : index
    %c0_3 = arith.constant 0 : index
    %4 = vector.load %arg3[%c0_2, %c0_3] : memref<128x128xbf16, #tpu.memory_space<vmem>>, vector<128x128xbf16>
    %c0_4 = arith.constant 0 : index
    %c0_5 = arith.constant 0 : index
    %5 = vector.load %arg4[%c0_4, %c0_5] : memref<128x128xbf16, #tpu.memory_space<vmem>>, vector<128x128xbf16>
    %cst = arith.constant dense<0.000000e+00> : vector<128x128xf32>
    %6 = tpu.matmul %4, %5, %cst {dimension_numbers = #tpu.dot_dimension_numbers<[1], [0], [0], [1], [0, 0, 1, 1], [], []>} : vector<128x128xbf16>, vector<128x128xbf16>, vector<128x128xf32> -> vector<128x128xf32>
    %7 = arith.addf %3, %6 : vector<128x128xf32>
    %c0_6 = arith.constant 0 : index
    %c0_7 = arith.constant 0 : index
    %8 = vector.load %arg7[%c0_6, %c0_7] : memref<128x128xf32, #tpu.memory_space<vmem>>, vector<128x128xf32>
    tpu.vector_store %arg7[%c0_6, %c0_7], %7 {strides = array<i32>} : memref<128x128xf32, #tpu.memory_space<vmem>>, vector<128x128xf32>,
    %c0_i32_8 = arith.constant 0 : i32
    %9 = arith.cmpi eq, %arg2, %c0_i32_8 : i32
    %10 = arith.extui %9 : i1 to i32
    %c0_i32_9 = arith.constant 0 : i32
    %11 = arith.cmpi ne, %10, %c0_i32_9 : i32
    scf.if %11 {
      %c0_10 = arith.constant 0 : index
      %c0_11 = arith.constant 0 : index
      %12 = vector.load %arg7[%c0_10, %c0_11] : memref<128x128xf32, #tpu.memory_space<vmem>>, vector<128x128xf32>
      %c0_12 = arith.constant 0 : index
      %c0_13 = arith.constant 0 : index
      %13 = vector.load %arg5[%c0_12, %c0_13] : memref<1x128xf32, #tpu.memory_space<vmem>>, vector<1x128xf32>
      %14 = vector.broadcast %13 : vector<1x128xf32> to vector<128x128xf32>
      %15 = arith.addf %12, %14 : vector<128x128xf32>
      %cst_14 = arith.constant 0.000000e+00 : f32
      %16 = vector.broadcast %cst_14 : f32 to vector<128x128xf32>
      %17 = arith.maximumf %15, %16 : vector<128x128xf32>
      %c0_15 = arith.constant 0 : index
      %c0_16 = arith.constant 0 : index
      %18 = vector.load %arg6[%c0_15, %c0_16] : memref<128x128xf32, #tpu.memory_space<vmem>>, vector<128x128xf32>
      tpu.vector_store %arg6[%c0_15, %c0_16], %17 {strides = array<i32>} : memref<128x128xf32, #tpu.memory_space<vmem>>, vector<128x128xf32>,
    } else {
    }
    return
  }
  func.func @transform_0(%arg0: i32, %arg1: i32, %arg2: i32) -> (i32, i32) {
    %c0_i32 = arith.constant 0 : i32
    return %arg0, %arg2 : i32, i32
  }
  func.func @transform_1(%arg0: i32, %arg1: i32, %arg2: i32) -> (i32, i32) {
    %c0_i32 = arith.constant 0 : i32
    return %arg2, %arg1 : i32, i32
  }
  func.func @transform_2(%arg0: i32, %arg1: i32, %arg2: i32) -> (i32, i32) {
    %c0_i32 = arith.constant 0 : i32
    %c0_i32_0 = arith.constant 0 : i32
    return %c0_i32, %arg1 : i32, i32
  }
  func.func @transform_3(%arg0: i32, %arg1: i32, %arg2: i32) -> (i32, i32) {
    %c0_i32 = arith.constant 0 : i32
    return %arg0, %arg1 : i32, i32
  }
}

module attributes {stable_mosaic.version = 11 : i64} {
  func.func @_matmul_kernel(%arg0: i32, %arg1: i32, %arg2: i32, %arg3: memref<112x128xbf16, #tpu.memory_space<vmem>>, %arg4: memref<128x128xbf16, #tpu.memory_space<vmem>>, %arg5: memref<1x128xf32, #tpu.memory_space<vmem>>, %arg6: memref<112x128xf32, #tpu.memory_space<vmem>>, %arg7: memref<112x128xf32, #tpu.memory_space<vmem>>) attributes {dimension_semantics = [#tpu.dimension_semantics<parallel>, #tpu.dimension_semantics<parallel>, #tpu.dimension_semantics<arbitrary>], iteration_bounds = array<i64: 1, 1, 1>, scalar_prefetch = 0 : i64, scratch_operands = 1 : i64, tpu.core_type = #tpu.core_type<tc>, window_params = [{transform_indices = @transform_0, window_bounds = array<i64: 112, 128>}, {transform_indices = @transform_1, window_bounds = array<i64: 128, 128>}, {transform_indices = @transform_2, window_bounds = array<i64: 1, 128>}, {transform_indices = @transform_3, window_bounds = array<i64: 112, 128>}]} {
    %c0_i32 = arith.constant 0 : i32
    %0 = arith.cmpi eq, %arg2, %c0_i32 : i32
    %1 = arith.extui %0 : i1 to i32
    %c0_i32_0 = arith.constant 0 : i32
    %2 = arith.cmpi ne, %1, %c0_i32_0 : i32
    scf.if %2 {
      %cst_10 = arith.constant 0.000000e+00 : f32
      %12 = vector.broadcast %cst_10 : f32 to vector<112x128xf32>
      %c0_11 = arith.constant 0 : index
      %c0_12 = arith.constant 0 : index
      %13 = vector.load %arg7[%c0_11, %c0_12] : memref<112x128xf32, #tpu.memory_space<vmem>>, vector<112x128xf32>
      tpu.vector_store %arg7[%c0_11, %c0_12], %12 {strides = array<i32>} : memref<112x128xf32, #tpu.memory_space<vmem>>, vector<112x128xf32>,
    } else {
    }
    %c0 = arith.constant 0 : index
    %c0_1 = arith.constant 0 : index
    %3 = vector.load %arg7[%c0, %c0_1] : memref<112x128xf32, #tpu.memory_space<vmem>>, vector<112x128xf32>
    %c0_2 = arith.constant 0 : index
    %c0_3 = arith.constant 0 : index
    %4 = vector.load %arg3[%c0_2, %c0_3] : memref<112x128xbf16, #tpu.memory_space<vmem>>, vector<112x128xbf16>
    %c0_4 = arith.constant 0 : index
    %c0_5 = arith.constant 0 : index
    %5 = vector.load %arg4[%c0_4, %c0_5] : memref<128x128xbf16, #tpu.memory_space<vmem>>, vector<128x128xbf16>
    %cst = arith.constant dense<0.000000e+00> : vector<112x128xf32>
    %6 = tpu.matmul %4, %5, %cst {dimension_numbers = #tpu.dot_dimension_numbers<[1], [0], [0], [1], [0, 0, 1, 1], [], []>} : vector<112x128xbf16>, vector<128x128xbf16>, vector<112x128xf32> -> vector<112x128xf32>
    %7 = arith.addf %3, %6 : vector<112x128xf32>
    %c0_6 = arith.constant 0 : index
    %c0_7 = arith.constant 0 : index
    %8 = vector.load %arg7[%c0_6, %c0_7] : memref<112x128xf32, #tpu.memory_space<vmem>>, vector<112x128xf32>
    tpu.vector_store %arg7[%c0_6, %c0_7], %7 {strides = array<i32>} : memref<112x128xf32, #tpu.memory_space<vmem>>, vector<112x128xf32>,
    %c0_i32_8 = arith.constant 0 : i32
    %9 = arith.cmpi eq, %arg2, %c0_i32_8 : i32
    %10 = arith.extui %9 : i1 to i32
    %c0_i32_9 = arith.constant 0 : i32
    %11 = arith.cmpi ne, %10, %c0_i32_9 : i32
    scf.if %11 {
      %c0_10 = arith.constant 0 : index
      %c0_11 = arith.constant 0 : index
      %12 = vector.load %arg7[%c0_10, %c0_11] : memref<112x128xf32, #tpu.memory_space<vmem>>, vector<112x128xf32>
      %c0_12 = arith.constant 0 : index
      %c0_13 = arith.constant 0 : index
      %13 = vector.load %arg5[%c0_12, %c0_13] : memref<1x128xf32, #tpu.memory_space<vmem>>, vector<1x128xf32>
      %14 = vector.broadcast %13 : vector<1x128xf32> to vector<112x128xf32>
      %15 = arith.addf %12, %14 : vector<112x128xf32>
      %cst_14 = arith.constant 0.000000e+00 : f32
      %16 = vector.broadcast %cst_14 : f32 to vector<112x128xf32>
      %17 = arith.maximumf %15, %16 : vector<112x128xf32>
      %c0_15 = arith.constant 0 : index
      %c0_16 = arith.constant 0 : index
      %18 = vector.load %arg6[%c0_15, %c0_16] : memref<112x128xf32, #tpu.memory_space<vmem>>, vector<112x128xf32>
      tpu.vector_store %arg6[%c0_15, %c0_16], %17 {strides = array<i32>} : memref<112x128xf32, #tpu.memory_space<vmem>>, vector<112x128xf32>,
    } else {
    }
    return
  }
  func.func @transform_0(%arg0: i32, %arg1: i32, %arg2: i32) -> (i32, i32) {
    %c0_i32 = arith.constant 0 : i32
    return %arg0, %arg2 : i32, i32
  }
  func.func @transform_1(%arg0: i32, %arg1: i32, %arg2: i32) -> (i32, i32) {
    %c0_i32 = arith.constant 0 : i32
    return %arg2, %arg1 : i32, i32
  }
  func.func @transform_2(%arg0: i32, %arg1: i32, %arg2: i32) -> (i32, i32) {
    %c0_i32 = arith.constant 0 : i32
    %c0_i32_0 = arith.constant 0 : i32
    return %c0_i32, %arg1 : i32, i32
  }
  func.func @transform_3(%arg0: i32, %arg1: i32, %arg2: i32) -> (i32, i32) {
    %c0_i32 = arith.constant 0 : i32
    return %arg0, %arg1 : i32, i32
  }
}

module attributes {stable_mosaic.version = 11 : i64} {
  func.func @_matmul_kernel(%arg0: i32, %arg1: i32, %arg2: i32, %arg3: memref<112x256xbf16, #tpu.memory_space<vmem>>, %arg4: memref<256x128xbf16, #tpu.memory_space<vmem>>, %arg5: memref<1x128xf32, #tpu.memory_space<vmem>>, %arg6: memref<112x128xf32, #tpu.memory_space<vmem>>, %arg7: memref<112x128xf32, #tpu.memory_space<vmem>>) attributes {dimension_semantics = [#tpu.dimension_semantics<parallel>, #tpu.dimension_semantics<parallel>, #tpu.dimension_semantics<arbitrary>], iteration_bounds = array<i64: 1, 1, 1>, scalar_prefetch = 0 : i64, scratch_operands = 1 : i64, tpu.core_type = #tpu.core_type<tc>, window_params = [{transform_indices = @transform_0, window_bounds = array<i64: 112, 256>}, {transform_indices = @transform_1, window_bounds = array<i64: 256, 128>}, {transform_indices = @transform_2, window_bounds = array<i64: 1, 128>}, {transform_indices = @transform_3, window_bounds = array<i64: 112, 128>}]} {
    %c0_i32 = arith.constant 0 : i32
    %0 = arith.cmpi eq, %arg2, %c0_i32 : i32
    %1 = arith.extui %0 : i1 to i32
    %c0_i32_0 = arith.constant 0 : i32
    %2 = arith.cmpi ne, %1, %c0_i32_0 : i32
    scf.if %2 {
      %cst_10 = arith.constant 0.000000e+00 : f32
      %12 = vector.broadcast %cst_10 : f32 to vector<112x128xf32>
      %c0_11 = arith.constant 0 : index
      %c0_12 = arith.constant 0 : index
      %13 = vector.load %arg7[%c0_11, %c0_12] : memref<112x128xf32, #tpu.memory_space<vmem>>, vector<112x128xf32>
      tpu.vector_store %arg7[%c0_11, %c0_12], %12 {strides = array<i32>} : memref<112x128xf32, #tpu.memory_space<vmem>>, vector<112x128xf32>,
    } else {
    }
    %c0 = arith.constant 0 : index
    %c0_1 = arith.constant 0 : index
    %3 = vector.load %arg7[%c0, %c0_1] : memref<112x128xf32, #tpu.memory_space<vmem>>, vector<112x128xf32>
    %c0_2 = arith.constant 0 : index
    %c0_3 = arith.constant 0 : index
    %4 = vector.load %arg3[%c0_2, %c0_3] : memref<112x256xbf16, #tpu.memory_space<vmem>>, vector<112x256xbf16>
    %c0_4 = arith.constant 0 : index
    %c0_5 = arith.constant 0 : index
    %5 = vector.load %arg4[%c0_4, %c0_5] : memref<256x128xbf16, #tpu.memory_space<vmem>>, vector<256x128xbf16>
    %cst = arith.constant dense<0.000000e+00> : vector<112x128xf32>
    %6 = tpu.matmul %4, %5, %cst {dimension_numbers = #tpu.dot_dimension_numbers<[1], [0], [0], [1], [0, 0, 1, 1], [], []>} : vector<112x256xbf16>, vector<256x128xbf16>, vector<112x128xf32> -> vector<112x128xf32>
    %7 = arith.addf %3, %6 : vector<112x128xf32>
    %c0_6 = arith.constant 0 : index
    %c0_7 = arith.constant 0 : index
    %8 = vector.load %arg7[%c0_6, %c0_7] : memref<112x128xf32, #tpu.memory_space<vmem>>, vector<112x128xf32>
    tpu.vector_store %arg7[%c0_6, %c0_7], %7 {strides = array<i32>} : memref<112x128xf32, #tpu.memory_space<vmem>>, vector<112x128xf32>,
    %c0_i32_8 = arith.constant 0 : i32
    %9 = arith.cmpi eq, %arg2, %c0_i32_8 : i32
    %10 = arith.extui %9 : i1 to i32
    %c0_i32_9 = arith.constant 0 : i32
    %11 = arith.cmpi ne, %10, %c0_i32_9 : i32
    scf.if %11 {
      %c0_10 = arith.constant 0 : index
      %c0_11 = arith.constant 0 : index
      %12 = vector.load %arg7[%c0_10, %c0_11] : memref<112x128xf32, #tpu.memory_space<vmem>>, vector<112x128xf32>
      %c0_12 = arith.constant 0 : index
      %c0_13 = arith.constant 0 : index
      %13 = vector.load %arg5[%c0_12, %c0_13] : memref<1x128xf32, #tpu.memory_space<vmem>>, vector<1x128xf32>
      %14 = vector.broadcast %13 : vector<1x128xf32> to vector<112x128xf32>
      %15 = arith.addf %12, %14 : vector<112x128xf32>
      %cst_14 = arith.constant 0.000000e+00 : f32
      %16 = vector.broadcast %cst_14 : f32 to vector<112x128xf32>
      %17 = arith.maximumf %15, %16 : vector<112x128xf32>
      %c0_15 = arith.constant 0 : index
      %c0_16 = arith.constant 0 : index
      %18 = vector.load %arg6[%c0_15, %c0_16] : memref<112x128xf32, #tpu.memory_space<vmem>>, vector<112x128xf32>
      tpu.vector_store %arg6[%c0_15, %c0_16], %17 {strides = array<i32>} : memref<112x128xf32, #tpu.memory_space<vmem>>, vector<112x128xf32>,
    } else {
    }
    return
  }
  func.func @transform_0(%arg0: i32, %arg1: i32, %arg2: i32) -> (i32, i32) {
    %c0_i32 = arith.constant 0 : i32
    return %arg0, %arg2 : i32, i32
  }
  func.func @transform_1(%arg0: i32, %arg1: i32, %arg2: i32) -> (i32, i32) {
    %c0_i32 = arith.constant 0 : i32
    return %arg2, %arg1 : i32, i32
  }
  func.func @transform_2(%arg0: i32, %arg1: i32, %arg2: i32) -> (i32, i32) {
    %c0_i32 = arith.constant 0 : i32
    %c0_i32_0 = arith.constant 0 : i32
    return %c0_i32, %arg1 : i32, i32
  }
  func.func @transform_3(%arg0: i32, %arg1: i32, %arg2: i32) -> (i32, i32) {
    %c0_i32 = arith.constant 0 : i32
    return %arg0, %arg1 : i32, i32
  }
}

module attributes {stable_mosaic.version = 11 : i64} {
  func.func @_matmul_kernel(%arg0: i32, %arg1: i32, %arg2: i32, %arg3: memref<256x128xbf16, #tpu.memory_space<vmem>>, %arg4: memref<128x128xbf16, #tpu.memory_space<vmem>>, %arg5: memref<1x128xf32, #tpu.memory_space<vmem>>, %arg6: memref<256x128xf32, #tpu.memory_space<vmem>>, %arg7: memref<256x128xf32, #tpu.memory_space<vmem>>) attributes {dimension_semantics = [#tpu.dimension_semantics<parallel>, #tpu.dimension_semantics<parallel>, #tpu.dimension_semantics<arbitrary>], iteration_bounds = array<i64: 2, 1, 1>, scalar_prefetch = 0 : i64, scratch_operands = 1 : i64, tpu.core_type = #tpu.core_type<tc>, window_params = [{transform_indices = @transform_0, window_bounds = array<i64: 256, 128>}, {transform_indices = @transform_1, window_bounds = array<i64: 128, 128>}, {transform_indices = @transform_2, window_bounds = array<i64: 1, 128>}, {transform_indices = @transform_3, window_bounds = array<i64: 256, 128>}]} {
    %c0_i32 = arith.constant 0 : i32
    %0 = arith.cmpi eq, %arg2, %c0_i32 : i32
    %1 = arith.extui %0 : i1 to i32
    %c0_i32_0 = arith.constant 0 : i32
    %2 = arith.cmpi ne, %1, %c0_i32_0 : i32
    scf.if %2 {
      %cst_10 = arith.constant 0.000000e+00 : f32
      %12 = vector.broadcast %cst_10 : f32 to vector<256x128xf32>
      %c0_11 = arith.constant 0 : index
      %c0_12 = arith.constant 0 : index
      %13 = vector.load %arg7[%c0_11, %c0_12] : memref<256x128xf32, #tpu.memory_space<vmem>>, vector<256x128xf32>
      tpu.vector_store %arg7[%c0_11, %c0_12], %12 {strides = array<i32>} : memref<256x128xf32, #tpu.memory_space<vmem>>, vector<256x128xf32>,
    } else {
    }
    %c0 = arith.constant 0 : index
    %c0_1 = arith.constant 0 : index
    %3 = vector.load %arg7[%c0, %c0_1] : memref<256x128xf32, #tpu.memory_space<vmem>>, vector<256x128xf32>
    %c0_2 = arith.constant 0 : index
    %c0_3 = arith.constant 0 : index
    %4 = vector.load %arg3[%c0_2, %c0_3] : memref<256x128xbf16, #tpu.memory_space<vmem>>, vector<256x128xbf16>
    %c0_4 = arith.constant 0 : index
    %c0_5 = arith.constant 0 : index
    %5 = vector.load %arg4[%c0_4, %c0_5] : memref<128x128xbf16, #tpu.memory_space<vmem>>, vector<128x128xbf16>
    %cst = arith.constant dense<0.000000e+00> : vector<256x128xf32>
    %6 = tpu.matmul %4, %5, %cst {dimension_numbers = #tpu.dot_dimension_numbers<[1], [0], [0], [1], [0, 0, 1, 1], [], []>} : vector<256x128xbf16>, vector<128x128xbf16>, vector<256x128xf32> -> vector<256x128xf32>
    %7 = arith.addf %3, %6 : vector<256x128xf32>
    %c0_6 = arith.constant 0 : index
    %c0_7 = arith.constant 0 : index
    %8 = vector.load %arg7[%c0_6, %c0_7] : memref<256x128xf32, #tpu.memory_space<vmem>>, vector<256x128xf32>
    tpu.vector_store %arg7[%c0_6, %c0_7], %7 {strides = array<i32>} : memref<256x128xf32, #tpu.memory_space<vmem>>, vector<256x128xf32>,
    %c0_i32_8 = arith.constant 0 : i32
    %9 = arith.cmpi eq, %arg2, %c0_i32_8 : i32
    %10 = arith.extui %9 : i1 to i32
    %c0_i32_9 = arith.constant 0 : i32
    %11 = arith.cmpi ne, %10, %c0_i32_9 : i32
    scf.if %11 {
      %c0_10 = arith.constant 0 : index
      %c0_11 = arith.constant 0 : index
      %12 = vector.load %arg7[%c0_10, %c0_11] : memref<256x128xf32, #tpu.memory_space<vmem>>, vector<256x128xf32>
      %c0_12 = arith.constant 0 : index
      %c0_13 = arith.constant 0 : index
      %13 = vector.load %arg5[%c0_12, %c0_13] : memref<1x128xf32, #tpu.memory_space<vmem>>, vector<1x128xf32>
      %14 = vector.broadcast %13 : vector<1x128xf32> to vector<256x128xf32>
      %15 = arith.addf %12, %14 : vector<256x128xf32>
      %cst_14 = arith.constant 0.000000e+00 : f32
      %16 = vector.broadcast %cst_14 : f32 to vector<256x128xf32>
      %17 = arith.maximumf %15, %16 : vector<256x128xf32>
      %c0_15 = arith.constant 0 : index
      %c0_16 = arith.constant 0 : index
      %18 = vector.load %arg6[%c0_15, %c0_16] : memref<256x128xf32, #tpu.memory_space<vmem>>, vector<256x128xf32>
      tpu.vector_store %arg6[%c0_15, %c0_16], %17 {strides = array<i32>} : memref<256x128xf32, #tpu.memory_space<vmem>>, vector<256x128xf32>,
    } else {
    }
    return
  }
  func.func @transform_0(%arg0: i32, %arg1: i32, %arg2: i32) -> (i32, i32) {
    %c0_i32 = arith.constant 0 : i32
    return %arg0, %arg2 : i32, i32
  }
  func.func @transform_1(%arg0: i32, %arg1: i32, %arg2: i32) -> (i32, i32) {
    %c0_i32 = arith.constant 0 : i32
    return %arg2, %arg1 : i32, i32
  }
  func.func @transform_2(%arg0: i32, %arg1: i32, %arg2: i32) -> (i32, i32) {
    %c0_i32 = arith.constant 0 : i32
    %c0_i32_0 = arith.constant 0 : i32
    return %c0_i32, %arg1 : i32, i32
  }
  func.func @transform_3(%arg0: i32, %arg1: i32, %arg2: i32) -> (i32, i32) {
    %c0_i32 = arith.constant 0 : i32
    return %arg0, %arg1 : i32, i32
  }
}

module attributes {stable_mosaic.version = 11 : i64} {
  func.func @_matmul_kernel(%arg0: i32, %arg1: i32, %arg2: i32, %arg3: memref<256x384xbf16, #tpu.memory_space<vmem>>, %arg4: memref<384x128xbf16, #tpu.memory_space<vmem>>, %arg5: memref<1x128xf32, #tpu.memory_space<vmem>>, %arg6: memref<256x128xf32, #tpu.memory_space<vmem>>, %arg7: memref<256x128xf32, #tpu.memory_space<vmem>>) attributes {dimension_semantics = [#tpu.dimension_semantics<parallel>, #tpu.dimension_semantics<parallel>, #tpu.dimension_semantics<arbitrary>], iteration_bounds = array<i64: 8, 1, 1>, scalar_prefetch = 0 : i64, scratch_operands = 1 : i64, tpu.core_type = #tpu.core_type<tc>, window_params = [{transform_indices = @transform_0, window_bounds = array<i64: 256, 384>}, {transform_indices = @transform_1, window_bounds = array<i64: 384, 128>}, {transform_indices = @transform_2, window_bounds = array<i64: 1, 128>}, {transform_indices = @transform_3, window_bounds = array<i64: 256, 128>}]} {
    %c0_i32 = arith.constant 0 : i32
    %0 = arith.cmpi eq, %arg2, %c0_i32 : i32
    %1 = arith.extui %0 : i1 to i32
    %c0_i32_0 = arith.constant 0 : i32
    %2 = arith.cmpi ne, %1, %c0_i32_0 : i32
    scf.if %2 {
      %cst_10 = arith.constant 0.000000e+00 : f32
      %12 = vector.broadcast %cst_10 : f32 to vector<256x128xf32>
      %c0_11 = arith.constant 0 : index
      %c0_12 = arith.constant 0 : index
      %13 = vector.load %arg7[%c0_11, %c0_12] : memref<256x128xf32, #tpu.memory_space<vmem>>, vector<256x128xf32>
      tpu.vector_store %arg7[%c0_11, %c0_12], %12 {strides = array<i32>} : memref<256x128xf32, #tpu.memory_space<vmem>>, vector<256x128xf32>,
    } else {
    }
    %c0 = arith.constant 0 : index
    %c0_1 = arith.constant 0 : index
    %3 = vector.load %arg7[%c0, %c0_1] : memref<256x128xf32, #tpu.memory_space<vmem>>, vector<256x128xf32>
    %c0_2 = arith.constant 0 : index
    %c0_3 = arith.constant 0 : index
    %4 = vector.load %arg3[%c0_2, %c0_3] : memref<256x384xbf16, #tpu.memory_space<vmem>>, vector<256x384xbf16>
    %c0_4 = arith.constant 0 : index
    %c0_5 = arith.constant 0 : index
    %5 = vector.load %arg4[%c0_4, %c0_5] : memref<384x128xbf16, #tpu.memory_space<vmem>>, vector<384x128xbf16>
    %cst = arith.constant dense<0.000000e+00> : vector<256x128xf32>
    %6 = tpu.matmul %4, %5, %cst {dimension_numbers = #tpu.dot_dimension_numbers<[1], [0], [0], [1], [0, 0, 1, 1], [], []>} : vector<256x384xbf16>, vector<384x128xbf16>, vector<256x128xf32> -> vector<256x128xf32>
    %7 = arith.addf %3, %6 : vector<256x128xf32>
    %c0_6 = arith.constant 0 : index
    %c0_7 = arith.constant 0 : index
    %8 = vector.load %arg7[%c0_6, %c0_7] : memref<256x128xf32, #tpu.memory_space<vmem>>, vector<256x128xf32>
    tpu.vector_store %arg7[%c0_6, %c0_7], %7 {strides = array<i32>} : memref<256x128xf32, #tpu.memory_space<vmem>>, vector<256x128xf32>,
    %c0_i32_8 = arith.constant 0 : i32
    %9 = arith.cmpi eq, %arg2, %c0_i32_8 : i32
    %10 = arith.extui %9 : i1 to i32
    %c0_i32_9 = arith.constant 0 : i32
    %11 = arith.cmpi ne, %10, %c0_i32_9 : i32
    scf.if %11 {
      %c0_10 = arith.constant 0 : index
      %c0_11 = arith.constant 0 : index
      %12 = vector.load %arg7[%c0_10, %c0_11] : memref<256x128xf32, #tpu.memory_space<vmem>>, vector<256x128xf32>
      %c0_12 = arith.constant 0 : index
      %c0_13 = arith.constant 0 : index
      %13 = vector.load %arg5[%c0_12, %c0_13] : memref<1x128xf32, #tpu.memory_space<vmem>>, vector<1x128xf32>
      %14 = vector.broadcast %13 : vector<1x128xf32> to vector<256x128xf32>
      %15 = arith.addf %12, %14 : vector<256x128xf32>
      %16 = arith.negf %15 : vector<256x128xf32>
      %17 = math.exp %16 : vector<256x128xf32>
      %cst_14 = arith.constant 1.000000e+00 : f32
      %18 = vector.broadcast %cst_14 : f32 to vector<256x128xf32>
      %19 = arith.addf %18, %17 : vector<256x128xf32>
      %20 = arith.divf %18, %19 : vector<256x128xf32>
      %c0_15 = arith.constant 0 : index
      %c0_16 = arith.constant 0 : index
      %21 = vector.load %arg6[%c0_15, %c0_16] : memref<256x128xf32, #tpu.memory_space<vmem>>, vector<256x128xf32>
      tpu.vector_store %arg6[%c0_15, %c0_16], %20 {strides = array<i32>} : memref<256x128xf32, #tpu.memory_space<vmem>>, vector<256x128xf32>,
    } else {
    }
    return
  }
  func.func @transform_0(%arg0: i32, %arg1: i32, %arg2: i32) -> (i32, i32) {
    %c0_i32 = arith.constant 0 : i32
    return %arg0, %arg2 : i32, i32
  }
  func.func @transform_1(%arg0: i32, %arg1: i32, %arg2: i32) -> (i32, i32) {
    %c0_i32 = arith.constant 0 : i32
    return %arg2, %arg1 : i32, i32
  }
  func.func @transform_2(%arg0: i32, %arg1: i32, %arg2: i32) -> (i32, i32) {
    %c0_i32 = arith.constant 0 : i32
    %c0_i32_0 = arith.constant 0 : i32
    return %c0_i32, %arg1 : i32, i32
  }
  func.func @transform_3(%arg0: i32, %arg1: i32, %arg2: i32) -> (i32, i32) {
    %c0_i32 = arith.constant 0 : i32
    return %arg0, %arg1 : i32, i32
  }
}

</mosaic_0001>

<llo_original>
// kernel: svae_conv_forward.20
$region0: #{svae_conv_forward.20}
  #allocation0 [shape = 'u32[]', space=smem, size = 0x4, offset = 0x4, fixed_abs, tag = 'smem constant byte address 0x4 - core index']
  #allocation1 [shape = 'u32[144,128]{1,0:T(1,128)}', space=vmem, size = 0x12000, scoped, tag = 'internal scratch']
  #allocation2 [shape = 'f32[16,256]{1,0:T(8,128)}', space=vmem, size = 0x4000, scoped, tag = 'scratch operand']
  %s0 = inlined_call_operand.vmem [shape: bf16[16,3072], index: 0, kind: input, shape index: {}]
  %s1 = inlined_call_operand.vmem [shape: bf16[3072,1024], index: 1, kind: input, shape index: {}]
  %s2 = inlined_call_operand.vmem [shape: f32[1,1024], index: 2, kind: input, shape index: {}]
  %s3 = inlined_call_operand.vmem [shape: f32[16,1024], index: 3, kind: output, shape index: {}]
  %s4 = sld [smem:[#allocation0]]
  $region133: #{svae_conv_forward.20} parent=0
    _
  %s6 = ssub.s32 1, %s4
  %s7 = scalar_select 0, %s6, %s4
  $region1: #{svae_conv_forward.20} parent=0
    #allocation3 [shape = 'u8[32768]{0}', space=vmem, size = 0x8000, scoped, tag = 'input window, operand 0']
    #allocation4 [shape = 'u8[524288]{0}', space=vmem, size = 0x80000, scoped, tag = 'input window, operand 1']
    #allocation5 [shape = 'u8[32768]{0}', space=vmem, size = 0x8000, scoped, tag = 'output window, operand 0']
    loop: start=0, step=1, limit=26
    $region2: #{svae_conv_forward.20} parent=1 // loop_pre_header
      _
    $region3: #{svae_conv_forward.20} parent=1 // loop_header
      %s9 = sphi 0, %s13
      %p10 = scmp.ge.s32.totalorder %s9, 26
      %s16 = sphi 0, %s35
      %s17 = sphi 0, %s31
      %s18 = sphi 0, %s27
      %s19 = sphi 0, %s16
      %s20 = sphi 0, %s17
      %s21 = sphi 0, %s18
      %s22 = sphi 0, %s19
      %s23 = sphi 0, %s20
      %s24 = sphi 0, %s21
      %s40 = sphi 0, %s42
      %s43 = sphi 0, %s40
      %s44 = sphi 0, %s43
      %s60 = sphi 0, %s44
      %s68 = sphi 0, %s70
      %s71 = sphi 0, %s68
      %s72 = sphi 0, %s71
      %s88 = sphi 0, %s72
      %s94 = sphi 0, %s96
      %s97 = sphi 0, %s94
      %s98 = sphi 0, %s97
      %s114 = sphi 0, %s98
      %s122 = sphi 0, %s124
      %s125 = sphi 0, %s122
      %s126 = sphi 0, %s125
      %s142 = sphi 0, %s126
    $region4: #{svae_conv_forward.20} parent=1 // loop_header_branch
      %12 = sbr.rel (%p10) target = $region8
    $region5: #{svae_conv_forward.20} parent=1 // loop_body
      %s14 = ssub.s32 %s9, 1
      %s15 = ssub.s32 %s9, 2
      %s25 = sadd.s32 1, %s18
      %p26 = scmp.ge.s32.totalorder %s25, 6
      %s27 = scalar_select %p26, 0, %s25
      %s28 = sadd.s32 1, %s17
      %s29 = scalar_select %p26, %s28, %s17
      %p30 = scmp.ge.s32.totalorder %s29, 4
      %s31 = scalar_select %p30, 0, %s29
      %s32 = sadd.s32 1, %s16
      %s33 = scalar_select %p30, %s32, %s16
      %p34 = scmp.ge.s32.totalorder %s33, 1
      %s35 = scalar_select %p34, 0, %s33
      %s36 = ssub.s32 %s16, %s35
      %s37 = ssub.s32 %s18, %s27
      %s38 = sor.u32 %s36, %s37
      %p39 = scmp.eq.s32.totalorder %s38, 0
      %s41 = sadd.s32 %s40, 1
      %s42 = scalar_select %p39, %s40, %s41
      %p45 = pneg %p39
      %p46 = scmp.eq.s32.totalorder %s9, 23
      %p47 = por %p45, %p46
      %p48 = scmp.ne.s32.totalorder %s40, %s43
      %p49 = scmp.eq.s32.totalorder %s9, 0
      %p50 = por %p48, %p49
      %p51 = scmp.ne.s32.totalorder %s40, %s43
      %p52 = scmp.eq.s32.totalorder %s14, 23
      %p53 = por %p51, %p52
      %p54 = scmp.ne.s32.totalorder %s43, %s44
      %p55 = scmp.eq.s32.totalorder %s14, 0
      %p56 = por %p54, %p55
      %p57 = scmp.ne.s32.totalorder %s43, %s44
      %p58 = scmp.eq.s32.totalorder %s15, 23
      %p59 = por %p57, %p58
      %p61 = scmp.ne.s32.totalorder %s44, %s60
      %p62 = scmp.eq.s32.totalorder %s15, 0
      %p63 = por %p61, %p62
      %s64 = ssub.s32 %s18, %s27
      %s65 = ssub.s32 %s17, %s31
      %s66 = sor.u32 %s64, %s65
      %p67 = scmp.eq.s32.totalorder %s66, 0
      %s69 = sadd.s32 %s68, 1
      %s70 = scalar_select %p67, %s68, %s69
      %p73 = pneg %p67
      %p74 = scmp.eq.s32.totalorder %s9, 23
      %p75 = por %p73, %p74
      %p76 = scmp.ne.s32.totalorder %s68, %s71
      %p77 = scmp.eq.s32.totalorder %s9, 0
      %p78 = por %p76, %p77
      %p79 = scmp.ne.s32.totalorder %s68, %s71
      %p80 = scmp.eq.s32.totalorder %s14, 23
      %p81 = por %p79, %p80
      %p82 = scmp.ne.s32.totalorder %s71, %s72
      %p83 = scmp.eq.s32.totalorder %s14, 0
      %p84 = por %p82, %p83
      %p85 = scmp.ne.s32.totalorder %s71, %s72
      %p86 = scmp.eq.s32.totalorder %s15, 23
      %p87 = por %p85, %p86
      %p89 = scmp.ne.s32.totalorder %s72, %s88
      %p90 = scmp.eq.s32.totalorder %s15, 0
      %p91 = por %p89, %p90
      %s92 = ssub.s32 %s17, %s31
      %p93 = scmp.eq.s32.totalorder %s92, 0
      %s95 = sadd.s32 %s94, 1
      %s96 = scalar_select %p93, %s94, %s95
      %p99 = pneg %p93
      %p100 = scmp.eq.s32.totalorder %s9, 23
      %p101 = por %p99, %p100
      %p102 = scmp.ne.s32.totalorder %s94, %s97
      %p103 = scmp.eq.s32.totalorder %s9, 0
      %p104 = por %p102, %p103
      %p105 = scmp.ne.s32.totalorder %s94, %s97
      %p106 = scmp.eq.s32.totalorder %s14, 23
      %p107 = por %p105, %p106
      %p108 = scmp.ne.s32.totalorder %s97, %s98
      %p109 = scmp.eq.s32.totalorder %s14, 0
      %p110 = por %p108, %p109
      %p111 = scmp.ne.s32.totalorder %s97, %s98
      %p112 = scmp.eq.s32.totalorder %s15, 23
      %p113 = por %p111, %p112
      %p115 = scmp.ne.s32.totalorder %s98, %s114
      %p116 = scmp.eq.s32.totalorder %s15, 0
      %p117 = por %p115, %p116
      %s118 = ssub.s32 %s16, %s35
      %s119 = ssub.s32 %s17, %s31
      %s120 = sor.u32 %s118, %s119
      %p121 = scmp.eq.s32.totalorder %s120, 0
      %s123 = sadd.s32 %s122, 1
      %s124 = scalar_select %p121, %s122, %s123
      %p127 = pneg %p121
      %p128 = scmp.eq.s32.totalorder %s9, 23
      %p129 = por %p127, %p128
      %p130 = scmp.ne.s32.totalorder %s122, %s125
      %p131 = scmp.eq.s32.totalorder %s9, 0
      %p132 = por %p130, %p131
      %p133 = scmp.ne.s32.totalorder %s122, %s125
      %p134 = scmp.eq.s32.totalorder %s14, 23
      %p135 = por %p133, %p134
      %p136 = scmp.ne.s32.totalorder %s125, %s126
      %p137 = scmp.eq.s32.totalorder %s14, 0
      %p138 = por %p136, %p137
      %p139 = scmp.ne.s32.totalorder %s125, %s126
      %p140 = scmp.eq.s32.totalorder %s15, 23
      %p141 = por %p139, %p140
      %p143 = scmp.ne.s32.totalorder %s126, %s142
      %p144 = scmp.eq.s32.totalorder %s15, 0
      %p145 = por %p143, %p144
      %p146 = scmp.le.s32.totalorder 1, %s9
      %p147 = scmp.lt.s32.totalorder %s9, 25
      %p148 = pnand %p146, %p147
      %p149 = pneg %p148
      // Predicated region
      $region9: #{svae_conv_forward.20} parent=5 // pred_check
        _
      $region10: #{svae_conv_forward.20} parent=5 // pred_check_branch
        %151 = sbr.rel (%p148) target = $region12
      $region11: #{svae_conv_forward.20} parent=5 // pred_region
        %s152 = ssub.s32 %s9, 1
      $region12: #{svae_conv_forward.20} parent=5 // pred_fallthru
        _
      %p153 = scmp.lt.s32.totalorder %s9, 24
      // Predicated region
      $region13: #{svae_conv_forward.20} parent=5 // pred_check
        %p154 = pneg %p153
      $region14: #{svae_conv_forward.20} parent=5 // pred_check_branch
        %156 = sbr.rel (%p154) target = $region16
      $region15: #{svae_conv_forward.20} parent=5 // pred_region
        // Predicated region
        $region17: #{svae_conv_forward.20} parent=15 // pred_check
          %p157 = pneg %p50
        $region18: #{svae_conv_forward.20} parent=15 // pred_check_branch
          %159 = sbr.rel (%p157) target = $region20
        $region19: #{svae_conv_forward.20} parent=15 // pred_region
          %s160 = sand.u32 %s40, 1
          %s161 = sand.u32 %s40, 1
          %s162 = smul.addr %s161, 32
          %s163 = scalar_lea.vmem [#allocation3], %s162
          %s164 = smul.u32 2, %s16
          %s165 = smul.u32 4, %s18
          %s166 = smul.addr %s164, 24
          %s167 = sadd.s32 %s165, %s166
          %s168 = smul.addr %s167, 4
          %s169 = scalar_lea.vmem %s0, %s168
          // Predicated region
          $region21: #{svae_conv_forward.20} parent=19 // pred_check
            _
          $region22: #{svae_conv_forward.20} parent=19 // pred_check_branch
            %171 = sbr.rel (0) target = $region24
          $region23: #{svae_conv_forward.20} parent=19 // pred_region
            // Predicated region
            $region25: #{svae_conv_forward.20} parent=23 // pred_check
              _
            $region26: #{svae_conv_forward.20} parent=23 // pred_check_branch
              %173 = sbr.rel (0) target = $region28
            $region27: #{svae_conv_forward.20} parent=23 // pred_region
              loop: start=0, step=1, limit=1
              $region29: #{svae_conv_forward.20} parent=27 // loop_pre_header
                _
              $region30: #{svae_conv_forward.20} parent=27 // loop_header
                %s175 = sphi 0, %s179
                %p176 = scmp.ge.s32.totalorder %s175, 1
                %s180 = sphi %s169, %s169
                %s181 = sphi %s163, %s163
              $region31: #{svae_conv_forward.20} parent=27 // loop_header_branch
                %178 = sbr.rel (%p176) target = $region35
              $region32: #{svae_conv_forward.20} parent=27 // loop_body
                %v182 = vld [vmem:[%s180] sm:$0xff]
                %183 = vst [vmem:[%s181] sm:$0xff] %v182
                %v184 = vld [vmem:[%s180 + $0x8] sm:$0xff]
                %185 = vst [vmem:[%s181 + $0x8] sm:$0xff] %v184
                %v186 = vld [vmem:[%s180 + $0x60] sm:$0xff]
                %187 = vst [vmem:[%s181 + $0x10] sm:$0xff] %v186
                %v188 = vld [vmem:[%s180 + $0x68] sm:$0xff]
                %189 = vst [vmem:[%s181 + $0x18] sm:$0xff] %v188
              $region33: #{svae_conv_forward.20} parent=27 // loop_footer
                %s179 = sadd.s32 1, %s175
              $region34: #{svae_conv_forward.20} parent=27 // loop_footer_branch
                %174 = sbr.rel target = $region30
              $region35: #{svae_conv_forward.20} parent=27 // loop_exit
                _
            $region28: #{svae_conv_forward.20} parent=23 // pred_fallthru
              _
            // Predicated region
            $region36: #{svae_conv_forward.20} parent=23 // pred_check
              _
            $region37: #{svae_conv_forward.20} parent=23 // pred_check_branch
              %191 = sbr.rel target = $region39
            $region38: #{svae_conv_forward.20} parent=23 // pred_region
              _
            $region39: #{svae_conv_forward.20} parent=23 // pred_fallthru
              _
          $region24: #{svae_conv_forward.20} parent=19 // pred_fallthru
            _
          %192 = vnop
        $region20: #{svae_conv_forward.20} parent=15 // pred_fallthru
          _
        // Predicated region
        $region40: #{svae_conv_forward.20} parent=15 // pred_check
          %p193 = pneg %p78
        $region41: #{svae_conv_forward.20} parent=15 // pred_check_branch
          %195 = sbr.rel (%p193) target = $region43
        $region42: #{svae_conv_forward.20} parent=15 // pred_region
          %s196 = sand.u32 %s68, 1
          %s197 = sand.u32 %s68, 1
          %s198 = smul.addr %s197, 512
          %s199 = scalar_lea.vmem [#allocation4], %s198
          %s200 = smul.u32 64, %s18
          %s201 = smul.u32 2, %s17
          %s202 = smul.addr %s200, 8
          %s203 = sadd.s32 %s201, %s202
          %s204 = smul.addr %s203, 4
          %s205 = scalar_lea.vmem %s1, %s204
          // Predicated region
          $region44: #{svae_conv_forward.20} parent=42 // pred_check
            _
          $region45: #{svae_conv_forward.20} parent=42 // pred_check_branch
            %207 = sbr.rel (0) target = $region47
          $region46: #{svae_conv_forward.20} parent=42 // pred_region
            // Predicated region
            $region48: #{svae_conv_forward.20} parent=46 // pred_check
              _
            $region49: #{svae_conv_forward.20} parent=46 // pred_check_branch
              %209 = sbr.rel (0) target = $region51
            $region50: #{svae_conv_forward.20} parent=46 // pred_region
              // Predicated region
              $region63: #{svae_conv_forward.20} parent=50 // pred_check
                _
              $region64: #{svae_conv_forward.20} parent=50 // pred_check_branch
                %351 = sbr.rel (0) target = $region66
              $region65: #{svae_conv_forward.20} parent=50 // pred_region
                loop: start=0, step=1, limit=1
                $region67: #{svae_conv_forward.20} parent=65 // loop_pre_header
                  _
                $region68: #{svae_conv_forward.20} parent=65 // loop_header
                  %s353 = sphi 0, %s357
                  %p354 = scmp.ge.s32.totalorder %s353, 1
                  %s358 = sphi %s205, %s205
                  %s359 = sphi %s199, %s199
                $region69: #{svae_conv_forward.20} parent=65 // loop_header_branch
                  %356 = sbr.rel (%p354) target = $region73
                $region70: #{svae_conv_forward.20} parent=65 // loop_body
                  %v360 = vld [vmem:[%s358] sm:$0xff]
                  %361 = vst [vmem:[%s359] sm:$0xff] %v360
                  %v362 = vld [vmem:[%s358 + $0x20] sm:$0xff]
                  %363 = vst [vmem:[%s359 + $0x8] sm:$0xff] %v362
                  %v364 = vld [vmem:[%s358 + $0x40] sm:$0xff]
                  %365 = vst [vmem:[%s359 + $0x10] sm:$0xff] %v364
                  %v366 = vld [vmem:[%s358 + $0x60] sm:$0xff]
                  %367 = vst [vmem:[%s359 + $0x18] sm:$0xff] %v366
                  %v368 = vld [vmem:[%s358 + $0x80] sm:$0xff]
                  %369 = vst [vmem:[%s359 + $0x20] sm:$0xff] %v368
                  %v370 = vld [vmem:[%s358 + $0xa0] sm:$0xff]
                  %371 = vst [vmem:[%s359 + $0x28] sm:$0xff] %v370
                  %v372 = vld [vmem:[%s358 + $0xc0] sm:$0xff]
                  %373 = vst [vmem:[%s359 + $0x30] sm:$0xff] %v372
                  %v374 = vld [vmem:[%s358 + $0xe0] sm:$0xff]
                  %375 = vst [vmem:[%s359 + $0x38] sm:$0xff] %v374
                  %v376 = vld [vmem:[%s358 + $0x100] sm:$0xff]
                  %377 = vst [vmem:[%s359 + $0x40] sm:$0xff] %v376
                  %v378 = vld [vmem:[%s358 + $0x120] sm:$0xff]
                  %379 = vst [vmem:[%s359 + $0x48] sm:$0xff] %v378
                  %v380 = vld [vmem:[%s358 + $0x140] sm:$0xff]
                  %381 = vst [vmem:[%s359 + $0x50] sm:$0xff] %v380
                  %v382 = vld [vmem:[%s358 + $0x160] sm:$0xff]
                  %383 = vst [vmem:[%s359 + $0x58] sm:$0xff] %v382
                  %v384 = vld [vmem:[%s358 + $0x180] sm:$0xff]
                  %385 = vst [vmem:[%s359 + $0x60] sm:$0xff] %v384
                  %v386 = vld [vmem:[%s358 + $0x1a0] sm:$0xff]
                  %387 = vst [vmem:[%s359 + $0x68] sm:$0xff] %v386
                  %v388 = vld [vmem:[%s358 + $0x1c0] sm:$0xff]
                  %389 = vst [vmem:[%s359 + $0x70] sm:$0xff] %v388
                  %v390 = vld [vmem:[%s358 + $0x1e0] sm:$0xff]
                  %391 = vst [vmem:[%s359 + $0x78] sm:$0xff] %v390
                  %v392 = vld [vmem:[%s358 + $0x200] sm:$0xff]
                  %393 = vst [vmem:[%s359 + $0x80] sm:$0xff] %v392
                  %v394 = vld [vmem:[%s358 + $0x220] sm:$0xff]
                  %395 = vst [vmem:[%s359 + $0x88] sm:$0xff] %v394
                  %v396 = vld [vmem:[%s358 + $0x240] sm:$0xff]
                  %397 = vst [vmem:[%s359 + $0x90] sm:$0xff] %v396
                  %v398 = vld [vmem:[%s358 + $0x260] sm:$0xff]
                  %399 = vst [vmem:[%s359 + $0x98] sm:$0xff] %v398
                  %v400 = vld [vmem:[%s358 + $0x280] sm:$0xff]
                  %401 = vst [vmem:[%s359 + $0xa0] sm:$0xff] %v400
                  %v402 = vld [vmem:[%s358 + $0x2a0] sm:$0xff]
                  %403 = vst [vmem:[%s359 + $0xa8] sm:$0xff] %v402
                  %v404 = vld [vmem:[%s358 + $0x2c0] sm:$0xff]
                  %405 = vst [vmem:[%s359 + $0xb0] sm:$0xff] %v404
                  %v406 = vld [vmem:[%s358 + $0x2e0] sm:$0xff]
                  %407 = vst [vmem:[%s359 + $0xb8] sm:$0xff] %v406
                  %v408 = vld [vmem:[%s358 + $0x300] sm:$0xff]
                  %409 = vst [vmem:[%s359 + $0xc0] sm:$0xff] %v408
                  %v410 = vld [vmem:[%s358 + $0x320] sm:$0xff]
                  %411 = vst [vmem:[%s359 + $0xc8] sm:$0xff] %v410
                  %v412 = vld [vmem:[%s358 + $0x340] sm:$0xff]
                  %413 = vst [vmem:[%s359 + $0xd0] sm:$0xff] %v412
                  %v414 = vld [vmem:[%s358 + $0x360] sm:$0xff]
                  %415 = vst [vmem:[%s359 + $0xd8] sm:$0xff] %v414
                  %v416 = vld [vmem:[%s358 + $0x380] sm:$0xff]
                  %417 = vst [vmem:[%s359 + $0xe0] sm:$0xff] %v416
                  %v418 = vld [vmem:[%s358 + $0x3a0] sm:$0xff]
                  %419 = vst [vmem:[%s359 + $0xe8] sm:$0xff] %v418
                  %v420 = vld [vmem:[%s358 + $0x3c0] sm:$0xff]
                  %421 = vst [vmem:[%s359 + $0xf0] sm:$0xff] %v420
                  %v422 = vld [vmem:[%s358 + $0x3e0] sm:$0xff]
                  %423 = vst [vmem:[%s359 + $0xf8] sm:$0xff] %v422
                  %v424 = vld [vmem:[%s358 + $0x400] sm:$0xff]
                  %425 = vst [vmem:[%s359 + $0x100] sm:$0xff] %v424
                  %v426 = vld [vmem:[%s358 + $0x420] sm:$0xff]
                  %427 = vst [vmem:[%s359 + $0x108] sm:$0xff] %v426
                  %v428 = vld [vmem:[%s358 + $0x440] sm:$0xff]
                  %429 = vst [vmem:[%s359 + $0x110] sm:$0xff] %v428
                  %v430 = vld [vmem:[%s358 + $0x460] sm:$0xff]
                  %431 = vst [vmem:[%s359 + $0x118] sm:$0xff] %v430
                  %v432 = vld [vmem:[%s358 + $0x480] sm:$0xff]
                  %433 = vst [vmem:[%s359 + $0x120] sm:$0xff] %v432
                  %v434 = vld [vmem:[%s358 + $0x4a0] sm:$0xff]
                  %435 = vst [vmem:[%s359 + $0x128] sm:$0xff] %v434
                  %v436 = vld [vmem:[%s358 + $0x4c0] sm:$0xff]
                  %437 = vst [vmem:[%s359 + $0x130] sm:$0xff] %v436
                  %v438 = vld [vmem:[%s358 + $0x4e0] sm:$0xff]
                  %439 = vst [vmem:[%s359 + $0x138] sm:$0xff] %v438
                  %v440 = vld [vmem:[%s358 + $0x500] sm:$0xff]
                  %441 = vst [vmem:[%s359 + $0x140] sm:$0xff] %v440
                  %v442 = vld [vmem:[%s358 + $0x520] sm:$0xff]
                  %443 = vst [vmem:[%s359 + $0x148] sm:$0xff] %v442
                  %v444 = vld [vmem:[%s358 + $0x540] sm:$0xff]
                  %445 = vst [vmem:[%s359 + $0x150] sm:$0xff] %v444
                  %v446 = vld [vmem:[%s358 + $0x560] sm:$0xff]
                  %447 = vst [vmem:[%s359 + $0x158] sm:$0xff] %v446
                  %v448 = vld [vmem:[%s358 + $0x580] sm:$0xff]
                  %449 = vst [vmem:[%s359 + $0x160] sm:$0xff] %v448
                  %v450 = vld [vmem:[%s358 + $0x5a0] sm:$0xff]
                  %451 = vst [vmem:[%s359 + $0x168] sm:$0xff] %v450
                  %v452 = vld [vmem:[%s358 + $0x5c0] sm:$0xff]
                  %453 = vst [vmem:[%s359 + $0x170] sm:$0xff] %v452
                  %v454 = vld [vmem:[%s358 + $0x5e0] sm:$0xff]
                  %455 = vst [vmem:[%s359 + $0x178] sm:$0xff] %v454
                  %v456 = vld [vmem:[%s358 + $0x600] sm:$0xff]
                  %457 = vst [vmem:[%s359 + $0x180] sm:$0xff] %v456
                  %v458 = vld [vmem:[%s358 + $0x620] sm:$0xff]
                  %459 = vst [vmem:[%s359 + $0x188] sm:$0xff] %v458
                  %v460 = vld [vmem:[%s358 + $0x640] sm:$0xff]
                  %461 = vst [vmem:[%s359 + $0x190] sm:$0xff] %v460
                  %v462 = vld [vmem:[%s358 + $0x660] sm:$0xff]
                  %463 = vst [vmem:[%s359 + $0x198] sm:$0xff] %v462
                  %v464 = vld [vmem:[%s358 + $0x680] sm:$0xff]
                  %465 = vst [vmem:[%s359 + $0x1a0] sm:$0xff] %v464
                  %v466 = vld [vmem:[%s358 + $0x6a0] sm:$0xff]
                  %467 = vst [vmem:[%s359 + $0x1a8] sm:$0xff] %v466
                  %v468 = vld [vmem:[%s358 + $0x6c0] sm:$0xff]
                  %469 = vst [vmem:[%s359 + $0x1b0] sm:$0xff] %v468
                  %v470 = vld [vmem:[%s358 + $0x6e0] sm:$0xff]
                  %471 = vst [vmem:[%s359 + $0x1b8] sm:$0xff] %v470
                  %v472 = vld [vmem:[%s358 + $0x700] sm:$0xff]
                  %473 = vst [vmem:[%s359 + $0x1c0] sm:$0xff] %v472
                  %v474 = vld [vmem:[%s358 + $0x720] sm:$0xff]
                  %475 = vst [vmem:[%s359 + $0x1c8] sm:$0xff] %v474
                  %v476 = vld [vmem:[%s358 + $0x740] sm:$0xff]
                  %477 = vst [vmem:[%s359 + $0x1d0] sm:$0xff] %v476
                  %v478 = vld [vmem:[%s358 + $0x760] sm:$0xff]
                  %479 = vst [vmem:[%s359 + $0x1d8] sm:$0xff] %v478
                  %v480 = vld [vmem:[%s358 + $0x780] sm:$0xff]
                  %481 = vst [vmem:[%s359 + $0x1e0] sm:$0xff] %v480
                  %v482 = vld [vmem:[%s358 + $0x7a0] sm:$0xff]
                  %483 = vst [vmem:[%s359 + $0x1e8] sm:$0xff] %v482
                  %v484 = vld [vmem:[%s358 + $0x7c0] sm:$0xff]
                  %485 = vst [vmem:[%s359 + $0x1f0] sm:$0xff] %v484
                  %v486 = vld [vmem:[%s358 + $0x7e0] sm:$0xff]
                  %487 = vst [vmem:[%s359 + $0x1f8] sm:$0xff] %v486
                $region71: #{svae_conv_forward.20} parent=65 // loop_footer
                  %s357 = sadd.s32 1, %s353
                $region72: #{svae_conv_forward.20} parent=65 // loop_footer_branch
                  %352 = sbr.rel target = $region68
                $region73: #{svae_conv_forward.20} parent=65 // loop_exit
                  _
              $region66: #{svae_conv_forward.20} parent=50 // pred_fallthru
                _
              // Predicated region
              $region74: #{svae_conv_forward.20} parent=50 // pred_check
                _
              $region75: #{svae_conv_forward.20} parent=50 // pred_check_branch
                %489 = sbr.rel target = $region77
              $region76: #{svae_conv_forward.20} parent=50 // pred_region
                _
              $region77: #{svae_conv_forward.20} parent=50 // pred_fallthru
                _
            $region51: #{svae_conv_forward.20} parent=46 // pred_fallthru
              _
            // Predicated region
            $region52: #{svae_conv_forward.20} parent=46 // pred_check
              _
            $region53: #{svae_conv_forward.20} parent=46 // pred_check_branch
              %211 = sbr.rel target = $region55
            $region54: #{svae_conv_forward.20} parent=46 // pred_region
              %s213 = ssub.s32 256, 1
              loop: start=0, step=1, limit=1
              $region56: #{svae_conv_forward.20} parent=54 // loop_pre_header
                _
              $region57: #{svae_conv_forward.20} parent=54 // loop_header
                %s215 = sphi 0, %s219
                %p216 = scmp.ge.s32.totalorder %s215, 1
                %s220 = sphi %s205, %s205
                %s221 = sphi %s199, %s199
              $region58: #{svae_conv_forward.20} parent=54 // loop_header_branch
                %218 = sbr.rel (%p216) target = $region62
              $region59: #{svae_conv_forward.20} parent=54 // loop_body
                %v222 = vld [vmem:[%s220] sm:%s213]
                %223 = vst [vmem:[%s221] sm:%s213] %v222
                %v224 = vld [vmem:[%s220 + $0x20] sm:%s213]
                %225 = vst [vmem:[%s221 + $0x8] sm:%s213] %v224
                %v226 = vld [vmem:[%s220 + $0x40] sm:%s213]
                %227 = vst [vmem:[%s221 + $0x10] sm:%s213] %v226
                %v228 = vld [vmem:[%s220 + $0x60] sm:%s213]
                %229 = vst [vmem:[%s221 + $0x18] sm:%s213] %v228
                %v230 = vld [vmem:[%s220 + $0x80] sm:%s213]
                %231 = vst [vmem:[%s221 + $0x20] sm:%s213] %v230
                %v232 = vld [vmem:[%s220 + $0xa0] sm:%s213]
                %233 = vst [vmem:[%s221 + $0x28] sm:%s213] %v232
                %v234 = vld [vmem:[%s220 + $0xc0] sm:%s213]
                %235 = vst [vmem:[%s221 + $0x30] sm:%s213] %v234
                %v236 = vld [vmem:[%s220 + $0xe0] sm:%s213]
                %237 = vst [vmem:[%s221 + $0x38] sm:%s213] %v236
                %v238 = vld [vmem:[%s220 + $0x100] sm:%s213]
                %239 = vst [vmem:[%s221 + $0x40] sm:%s213] %v238
                %v240 = vld [vmem:[%s220 + $0x120] sm:%s213]
                %241 = vst [vmem:[%s221 + $0x48] sm:%s213] %v240
                %v242 = vld [vmem:[%s220 + $0x140] sm:%s213]
                %243 = vst [vmem:[%s221 + $0x50] sm:%s213] %v242
                %v244 = vld [vmem:[%s220 + $0x160] sm:%s213]
                %245 = vst [vmem:[%s221 + $0x58] sm:%s213] %v244
                %v246 = vld [vmem:[%s220 + $0x180] sm:%s213]
                %247 = vst [vmem:[%s221 + $0x60] sm:%s213] %v246
                %v248 = vld [vmem:[%s220 + $0x1a0] sm:%s213]
                %249 = vst [vmem:[%s221 + $0x68] sm:%s213] %v248
                %v250 = vld [vmem:[%s220 + $0x1c0] sm:%s213]
                %251 = vst [vmem:[%s221 + $0x70] sm:%s213] %v250
                %v252 = vld [vmem:[%s220 + $0x1e0] sm:%s213]
                %253 = vst [vmem:[%s221 + $0x78] sm:%s213] %v252
                %v254 = vld [vmem:[%s220 + $0x200] sm:%s213]
                %255 = vst [vmem:[%s221 + $0x80] sm:%s213] %v254
                %v256 = vld [vmem:[%s220 + $0x220] sm:%s213]
                %257 = vst [vmem:[%s221 + $0x88] sm:%s213] %v256
                %v258 = vld [vmem:[%s220 + $0x240] sm:%s213]
                %259 = vst [vmem:[%s221 + $0x90] sm:%s213] %v258
                %v260 = vld [vmem:[%s220 + $0x260] sm:%s213]
                %261 = vst [vmem:[%s221 + $0x98] sm:%s213] %v260
                %v262 = vld [vmem:[%s220 + $0x280] sm:%s213]
                %263 = vst [vmem:[%s221 + $0xa0] sm:%s213] %v262
                %v264 = vld [vmem:[%s220 + $0x2a0] sm:%s213]
                %265 = vst [vmem:[%s221 + $0xa8] sm:%s213] %v264
                %v266 = vld [vmem:[%s220 + $0x2c0] sm:%s213]
                %267 = vst [vmem:[%s221 + $0xb0] sm:%s213] %v266
                %v268 = vld [vmem:[%s220 + $0x2e0] sm:%s213]
                %269 = vst [vmem:[%s221 + $0xb8] sm:%s213] %v268
                %v270 = vld [vmem:[%s220 + $0x300] sm:%s213]
                %271 = vst [vmem:[%s221 + $0xc0] sm:%s213] %v270
                %v272 = vld [vmem:[%s220 + $0x320] sm:%s213]
                %273 = vst [vmem:[%s221 + $0xc8] sm:%s213] %v272
                %v274 = vld [vmem:[%s220 + $0x340] sm:%s213]
                %275 = vst [vmem:[%s221 + $0xd0] sm:%s213] %v274
                %v276 = vld [vmem:[%s220 + $0x360] sm:%s213]
                %277 = vst [vmem:[%s221 + $0xd8] sm:%s213] %v276
                %v278 = vld [vmem:[%s220 + $0x380] sm:%s213]
                %279 = vst [vmem:[%s221 + $0xe0] sm:%s213] %v278
                %v280 = vld [vmem:[%s220 + $0x3a0] sm:%s213]
                %281 = vst [vmem:[%s221 + $0xe8] sm:%s213] %v280
                %v282 = vld [vmem:[%s220 + $0x3c0] sm:%s213]
                %283 = vst [vmem:[%s221 + $0xf0] sm:%s213] %v282
                %v284 = vld [vmem:[%s220 + $0x3e0] sm:%s213]
                %285 = vst [vmem:[%s221 + $0xf8] sm:%s213] %v284
                %v286 = vld [vmem:[%s220 + $0x400] sm:%s213]
                %287 = vst [vmem:[%s221 + $0x100] sm:%s213] %v286
                %v288 = vld [vmem:[%s220 + $0x420] sm:%s213]
                %289 = vst [vmem:[%s221 + $0x108] sm:%s213] %v288
                %v290 = vld [vmem:[%s220 + $0x440] sm:%s213]
                %291 = vst [vmem:[%s221 + $0x110] sm:%s213] %v290
                %v292 = vld [vmem:[%s220 + $0x460] sm:%s213]
                %293 = vst [vmem:[%s221 + $0x118] sm:%s213] %v292
                %v294 = vld [vmem:[%s220 + $0x480] sm:%s213]
                %295 = vst [vmem:[%s221 + $0x120] sm:%s213] %v294
                %v296 = vld [vmem:[%s220 + $0x4a0] sm:%s213]
                %297 = vst [vmem:[%s221 + $0x128] sm:%s213] %v296
                %v298 = vld [vmem:[%s220 + $0x4c0] sm:%s213]
                %299 = vst [vmem:[%s221 + $0x130] sm:%s213] %v298
                %v300 = vld [vmem:[%s220 + $0x4e0] sm:%s213]
                %301 = vst [vmem:[%s221 + $0x138] sm:%s213] %v300
                %v302 = vld [vmem:[%s220 + $0x500] sm:%s213]
                %303 = vst [vmem:[%s221 + $0x140] sm:%s213] %v302
                %v304 = vld [vmem:[%s220 + $0x520] sm:%s213]
                %305 = vst [vmem:[%s221 + $0x148] sm:%s213] %v304
                %v306 = vld [vmem:[%s220 + $0x540] sm:%s213]
                %307 = vst [vmem:[%s221 + $0x150] sm:%s213] %v306
                %v308 = vld [vmem:[%s220 + $0x560] sm:%s213]
                %309 = vst [vmem:[%s221 + $0x158] sm:%s213] %v308
                %v310 = vld [vmem:[%s220 + $0x580] sm:%s213]
                %311 = vst [vmem:[%s221 + $0x160] sm:%s213] %v310
                %v312 = vld [vmem:[%s220 + $0x5a0] sm:%s213]
                %313 = vst [vmem:[%s221 + $0x168] sm:%s213] %v312
                %v314 = vld [vmem:[%s220 + $0x5c0] sm:%s213]
                %315 = vst [vmem:[%s221 + $0x170] sm:%s213] %v314
                %v316 = vld [vmem:[%s220 + $0x5e0] sm:%s213]
                %317 = vst [vmem:[%s221 + $0x178] sm:%s213] %v316
                %v318 = vld [vmem:[%s220 + $0x600] sm:%s213]
                %319 = vst [vmem:[%s221 + $0x180] sm:%s213] %v318
                %v320 = vld [vmem:[%s220 + $0x620] sm:%s213]
                %321 = vst [vmem:[%s221 + $0x188] sm:%s213] %v320
                %v322 = vld [vmem:[%s220 + $0x640] sm:%s213]
                %323 = vst [vmem:[%s221 + $0x190] sm:%s213] %v322
                %v324 = vld [vmem:[%s220 + $0x660] sm:%s213]
                %325 = vst [vmem:[%s221 + $0x198] sm:%s213] %v324
                %v326 = vld [vmem:[%s220 + $0x680] sm:%s213]
                %327 = vst [vmem:[%s221 + $0x1a0] sm:%s213] %v326
                %v328 = vld [vmem:[%s220 + $0x6a0] sm:%s213]
                %329 = vst [vmem:[%s221 + $0x1a8] sm:%s213] %v328
                %v330 = vld [vmem:[%s220 + $0x6c0] sm:%s213]
                %331 = vst [vmem:[%s221 + $0x1b0] sm:%s213] %v330
                %v332 = vld [vmem:[%s220 + $0x6e0] sm:%s213]
                %333 = vst [vmem:[%s221 + $0x1b8] sm:%s213] %v332
                %v334 = vld [vmem:[%s220 + $0x700] sm:%s213]
                %335 = vst [vmem:[%s221 + $0x1c0] sm:%s213] %v334
                %v336 = vld [vmem:[%s220 + $0x720] sm:%s213]
                %337 = vst [vmem:[%s221 + $0x1c8] sm:%s213] %v336
                %v338 = vld [vmem:[%s220 + $0x740] sm:%s213]
                %339 = vst [vmem:[%s221 + $0x1d0] sm:%s213] %v338
                %v340 = vld [vmem:[%s220 + $0x760] sm:%s213]
                %341 = vst [vmem:[%s221 + $0x1d8] sm:%s213] %v340
                %v342 = vld [vmem:[%s220 + $0x780] sm:%s213]
                %343 = vst [vmem:[%s221 + $0x1e0] sm:%s213] %v342
                %v344 = vld [vmem:[%s220 + $0x7a0] sm:%s213]
                %345 = vst [vmem:[%s221 + $0x1e8] sm:%s213] %v344
                %v346 = vld [vmem:[%s220 + $0x7c0] sm:%s213]
                %347 = vst [vmem:[%s221 + $0x1f0] sm:%s213] %v346
                %v348 = vld [vmem:[%s220 + $0x7e0] sm:%s213]
                %349 = vst [vmem:[%s221 + $0x1f8] sm:%s213] %v348
              $region60: #{svae_conv_forward.20} parent=54 // loop_footer
                %s219 = sadd.s32 1, %s215
              $region61: #{svae_conv_forward.20} parent=54 // loop_footer_branch
                %214 = sbr.rel target = $region57
              $region62: #{svae_conv_forward.20} parent=54 // loop_exit
                _
            $region55: #{svae_conv_forward.20} parent=46 // pred_fallthru
              _
          $region47: #{svae_conv_forward.20} parent=42 // pred_fallthru
            _
          %490 = vnop
        $region43: #{svae_conv_forward.20} parent=15 // pred_fallthru
          _
        // Predicated region
        $region78: #{svae_conv_forward.20} parent=15 // pred_check
          %p491 = pneg %p104
        $region79: #{svae_conv_forward.20} parent=15 // pred_check_branch
          %493 = sbr.rel (%p491) target = $region81
        $region80: #{svae_conv_forward.20} parent=15 // pred_region
          %s494 = smul.u32 2, %s17
          %p495 = scmp.lt.s32.totalorder %s494, 7
          %s496 = scalar_select %p495, %s494, 7
          %s497 = scalar_lea.vmem %s2, %s496
          %s498 = smul.u32 2, %s17
        $region81: #{svae_conv_forward.20} parent=15 // pred_fallthru
          _
      $region16: #{svae_conv_forward.20} parent=5 // pred_fallthru
        _
      %p499 = scmp.le.s32.totalorder 1, %s9
      %p500 = scmp.lt.s32.totalorder %s9, 25
      %p501 = pnand %p499, %p500
      %p502 = pneg %p501
      // Predicated region
      $region82: #{svae_conv_forward.20} parent=5 // pred_check
        _
      $region83: #{svae_conv_forward.20} parent=5 // pred_check_branch
        %504 = sbr.rel (%p501) target = $region85
      $region84: #{svae_conv_forward.20} parent=5 // pred_region
        %s505 = ssub.s32 %s9, 1
        %s506 = sand.u32 %s43, 1
        %s507 = sand.u32 %s43, 1
        %s508 = smul.addr %s507, 32
        %s509 = scalar_lea.vmem [#allocation3], %s508
        // Predicated region
        $region86: #{svae_conv_forward.20} parent=84 // pred_check
          %p510 = pneg %p56
        $region87: #{svae_conv_forward.20} parent=84 // pred_check_branch
          %512 = sbr.rel (%p510) target = $region89
        $region88: #{svae_conv_forward.20} parent=84 // pred_region
          _
        $region89: #{svae_conv_forward.20} parent=84 // pred_fallthru
          _
        %s513 = sand.u32 %s71, 1
        %s514 = sand.u32 %s71, 1
        %s515 = smul.addr %s514, 512
        %s516 = scalar_lea.vmem [#allocation4], %s515
        // Predicated region
        $region90: #{svae_conv_forward.20} parent=84 // pred_check
          %p517 = pneg %p84
        $region91: #{svae_conv_forward.20} parent=84 // pred_check_branch
          %519 = sbr.rel (%p517) target = $region93
        $region92: #{svae_conv_forward.20} parent=84 // pred_region
          _
        $region93: #{svae_conv_forward.20} parent=84 // pred_fallthru
          _
        %s520 = sand.u32 %s43, 1
        %s521 = sand.u32 %s43, 1
        %s522 = smul.addr %s521, 32
        %s523 = scalar_lea.vmem [#allocation3], %s522
        %p524 = pneg %p56
        %p525 = pneg %p53
        %s526 = sand.u32 %s71, 1
        %s527 = sand.u32 %s71, 1
        %s528 = smul.addr %s527, 512
        %s529 = scalar_lea.vmem [#allocation4], %s528
        %p530 = pneg %p84
        %p531 = pneg %p81
        %s532 = smul.u32 2, %s20
        %p533 = scmp.lt.s32.totalorder %s532, 7
        %s534 = scalar_select %p533, %s532, 7
        %s535 = scalar_lea.vmem %s2, %s534
        %p536 = pneg %p110
        %p537 = pneg %p107
        %p538 = pneg %p138
        %p539 = pneg %p135
        %s540 = sand.u32 %s125, 1
        %s541 = sand.u32 %s125, 1
        %s542 = smul.addr %s541, 32
        %s543 = scalar_lea.vmem [#allocation5], %s542
        %s544 = smul.u32 2, %s19
        %s545 = smul.u32 4, %s21
        %s546 = smul.u32 64, %s21
        %s547 = smul.u32 2, %s20
        %s548 = smul.u32 2, %s20
        %p549 = scmp.lt.s32.totalorder %s548, 7
        %s550 = scalar_select %p549, %s548, 7
        %s551 = scalar_lea.vmem %s2, %s550
        %s552 = smul.u32 2, %s20
        %s553 = smul.u32 2, %s19
        %s554 = smul.u32 2, %s20
        %p555 = scmp.eq.s32.totalorder %s21, 0
        // Predicated region
        $region94: #{svae_conv_forward.20} parent=84 // pred_check
          %p556 = pneg %p555
        $region95: #{svae_conv_forward.20} parent=84 // pred_check_branch
          %558 = sbr.rel (%p556) target = $region97
        $region96: #{svae_conv_forward.20} parent=84 // pred_region
          %559 = vst [vmem:[#allocation2] sm:$0xff] 0.0
          %560 = vst [vmem:[#allocation2 + $0x8] sm:$0xff] 0.0
          %561 = vst [vmem:[#allocation2 + $0x10] sm:$0xff] 0.0
          %562 = vst [vmem:[#allocation2 + $0x18] sm:$0xff] 0.0
        $region97: #{svae_conv_forward.20} parent=84 // pred_fallthru
          _
        %v563 = vld [vmem:[#allocation2] sm:$0xff]
        %v564 = vld [vmem:[#allocation2 + $0x8] sm:$0xff]
        %v565 = vld [vmem:[#allocation2 + $0x10] sm:$0xff]
        %v566 = vld [vmem:[#allocation2 + $0x18] sm:$0xff]
        %v567 = vld [vmem:[%s509] sm:$0xff]
        %v568 = vld [vmem:[%s509 + $0x8] sm:$0xff]
        %v569 = vld [vmem:[%s509 + $0x10] sm:$0xff]
        %v570 = vld [vmem:[%s509 + $0x18] sm:$0xff]
        %v571 = vld [vmem:[%s516] sm:$0xff]
        %v572 = vld [vmem:[%s516 + $0x8] sm:$0xff]
        %v573 = vld [vmem:[%s516 + $0x10] sm:$0xff]
        %v574 = vld [vmem:[%s516 + $0x18] sm:$0xff]
        %v575 = vld [vmem:[%s516 + $0x20] sm:$0xff]
        %v576 = vld [vmem:[%s516 + $0x28] sm:$0xff]
        %v577 = vld [vmem:[%s516 + $0x30] sm:$0xff]
        %v578 = vld [vmem:[%s516 + $0x38] sm:$0xff]
        %v579 = vld [vmem:[%s516 + $0x40] sm:$0xff]
        %v580 = vld [vmem:[%s516 + $0x48] sm:$0xff]
        %v581 = vld [vmem:[%s516 + $0x50] sm:$0xff]
        %v582 = vld [vmem:[%s516 + $0x58] sm:$0xff]
        %v583 = vld [vmem:[%s516 + $0x60] sm:$0xff]
        %v584 = vld [vmem:[%s516 + $0x68] sm:$0xff]
        %v585 = vld [vmem:[%s516 + $0x70] sm:$0xff]
        %v586 = vld [vmem:[%s516 + $0x78] sm:$0xff]
        %v587 = vld [vmem:[%s516 + $0x80] sm:$0xff]
        %v588 = vld [vmem:[%s516 + $0x88] sm:$0xff]
        %v589 = vld [vmem:[%s516 + $0x90] sm:$0xff]
        %v590 = vld [vmem:[%s516 + $0x98] sm:$0xff]
        %v591 = vld [vmem:[%s516 + $0xa0] sm:$0xff]
        %v592 = vld [vmem:[%s516 + $0xa8] sm:$0xff]
        %v593 = vld [vmem:[%s516 + $0xb0] sm:$0xff]
        %v594 = vld [vmem:[%s516 + $0xb8] sm:$0xff]
        %v595 = vld [vmem:[%s516 + $0xc0] sm:$0xff]
        %v596 = vld [vmem:[%s516 + $0xc8] sm:$0xff]
        %v597 = vld [vmem:[%s516 + $0xd0] sm:$0xff]
        %v598 = vld [vmem:[%s516 + $0xd8] sm:$0xff]
        %v599 = vld [vmem:[%s516 + $0xe0] sm:$0xff]
        %v600 = vld [vmem:[%s516 + $0xe8] sm:$0xff]
        %v601 = vld [vmem:[%s516 + $0xf0] sm:$0xff]
        %v602 = vld [vmem:[%s516 + $0xf8] sm:$0xff]
        %v603 = vld [vmem:[%s516 + $0x100] sm:$0xff]
        %v604 = vld [vmem:[%s516 + $0x108] sm:$0xff]
        %v605 = vld [vmem:[%s516 + $0x110] sm:$0xff]
        %v606 = vld [vmem:[%s516 + $0x118] sm:$0xff]
        %v607 = vld [vmem:[%s516 + $0x120] sm:$0xff]
        %v608 = vld [vmem:[%s516 + $0x128] sm:$0xff]
        %v609 = vld [vmem:[%s516 + $0x130] sm:$0xff]
        %v610 = vld [vmem:[%s516 + $0x138] sm:$0xff]
        %v611 = vld [vmem:[%s516 + $0x140] sm:$0xff]
        %v612 = vld [vmem:[%s516 + $0x148] sm:$0xff]
        %v613 = vld [vmem:[%s516 + $0x150] sm:$0xff]
        %v614 = vld [vmem:[%s516 + $0x158] sm:$0xff]
        %v615 = vld [vmem:[%s516 + $0x160] sm:$0xff]
        %v616 = vld [vmem:[%s516 + $0x168] sm:$0xff]
        %v617 = vld [vmem:[%s516 + $0x170] sm:$0xff]
        %v618 = vld [vmem:[%s516 + $0x178] sm:$0xff]
        %v619 = vld [vmem:[%s516 + $0x180] sm:$0xff]
        %v620 = vld [vmem:[%s516 + $0x188] sm:$0xff]
        %v621 = vld [vmem:[%s516 + $0x190] sm:$0xff]
        %v622 = vld [vmem:[%s516 + $0x198] sm:$0xff]
        %v623 = vld [vmem:[%s516 + $0x1a0] sm:$0xff]
        %v624 = vld [vmem:[%s516 + $0x1a8] sm:$0xff]
        %v625 = vld [vmem:[%s516 + $0x1b0] sm:$0xff]
        %v626 = vld [vmem:[%s516 + $0x1b8] sm:$0xff]
        %v627 = vld [vmem:[%s516 + $0x1c0] sm:$0xff]
        %v628 = vld [vmem:[%s516 + $0x1c8] sm:$0xff]
        %v629 = vld [vmem:[%s516 + $0x1d0] sm:$0xff]
        %v630 = vld [vmem:[%s516 + $0x1d8] sm:$0xff]
        %v631 = vld [vmem:[%s516 + $0x1e0] sm:$0xff]
        %v632 = vld [vmem:[%s516 + $0x1e8] sm:$0xff]
        %v633 = vld [vmem:[%s516 + $0x1f0] sm:$0xff]
        %v634 = vld [vmem:[%s516 + $0x1f8] sm:$0xff]
        %v639 = vunpack.c.l.b16 %v567
        %v640 = vunpack.c.h.b16 %v567
        %v641 = vunpack.c.l.b16 %v568
        %v642 = vunpack.c.h.b16 %v568
        %v643 = vunpack.c.l.b16 %v569
        %v644 = vunpack.c.h.b16 %v569
        %v645 = vunpack.c.l.b16 %v570
        %v646 = vunpack.c.h.b16 %v570
        %v647 = vpack.c.b16 %v643, %v639
        %v648 = vpack.c.b16 %v644, %v640
        %v649 = vpack.c.b16 %v645, %v641
        %v650 = vpack.c.b16 %v646, %v642
        %v719 = vunpack.c.l.b16 %v571
        %v720 = vunpack.c.h.b16 %v571
        %v721 = vunpack.c.l.b16 %v572
        %v722 = vunpack.c.h.b16 %v572
        %v723 = vunpack.c.l.b16 %v573
        %v724 = vunpack.c.h.b16 %v573
        %v725 = vunpack.c.l.b16 %v574
        %v726 = vunpack.c.h.b16 %v574
        %v727 = vunpack.c.l.b16 %v575
        %v728 = vunpack.c.h.b16 %v575
        %v729 = vunpack.c.l.b16 %v576
        %v730 = vunpack.c.h.b16 %v576
        %v731 = vunpack.c.l.b16 %v577
        %v732 = vunpack.c.h.b16 %v577
        %v733 = vunpack.c.l.b16 %v578
        %v734 = vunpack.c.h.b16 %v578
        %v735 = vunpack.c.l.b16 %v579
        %v736 = vunpack.c.h.b16 %v579
        %v737 = vunpack.c.l.b16 %v580
        %v738 = vunpack.c.h.b16 %v580
        %v739 = vunpack.c.l.b16 %v581
        %v740 = vunpack.c.h.b16 %v581
        %v741 = vunpack.c.l.b16 %v582
        %v742 = vunpack.c.h.b16 %v582
        %v743 = vunpack.c.l.b16 %v583
        %v744 = vunpack.c.h.b16 %v583
        %v745 = vunpack.c.l.b16 %v584
        %v746 = vunpack.c.h.b16 %v584
        %v747 = vunpack.c.l.b16 %v585
        %v748 = vunpack.c.h.b16 %v585
        %v749 = vunpack.c.l.b16 %v586
        %v750 = vunpack.c.h.b16 %v586
        %v751 = vunpack.c.l.b16 %v587
        %v752 = vunpack.c.h.b16 %v587
        %v753 = vunpack.c.l.b16 %v588
        %v754 = vunpack.c.h.b16 %v588
        %v755 = vunpack.c.l.b16 %v589
        %v756 = vunpack.c.h.b16 %v589
        %v757 = vunpack.c.l.b16 %v590
        %v758 = vunpack.c.h.b16 %v590
        %v759 = vunpack.c.l.b16 %v591
        %v760 = vunpack.c.h.b16 %v591
        %v761 = vunpack.c.l.b16 %v592
        %v762 = vunpack.c.h.b16 %v592
        %v763 = vunpack.c.l.b16 %v593
        %v764 = vunpack.c.h.b16 %v593
        %v765 = vunpack.c.l.b16 %v594
        %v766 = vunpack.c.h.b16 %v594
        %v767 = vunpack.c.l.b16 %v595
        %v768 = vunpack.c.h.b16 %v595
        %v769 = vunpack.c.l.b16 %v596
        %v770 = vunpack.c.h.b16 %v596
        %v771 = vunpack.c.l.b16 %v597
        %v772 = vunpack.c.h.b16 %v597
        %v773 = vunpack.c.l.b16 %v598
        %v774 = vunpack.c.h.b16 %v598
        %v775 = vunpack.c.l.b16 %v599
        %v776 = vunpack.c.h.b16 %v599
        %v777 = vunpack.c.l.b16 %v600
        %v778 = vunpack.c.h.b16 %v600
        %v779 = vunpack.c.l.b16 %v601
        %v780 = vunpack.c.h.b16 %v601
        %v781 = vunpack.c.l.b16 %v602
        %v782 = vunpack.c.h.b16 %v602
        %v783 = vunpack.c.l.b16 %v603
        %v784 = vunpack.c.h.b16 %v603
        %v785 = vunpack.c.l.b16 %v604
        %v786 = vunpack.c.h.b16 %v604
        %v787 = vunpack.c.l.b16 %v605
        %v788 = vunpack.c.h.b16 %v605
        %v789 = vunpack.c.l.b16 %v606
        %v790 = vunpack.c.h.b16 %v606
        %v791 = vunpack.c.l.b16 %v607
        %v792 = vunpack.c.h.b16 %v607
        %v793 = vunpack.c.l.b16 %v608
        %v794 = vunpack.c.h.b16 %v608
        %v795 = vunpack.c.l.b16 %v609
        %v796 = vunpack.c.h.b16 %v609
        %v797 = vunpack.c.l.b16 %v610
        %v798 = vunpack.c.h.b16 %v610
        %v799 = vunpack.c.l.b16 %v611
        %v800 = vunpack.c.h.b16 %v611
        %v801 = vunpack.c.l.b16 %v612
        %v802 = vunpack.c.h.b16 %v612
        %v803 = vunpack.c.l.b16 %v613
        %v804 = vunpack.c.h.b16 %v613
        %v805 = vunpack.c.l.b16 %v614
        %v806 = vunpack.c.h.b16 %v614
        %v807 = vunpack.c.l.b16 %v615
        %v808 = vunpack.c.h.b16 %v615
        %v809 = vunpack.c.l.b16 %v616
        %v810 = vunpack.c.h.b16 %v616
        %v811 = vunpack.c.l.b16 %v617
        %v812 = vunpack.c.h.b16 %v617
        %v813 = vunpack.c.l.b16 %v618
        %v814 = vunpack.c.h.b16 %v618
        %v815 = vunpack.c.l.b16 %v619
        %v816 = vunpack.c.h.b16 %v619
        %v817 = vunpack.c.l.b16 %v620
        %v818 = vunpack.c.h.b16 %v620
        %v819 = vunpack.c.l.b16 %v621
        %v820 = vunpack.c.h.b16 %v621
        %v821 = vunpack.c.l.b16 %v622
        %v822 = vunpack.c.h.b16 %v622
        %v823 = vunpack.c.l.b16 %v623
        %v824 = vunpack.c.h.b16 %v623
        %v825 = vunpack.c.l.b16 %v624
        %v826 = vunpack.c.h.b16 %v624
        %v827 = vunpack.c.l.b16 %v625
        %v828 = vunpack.c.h.b16 %v625
        %v829 = vunpack.c.l.b16 %v626
        %v830 = vunpack.c.h.b16 %v626
        %v831 = vunpack.c.l.b16 %v627
        %v832 = vunpack.c.h.b16 %v627
        %v833 = vunpack.c.l.b16 %v628
        %v834 = vunpack.c.h.b16 %v628
        %v835 = vunpack.c.l.b16 %v629
        %v836 = vunpack.c.h.b16 %v629
        %v837 = vunpack.c.l.b16 %v630
        %v838 = vunpack.c.h.b16 %v630
        %v839 = vunpack.c.l.b16 %v631
        %v840 = vunpack.c.h.b16 %v631
        %v841 = vunpack.c.l.b16 %v632
        %v842 = vunpack.c.h.b16 %v632
        %v843 = vunpack.c.l.b16 %v633
        %v844 = vunpack.c.h.b16 %v633
        %v845 = vunpack.c.l.b16 %v634
        %v846 = vunpack.c.h.b16 %v634
        %v847 = vpack.c.b16 %v721, %v719
        %v848 = vpack.c.b16 %v722, %v720
        %v849 = vpack.c.b16 %v725, %v723
        %v850 = vpack.c.b16 %v726, %v724
        %v851 = vpack.c.b16 %v729, %v727
        %v852 = vpack.c.b16 %v730, %v728
        %v853 = vpack.c.b16 %v733, %v731
        %v854 = vpack.c.b16 %v734, %v732
        %v855 = vpack.c.b16 %v737, %v735
        %v856 = vpack.c.b16 %v738, %v736
        %v857 = vpack.c.b16 %v741, %v739
        %v858 = vpack.c.b16 %v742, %v740
        %v859 = vpack.c.b16 %v745, %v743
        %v860 = vpack.c.b16 %v746, %v744
        %v861 = vpack.c.b16 %v749, %v747
        %v862 = vpack.c.b16 %v750, %v748
        %v863 = vpack.c.b16 %v753, %v751
        %v864 = vpack.c.b16 %v754, %v752
        %v865 = vpack.c.b16 %v757, %v755
        %v866 = vpack.c.b16 %v758, %v756
        %v867 = vpack.c.b16 %v761, %v759
        %v868 = vpack.c.b16 %v762, %v760
        %v869 = vpack.c.b16 %v765, %v763
        %v870 = vpack.c.b16 %v766, %v764
        %v871 = vpack.c.b16 %v769, %v767
        %v872 = vpack.c.b16 %v770, %v768
        %v873 = vpack.c.b16 %v773, %v771
        %v874 = vpack.c.b16 %v774, %v772
        %v875 = vpack.c.b16 %v777, %v775
        %v876 = vpack.c.b16 %v778, %v776
        %v877 = vpack.c.b16 %v781, %v779
        %v878 = vpack.c.b16 %v782, %v780
        %v879 = vpack.c.b16 %v785, %v783
        %v880 = vpack.c.b16 %v786, %v784
        %v881 = vpack.c.b16 %v789, %v787
        %v882 = vpack.c.b16 %v790, %v788
        %v883 = vpack.c.b16 %v793, %v791
        %v884 = vpack.c.b16 %v794, %v792
        %v885 = vpack.c.b16 %v797, %v795
        %v886 = vpack.c.b16 %v798, %v796
        %v887 = vpack.c.b16 %v801, %v799
        %v888 = vpack.c.b16 %v802, %v800
        %v889 = vpack.c.b16 %v805, %v803
        %v890 = vpack.c.b16 %v806, %v804
        %v891 = vpack.c.b16 %v809, %v807
        %v892 = vpack.c.b16 %v810, %v808
        %v893 = vpack.c.b16 %v813, %v811
        %v894 = vpack.c.b16 %v814, %v812
        %v895 = vpack.c.b16 %v817, %v815
        %v896 = vpack.c.b16 %v818, %v816
        %v897 = vpack.c.b16 %v821, %v819
        %v898 = vpack.c.b16 %v822, %v820
        %v899 = vpack.c.b16 %v825, %v823
        %v900 = vpack.c.b16 %v826, %v824
        %v901 = vpack.c.b16 %v829, %v827
        %v902 = vpack.c.b16 %v830, %v828
        %v903 = vpack.c.b16 %v833, %v831
        %v904 = vpack.c.b16 %v834, %v832
        %v905 = vpack.c.b16 %v837, %v835
        %v906 = vpack.c.b16 %v838, %v836
        %v907 = vpack.c.b16 %v841, %v839
        %v908 = vpack.c.b16 %v842, %v840
        %v909 = vpack.c.b16 %v845, %v843
        %v910 = vpack.c.b16 %v846, %v844
        %975 = vmatprep.subr.bf16.mxu0 %v862
        %976 = vmatpush1.bf16.msra.mxu0 %v861
        %977 = vmatprep.subr.bf16.mxu0 %v860
        %978 = vmatpush1.bf16.msra.mxu0 %v859
        %979 = vmatprep.subr.bf16.mxu0 %v858
        %980 = vmatpush1.bf16.msra.mxu0 %v857
        %981 = vmatprep.subr.bf16.mxu0 %v856
        %982 = vmatpush1.bf16.msra.mxu0 %v855
        %983 = vmatprep.subr.bf16.mxu0 %v854
        %984 = vmatpush1.bf16.msra.mxu0 %v853
        %985 = vmatprep.subr.bf16.mxu0 %v852
        %986 = vmatpush1.bf16.msra.mxu0 %v851
        %987 = vmatprep.subr.bf16.mxu0 %v850
        %988 = vmatpush1.bf16.msra.mxu0 %v849
        %989 = vmatprep.subr.bf16.mxu0 %v848
        %990 = vmatpush1.bf16.msra.mxu0 %v847
        %991 = vmatprep.subr.bf16.mxu0 %v878
        %992 = vmatpush2.bf16.msra.mxu0 %v877
        %993 = vmatprep.subr.bf16.mxu0 %v876
        %994 = vmatpush2.bf16.msra.mxu0 %v875
        %995 = vmatprep.subr.bf16.mxu0 %v874
        %996 = vmatpush2.bf16.msra.mxu0 %v873
        %997 = vmatprep.subr.bf16.mxu0 %v872
        %998 = vmatpush2.bf16.msra.mxu0 %v871
        %999 = vmatprep.subr.bf16.mxu0 %v870
        %1000 = vmatpush2.bf16.msra.mxu0 %v869
        %1001 = vmatprep.subr.bf16.mxu0 %v868
        %1002 = vmatpush2.bf16.msra.mxu0 %v867
        %1003 = vmatprep.subr.bf16.mxu0 %v866
        %1004 = vmatpush2.bf16.msra.mxu0 %v865
        %1005 = vmatprep.subr.bf16.mxu0 %v864
        %1006 = vmatpush2.bf16.msra.mxu0 %v863
        %1007 = vmatprep.mubr.bf16.mxu0 %v648
        %1008 = vmatmul.mubr.bf16.gmra.mxu0 %v647
        %v1009 = vpop.f32.mrf.mxu0
        %v1010 = vadd.f32 0.0, %v1009
        %v1011 = vpop.f32.mrf.mxu0
        %v1012 = vadd.f32 0.0, %v1011
        %v1013 = vpop.f32.mrf.mxu0
        %v1014 = vadd.f32 0.0, %v1013
        %v1015 = vpop.f32.mrf.mxu0
        %v1016 = vadd.f32 0.0, %v1015
        %1017 = vdwg.mxu0
        %1018 = vmatprep.subr.bf16.mxu0 %v894
        %1019 = vmatpush1.bf16.msra.mxu0 %v893
        %1020 = vmatprep.subr.bf16.mxu0 %v892
        %1021 = vmatpush1.bf16.msra.mxu0 %v891
        %1022 = vmatprep.subr.bf16.mxu0 %v890
        %1023 = vmatpush1.bf16.msra.mxu0 %v889
        %1024 = vmatprep.subr.bf16.mxu0 %v888
        %1025 = vmatpush1.bf16.msra.mxu0 %v887
        %1026 = vmatprep.subr.bf16.mxu0 %v886
        %1027 = vmatpush1.bf16.msra.mxu0 %v885
        %1028 = vmatprep.subr.bf16.mxu0 %v884
        %1029 = vmatpush1.bf16.msra.mxu0 %v883
        %1030 = vmatprep.subr.bf16.mxu0 %v882
        %1031 = vmatpush1.bf16.msra.mxu0 %v881
        %1032 = vmatprep.subr.bf16.mxu0 %v880
        %1033 = vmatpush1.bf16.msra.mxu0 %v879
        %1034 = vmatprep.subr.bf16.mxu0 %v910
        %1035 = vmatpush2.bf16.msra.mxu0 %v909
        %1036 = vmatprep.subr.bf16.mxu0 %v908
        %1037 = vmatpush2.bf16.msra.mxu0 %v907
        %1038 = vmatprep.subr.bf16.mxu0 %v906
        %1039 = vmatpush2.bf16.msra.mxu0 %v905
        %1040 = vmatprep.subr.bf16.mxu0 %v904
        %1041 = vmatpush2.bf16.msra.mxu0 %v903
        %1042 = vmatprep.subr.bf16.mxu0 %v902
        %1043 = vmatpush2.bf16.msra.mxu0 %v901
        %1044 = vmatprep.subr.bf16.mxu0 %v900
        %1045 = vmatpush2.bf16.msra.mxu0 %v899
        %1046 = vmatprep.subr.bf16.mxu0 %v898
        %1047 = vmatpush2.bf16.msra.mxu0 %v897
        %1048 = vmatprep.subr.bf16.mxu0 %v896
        %1049 = vmatpush2.bf16.msra.mxu0 %v895
        %1050 = vmatprep.mubr.bf16.mxu0 %v650
        %1051 = vmatmul.mubr.bf16.gmra.mxu0 %v649
        %v1052 = vpop.f32.mrf.mxu0
        %v1053 = vadd.f32 %v1010, %v1052
        %v1054 = vpop.f32.mrf.mxu0
        %v1055 = vadd.f32 %v1012, %v1054
        %v1056 = vpop.f32.mrf.mxu0
        %v1057 = vadd.f32 %v1014, %v1056
        %v1058 = vpop.f32.mrf.mxu0
        %v1059 = vadd.f32 %v1016, %v1058
        %1060 = vdwg.mxu0
        %v1061 = vadd.f32 %v563, %v1053
        %v1062 = vadd.f32 %v564, %v1055
        %v1063 = vadd.f32 %v565, %v1057
        %v1064 = vadd.f32 %v566, %v1059
        %1065 = vst [vmem:[#allocation2] sm:$0xff] %v1061
        %1066 = vst [vmem:[#allocation2 + $0x8] sm:$0xff] %v1062
        %1067 = vst [vmem:[#allocation2 + $0x10] sm:$0xff] %v1063
        %1068 = vst [vmem:[#allocation2 + $0x18] sm:$0xff] %v1064
        %p1069 = scmp.eq.s32.totalorder %s21, 5
        // Predicated region
        $region98: #{svae_conv_forward.20} parent=84 // pred_check
          %p1070 = pneg %p1069
        $region99: #{svae_conv_forward.20} parent=84 // pred_check_branch
          %1072 = sbr.rel (%p1070) target = $region101
        $region100: #{svae_conv_forward.20} parent=84 // pred_region
          %v1073 = vld [vmem:[#allocation2] sm:$0xff]
          %v1074 = vld [vmem:[#allocation2 + $0x8] sm:$0xff]
          %v1075 = vld [vmem:[#allocation2 + $0x10] sm:$0xff]
          %v1076 = vld [vmem:[#allocation2 + $0x18] sm:$0xff]
          %v1077 = vld [vmem:[%s551] sm:$0x3]
          %v1079 = vlaneseq
          %v1080 = vshrl.u32 %v1079, 7
          %v1081 = vsub.s32 0, %v1080
          %v1082 = vrot.slane %v1077, %v1081
          %v1083 = vlaneseq
          %v1084 = vshrl.u32 %v1083, 7
          %v1085 = vsub.s32 1, %v1084
          %v1086 = vrot.slane %v1077, %v1085
          %v1089 = vadd.f32 %v1073, %v1082
          %v1090 = vadd.f32 %v1074, %v1086
          %v1091 = vadd.f32 %v1075, %v1082
          %v1092 = vadd.f32 %v1076, %v1086
          %v1093 = vmax.f32 %v1089, 0.0
          %v1094 = vmax.f32 %v1090, 0.0
          %v1095 = vmax.f32 %v1091, 0.0
          %v1096 = vmax.f32 %v1092, 0.0
          %1097 = vst [vmem:[%s543] sm:$0xff] %v1093
          %1098 = vst [vmem:[%s543 + $0x8] sm:$0xff] %v1094
          %1099 = vst [vmem:[%s543 + $0x10] sm:$0xff] %v1095
          %1100 = vst [vmem:[%s543 + $0x18] sm:$0xff] %v1096
        $region101: #{svae_conv_forward.20} parent=84 // pred_fallthru
          _
        %s1101 = sand.u32 %s125, 1
        %s1102 = sand.u32 %s125, 1
        %s1103 = smul.addr %s1102, 32
        %s1104 = scalar_lea.vmem [#allocation5], %s1103
        // Predicated region
        $region102: #{svae_conv_forward.20} parent=84 // pred_check
          %p1105 = pneg %p135
        $region103: #{svae_conv_forward.20} parent=84 // pred_check_branch
          %1107 = sbr.rel (%p1105) target = $region105
        $region104: #{svae_conv_forward.20} parent=84 // pred_region
          %s1108 = smul.u32 2, %s19
          %s1109 = smul.u32 2, %s20
          %s1110 = smul.addr %s1108, 8
          %s1111 = sadd.s32 %s1109, %s1110
          %s1112 = smul.addr %s1111, 8
          %s1113 = scalar_lea.vmem %s3, %s1112
          // Predicated region
          $region106: #{svae_conv_forward.20} parent=104 // pred_check
            _
          $region107: #{svae_conv_forward.20} parent=104 // pred_check_branch
            %1115 = sbr.rel (0) target = $region109
          $region108: #{svae_conv_forward.20} parent=104 // pred_region
            // Predicated region
            $region110: #{svae_conv_forward.20} parent=108 // pred_check
              _
            $region111: #{svae_conv_forward.20} parent=108 // pred_check_branch
              %1117 = sbr.rel (0) target = $region113
            $region112: #{svae_conv_forward.20} parent=108 // pred_region
              loop: start=0, step=1, limit=1
              $region114: #{svae_conv_forward.20} parent=112 // loop_pre_header
                _
              $region115: #{svae_conv_forward.20} parent=112 // loop_header
                %s1119 = sphi 0, %s1123
                %p1120 = scmp.ge.s32.totalorder %s1119, 1
                %s1124 = sphi %s1104, %s1104
                %s1125 = sphi %s1113, %s1113
              $region116: #{svae_conv_forward.20} parent=112 // loop_header_branch
                %1122 = sbr.rel (%p1120) target = $region120
              $region117: #{svae_conv_forward.20} parent=112 // loop_body
                %v1126 = vld [vmem:[%s1124] sm:$0xff]
                %1127 = vst [vmem:[%s1125] sm:$0xff] %v1126
                %v1128 = vld [vmem:[%s1124 + $0x8] sm:$0xff]
                %1129 = vst [vmem:[%s1125 + $0x8] sm:$0xff] %v1128
                %v1130 = vld [vmem:[%s1124 + $0x10] sm:$0xff]
                %1131 = vst [vmem:[%s1125 + $0x40] sm:$0xff] %v1130
                %v1132 = vld [vmem:[%s1124 + $0x18] sm:$0xff]
                %1133 = vst [vmem:[%s1125 + $0x48] sm:$0xff] %v1132
              $region118: #{svae_conv_forward.20} parent=112 // loop_footer
                %s1123 = sadd.s32 1, %s1119
              $region119: #{svae_conv_forward.20} parent=112 // loop_footer_branch
                %1118 = sbr.rel target = $region115
              $region120: #{svae_conv_forward.20} parent=112 // loop_exit
                _
            $region113: #{svae_conv_forward.20} parent=108 // pred_fallthru
              _
            // Predicated region
            $region121: #{svae_conv_forward.20} parent=108 // pred_check
              _
            $region122: #{svae_conv_forward.20} parent=108 // pred_check_branch
              %1135 = sbr.rel target = $region124
            $region123: #{svae_conv_forward.20} parent=108 // pred_region
              _
            $region124: #{svae_conv_forward.20} parent=108 // pred_fallthru
              _
          $region109: #{svae_conv_forward.20} parent=104 // pred_fallthru
            _
          %1136 = vnop
        $region105: #{svae_conv_forward.20} parent=84 // pred_fallthru
          _
      $region85: #{svae_conv_forward.20} parent=5 // pred_fallthru
        _
      %p1137 = scmp.le.s32.totalorder 2, %s9
      // Predicated region
      $region125: #{svae_conv_forward.20} parent=5 // pred_check
        %p1138 = pneg %p1137
      $region126: #{svae_conv_forward.20} parent=5 // pred_check_branch
        %1140 = sbr.rel (%p1138) target = $region128
      $region127: #{svae_conv_forward.20} parent=5 // pred_region
        %s1141 = ssub.s32 %s9, 2
        // Predicated region
        $region129: #{svae_conv_forward.20} parent=127 // pred_check
          %p1142 = pneg %p141
        $region130: #{svae_conv_forward.20} parent=127 // pred_check_branch
          %1144 = sbr.rel (%p1142) target = $region132
        $region131: #{svae_conv_forward.20} parent=127 // pred_region
          %s1145 = sand.u32 %s126, 1
          %s1146 = sand.u32 %s126, 1
          %s1147 = smul.addr %s1146, 32
          %s1148 = scalar_lea.vmem [#allocation5], %s1147
        $region132: #{svae_conv_forward.20} parent=127 // pred_fallthru
          _
      $region128: #{svae_conv_forward.20} parent=5 // pred_fallthru
        _
    $region6: #{svae_conv_forward.20} parent=1 // loop_footer
      %s13 = sadd.s32 1, %s9
    $region7: #{svae_conv_forward.20} parent=1 // loop_footer_branch
      %8 = sbr.rel target = $region3
    $region8: #{svae_conv_forward.20} parent=1 // loop_exit
      _

// kernel: svae_conv_forward.21
$region0: #{svae_conv_forward.21}
  #allocation0 [shape = 'u32[]', space=smem, size = 0x4, offset = 0x4, fixed_abs, tag = 'smem constant byte address 0x4 - core index']
  #allocation1 [shape = 'u32[144,128]{1,0:T(1,128)}', space=vmem, size = 0x12000, scoped, tag = 'internal scratch']
  %s0 = inlined_call_operand.vmem [shape: f32[2,1024], index: 0, kind: input, shape index: {}]
  %s1 = inlined_call_operand.vmem [shape: f32[1024,64], index: 1, kind: input, shape index: {}]
  %s2 = inlined_call_operand.vmem [shape: f32[1,64], index: 2, kind: input, shape index: {}]
  %s3 = inlined_call_operand.vmem [shape: f32[2,32], index: 3, kind: input, shape index: {}]
  %s4 = inlined_call_operand.vmem [shape: f32[32,7], index: 4, kind: input, shape index: {}]
  %s5 = inlined_call_operand.vmem [shape: f32[1,7], index: 5, kind: input, shape index: {}]
  %s6 = inlined_call_operand.vmem [shape: f32[32,2], index: 6, kind: input, shape index: {}]
  %s7 = inlined_call_operand.vmem [shape: f32[1,2], index: 7, kind: input, shape index: {}]
  %s8 = inlined_call_operand.vmem [shape: f32[32,1024], index: 8, kind: input, shape index: {}]
  %s9 = inlined_call_operand.vmem [shape: f32[1,1024], index: 9, kind: input, shape index: {}]
  %s10 = inlined_call_operand.hbm [shape: f32[2,32], index: 10, kind: output, shape index: {0}]
  %s11 = inlined_call_operand.hbm [shape: f32[2,32], index: 11, kind: output, shape index: {1}]
  %s12 = inlined_call_operand.hbm [shape: f32[2,32], index: 12, kind: output, shape index: {2}]
  %s13 = inlined_call_operand.hbm [shape: f32[2,7], index: 13, kind: output, shape index: {3}]
  %s14 = inlined_call_operand.hbm [shape: f32[2,2], index: 14, kind: output, shape index: {4}]
  %s15 = inlined_call_operand.vmem [shape: f32[2,1024], index: 15, kind: output, shape index: {5}]
  %16 = xla_tuple %s10, %s11, %s12, %s13, %s14, %s15
  %s17 = sld [smem:[#allocation0]]
  $region90: #{svae_conv_forward.21} parent=0
    _
  %s19 = ssub.s32 1, %s17
  %s20 = scalar_select 0, %s19, %s17
  $region1: #{svae_conv_forward.21} parent=0
    #allocation2 [shape = 'u8[1024]{0}', space=vmem, size = 0x400, scoped, tag = 'output window, operand 0, single buffered']
    #allocation3 [shape = 's32[1]{0}', space=sflag, size = 0x4, scoped, tag = 'scoped memory for svae_conv_forward.21']
    #allocation4 [shape = 'u8[1024]{0}', space=vmem, size = 0x400, scoped, tag = 'output window, operand 1, single buffered']
    #allocation5 [shape = 's32[1]{0}', space=sflag, size = 0x4, scoped, tag = 'scoped memory for svae_conv_forward.21']
    #allocation6 [shape = 'u8[1024]{0}', space=vmem, size = 0x400, scoped, tag = 'output window, operand 2, single buffered']
    #allocation7 [shape = 'u8[1024]{0}', space=vmem, size = 0x400, scoped, tag = 'output window, operand 3, single buffered']
    #allocation8 [shape = 's32[1]{0}', space=sflag, size = 0x4, scoped, tag = 'scoped memory for svae_conv_forward.21']
    #allocation9 [shape = 'u8[1024]{0}', space=vmem, size = 0x400, scoped, tag = 'output window, operand 4, single buffered']
    %21 = vsyncpa [#allocation3], 0
    %22 = vsyncpa [#allocation5], 0
    %23 = vsyncpa [#allocation8], 0
    // Predicated region
    $region2: #{svae_conv_forward.21} parent=1 // pred_check
      _
    $region3: #{svae_conv_forward.21} parent=1 // pred_check_branch
      %25 = sbr.rel (0) target = $region5
    $region4: #{svae_conv_forward.21} parent=1 // pred_region
      _
    $region5: #{svae_conv_forward.21} parent=1 // pred_fallthru
      _
    // Predicated region
    $region6: #{svae_conv_forward.21} parent=1 // pred_check
      _
    $region7: #{svae_conv_forward.21} parent=1 // pred_check_branch
      %27 = sbr.rel (0) target = $region9
    $region8: #{svae_conv_forward.21} parent=1 // pred_region
      _
    $region9: #{svae_conv_forward.21} parent=1 // pred_fallthru
      _
    // Predicated region
    $region10: #{svae_conv_forward.21} parent=1 // pred_check
      _
    $region11: #{svae_conv_forward.21} parent=1 // pred_check_branch
      %29 = sbr.rel (0) target = $region13
    $region12: #{svae_conv_forward.21} parent=1 // pred_region
      _
    $region13: #{svae_conv_forward.21} parent=1 // pred_fallthru
      _
    // Predicated region
    $region14: #{svae_conv_forward.21} parent=1 // pred_check
      _
    $region15: #{svae_conv_forward.21} parent=1 // pred_check_branch
      %31 = sbr.rel (0) target = $region17
    $region16: #{svae_conv_forward.21} parent=1 // pred_region
      _
    $region17: #{svae_conv_forward.21} parent=1 // pred_fallthru
      _
    // Predicated region
    $region18: #{svae_conv_forward.21} parent=1 // pred_check
      _
    $region19: #{svae_conv_forward.21} parent=1 // pred_check_branch
      %33 = sbr.rel (0) target = $region21
    $region20: #{svae_conv_forward.21} parent=1 // pred_region
      _
    $region21: #{svae_conv_forward.21} parent=1 // pred_fallthru
      _
    // Predicated region
    $region22: #{svae_conv_forward.21} parent=1 // pred_check
      _
    $region23: #{svae_conv_forward.21} parent=1 // pred_check_branch
      %35 = sbr.rel (0) target = $region25
    $region24: #{svae_conv_forward.21} parent=1 // pred_region
      _
    $region25: #{svae_conv_forward.21} parent=1 // pred_fallthru
      _
    // Predicated region
    $region26: #{svae_conv_forward.21} parent=1 // pred_check
      _
    $region27: #{svae_conv_forward.21} parent=1 // pred_check_branch
      %37 = sbr.rel (0) target = $region29
    $region28: #{svae_conv_forward.21} parent=1 // pred_region
      _
    $region29: #{svae_conv_forward.21} parent=1 // pred_fallthru
      _
    // Predicated region
    $region30: #{svae_conv_forward.21} parent=1 // pred_check
      _
    $region31: #{svae_conv_forward.21} parent=1 // pred_check_branch
      %39 = sbr.rel (0) target = $region33
    $region32: #{svae_conv_forward.21} parent=1 // pred_region
      _
    $region33: #{svae_conv_forward.21} parent=1 // pred_fallthru
      _
    // Predicated region
    $region34: #{svae_conv_forward.21} parent=1 // pred_check
      _
    $region35: #{svae_conv_forward.21} parent=1 // pred_check_branch
      %41 = sbr.rel (0) target = $region37
    $region36: #{svae_conv_forward.21} parent=1 // pred_region
      _
    $region37: #{svae_conv_forward.21} parent=1 // pred_fallthru
      _
    // Predicated region
    $region38: #{svae_conv_forward.21} parent=1 // pred_check
      _
    $region39: #{svae_conv_forward.21} parent=1 // pred_check_branch
      %43 = sbr.rel (0) target = $region41
    $region40: #{svae_conv_forward.21} parent=1 // pred_region
      _
    $region41: #{svae_conv_forward.21} parent=1 // pred_fallthru
      _
    %v44 = vld [vmem:[%s0] sm:$0xff]
    %v45 = vld [vmem:[%s0 + $0x8] sm:$0xff]
    %v46 = vld [vmem:[%s1] sm:$0xff]
    %v47 = vld [vmem:[%s1 + $0x8] sm:$0xff]
    %v48 = vld [vmem:[%s1 + $0x10] sm:$0xff]
    %v49 = vld [vmem:[%s1 + $0x18] sm:$0xff]
    %v50 = vld [vmem:[%s1 + $0x20] sm:$0xff]
    %v51 = vld [vmem:[%s1 + $0x28] sm:$0xff]
    %v52 = vld [vmem:[%s1 + $0x30] sm:$0xff]
    %v53 = vld [vmem:[%s1 + $0x38] sm:$0xff]
    %v54 = vld [vmem:[%s1 + $0x40] sm:$0xff]
    %v55 = vld [vmem:[%s1 + $0x48] sm:$0xff]
    %v56 = vld [vmem:[%s1 + $0x50] sm:$0xff]
    %v57 = vld [vmem:[%s1 + $0x58] sm:$0xff]
    %v58 = vld [vmem:[%s1 + $0x60] sm:$0xff]
    %v59 = vld [vmem:[%s1 + $0x68] sm:$0xff]
    %v60 = vld [vmem:[%s1 + $0x70] sm:$0xff]
    %v61 = vld [vmem:[%s1 + $0x78] sm:$0xff]
    %v62 = vld [vmem:[%s1 + $0x80] sm:$0xff]
    %v63 = vld [vmem:[%s1 + $0x88] sm:$0xff]
    %v64 = vld [vmem:[%s1 + $0x90] sm:$0xff]
    %v65 = vld [vmem:[%s1 + $0x98] sm:$0xff]
    %v66 = vld [vmem:[%s1 + $0xa0] sm:$0xff]
    %v67 = vld [vmem:[%s1 + $0xa8] sm:$0xff]
    %v68 = vld [vmem:[%s1 + $0xb0] sm:$0xff]
    %v69 = vld [vmem:[%s1 + $0xb8] sm:$0xff]
    %v70 = vld [vmem:[%s1 + $0xc0] sm:$0xff]
    %v71 = vld [vmem:[%s1 + $0xc8] sm:$0xff]
    %v72 = vld [vmem:[%s1 + $0xd0] sm:$0xff]
    %v73 = vld [vmem:[%s1 + $0xd8] sm:$0xff]
    %v74 = vld [vmem:[%s1 + $0xe0] sm:$0xff]
    %v75 = vld [vmem:[%s1 + $0xe8] sm:$0xff]
    %v76 = vld [vmem:[%s1 + $0xf0] sm:$0xff]
    %v77 = vld [vmem:[%s1 + $0xf8] sm:$0xff]
    %v78 = vld [vmem:[%s1 + $0x100] sm:$0xff]
    %v79 = vld [vmem:[%s1 + $0x108] sm:$0xff]
    %v80 = vld [vmem:[%s1 + $0x110] sm:$0xff]
    %v81 = vld [vmem:[%s1 + $0x118] sm:$0xff]
    %v82 = vld [vmem:[%s1 + $0x120] sm:$0xff]
    %v83 = vld [vmem:[%s1 + $0x128] sm:$0xff]
    %v84 = vld [vmem:[%s1 + $0x130] sm:$0xff]
    %v85 = vld [vmem:[%s1 + $0x138] sm:$0xff]
    %v86 = vld [vmem:[%s1 + $0x140] sm:$0xff]
    %v87 = vld [vmem:[%s1 + $0x148] sm:$0xff]
    %v88 = vld [vmem:[%s1 + $0x150] sm:$0xff]
    %v89 = vld [vmem:[%s1 + $0x158] sm:$0xff]
    %v90 = vld [vmem:[%s1 + $0x160] sm:$0xff]
    %v91 = vld [vmem:[%s1 + $0x168] sm:$0xff]
    %v92 = vld [vmem:[%s1 + $0x170] sm:$0xff]
    %v93 = vld [vmem:[%s1 + $0x178] sm:$0xff]
    %v94 = vld [vmem:[%s1 + $0x180] sm:$0xff]
    %v95 = vld [vmem:[%s1 + $0x188] sm:$0xff]
    %v96 = vld [vmem:[%s1 + $0x190] sm:$0xff]
    %v97 = vld [vmem:[%s1 + $0x198] sm:$0xff]
    %v98 = vld [vmem:[%s1 + $0x1a0] sm:$0xff]
    %v99 = vld [vmem:[%s1 + $0x1a8] sm:$0xff]
    %v100 = vld [vmem:[%s1 + $0x1b0] sm:$0xff]
    %v101 = vld [vmem:[%s1 + $0x1b8] sm:$0xff]
    %v102 = vld [vmem:[%s1 + $0x1c0] sm:$0xff]
    %v103 = vld [vmem:[%s1 + $0x1c8] sm:$0xff]
    %v104 = vld [vmem:[%s1 + $0x1d0] sm:$0xff]
    %v105 = vld [vmem:[%s1 + $0x1d8] sm:$0xff]
    %v106 = vld [vmem:[%s1 + $0x1e0] sm:$0xff]
    %v107 = vld [vmem:[%s1 + $0x1e8] sm:$0xff]
    %v108 = vld [vmem:[%s1 + $0x1f0] sm:$0xff]
    %v109 = vld [vmem:[%s1 + $0x1f8] sm:$0xff]
    %v110 = vld [vmem:[%s1 + $0x200] sm:$0xff]
    %v111 = vld [vmem:[%s1 + $0x208] sm:$0xff]
    %v112 = vld [vmem:[%s1 + $0x210] sm:$0xff]
    %v113 = vld [vmem:[%s1 + $0x218] sm:$0xff]
    %v114 = vld [vmem:[%s1 + $0x220] sm:$0xff]
    %v115 = vld [vmem:[%s1 + $0x228] sm:$0xff]
    %v116 = vld [vmem:[%s1 + $0x230] sm:$0xff]
    %v117 = vld [vmem:[%s1 + $0x238] sm:$0xff]
    %v118 = vld [vmem:[%s1 + $0x240] sm:$0xff]
    %v119 = vld [vmem:[%s1 + $0x248] sm:$0xff]
    %v120 = vld [vmem:[%s1 + $0x250] sm:$0xff]
    %v121 = vld [vmem:[%s1 + $0x258] sm:$0xff]
    %v122 = vld [vmem:[%s1 + $0x260] sm:$0xff]
    %v123 = vld [vmem:[%s1 + $0x268] sm:$0xff]
    %v124 = vld [vmem:[%s1 + $0x270] sm:$0xff]
    %v125 = vld [vmem:[%s1 + $0x278] sm:$0xff]
    %v126 = vld [vmem:[%s1 + $0x280] sm:$0xff]
    %v127 = vld [vmem:[%s1 + $0x288] sm:$0xff]
    %v128 = vld [vmem:[%s1 + $0x290] sm:$0xff]
    %v129 = vld [vmem:[%s1 + $0x298] sm:$0xff]
    %v130 = vld [vmem:[%s1 + $0x2a0] sm:$0xff]
    %v131 = vld [vmem:[%s1 + $0x2a8] sm:$0xff]
    %v132 = vld [vmem:[%s1 + $0x2b0] sm:$0xff]
    %v133 = vld [vmem:[%s1 + $0x2b8] sm:$0xff]
    %v134 = vld [vmem:[%s1 + $0x2c0] sm:$0xff]
    %v135 = vld [vmem:[%s1 + $0x2c8] sm:$0xff]
    %v136 = vld [vmem:[%s1 + $0x2d0] sm:$0xff]
    %v137 = vld [vmem:[%s1 + $0x2d8] sm:$0xff]
    %v138 = vld [vmem:[%s1 + $0x2e0] sm:$0xff]
    %v139 = vld [vmem:[%s1 + $0x2e8] sm:$0xff]
    %v140 = vld [vmem:[%s1 + $0x2f0] sm:$0xff]
    %v141 = vld [vmem:[%s1 + $0x2f8] sm:$0xff]
    %v142 = vld [vmem:[%s1 + $0x300] sm:$0xff]
    %v143 = vld [vmem:[%s1 + $0x308] sm:$0xff]
    %v144 = vld [vmem:[%s1 + $0x310] sm:$0xff]
    %v145 = vld [vmem:[%s1 + $0x318] sm:$0xff]
    %v146 = vld [vmem:[%s1 + $0x320] sm:$0xff]
    %v147 = vld [vmem:[%s1 + $0x328] sm:$0xff]
    %v148 = vld [vmem:[%s1 + $0x330] sm:$0xff]
    %v149 = vld [vmem:[%s1 + $0x338] sm:$0xff]
    %v150 = vld [vmem:[%s1 + $0x340] sm:$0xff]
    %v151 = vld [vmem:[%s1 + $0x348] sm:$0xff]
    %v152 = vld [vmem:[%s1 + $0x350] sm:$0xff]
    %v153 = vld [vmem:[%s1 + $0x358] sm:$0xff]
    %v154 = vld [vmem:[%s1 + $0x360] sm:$0xff]
    %v155 = vld [vmem:[%s1 + $0x368] sm:$0xff]
    %v156 = vld [vmem:[%s1 + $0x370] sm:$0xff]
    %v157 = vld [vmem:[%s1 + $0x378] sm:$0xff]
    %v158 = vld [vmem:[%s1 + $0x380] sm:$0xff]
    %v159 = vld [vmem:[%s1 + $0x388] sm:$0xff]
    %v160 = vld [vmem:[%s1 + $0x390] sm:$0xff]
    %v161 = vld [vmem:[%s1 + $0x398] sm:$0xff]
    %v162 = vld [vmem:[%s1 + $0x3a0] sm:$0xff]
    %v163 = vld [vmem:[%s1 + $0x3a8] sm:$0xff]
    %v164 = vld [vmem:[%s1 + $0x3b0] sm:$0xff]
    %v165 = vld [vmem:[%s1 + $0x3b8] sm:$0xff]
    %v166 = vld [vmem:[%s1 + $0x3c0] sm:$0xff]
    %v167 = vld [vmem:[%s1 + $0x3c8] sm:$0xff]
    %v168 = vld [vmem:[%s1 + $0x3d0] sm:$0xff]
    %v169 = vld [vmem:[%s1 + $0x3d8] sm:$0xff]
    %v170 = vld [vmem:[%s1 + $0x3e0] sm:$0xff]
    %v171 = vld [vmem:[%s1 + $0x3e8] sm:$0xff]
    %v172 = vld [vmem:[%s1 + $0x3f0] sm:$0xff]
    %v173 = vld [vmem:[%s1 + $0x3f8] sm:$0xff]
    %v174 = vld [vmem:[%s2] sm:$0x1]
    %v176 = vlaneseq
    %v177 = vshrl.u32 %v176, 7
    %v178 = vsub.s32 0, %v177
    %v179 = vrot.slane %v174, %v178
    %v183 = vcombine.high %v44, %v44
    %v185 = vunpack.c.l.s4 1983009808
    %v186 = vunpack.c.0.s8 %v185
    %v187 = vlaneseq
    %v188 = vshrl.u32 %v187, 7
    %v189 = vsub.s32 %v186, %v188
    %v190 = vrot.slane %v44, %v189
    %v192 = vunpack.c.l.s4 1983009808
    %v193 = vunpack.c.0.s8 %v192
    %v194 = vlaneseq
    %v195 = vshrl.u32 %v194, 7
    %v196 = vsub.s32 %v193, %v195
    %v197 = vrot.slane %v183, %v196
    %v198 = vcombine.high %v190, %v190
    %v199 = vcombine.high %v197, %v197
    %v200 = vcombine.high %v45, %v45
    %v202 = vunpack.c.l.s4 1983009808
    %v203 = vunpack.c.0.s8 %v202
    %v204 = vlaneseq
    %v205 = vshrl.u32 %v204, 7
    %v206 = vsub.s32 %v203, %v205
    %v207 = vrot.slane %v45, %v206
    %v209 = vunpack.c.l.s4 1983009808
    %v210 = vunpack.c.0.s8 %v209
    %v211 = vlaneseq
    %v212 = vshrl.u32 %v211, 7
    %v213 = vsub.s32 %v210, %v212
    %v214 = vrot.slane %v200, %v213
    %v215 = vcombine.high %v207, %v207
    %v216 = vcombine.high %v214, %v214
    %225 = vmatprep.subr.mxu0 0.0
    %226 = vmatpush1.msra.mxu0 %v61
    %227 = vmatprep.subr.mxu0 0.0
    %228 = vmatpush1.msra.mxu0 %v60
    %229 = vmatprep.subr.mxu0 0.0
    %230 = vmatpush1.msra.mxu0 %v59
    %231 = vmatprep.subr.mxu0 0.0
    %232 = vmatpush1.msra.mxu0 %v58
    %233 = vmatprep.subr.mxu0 0.0
    %234 = vmatpush1.msra.mxu0 %v57
    %235 = vmatprep.subr.mxu0 0.0
    %236 = vmatpush1.msra.mxu0 %v56
    %237 = vmatprep.subr.mxu0 0.0
    %238 = vmatpush1.msra.mxu0 %v55
    %239 = vmatprep.subr.mxu0 0.0
    %240 = vmatpush1.msra.mxu0 %v54
    %241 = vmatprep.subr.mxu0 0.0
    %242 = vmatpush1.msra.mxu0 %v53
    %243 = vmatprep.subr.mxu0 0.0
    %244 = vmatpush1.msra.mxu0 %v52
    %245 = vmatprep.subr.mxu0 0.0
    %246 = vmatpush1.msra.mxu0 %v51
    %247 = vmatprep.subr.mxu0 0.0
    %248 = vmatpush1.msra.mxu0 %v50
    %249 = vmatprep.subr.mxu0 0.0
    %250 = vmatpush1.msra.mxu0 %v49
    %251 = vmatprep.subr.mxu0 0.0
    %252 = vmatpush1.msra.mxu0 %v48
    %253 = vmatprep.subr.mxu0 0.0
    %254 = vmatpush1.msra.mxu0 %v47
    %255 = vmatprep.subr.mxu0 0.0
    %256 = vmatpush1.msra.mxu0 %v46
    %257 = vmatprep.subr.mxu0 0.0
    %258 = vmatpush2.msra.mxu0 %v77
    %259 = vmatprep.subr.mxu0 0.0
    %260 = vmatpush2.msra.mxu0 %v76
    %261 = vmatprep.subr.mxu0 0.0
    %262 = vmatpush2.msra.mxu0 %v75
    %263 = vmatprep.subr.mxu0 0.0
    %264 = vmatpush2.msra.mxu0 %v74
    %265 = vmatprep.subr.mxu0 0.0
    %266 = vmatpush2.msra.mxu0 %v73
    %267 = vmatprep.subr.mxu0 0.0
    %268 = vmatpush2.msra.mxu0 %v72
    %269 = vmatprep.subr.mxu0 0.0
    %270 = vmatpush2.msra.mxu0 %v71
    %271 = vmatprep.subr.mxu0 0.0
    %272 = vmatpush2.msra.mxu0 %v70
    %273 = vmatprep.subr.mxu0 0.0
    %274 = vmatpush2.msra.mxu0 %v69
    %275 = vmatprep.subr.mxu0 0.0
    %276 = vmatpush2.msra.mxu0 %v68
    %277 = vmatprep.subr.mxu0 0.0
    %278 = vmatpush2.msra.mxu0 %v67
    %279 = vmatprep.subr.mxu0 0.0
    %280 = vmatpush2.msra.mxu0 %v66
    %281 = vmatprep.subr.mxu0 0.0
    %282 = vmatpush2.msra.mxu0 %v65
    %283 = vmatprep.subr.mxu0 0.0
    %284 = vmatpush2.msra.mxu0 %v64
    %285 = vmatprep.subr.mxu0 0.0
    %286 = vmatpush2.msra.mxu0 %v63
    %287 = vmatprep.subr.mxu0 0.0
    %288 = vmatpush2.msra.mxu0 %v62
    %289 = vmatprep.mubr.f32.mxu0 %v198
    %290 = vmatmul.mubr.f32.gmra.mxu0 %v190
    %v291 = vpop.f32.mrf.mxu0
    %v292 = vadd.f32 %v179, %v291
    %v293 = vpop.f32.mrf.mxu0
    %294 = vdwg.mxu0
    %295 = vmatprep.subr.mxu0 0.0
    %296 = vmatpush1.msra.mxu0 %v93
    %297 = vmatprep.subr.mxu0 0.0
    %298 = vmatpush1.msra.mxu0 %v92
    %299 = vmatprep.subr.mxu0 0.0
    %300 = vmatpush1.msra.mxu0 %v91
    %301 = vmatprep.subr.mxu0 0.0
    %302 = vmatpush1.msra.mxu0 %v90
    %303 = vmatprep.subr.mxu0 0.0
    %304 = vmatpush1.msra.mxu0 %v89
    %305 = vmatprep.subr.mxu0 0.0
    %306 = vmatpush1.msra.mxu0 %v88
    %307 = vmatprep.subr.mxu0 0.0
    %308 = vmatpush1.msra.mxu0 %v87
    %309 = vmatprep.subr.mxu0 0.0
    %310 = vmatpush1.msra.mxu0 %v86
    %311 = vmatprep.subr.mxu0 0.0
    %312 = vmatpush1.msra.mxu0 %v85
    %313 = vmatprep.subr.mxu0 0.0
    %314 = vmatpush1.msra.mxu0 %v84
    %315 = vmatprep.subr.mxu0 0.0
    %316 = vmatpush1.msra.mxu0 %v83
    %317 = vmatprep.subr.mxu0 0.0
    %318 = vmatpush1.msra.mxu0 %v82
    %319 = vmatprep.subr.mxu0 0.0
    %320 = vmatpush1.msra.mxu0 %v81
    %321 = vmatprep.subr.mxu0 0.0
    %322 = vmatpush1.msra.mxu0 %v80
    %323 = vmatprep.subr.mxu0 0.0
    %324 = vmatpush1.msra.mxu0 %v79
    %325 = vmatprep.subr.mxu0 0.0
    %326 = vmatpush1.msra.mxu0 %v78
    %327 = vmatprep.subr.mxu0 0.0
    %328 = vmatpush2.msra.mxu0 %v109
    %329 = vmatprep.subr.mxu0 0.0
    %330 = vmatpush2.msra.mxu0 %v108
    %331 = vmatprep.subr.mxu0 0.0
    %332 = vmatpush2.msra.mxu0 %v107
    %333 = vmatprep.subr.mxu0 0.0
    %334 = vmatpush2.msra.mxu0 %v106
    %335 = vmatprep.subr.mxu0 0.0
    %336 = vmatpush2.msra.mxu0 %v105
    %337 = vmatprep.subr.mxu0 0.0
    %338 = vmatpush2.msra.mxu0 %v104
    %339 = vmatprep.subr.mxu0 0.0
    %340 = vmatpush2.msra.mxu0 %v103
    %341 = vmatprep.subr.mxu0 0.0
    %342 = vmatpush2.msra.mxu0 %v102
    %343 = vmatprep.subr.mxu0 0.0
    %344 = vmatpush2.msra.mxu0 %v101
    %345 = vmatprep.subr.mxu0 0.0
    %346 = vmatpush2.msra.mxu0 %v100
    %347 = vmatprep.subr.mxu0 0.0
    %348 = vmatpush2.msra.mxu0 %v99
    %349 = vmatprep.subr.mxu0 0.0
    %350 = vmatpush2.msra.mxu0 %v98
    %351 = vmatprep.subr.mxu0 0.0
    %352 = vmatpush2.msra.mxu0 %v97
    %353 = vmatprep.subr.mxu0 0.0
    %354 = vmatpush2.msra.mxu0 %v96
    %355 = vmatprep.subr.mxu0 0.0
    %356 = vmatpush2.msra.mxu0 %v95
    %357 = vmatprep.subr.mxu0 0.0
    %358 = vmatpush2.msra.mxu0 %v94
    %359 = vmatprep.mubr.f32.mxu0 %v199
    %360 = vmatmul.mubr.f32.gmra.mxu0 %v197
    %v361 = vpop.f32.mrf.mxu0
    %v362 = vadd.f32 %v292, %v361
    %v363 = vpop.f32.mrf.mxu0
    %364 = vdwg.mxu0
    %365 = vmatprep.subr.mxu0 0.0
    %366 = vmatpush1.msra.mxu0 %v125
    %367 = vmatprep.subr.mxu0 0.0
    %368 = vmatpush1.msra.mxu0 %v124
    %369 = vmatprep.subr.mxu0 0.0
    %370 = vmatpush1.msra.mxu0 %v123
    %371 = vmatprep.subr.mxu0 0.0
    %372 = vmatpush1.msra.mxu0 %v122
    %373 = vmatprep.subr.mxu0 0.0
    %374 = vmatpush1.msra.mxu0 %v121
    %375 = vmatprep.subr.mxu0 0.0
    %376 = vmatpush1.msra.mxu0 %v120
    %377 = vmatprep.subr.mxu0 0.0
    %378 = vmatpush1.msra.mxu0 %v119
    %379 = vmatprep.subr.mxu0 0.0
    %380 = vmatpush1.msra.mxu0 %v118
    %381 = vmatprep.subr.mxu0 0.0
    %382 = vmatpush1.msra.mxu0 %v117
    %383 = vmatprep.subr.mxu0 0.0
    %384 = vmatpush1.msra.mxu0 %v116
    %385 = vmatprep.subr.mxu0 0.0
    %386 = vmatpush1.msra.mxu0 %v115
    %387 = vmatprep.subr.mxu0 0.0
    %388 = vmatpush1.msra.mxu0 %v114
    %389 = vmatprep.subr.mxu0 0.0
    %390 = vmatpush1.msra.mxu0 %v113
    %391 = vmatprep.subr.mxu0 0.0
    %392 = vmatpush1.msra.mxu0 %v112
    %393 = vmatprep.subr.mxu0 0.0
    %394 = vmatpush1.msra.mxu0 %v111
    %395 = vmatprep.subr.mxu0 0.0
    %396 = vmatpush1.msra.mxu0 %v110
    %397 = vmatprep.subr.mxu0 0.0
    %398 = vmatpush2.msra.mxu0 %v141
    %399 = vmatprep.subr.mxu0 0.0
    %400 = vmatpush2.msra.mxu0 %v140
    %401 = vmatprep.subr.mxu0 0.0
    %402 = vmatpush2.msra.mxu0 %v139
    %403 = vmatprep.subr.mxu0 0.0
    %404 = vmatpush2.msra.mxu0 %v138
    %405 = vmatprep.subr.mxu0 0.0
    %406 = vmatpush2.msra.mxu0 %v137
    %407 = vmatprep.subr.mxu0 0.0
    %408 = vmatpush2.msra.mxu0 %v136
    %409 = vmatprep.subr.mxu0 0.0
    %410 = vmatpush2.msra.mxu0 %v135
    %411 = vmatprep.subr.mxu0 0.0
    %412 = vmatpush2.msra.mxu0 %v134
    %413 = vmatprep.subr.mxu0 0.0
    %414 = vmatpush2.msra.mxu0 %v133
    %415 = vmatprep.subr.mxu0 0.0
    %416 = vmatpush2.msra.mxu0 %v132
    %417 = vmatprep.subr.mxu0 0.0
    %418 = vmatpush2.msra.mxu0 %v131
    %419 = vmatprep.subr.mxu0 0.0
    %420 = vmatpush2.msra.mxu0 %v130
    %421 = vmatprep.subr.mxu0 0.0
    %422 = vmatpush2.msra.mxu0 %v129
    %423 = vmatprep.subr.mxu0 0.0
    %424 = vmatpush2.msra.mxu0 %v128
    %425 = vmatprep.subr.mxu0 0.0
    %426 = vmatpush2.msra.mxu0 %v127
    %427 = vmatprep.subr.mxu0 0.0
    %428 = vmatpush2.msra.mxu0 %v126
    %429 = vmatprep.mubr.f32.mxu0 %v215
    %430 = vmatmul.mubr.f32.gmra.mxu0 %v207
    %v431 = vpop.f32.mrf.mxu0
    %v432 = vadd.f32 %v362, %v431
    %v433 = vpop.f32.mrf.mxu0
    %434 = vdwg.mxu0
    %435 = vmatprep.subr.mxu0 0.0
    %436 = vmatpush1.msra.mxu0 %v157
    %437 = vmatprep.subr.mxu0 0.0
    %438 = vmatpush1.msra.mxu0 %v156
    %439 = vmatprep.subr.mxu0 0.0
    %440 = vmatpush1.msra.mxu0 %v155
    %441 = vmatprep.subr.mxu0 0.0
    %442 = vmatpush1.msra.mxu0 %v154
    %443 = vmatprep.subr.mxu0 0.0
    %444 = vmatpush1.msra.mxu0 %v153
    %445 = vmatprep.subr.mxu0 0.0
    %446 = vmatpush1.msra.mxu0 %v152
    %447 = vmatprep.subr.mxu0 0.0
    %448 = vmatpush1.msra.mxu0 %v151
    %449 = vmatprep.subr.mxu0 0.0
    %450 = vmatpush1.msra.mxu0 %v150
    %451 = vmatprep.subr.mxu0 0.0
    %452 = vmatpush1.msra.mxu0 %v149
    %453 = vmatprep.subr.mxu0 0.0
    %454 = vmatpush1.msra.mxu0 %v148
    %455 = vmatprep.subr.mxu0 0.0
    %456 = vmatpush1.msra.mxu0 %v147
    %457 = vmatprep.subr.mxu0 0.0
    %458 = vmatpush1.msra.mxu0 %v146
    %459 = vmatprep.subr.mxu0 0.0
    %460 = vmatpush1.msra.mxu0 %v145
    %461 = vmatprep.subr.mxu0 0.0
    %462 = vmatpush1.msra.mxu0 %v144
    %463 = vmatprep.subr.mxu0 0.0
    %464 = vmatpush1.msra.mxu0 %v143
    %465 = vmatprep.subr.mxu0 0.0
    %466 = vmatpush1.msra.mxu0 %v142
    %467 = vmatprep.subr.mxu0 0.0
    %468 = vmatpush2.msra.mxu0 %v173
    %469 = vmatprep.subr.mxu0 0.0
    %470 = vmatpush2.msra.mxu0 %v172
    %471 = vmatprep.subr.mxu0 0.0
    %472 = vmatpush2.msra.mxu0 %v171
    %473 = vmatprep.subr.mxu0 0.0
    %474 = vmatpush2.msra.mxu0 %v170
    %475 = vmatprep.subr.mxu0 0.0
    %476 = vmatpush2.msra.mxu0 %v169
    %477 = vmatprep.subr.mxu0 0.0
    %478 = vmatpush2.msra.mxu0 %v168
    %479 = vmatprep.subr.mxu0 0.0
    %480 = vmatpush2.msra.mxu0 %v167
    %481 = vmatprep.subr.mxu0 0.0
    %482 = vmatpush2.msra.mxu0 %v166
    %483 = vmatprep.subr.mxu0 0.0
    %484 = vmatpush2.msra.mxu0 %v165
    %485 = vmatprep.subr.mxu0 0.0
    %486 = vmatpush2.msra.mxu0 %v164
    %487 = vmatprep.subr.mxu0 0.0
    %488 = vmatpush2.msra.mxu0 %v163
    %489 = vmatprep.subr.mxu0 0.0
    %490 = vmatpush2.msra.mxu0 %v162
    %491 = vmatprep.subr.mxu0 0.0
    %492 = vmatpush2.msra.mxu0 %v161
    %493 = vmatprep.subr.mxu0 0.0
    %494 = vmatpush2.msra.mxu0 %v160
    %495 = vmatprep.subr.mxu0 0.0
    %496 = vmatpush2.msra.mxu0 %v159
    %497 = vmatprep.subr.mxu0 0.0
    %498 = vmatpush2.msra.mxu0 %v158
    %499 = vmatprep.mubr.f32.mxu0 %v216
    %500 = vmatmul.mubr.f32.gmra.mxu0 %v214
    %v501 = vpop.f32.mrf.mxu0
    %v502 = vadd.f32 %v432, %v501
    %v503 = vpop.f32.mrf.mxu0
    %504 = vdwg.mxu0
    %v505 = vmul.f32 %v502, 0.5
    %v506 = vmul.f32 %v505, 1.442695
    %v507 = vpow.pop %v506
    %v508 = vld [vmem:[%s3] sm:$0x3]
    %510 = vrot.lane.b32.xlu0 %v507, 96
    %v511 = vpop.permute.xlu0 %510
    %v513 = vmul.f32 %v508, %v511
    %v514 = vadd.f32 %v502, %v513
    %vm515 = vcmask 254976
    %516 = vst.msk [vmem:[#allocation2] sm:$0x3] %vm515, %v502
    %518 = vrot.lane.b32.xlu0 %v502, 96
    %v519 = vpop.permute.xlu0 %518
    %521 = vst.msk [vmem:[#allocation4] sm:$0x3] %vm515, %v519
    %522 = vst.msk [vmem:[#allocation6] sm:$0x3] %vm515, %v514
    %v523 = vld [vmem:[%s4] sm:$0xff]
    %v524 = vld [vmem:[%s4 + $0x8] sm:$0xff]
    %v525 = vld [vmem:[%s4 + $0x10] sm:$0xff]
    %v526 = vld [vmem:[%s4 + $0x18] sm:$0xff]
    %v527 = vld [vmem:[%s5] sm:$0x1]
    %v529 = vlaneseq
    %v530 = vshrl.u32 %v529, 7
    %v531 = vsub.s32 0, %v530
    %v532 = vrot.slane %v527, %v531
    %vm534 = vcmask 261120
    %v536 = vsel %vm534, %v514, 0
    %538 = vmatprep.subr.mxu0 0.0
    %539 = vmatpush1.msra.mxu0 0.0
    %540 = vmatprep.subr.mxu0 0.0
    %541 = vmatpush1.msra.mxu0 0.0
    %542 = vmatprep.subr.mxu0 0.0
    %543 = vmatpush1.msra.mxu0 0.0
    %544 = vmatprep.subr.mxu0 0.0
    %545 = vmatpush1.msra.mxu0 0.0
    %546 = vmatprep.subr.mxu0 0.0
    %547 = vmatpush1.msra.mxu0 0.0
    %548 = vmatprep.subr.mxu0 0.0
    %549 = vmatpush1.msra.mxu0 0.0
    %550 = vmatprep.subr.mxu0 0.0
    %551 = vmatpush1.msra.mxu0 0.0
    %552 = vmatprep.subr.mxu0 0.0
    %553 = vmatpush1.msra.mxu0 0.0
    %554 = vmatprep.subr.mxu0 0.0
    %555 = vmatpush1.msra.mxu0 0.0
    %556 = vmatprep.subr.mxu0 0.0
    %557 = vmatpush1.msra.mxu0 0.0
    %558 = vmatprep.subr.mxu0 0.0
    %559 = vmatpush1.msra.mxu0 0.0
    %560 = vmatprep.subr.mxu0 0.0
    %561 = vmatpush1.msra.mxu0 0.0
    %562 = vmatprep.subr.mxu0 0.0
    %563 = vmatpush1.msra.mxu0 %v526
    %564 = vmatprep.subr.mxu0 0.0
    %565 = vmatpush1.msra.mxu0 %v525
    %566 = vmatprep.subr.mxu0 0.0
    %567 = vmatpush1.msra.mxu0 %v524
    %568 = vmatprep.subr.mxu0 0.0
    %569 = vmatpush1.msra.mxu0 %v523
    %570 = vmatprep.subr.mxu0 0.0
    %571 = vmatpush2.msra.mxu0 0.0
    %572 = vmatprep.subr.mxu0 0.0
    %573 = vmatpush2.msra.mxu0 0.0
    %574 = vmatprep.subr.mxu0 0.0
    %575 = vmatpush2.msra.mxu0 0.0
    %576 = vmatprep.subr.mxu0 0.0
    %577 = vmatpush2.msra.mxu0 0.0
    %578 = vmatprep.subr.mxu0 0.0
    %579 = vmatpush2.msra.mxu0 0.0
    %580 = vmatprep.subr.mxu0 0.0
    %581 = vmatpush2.msra.mxu0 0.0
    %582 = vmatprep.subr.mxu0 0.0
    %583 = vmatpush2.msra.mxu0 0.0
    %584 = vmatprep.subr.mxu0 0.0
    %585 = vmatpush2.msra.mxu0 0.0
    %586 = vmatprep.subr.mxu0 0.0
    %587 = vmatpush2.msra.mxu0 0.0
    %588 = vmatprep.subr.mxu0 0.0
    %589 = vmatpush2.msra.mxu0 0.0
    %590 = vmatprep.subr.mxu0 0.0
    %591 = vmatpush2.msra.mxu0 0.0
    %592 = vmatprep.subr.mxu0 0.0
    %593 = vmatpush2.msra.mxu0 0.0
    %594 = vmatprep.subr.mxu0 0.0
    %595 = vmatpush2.msra.mxu0 0.0
    %596 = vmatprep.subr.mxu0 0.0
    %597 = vmatpush2.msra.mxu0 0.0
    %598 = vmatprep.subr.mxu0 0.0
    %599 = vmatpush2.msra.mxu0 0.0
    %600 = vmatprep.subr.mxu0 0.0
    %601 = vmatpush2.msra.mxu0 0.0
    %602 = vmatprep.mubr.f32.mxu0 0.0
    %603 = vmatmul.mubr.f32.gmra.mxu0 %v536
    %v604 = vpop.f32.mrf.mxu0
    %v605 = vadd.f32 %v532, %v604
    %v606 = vpop.f32.mrf.mxu0
    %607 = vdwg.mxu0
    %vm608 = vcmask 50176
    %v609 = vsel %vm608, %v605, -inf
    %610 = vmax.xlane.f32.xlu0 %v609
    %v611 = vpop.xlane.xlu0 %610
    %v612 = vsub.f32 %v605, %v611
    %v613 = vmul.f32 %v612, 1.442695
    %v614 = vpow.pop %v613
    %v615 = vsel %vm608, %v614, 0.0
    %616 = vadd.xlane.f32.xlu0 %v615
    %v617 = vpop.xlane.xlu0 %616
    %v618 = vlog2.pop %v617
    %v619 = vmul.f32 %v618, 0.6931472
    %v620 = vsub.f32 %v612, %v619
    %621 = vst.msk [vmem:[#allocation7] sm:$0x3] %vm608, %v620
    %v622 = vld [vmem:[%s6] sm:$0xff]
    %v623 = vld [vmem:[%s6 + $0x8] sm:$0xff]
    %v624 = vld [vmem:[%s6 + $0x10] sm:$0xff]
    %v625 = vld [vmem:[%s6 + $0x18] sm:$0xff]
    %v626 = vld [vmem:[%s7] sm:$0x1]
    %v628 = vlaneseq
    %v629 = vshrl.u32 %v628, 7
    %v630 = vsub.s32 0, %v629
    %v631 = vrot.slane %v626, %v630
    %633 = vmatprep.subr.mxu0 0.0
    %634 = vmatpush1.msra.mxu0 0.0
    %635 = vmatprep.subr.mxu0 0.0
    %636 = vmatpush1.msra.mxu0 0.0
    %637 = vmatprep.subr.mxu0 0.0
    %638 = vmatpush1.msra.mxu0 0.0
    %639 = vmatprep.subr.mxu0 0.0
    %640 = vmatpush1.msra.mxu0 0.0
    %641 = vmatprep.subr.mxu0 0.0
    %642 = vmatpush1.msra.mxu0 0.0
    %643 = vmatprep.subr.mxu0 0.0
    %644 = vmatpush1.msra.mxu0 0.0
    %645 = vmatprep.subr.mxu0 0.0
    %646 = vmatpush1.msra.mxu0 0.0
    %647 = vmatprep.subr.mxu0 0.0
    %648 = vmatpush1.msra.mxu0 0.0
    %649 = vmatprep.subr.mxu0 0.0
    %650 = vmatpush1.msra.mxu0 0.0
    %651 = vmatprep.subr.mxu0 0.0
    %652 = vmatpush1.msra.mxu0 0.0
    %653 = vmatprep.subr.mxu0 0.0
    %654 = vmatpush1.msra.mxu0 0.0
    %655 = vmatprep.subr.mxu0 0.0
    %656 = vmatpush1.msra.mxu0 0.0
    %657 = vmatprep.subr.mxu0 0.0
    %658 = vmatpush1.msra.mxu0 %v625
    %659 = vmatprep.subr.mxu0 0.0
    %660 = vmatpush1.msra.mxu0 %v624
    %661 = vmatprep.subr.mxu0 0.0
    %662 = vmatpush1.msra.mxu0 %v623
    %663 = vmatprep.subr.mxu0 0.0
    %664 = vmatpush1.msra.mxu0 %v622
    %665 = vmatprep.subr.mxu0 0.0
    %666 = vmatpush2.msra.mxu0 0.0
    %667 = vmatprep.subr.mxu0 0.0
    %668 = vmatpush2.msra.mxu0 0.0
    %669 = vmatprep.subr.mxu0 0.0
    %670 = vmatpush2.msra.mxu0 0.0
    %671 = vmatprep.subr.mxu0 0.0
    %672 = vmatpush2.msra.mxu0 0.0
    %673 = vmatprep.subr.mxu0 0.0
    %674 = vmatpush2.msra.mxu0 0.0
    %675 = vmatprep.subr.mxu0 0.0
    %676 = vmatpush2.msra.mxu0 0.0
    %677 = vmatprep.subr.mxu0 0.0
    %678 = vmatpush2.msra.mxu0 0.0
    %679 = vmatprep.subr.mxu0 0.0
    %680 = vmatpush2.msra.mxu0 0.0
    %681 = vmatprep.subr.mxu0 0.0
    %682 = vmatpush2.msra.mxu0 0.0
    %683 = vmatprep.subr.mxu0 0.0
    %684 = vmatpush2.msra.mxu0 0.0
    %685 = vmatprep.subr.mxu0 0.0
    %686 = vmatpush2.msra.mxu0 0.0
    %687 = vmatprep.subr.mxu0 0.0
    %688 = vmatpush2.msra.mxu0 0.0
    %689 = vmatprep.subr.mxu0 0.0
    %690 = vmatpush2.msra.mxu0 0.0
    %691 = vmatprep.subr.mxu0 0.0
    %692 = vmatpush2.msra.mxu0 0.0
    %693 = vmatprep.subr.mxu0 0.0
    %694 = vmatpush2.msra.mxu0 0.0
    %695 = vmatprep.subr.mxu0 0.0
    %696 = vmatpush2.msra.mxu0 0.0
    %697 = vmatprep.mubr.f32.mxu0 0.0
    %698 = vmatmul.mubr.f32.gmra.mxu0 %v536
    %v699 = vpop.f32.mrf.mxu0
    %v700 = vadd.f32 %v631, %v699
    %v701 = vpop.f32.mrf.mxu0
    %702 = vdwg.mxu0
    %vm703 = vcmask 9216
    %v704 = vsel %vm703, %v700, -inf
    %705 = vmax.xlane.f32.xlu0 %v704
    %v706 = vpop.xlane.xlu0 %705
    %v707 = vsub.f32 %v700, %v706
    %v708 = vmul.f32 %v707, 1.442695
    %v709 = vpow.pop %v708
    %v710 = vsel %vm703, %v709, 0.0
    %711 = vadd.xlane.f32.xlu0 %v710
    %v712 = vpop.xlane.xlu0 %711
    %v713 = vlog2.pop %v712
    %v714 = vmul.f32 %v713, 0.6931472
    %v715 = vsub.f32 %v707, %v714
    %716 = vst.msk [vmem:[#allocation9] sm:$0x3] %vm703, %v715
    %v717 = vld [vmem:[%s8] sm:$0xff]
    %v718 = vld [vmem:[%s8 + $0x8] sm:$0xff]
    %v719 = vld [vmem:[%s8 + $0x10] sm:$0xff]
    %v720 = vld [vmem:[%s8 + $0x18] sm:$0xff]
    %v721 = vld [vmem:[%s8 + $0x20] sm:$0xff]
    %v722 = vld [vmem:[%s8 + $0x28] sm:$0xff]
    %v723 = vld [vmem:[%s8 + $0x30] sm:$0xff]
    %v724 = vld [vmem:[%s8 + $0x38] sm:$0xff]
    %v725 = vld [vmem:[%s8 + $0x40] sm:$0xff]
    %v726 = vld [vmem:[%s8 + $0x48] sm:$0xff]
    %v727 = vld [vmem:[%s8 + $0x50] sm:$0xff]
    %v728 = vld [vmem:[%s8 + $0x58] sm:$0xff]
    %v729 = vld [vmem:[%s8 + $0x60] sm:$0xff]
    %v730 = vld [vmem:[%s8 + $0x68] sm:$0xff]
    %v731 = vld [vmem:[%s8 + $0x70] sm:$0xff]
    %v732 = vld [vmem:[%s8 + $0x78] sm:$0xff]
    %v733 = vld [vmem:[%s8 + $0x80] sm:$0xff]
    %v734 = vld [vmem:[%s8 + $0x88] sm:$0xff]
    %v735 = vld [vmem:[%s8 + $0x90] sm:$0xff]
    %v736 = vld [vmem:[%s8 + $0x98] sm:$0xff]
    %v737 = vld [vmem:[%s8 + $0xa0] sm:$0xff]
    %v738 = vld [vmem:[%s8 + $0xa8] sm:$0xff]
    %v739 = vld [vmem:[%s8 + $0xb0] sm:$0xff]
    %v740 = vld [vmem:[%s8 + $0xb8] sm:$0xff]
    %v741 = vld [vmem:[%s8 + $0xc0] sm:$0xff]
    %v742 = vld [vmem:[%s8 + $0xc8] sm:$0xff]
    %v743 = vld [vmem:[%s8 + $0xd0] sm:$0xff]
    %v744 = vld [vmem:[%s8 + $0xd8] sm:$0xff]
    %v745 = vld [vmem:[%s8 + $0xe0] sm:$0xff]
    %v746 = vld [vmem:[%s8 + $0xe8] sm:$0xff]
    %v747 = vld [vmem:[%s8 + $0xf0] sm:$0xff]
    %v748 = vld [vmem:[%s8 + $0xf8] sm:$0xff]
    %v749 = vld [vmem:[%s9] sm:$0xff]
    %v751 = vlaneseq
    %v752 = vshrl.u32 %v751, 7
    %v753 = vsub.s32 0, %v752
    %v754 = vrot.slane %v749, %v753
    %v755 = vlaneseq
    %v756 = vshrl.u32 %v755, 7
    %v757 = vsub.s32 1, %v756
    %v758 = vrot.slane %v749, %v757
    %v759 = vlaneseq
    %v760 = vshrl.u32 %v759, 7
    %v761 = vsub.s32 2, %v760
    %v762 = vrot.slane %v749, %v761
    %v763 = vlaneseq
    %v764 = vshrl.u32 %v763, 7
    %v765 = vsub.s32 3, %v764
    %v766 = vrot.slane %v749, %v765
    %v767 = vlaneseq
    %v768 = vshrl.u32 %v767, 7
    %v769 = vsub.s32 4, %v768
    %v770 = vrot.slane %v749, %v769
    %v771 = vlaneseq
    %v772 = vshrl.u32 %v771, 7
    %v773 = vsub.s32 5, %v772
    %v774 = vrot.slane %v749, %v773
    %v775 = vlaneseq
    %v776 = vshrl.u32 %v775, 7
    %v777 = vsub.s32 6, %v776
    %v778 = vrot.slane %v749, %v777
    %v779 = vlaneseq
    %v780 = vshrl.u32 %v779, 7
    %v781 = vsub.s32 7, %v780
    %v782 = vrot.slane %v749, %v781
    %791 = vmatprep.subr.mxu0 0.0
    %792 = vmatpush1.msra.mxu0 0.0
    %793 = vmatprep.subr.mxu0 0.0
    %794 = vmatpush1.msra.mxu0 0.0
    %795 = vmatprep.subr.mxu0 0.0
    %796 = vmatpush1.msra.mxu0 0.0
    %797 = vmatprep.subr.mxu0 0.0
    %798 = vmatpush1.msra.mxu0 0.0
    %799 = vmatprep.subr.mxu0 0.0
    %800 = vmatpush1.msra.mxu0 0.0
    %801 = vmatprep.subr.mxu0 0.0
    %802 = vmatpush1.msra.mxu0 0.0
    %803 = vmatprep.subr.mxu0 0.0
    %804 = vmatpush1.msra.mxu0 0.0
    %805 = vmatprep.subr.mxu0 0.0
    %806 = vmatpush1.msra.mxu0 0.0
    %807 = vmatprep.subr.mxu0 0.0
    %808 = vmatpush1.msra.mxu0 0.0
    %809 = vmatprep.subr.mxu0 0.0
    %810 = vmatpush1.msra.mxu0 0.0
    %811 = vmatprep.subr.mxu0 0.0
    %812 = vmatpush1.msra.mxu0 0.0
    %813 = vmatprep.subr.mxu0 0.0
    %814 = vmatpush1.msra.mxu0 0.0
    %815 = vmatprep.subr.mxu0 %v742
    %816 = vmatpush1.msra.mxu0 %v741
    %817 = vmatprep.subr.mxu0 %v734
    %818 = vmatpush1.msra.mxu0 %v733
    %819 = vmatprep.subr.mxu0 %v726
    %820 = vmatpush1.msra.mxu0 %v725
    %821 = vmatprep.subr.mxu0 %v718
    %822 = vmatpush1.msra.mxu0 %v717
    %823 = vmatprep.subr.mxu0 0.0
    %824 = vmatpush2.msra.mxu0 0.0
    %825 = vmatprep.subr.mxu0 0.0
    %826 = vmatpush2.msra.mxu0 0.0
    %827 = vmatprep.subr.mxu0 0.0
    %828 = vmatpush2.msra.mxu0 0.0
    %829 = vmatprep.subr.mxu0 0.0
    %830 = vmatpush2.msra.mxu0 0.0
    %831 = vmatprep.subr.mxu0 0.0
    %832 = vmatpush2.msra.mxu0 0.0
    %833 = vmatprep.subr.mxu0 0.0
    %834 = vmatpush2.msra.mxu0 0.0
    %835 = vmatprep.subr.mxu0 0.0
    %836 = vmatpush2.msra.mxu0 0.0
    %837 = vmatprep.subr.mxu0 0.0
    %838 = vmatpush2.msra.mxu0 0.0
    %839 = vmatprep.subr.mxu0 0.0
    %840 = vmatpush2.msra.mxu0 0.0
    %841 = vmatprep.subr.mxu0 0.0
    %842 = vmatpush2.msra.mxu0 0.0
    %843 = vmatprep.subr.mxu0 0.0
    %844 = vmatpush2.msra.mxu0 0.0
    %845 = vmatprep.subr.mxu0 0.0
    %846 = vmatpush2.msra.mxu0 0.0
    %847 = vmatprep.subr.mxu0 0.0
    %848 = vmatpush2.msra.mxu0 0.0
    %849 = vmatprep.subr.mxu0 0.0
    %850 = vmatpush2.msra.mxu0 0.0
    %851 = vmatprep.subr.mxu0 0.0
    %852 = vmatpush2.msra.mxu0 0.0
    %853 = vmatprep.subr.mxu0 0.0
    %854 = vmatpush2.msra.mxu0 0.0
    %855 = vmatprep.mubr.f32.mxu0 0.0
    %856 = vmatmul.mubr.f32.gmra.mxu0 %v536
    %v857 = vpop.f32.mrf.mxu0
    %v858 = vadd.f32 %v754, %v857
    %v859 = vpop.f32.mrf.mxu0
    %v860 = vadd.f32 %v758, %v859
    %861 = vdwg.mxu0
    %862 = vmatprep.subr.mxu0 0.0
    %863 = vmatpush1.msra.mxu0 0.0
    %864 = vmatprep.subr.mxu0 0.0
    %865 = vmatpush1.msra.mxu0 0.0
    %866 = vmatprep.subr.mxu0 0.0
    %867 = vmatpush1.msra.mxu0 0.0
    %868 = vmatprep.subr.mxu0 0.0
    %869 = vmatpush1.msra.mxu0 0.0
    %870 = vmatprep.subr.mxu0 0.0
    %871 = vmatpush1.msra.mxu0 0.0
    %872 = vmatprep.subr.mxu0 0.0
    %873 = vmatpush1.msra.mxu0 0.0
    %874 = vmatprep.subr.mxu0 0.0
    %875 = vmatpush1.msra.mxu0 0.0
    %876 = vmatprep.subr.mxu0 0.0
    %877 = vmatpush1.msra.mxu0 0.0
    %878 = vmatprep.subr.mxu0 0.0
    %879 = vmatpush1.msra.mxu0 0.0
    %880 = vmatprep.subr.mxu0 0.0
    %881 = vmatpush1.msra.mxu0 0.0
    %882 = vmatprep.subr.mxu0 0.0
    %883 = vmatpush1.msra.mxu0 0.0
    %884 = vmatprep.subr.mxu0 0.0
    %885 = vmatpush1.msra.mxu0 0.0
    %886 = vmatprep.subr.mxu0 %v744
    %887 = vmatpush1.msra.mxu0 %v743
    %888 = vmatprep.subr.mxu0 %v736
    %889 = vmatpush1.msra.mxu0 %v735
    %890 = vmatprep.subr.mxu0 %v728
    %891 = vmatpush1.msra.mxu0 %v727
    %892 = vmatprep.subr.mxu0 %v720
    %893 = vmatpush1.msra.mxu0 %v719
    %894 = vmatprep.subr.mxu0 0.0
    %895 = vmatpush2.msra.mxu0 0.0
    %896 = vmatprep.subr.mxu0 0.0
    %897 = vmatpush2.msra.mxu0 0.0
    %898 = vmatprep.subr.mxu0 0.0
    %899 = vmatpush2.msra.mxu0 0.0
    %900 = vmatprep.subr.mxu0 0.0
    %901 = vmatpush2.msra.mxu0 0.0
    %902 = vmatprep.subr.mxu0 0.0
    %903 = vmatpush2.msra.mxu0 0.0
    %904 = vmatprep.subr.mxu0 0.0
    %905 = vmatpush2.msra.mxu0 0.0
    %906 = vmatprep.subr.mxu0 0.0
    %907 = vmatpush2.msra.mxu0 0.0
    %908 = vmatprep.subr.mxu0 0.0
    %909 = vmatpush2.msra.mxu0 0.0
    %910 = vmatprep.subr.mxu0 0.0
    %911 = vmatpush2.msra.mxu0 0.0
    %912 = vmatprep.subr.mxu0 0.0
    %913 = vmatpush2.msra.mxu0 0.0
    %914 = vmatprep.subr.mxu0 0.0
    %915 = vmatpush2.msra.mxu0 0.0
    %916 = vmatprep.subr.mxu0 0.0
    %917 = vmatpush2.msra.mxu0 0.0
    %918 = vmatprep.subr.mxu0 0.0
    %919 = vmatpush2.msra.mxu0 0.0
    %920 = vmatprep.subr.mxu0 0.0
    %921 = vmatpush2.msra.mxu0 0.0
    %922 = vmatprep.subr.mxu0 0.0
    %923 = vmatpush2.msra.mxu0 0.0
    %924 = vmatprep.subr.mxu0 0.0
    %925 = vmatpush2.msra.mxu0 0.0
    %926 = vmatprep.mubr.f32.mxu0 0.0
    %927 = vmatmul.mubr.f32.gmra.mxu0 %v536
    %v928 = vpop.f32.mrf.mxu0
    %v929 = vadd.f32 %v762, %v928
    %v930 = vpop.f32.mrf.mxu0
    %v931 = vadd.f32 %v766, %v930
    %932 = vdwg.mxu0
    %933 = vmatprep.subr.mxu0 0.0
    %934 = vmatpush1.msra.mxu0 0.0
    %935 = vmatprep.subr.mxu0 0.0
    %936 = vmatpush1.msra.mxu0 0.0
    %937 = vmatprep.subr.mxu0 0.0
    %938 = vmatpush1.msra.mxu0 0.0
    %939 = vmatprep.subr.mxu0 0.0
    %940 = vmatpush1.msra.mxu0 0.0
    %941 = vmatprep.subr.mxu0 0.0
    %942 = vmatpush1.msra.mxu0 0.0
    %943 = vmatprep.subr.mxu0 0.0
    %944 = vmatpush1.msra.mxu0 0.0
    %945 = vmatprep.subr.mxu0 0.0
    %946 = vmatpush1.msra.mxu0 0.0
    %947 = vmatprep.subr.mxu0 0.0
    %948 = vmatpush1.msra.mxu0 0.0
    %949 = vmatprep.subr.mxu0 0.0
    %950 = vmatpush1.msra.mxu0 0.0
    %951 = vmatprep.subr.mxu0 0.0
    %952 = vmatpush1.msra.mxu0 0.0
    %953 = vmatprep.subr.mxu0 0.0
    %954 = vmatpush1.msra.mxu0 0.0
    %955 = vmatprep.subr.mxu0 0.0
    %956 = vmatpush1.msra.mxu0 0.0
    %957 = vmatprep.subr.mxu0 %v746
    %958 = vmatpush1.msra.mxu0 %v745
    %959 = vmatprep.subr.mxu0 %v738
    %960 = vmatpush1.msra.mxu0 %v737
    %961 = vmatprep.subr.mxu0 %v730
    %962 = vmatpush1.msra.mxu0 %v729
    %963 = vmatprep.subr.mxu0 %v722
    %964 = vmatpush1.msra.mxu0 %v721
    %965 = vmatprep.subr.mxu0 0.0
    %966 = vmatpush2.msra.mxu0 0.0
    %967 = vmatprep.subr.mxu0 0.0
    %968 = vmatpush2.msra.mxu0 0.0
    %969 = vmatprep.subr.mxu0 0.0
    %970 = vmatpush2.msra.mxu0 0.0
    %971 = vmatprep.subr.mxu0 0.0
    %972 = vmatpush2.msra.mxu0 0.0
    %973 = vmatprep.subr.mxu0 0.0
    %974 = vmatpush2.msra.mxu0 0.0
    %975 = vmatprep.subr.mxu0 0.0
    %976 = vmatpush2.msra.mxu0 0.0
    %977 = vmatprep.subr.mxu0 0.0
    %978 = vmatpush2.msra.mxu0 0.0
    %979 = vmatprep.subr.mxu0 0.0
    %980 = vmatpush2.msra.mxu0 0.0
    %981 = vmatprep.subr.mxu0 0.0
    %982 = vmatpush2.msra.mxu0 0.0
    %983 = vmatprep.subr.mxu0 0.0
    %984 = vmatpush2.msra.mxu0 0.0
    %985 = vmatprep.subr.mxu0 0.0
    %986 = vmatpush2.msra.mxu0 0.0
    %987 = vmatprep.subr.mxu0 0.0
    %988 = vmatpush2.msra.mxu0 0.0
    %989 = vmatprep.subr.mxu0 0.0
    %990 = vmatpush2.msra.mxu0 0.0
    %991 = vmatprep.subr.mxu0 0.0
    %992 = vmatpush2.msra.mxu0 0.0
    %993 = vmatprep.subr.mxu0 0.0
    %994 = vmatpush2.msra.mxu0 0.0
    %995 = vmatprep.subr.mxu0 0.0
    %996 = vmatpush2.msra.mxu0 0.0
    %997 = vmatprep.mubr.f32.mxu0 0.0
    %998 = vmatmul.mubr.f32.gmra.mxu0 %v536
    %v999 = vpop.f32.mrf.mxu0
    %v1000 = vadd.f32 %v770, %v999
    %v1001 = vpop.f32.mrf.mxu0
    %v1002 = vadd.f32 %v774, %v1001
    %1003 = vdwg.mxu0
    %1004 = vmatprep.subr.mxu0 0.0
    %1005 = vmatpush1.msra.mxu0 0.0
    %1006 = vmatprep.subr.mxu0 0.0
    %1007 = vmatpush1.msra.mxu0 0.0
    %1008 = vmatprep.subr.mxu0 0.0
    %1009 = vmatpush1.msra.mxu0 0.0
    %1010 = vmatprep.subr.mxu0 0.0
    %1011 = vmatpush1.msra.mxu0 0.0
    %1012 = vmatprep.subr.mxu0 0.0
    %1013 = vmatpush1.msra.mxu0 0.0
    %1014 = vmatprep.subr.mxu0 0.0
    %1015 = vmatpush1.msra.mxu0 0.0
    %1016 = vmatprep.subr.mxu0 0.0
    %1017 = vmatpush1.msra.mxu0 0.0
    %1018 = vmatprep.subr.mxu0 0.0
    %1019 = vmatpush1.msra.mxu0 0.0
    %1020 = vmatprep.subr.mxu0 0.0
    %1021 = vmatpush1.msra.mxu0 0.0
    %1022 = vmatprep.subr.mxu0 0.0
    %1023 = vmatpush1.msra.mxu0 0.0
    %1024 = vmatprep.subr.mxu0 0.0
    %1025 = vmatpush1.msra.mxu0 0.0
    %1026 = vmatprep.subr.mxu0 0.0
    %1027 = vmatpush1.msra.mxu0 0.0
    %1028 = vmatprep.subr.mxu0 %v748
    %1029 = vmatpush1.msra.mxu0 %v747
    %1030 = vmatprep.subr.mxu0 %v740
    %1031 = vmatpush1.msra.mxu0 %v739
    %1032 = vmatprep.subr.mxu0 %v732
    %1033 = vmatpush1.msra.mxu0 %v731
    %1034 = vmatprep.subr.mxu0 %v724
    %1035 = vmatpush1.msra.mxu0 %v723
    %1036 = vmatprep.subr.mxu0 0.0
    %1037 = vmatpush2.msra.mxu0 0.0
    %1038 = vmatprep.subr.mxu0 0.0
    %1039 = vmatpush2.msra.mxu0 0.0
    %1040 = vmatprep.subr.mxu0 0.0
    %1041 = vmatpush2.msra.mxu0 0.0
    %1042 = vmatprep.subr.mxu0 0.0
    %1043 = vmatpush2.msra.mxu0 0.0
    %1044 = vmatprep.subr.mxu0 0.0
    %1045 = vmatpush2.msra.mxu0 0.0
    %1046 = vmatprep.subr.mxu0 0.0
    %1047 = vmatpush2.msra.mxu0 0.0
    %1048 = vmatprep.subr.mxu0 0.0
    %1049 = vmatpush2.msra.mxu0 0.0
    %1050 = vmatprep.subr.mxu0 0.0
    %1051 = vmatpush2.msra.mxu0 0.0
    %1052 = vmatprep.subr.mxu0 0.0
    %1053 = vmatpush2.msra.mxu0 0.0
    %1054 = vmatprep.subr.mxu0 0.0
    %1055 = vmatpush2.msra.mxu0 0.0
    %1056 = vmatprep.subr.mxu0 0.0
    %1057 = vmatpush2.msra.mxu0 0.0
    %1058 = vmatprep.subr.mxu0 0.0
    %1059 = vmatpush2.msra.mxu0 0.0
    %1060 = vmatprep.subr.mxu0 0.0
    %1061 = vmatpush2.msra.mxu0 0.0
    %1062 = vmatprep.subr.mxu0 0.0
    %1063 = vmatpush2.msra.mxu0 0.0
    %1064 = vmatprep.subr.mxu0 0.0
    %1065 = vmatpush2.msra.mxu0 0.0
    %1066 = vmatprep.subr.mxu0 0.0
    %1067 = vmatpush2.msra.mxu0 0.0
    %1068 = vmatprep.mubr.f32.mxu0 0.0
    %1069 = vmatmul.mubr.f32.gmra.mxu0 %v536
    %v1070 = vpop.f32.mrf.mxu0
    %v1071 = vadd.f32 %v778, %v1070
    %v1072 = vpop.f32.mrf.mxu0
    %v1073 = vadd.f32 %v782, %v1072
    %1074 = vdwg.mxu0
    %v1083 = vcombine.low %v858, %v860
    %v1084 = vcombine.low %v929, %v931
    %v1086 = vunpack.c.l.s4 1983009808
    %v1087 = vunpack.c.0.s8 %v1086
    %v1088 = vlaneseq
    %v1089 = vshrl.u32 %v1088, 7
    %v1090 = vsub.s32 %v1087, %v1089
    %v1091 = vrot.slane %v1083, %v1090
    %v1093 = vunpack.c.l.s4 1983009808
    %v1094 = vunpack.c.0.s8 %v1093
    %v1095 = vlaneseq
    %v1096 = vshrl.u32 %v1095, 7
    %v1097 = vsub.s32 %v1094, %v1096
    %v1098 = vrot.slane %v1084, %v1097
    %v1099 = vcombine.low %v1091, %v1098
    %v1100 = vcombine.low %v1000, %v1002
    %v1101 = vcombine.low %v1071, %v1073
    %v1103 = vunpack.c.l.s4 1983009808
    %v1104 = vunpack.c.0.s8 %v1103
    %v1105 = vlaneseq
    %v1106 = vshrl.u32 %v1105, 7
    %v1107 = vsub.s32 %v1104, %v1106
    %v1108 = vrot.slane %v1100, %v1107
    %v1110 = vunpack.c.l.s4 1983009808
    %v1111 = vunpack.c.0.s8 %v1110
    %v1112 = vlaneseq
    %v1113 = vshrl.u32 %v1112, 7
    %v1114 = vsub.s32 %v1111, %v1113
    %v1115 = vrot.slane %v1101, %v1114
    %v1116 = vcombine.low %v1108, %v1115
    %1119 = vst [vmem:[%s15] sm:$0xff] %v1099
    %1120 = vst [vmem:[%s15 + $0x8] sm:$0xff] %v1116
    // Predicated region
    $region42: #{svae_conv_forward.21} parent=1 // pred_check
      _
    $region43: #{svae_conv_forward.21} parent=1 // pred_check_branch
      %1122 = sbr.rel (0) target = $region45
    $region44: #{svae_conv_forward.21} parent=1 // pred_region
      %s1124 = ssub.s32 32, 32
      %1125 = vsyncadd [#allocation3], %s1124
      %s1127 = sshll.u32 [#allocation2], 4
      %s1128 = int_to_ptr.vmem [resolvable:$true] %s1127
      %1130 = dma.vmem_to_hbm [thread:$0]  %s1128, 32, %s10, [#allocation3]
    $region45: #{svae_conv_forward.21} parent=1 // pred_fallthru
      _
    // Predicated region
    $region46: #{svae_conv_forward.21} parent=1 // pred_check
      _
    $region47: #{svae_conv_forward.21} parent=1 // pred_check_branch
      %1132 = sbr.rel (0) target = $region49
    $region48: #{svae_conv_forward.21} parent=1 // pred_region
      %s1134 = ssub.s32 32, 32
      %1135 = vsyncadd [#allocation5], %s1134
      %s1137 = sshll.u32 [#allocation4], 4
      %s1138 = int_to_ptr.vmem [resolvable:$true] %s1137
      %1140 = dma.vmem_to_hbm [thread:$0]  %s1138, 32, %s11, [#allocation5]
    $region49: #{svae_conv_forward.21} parent=1 // pred_fallthru
      _
    // Predicated region
    $region50: #{svae_conv_forward.21} parent=1 // pred_check
      _
    $region51: #{svae_conv_forward.21} parent=1 // pred_check_branch
      %1142 = sbr.rel (0) target = $region53
    $region52: #{svae_conv_forward.21} parent=1 // pred_region
      %s1144 = ssub.s32 32, 32
      %1145 = vsyncadd [#allocation5], %s1144
      %s1147 = sshll.u32 [#allocation6], 4
      %s1148 = int_to_ptr.vmem [resolvable:$true] %s1147
      %1150 = dma.vmem_to_hbm [thread:$0]  %s1148, 32, %s12, [#allocation5]
    $region53: #{svae_conv_forward.21} parent=1 // pred_fallthru
      _
    // Predicated region
    $region54: #{svae_conv_forward.21} parent=1 // pred_check
      _
    $region55: #{svae_conv_forward.21} parent=1 // pred_check_branch
      %1152 = sbr.rel (0) target = $region57
    $region56: #{svae_conv_forward.21} parent=1 // pred_region
      %s1154 = ssub.s32 32, 32
      %1155 = vsyncadd [#allocation8], %s1154
      %s1157 = sshll.u32 [#allocation7], 4
      %s1158 = int_to_ptr.vmem [resolvable:$true] %s1157
      %1160 = dma.vmem_to_hbm [thread:$0]  %s1158, 32, %s13, [#allocation8]
    $region57: #{svae_conv_forward.21} parent=1 // pred_fallthru
      _
    // Predicated region
    $region58: #{svae_conv_forward.21} parent=1 // pred_check
      _
    $region59: #{svae_conv_forward.21} parent=1 // pred_check_branch
      %1162 = sbr.rel (0) target = $region61
    $region60: #{svae_conv_forward.21} parent=1 // pred_region
      %s1164 = ssub.s32 32, 32
      %1165 = vsyncadd [#allocation8], %s1164
      %s1167 = sshll.u32 [#allocation9], 4
      %s1168 = int_to_ptr.vmem [resolvable:$true] %s1167
      %1170 = dma.vmem_to_hbm [thread:$0]  %s1168, 32, %s14, [#allocation8]
    $region61: #{svae_conv_forward.21} parent=1 // pred_fallthru
      _
    // Predicated region
    $region62: #{svae_conv_forward.21} parent=1 // pred_check
      _
    $region63: #{svae_conv_forward.21} parent=1 // pred_check_branch
      %1172 = sbr.rel (0) target = $region65
    $region64: #{svae_conv_forward.21} parent=1 // pred_region
      _
    $region65: #{svae_conv_forward.21} parent=1 // pred_fallthru
      _
    // Predicated region
    $region66: #{svae_conv_forward.21} parent=1 // pred_check
      _
    $region67: #{svae_conv_forward.21} parent=1 // pred_check_branch
      %1174 = sbr.rel (0) target = $region69
    $region68: #{svae_conv_forward.21} parent=1 // pred_region
      %1175 = dma.done [#allocation3], 32
    $region69: #{svae_conv_forward.21} parent=1 // pred_fallthru
      _
    // Predicated region
    $region70: #{svae_conv_forward.21} parent=1 // pred_check
      _
    $region71: #{svae_conv_forward.21} parent=1 // pred_check_branch
      %1177 = sbr.rel (0) target = $region73
    $region72: #{svae_conv_forward.21} parent=1 // pred_region
      %1178 = dma.done [#allocation5], 32
    $region73: #{svae_conv_forward.21} parent=1 // pred_fallthru
      _
    // Predicated region
    $region74: #{svae_conv_forward.21} parent=1 // pred_check
      _
    $region75: #{svae_conv_forward.21} parent=1 // pred_check_branch
      %1180 = sbr.rel (0) target = $region77
    $region76: #{svae_conv_forward.21} parent=1 // pred_region
      %1181 = dma.done [#allocation5], 32
    $region77: #{svae_conv_forward.21} parent=1 // pred_fallthru
      _
    // Predicated region
    $region78: #{svae_conv_forward.21} parent=1 // pred_check
      _
    $region79: #{svae_conv_forward.21} parent=1 // pred_check_branch
      %1183 = sbr.rel (0) target = $region81
    $region80: #{svae_conv_forward.21} parent=1 // pred_region
      %1184 = dma.done [#allocation8], 32
    $region81: #{svae_conv_forward.21} parent=1 // pred_fallthru
      _
    // Predicated region
    $region82: #{svae_conv_forward.21} parent=1 // pred_check
      _
    $region83: #{svae_conv_forward.21} parent=1 // pred_check_branch
      %1186 = sbr.rel (0) target = $region85
    $region84: #{svae_conv_forward.21} parent=1 // pred_region
      %1187 = dma.done [#allocation8], 32
    $region85: #{svae_conv_forward.21} parent=1 // pred_fallthru
      _
    // Predicated region
    $region86: #{svae_conv_forward.21} parent=1 // pred_check
      _
    $region87: #{svae_conv_forward.21} parent=1 // pred_check_branch
      %1189 = sbr.rel (0) target = $region89
    $region88: #{svae_conv_forward.21} parent=1 // pred_region
      _
    $region89: #{svae_conv_forward.21} parent=1 // pred_fallthru
      _
    %1190 = vsyncpa [#allocation3], 1
    %1191 = vsyncpa [#allocation5], 1
    %1192 = vsyncpa [#allocation8], 1

// kernel: svae_conv_forward.22
$region0: #{svae_conv_forward.22}
  #allocation0 [shape = 'u32[]', space=smem, size = 0x4, offset = 0x4, fixed_abs, tag = 'smem constant byte address 0x4 - core index']
  #allocation1 [shape = 'u32[144,128]{1,0:T(1,128)}', space=vmem, size = 0x12000, scoped, tag = 'internal scratch']
  #allocation2 [shape = 'f32[16,128]{1,0:T(8,128)}', space=vmem, size = 0x2000, scoped, tag = 'scratch operand']
  %s0 = inlined_call_operand.vmem [shape: bf16[16,9216], index: 0, kind: input, shape index: {}]
  %s1 = inlined_call_operand.vmem [shape: bf16[9216,128], index: 1, kind: input, shape index: {}]
  %s2 = inlined_call_operand.vmem [shape: f32[1,128], index: 2, kind: input, shape index: {}]
  %s3 = inlined_call_operand.vmem [shape: f32[16,128], index: 3, kind: output, shape index: {}]
  %s4 = sld [smem:[#allocation0]]
  $region76: #{svae_conv_forward.22} parent=0
    _
  %s6 = ssub.s32 1, %s4
  %s7 = scalar_select 0, %s6, %s4
  $region1: #{svae_conv_forward.22} parent=0
    #allocation3 [shape = 'u8[32768]{0}', space=vmem, size = 0x8000, scoped, tag = 'input window, operand 0']
    loop: start=0, step=1, limit=20
    $region2: #{svae_conv_forward.22} parent=1 // loop_pre_header
      _
    $region3: #{svae_conv_forward.22} parent=1 // loop_header
      %s9 = sphi 0, %s13
      %p10 = scmp.ge.s32.totalorder %s9, 20
      %s16 = sphi 0, %s35
      %s17 = sphi 0, %s31
      %s18 = sphi 0, %s27
      %s19 = sphi 0, %s16
      %s20 = sphi 0, %s17
      %s21 = sphi 0, %s18
      %s22 = sphi 0, %s19
      %s23 = sphi 0, %s20
      %s24 = sphi 0, %s21
      %s40 = sphi 0, %s42
      %s43 = sphi 0, %s40
      %s44 = sphi 0, %s43
      %s60 = sphi 0, %s44
      %s68 = sphi 0, %s70
      %s71 = sphi 0, %s68
      %s72 = sphi 0, %s71
      %s88 = sphi 0, %s72
      %s94 = sphi 0, %s96
      %s97 = sphi 0, %s94
      %s98 = sphi 0, %s97
      %s114 = sphi 0, %s98
      %s122 = sphi 0, %s124
      %s125 = sphi 0, %s122
      %s126 = sphi 0, %s125
      %s142 = sphi 0, %s126
    $region4: #{svae_conv_forward.22} parent=1 // loop_header_branch
      %12 = sbr.rel (%p10) target = $region8
    $region5: #{svae_conv_forward.22} parent=1 // loop_body
      %s14 = ssub.s32 %s9, 1
      %s15 = ssub.s32 %s9, 2
      %s25 = sadd.s32 1, %s18
      %p26 = scmp.ge.s32.totalorder %s25, 18
      %s27 = scalar_select %p26, 0, %s25
      %s28 = sadd.s32 1, %s17
      %s29 = scalar_select %p26, %s28, %s17
      %p30 = scmp.ge.s32.totalorder %s29, 1
      %s31 = scalar_select %p30, 0, %s29
      %s32 = sadd.s32 1, %s16
      %s33 = scalar_select %p30, %s32, %s16
      %p34 = scmp.ge.s32.totalorder %s33, 1
      %s35 = scalar_select %p34, 0, %s33
      %s36 = ssub.s32 %s16, %s35
      %s37 = ssub.s32 %s18, %s27
      %s38 = sor.u32 %s36, %s37
      %p39 = scmp.eq.s32.totalorder %s38, 0
      %s41 = sadd.s32 %s40, 1
      %s42 = scalar_select %p39, %s40, %s41
      %p45 = pneg %p39
      %p46 = scmp.eq.s32.totalorder %s9, 17
      %p47 = por %p45, %p46
      %p48 = scmp.ne.s32.totalorder %s40, %s43
      %p49 = scmp.eq.s32.totalorder %s9, 0
      %p50 = por %p48, %p49
      %p51 = scmp.ne.s32.totalorder %s40, %s43
      %p52 = scmp.eq.s32.totalorder %s14, 17
      %p53 = por %p51, %p52
      %p54 = scmp.ne.s32.totalorder %s43, %s44
      %p55 = scmp.eq.s32.totalorder %s14, 0
      %p56 = por %p54, %p55
      %p57 = scmp.ne.s32.totalorder %s43, %s44
      %p58 = scmp.eq.s32.totalorder %s15, 17
      %p59 = por %p57, %p58
      %p61 = scmp.ne.s32.totalorder %s44, %s60
      %p62 = scmp.eq.s32.totalorder %s15, 0
      %p63 = por %p61, %p62
      %s64 = ssub.s32 %s18, %s27
      %s65 = ssub.s32 %s17, %s31
      %s66 = sor.u32 %s64, %s65
      %p67 = scmp.eq.s32.totalorder %s66, 0
      %s69 = sadd.s32 %s68, 1
      %s70 = scalar_select %p67, %s68, %s69
      %p73 = pneg %p67
      %p74 = scmp.eq.s32.totalorder %s9, 17
      %p75 = por %p73, %p74
      %p76 = scmp.ne.s32.totalorder %s68, %s71
      %p77 = scmp.eq.s32.totalorder %s9, 0
      %p78 = por %p76, %p77
      %p79 = scmp.ne.s32.totalorder %s68, %s71
      %p80 = scmp.eq.s32.totalorder %s14, 17
      %p81 = por %p79, %p80
      %p82 = scmp.ne.s32.totalorder %s71, %s72
      %p83 = scmp.eq.s32.totalorder %s14, 0
      %p84 = por %p82, %p83
      %p85 = scmp.ne.s32.totalorder %s71, %s72
      %p86 = scmp.eq.s32.totalorder %s15, 17
      %p87 = por %p85, %p86
      %p89 = scmp.ne.s32.totalorder %s72, %s88
      %p90 = scmp.eq.s32.totalorder %s15, 0
      %p91 = por %p89, %p90
      %s92 = ssub.s32 %s17, %s31
      %p93 = scmp.eq.s32.totalorder %s92, 0
      %s95 = sadd.s32 %s94, 1
      %s96 = scalar_select %p93, %s94, %s95
      %p99 = pneg %p93
      %p100 = scmp.eq.s32.totalorder %s9, 17
      %p101 = por %p99, %p100
      %p102 = scmp.ne.s32.totalorder %s94, %s97
      %p103 = scmp.eq.s32.totalorder %s9, 0
      %p104 = por %p102, %p103
      %p105 = scmp.ne.s32.totalorder %s94, %s97
      %p106 = scmp.eq.s32.totalorder %s14, 17
      %p107 = por %p105, %p106
      %p108 = scmp.ne.s32.totalorder %s97, %s98
      %p109 = scmp.eq.s32.totalorder %s14, 0
      %p110 = por %p108, %p109
      %p111 = scmp.ne.s32.totalorder %s97, %s98
      %p112 = scmp.eq.s32.totalorder %s15, 17
      %p113 = por %p111, %p112
      %p115 = scmp.ne.s32.totalorder %s98, %s114
      %p116 = scmp.eq.s32.totalorder %s15, 0
      %p117 = por %p115, %p116
      %s118 = ssub.s32 %s16, %s35
      %s119 = ssub.s32 %s17, %s31
      %s120 = sor.u32 %s118, %s119
      %p121 = scmp.eq.s32.totalorder %s120, 0
      %s123 = sadd.s32 %s122, 1
      %s124 = scalar_select %p121, %s122, %s123
      %p127 = pneg %p121
      %p128 = scmp.eq.s32.totalorder %s9, 17
      %p129 = por %p127, %p128
      %p130 = scmp.ne.s32.totalorder %s122, %s125
      %p131 = scmp.eq.s32.totalorder %s9, 0
      %p132 = por %p130, %p131
      %p133 = scmp.ne.s32.totalorder %s122, %s125
      %p134 = scmp.eq.s32.totalorder %s14, 17
      %p135 = por %p133, %p134
      %p136 = scmp.ne.s32.totalorder %s125, %s126
      %p137 = scmp.eq.s32.totalorder %s14, 0
      %p138 = por %p136, %p137
      %p139 = scmp.ne.s32.totalorder %s125, %s126
      %p140 = scmp.eq.s32.totalorder %s15, 17
      %p141 = por %p139, %p140
      %p143 = scmp.ne.s32.totalorder %s126, %s142
      %p144 = scmp.eq.s32.totalorder %s15, 0
      %p145 = por %p143, %p144
      %p146 = scmp.le.s32.totalorder 1, %s9
      %p147 = scmp.lt.s32.totalorder %s9, 19
      %p148 = pnand %p146, %p147
      %p149 = pneg %p148
      // Predicated region
      $region9: #{svae_conv_forward.22} parent=5 // pred_check
        _
      $region10: #{svae_conv_forward.22} parent=5 // pred_check_branch
        %151 = sbr.rel (%p148) target = $region12
      $region11: #{svae_conv_forward.22} parent=5 // pred_region
        %s152 = ssub.s32 %s9, 1
        // Predicated region
        $region13: #{svae_conv_forward.22} parent=11 // pred_check
          %p153 = pneg %p110
        $region14: #{svae_conv_forward.22} parent=11 // pred_check_branch
          %155 = sbr.rel (%p153) target = $region16
        $region15: #{svae_conv_forward.22} parent=11 // pred_region
          %p156 = scmp.lt.s32.totalorder %s20, 0
          %s157 = scalar_select %p156, %s20, 0
          %s158 = scalar_lea.vmem %s2, %s157
        $region16: #{svae_conv_forward.22} parent=11 // pred_fallthru
          _
      $region12: #{svae_conv_forward.22} parent=5 // pred_fallthru
        _
      %p159 = scmp.lt.s32.totalorder %s9, 18
      // Predicated region
      $region17: #{svae_conv_forward.22} parent=5 // pred_check
        %p160 = pneg %p159
      $region18: #{svae_conv_forward.22} parent=5 // pred_check_branch
        %162 = sbr.rel (%p160) target = $region20
      $region19: #{svae_conv_forward.22} parent=5 // pred_region
        // Predicated region
        $region21: #{svae_conv_forward.22} parent=19 // pred_check
          %p163 = pneg %p50
        $region22: #{svae_conv_forward.22} parent=19 // pred_check_branch
          %165 = sbr.rel (%p163) target = $region24
        $region23: #{svae_conv_forward.22} parent=19 // pred_region
          %s166 = sand.u32 %s40, 1
          %s167 = sand.u32 %s40, 1
          %s168 = smul.addr %s167, 32
          %s169 = scalar_lea.vmem [#allocation3], %s168
          %s170 = smul.u32 2, %s16
          %s171 = smul.u32 4, %s18
          %s172 = smul.addr %s170, 72
          %s173 = sadd.s32 %s171, %s172
          %s174 = smul.addr %s173, 4
          %s175 = scalar_lea.vmem %s0, %s174
          // Predicated region
          $region25: #{svae_conv_forward.22} parent=23 // pred_check
            _
          $region26: #{svae_conv_forward.22} parent=23 // pred_check_branch
            %177 = sbr.rel (0) target = $region28
          $region27: #{svae_conv_forward.22} parent=23 // pred_region
            // Predicated region
            $region29: #{svae_conv_forward.22} parent=27 // pred_check
              _
            $region30: #{svae_conv_forward.22} parent=27 // pred_check_branch
              %179 = sbr.rel (0) target = $region32
            $region31: #{svae_conv_forward.22} parent=27 // pred_region
              loop: start=0, step=1, limit=1
              $region33: #{svae_conv_forward.22} parent=31 // loop_pre_header
                _
              $region34: #{svae_conv_forward.22} parent=31 // loop_header
                %s181 = sphi 0, %s185
                %p182 = scmp.ge.s32.totalorder %s181, 1
                %s186 = sphi %s175, %s175
                %s187 = sphi %s169, %s169
              $region35: #{svae_conv_forward.22} parent=31 // loop_header_branch
                %184 = sbr.rel (%p182) target = $region39
              $region36: #{svae_conv_forward.22} parent=31 // loop_body
                %v188 = vld [vmem:[%s186] sm:$0xff]
                %189 = vst [vmem:[%s187] sm:$0xff] %v188
                %v190 = vld [vmem:[%s186 + $0x8] sm:$0xff]
                %191 = vst [vmem:[%s187 + $0x8] sm:$0xff] %v190
                %v192 = vld [vmem:[%s186 + $0x120] sm:$0xff]
                %193 = vst [vmem:[%s187 + $0x10] sm:$0xff] %v192
                %v194 = vld [vmem:[%s186 + $0x128] sm:$0xff]
                %195 = vst [vmem:[%s187 + $0x18] sm:$0xff] %v194
              $region37: #{svae_conv_forward.22} parent=31 // loop_footer
                %s185 = sadd.s32 1, %s181
              $region38: #{svae_conv_forward.22} parent=31 // loop_footer_branch
                %180 = sbr.rel target = $region34
              $region39: #{svae_conv_forward.22} parent=31 // loop_exit
                _
            $region32: #{svae_conv_forward.22} parent=27 // pred_fallthru
              _
            // Predicated region
            $region40: #{svae_conv_forward.22} parent=27 // pred_check
              _
            $region41: #{svae_conv_forward.22} parent=27 // pred_check_branch
              %197 = sbr.rel target = $region43
            $region42: #{svae_conv_forward.22} parent=27 // pred_region
              _
            $region43: #{svae_conv_forward.22} parent=27 // pred_fallthru
              _
          $region28: #{svae_conv_forward.22} parent=23 // pred_fallthru
            _
          %198 = vnop
        $region24: #{svae_conv_forward.22} parent=19 // pred_fallthru
          _
        // Predicated region
        $region44: #{svae_conv_forward.22} parent=19 // pred_check
          %p199 = pneg %p78
        $region45: #{svae_conv_forward.22} parent=19 // pred_check_branch
          %201 = sbr.rel (%p199) target = $region47
        $region46: #{svae_conv_forward.22} parent=19 // pred_region
          %s202 = smul.u32 64, %s18
          %p203 = scmp.lt.s32.totalorder %s202, 1151
          %s204 = scalar_select %p203, %s202, 1151
          %p205 = scmp.lt.s32.totalorder %s17, 0
          %s206 = scalar_select %p205, %s17, 0
          %s207 = sadd.s32 %s206, %s204
          %s208 = smul.addr %s207, 4
          %s209 = scalar_lea.vmem %s1, %s208
          %s210 = smul.u32 64, %s18
        $region47: #{svae_conv_forward.22} parent=19 // pred_fallthru
          _
      $region20: #{svae_conv_forward.22} parent=5 // pred_fallthru
        _
      %p211 = scmp.le.s32.totalorder 1, %s9
      %p212 = scmp.lt.s32.totalorder %s9, 19
      %p213 = pnand %p211, %p212
      %p214 = pneg %p213
      // Predicated region
      $region48: #{svae_conv_forward.22} parent=5 // pred_check
        _
      $region49: #{svae_conv_forward.22} parent=5 // pred_check_branch
        %216 = sbr.rel (%p213) target = $region51
      $region50: #{svae_conv_forward.22} parent=5 // pred_region
        %s217 = ssub.s32 %s9, 1
        %s218 = sand.u32 %s43, 1
        %s219 = sand.u32 %s43, 1
        %s220 = smul.addr %s219, 32
        %s221 = scalar_lea.vmem [#allocation3], %s220
        // Predicated region
        $region52: #{svae_conv_forward.22} parent=50 // pred_check
          %p222 = pneg %p56
        $region53: #{svae_conv_forward.22} parent=50 // pred_check_branch
          %224 = sbr.rel (%p222) target = $region55
        $region54: #{svae_conv_forward.22} parent=50 // pred_region
          _
        $region55: #{svae_conv_forward.22} parent=50 // pred_fallthru
          _
        %s225 = sand.u32 %s43, 1
        %s226 = sand.u32 %s43, 1
        %s227 = smul.addr %s226, 32
        %s228 = scalar_lea.vmem [#allocation3], %s227
        %p229 = pneg %p56
        %p230 = pneg %p53
        %s231 = smul.u32 64, %s21
        %p232 = scmp.lt.s32.totalorder %s231, 1151
        %s233 = scalar_select %p232, %s231, 1151
        %p234 = scmp.lt.s32.totalorder %s20, 0
        %s235 = scalar_select %p234, %s20, 0
        %s236 = sadd.s32 %s235, %s233
        %s237 = smul.addr %s236, 4
        %s238 = scalar_lea.vmem %s1, %s237
        %p239 = pneg %p84
        %p240 = pneg %p81
        %p241 = scmp.lt.s32.totalorder %s20, 0
        %s242 = scalar_select %p241, %s20, 0
        %s243 = scalar_lea.vmem %s2, %s242
        %p244 = pneg %p110
        %p245 = pneg %p107
        %p246 = pneg %p138
        %p247 = pneg %p135
        %s248 = smul.u32 2, %s19
        %p249 = scmp.lt.s32.totalorder %s248, 1
        %s250 = scalar_select %p249, %s248, 1
        %p251 = scmp.lt.s32.totalorder %s20, 0
        %s252 = scalar_select %p251, %s20, 0
        %s253 = sadd.s32 %s252, %s250
        %s254 = smul.addr %s253, 8
        %s255 = scalar_lea.vmem %s3, %s254
        %s256 = smul.u32 2, %s19
        %s257 = smul.u32 4, %s21
        %s258 = smul.u32 64, %s21
        %p259 = scmp.lt.s32.totalorder %s258, 1151
        %s260 = scalar_select %p259, %s258, 1151
        %p261 = scmp.lt.s32.totalorder %s20, 0
        %s262 = scalar_select %p261, %s20, 0
        %s263 = sadd.s32 %s262, %s260
        %s264 = smul.addr %s263, 4
        %s265 = scalar_lea.vmem %s1, %s264
        %s266 = smul.u32 64, %s21
        %p267 = scmp.lt.s32.totalorder %s20, 0
        %s268 = scalar_select %p267, %s20, 0
        %s269 = scalar_lea.vmem %s2, %s268
        %s270 = smul.u32 2, %s19
        %p271 = scmp.lt.s32.totalorder %s270, 1
        %s272 = scalar_select %p271, %s270, 1
        %p273 = scmp.lt.s32.totalorder %s20, 0
        %s274 = scalar_select %p273, %s20, 0
        %s275 = sadd.s32 %s274, %s272
        %s276 = smul.addr %s275, 8
        %s277 = scalar_lea.vmem %s3, %s276
        %s278 = smul.u32 2, %s19
        %p280 = scmp.eq.s32.totalorder %s21, 0
        // Predicated region
        $region56: #{svae_conv_forward.22} parent=50 // pred_check
          %p281 = pneg %p280
        $region57: #{svae_conv_forward.22} parent=50 // pred_check_branch
          %283 = sbr.rel (%p281) target = $region59
        $region58: #{svae_conv_forward.22} parent=50 // pred_region
          %284 = vst [vmem:[#allocation2] sm:$0xff] 0.0
          %285 = vst [vmem:[#allocation2 + $0x8] sm:$0xff] 0.0
        $region59: #{svae_conv_forward.22} parent=50 // pred_fallthru
          _
        %v286 = vld [vmem:[#allocation2] sm:$0xff]
        %v287 = vld [vmem:[#allocation2 + $0x8] sm:$0xff]
        %v288 = vld [vmem:[%s221] sm:$0xff]
        %v289 = vld [vmem:[%s221 + $0x8] sm:$0xff]
        %v290 = vld [vmem:[%s221 + $0x10] sm:$0xff]
        %v291 = vld [vmem:[%s221 + $0x18] sm:$0xff]
        %v292 = vld [vmem:[%s265] sm:$0xf]
        %v293 = vld [vmem:[%s265 + $0x4] sm:$0xf]
        %v294 = vld [vmem:[%s265 + $0x8] sm:$0xf]
        %v295 = vld [vmem:[%s265 + $0xc] sm:$0xf]
        %v296 = vld [vmem:[%s265 + $0x10] sm:$0xf]
        %v297 = vld [vmem:[%s265 + $0x14] sm:$0xf]
        %v298 = vld [vmem:[%s265 + $0x18] sm:$0xf]
        %v299 = vld [vmem:[%s265 + $0x1c] sm:$0xf]
        %v300 = vld [vmem:[%s265 + $0x20] sm:$0xf]
        %v301 = vld [vmem:[%s265 + $0x24] sm:$0xf]
        %v302 = vld [vmem:[%s265 + $0x28] sm:$0xf]
        %v303 = vld [vmem:[%s265 + $0x2c] sm:$0xf]
        %v304 = vld [vmem:[%s265 + $0x30] sm:$0xf]
        %v305 = vld [vmem:[%s265 + $0x34] sm:$0xf]
        %v306 = vld [vmem:[%s265 + $0x38] sm:$0xf]
        %v307 = vld [vmem:[%s265 + $0x3c] sm:$0xf]
        %v308 = vld [vmem:[%s265 + $0x40] sm:$0xf]
        %v309 = vld [vmem:[%s265 + $0x44] sm:$0xf]
        %v310 = vld [vmem:[%s265 + $0x48] sm:$0xf]
        %v311 = vld [vmem:[%s265 + $0x4c] sm:$0xf]
        %v312 = vld [vmem:[%s265 + $0x50] sm:$0xf]
        %v313 = vld [vmem:[%s265 + $0x54] sm:$0xf]
        %v314 = vld [vmem:[%s265 + $0x58] sm:$0xf]
        %v315 = vld [vmem:[%s265 + $0x5c] sm:$0xf]
        %v316 = vld [vmem:[%s265 + $0x60] sm:$0xf]
        %v317 = vld [vmem:[%s265 + $0x64] sm:$0xf]
        %v318 = vld [vmem:[%s265 + $0x68] sm:$0xf]
        %v319 = vld [vmem:[%s265 + $0x6c] sm:$0xf]
        %v320 = vld [vmem:[%s265 + $0x70] sm:$0xf]
        %v321 = vld [vmem:[%s265 + $0x74] sm:$0xf]
        %v322 = vld [vmem:[%s265 + $0x78] sm:$0xf]
        %v323 = vld [vmem:[%s265 + $0x7c] sm:$0xf]
        %v324 = vld [vmem:[%s265 + $0x80] sm:$0xf]
        %v325 = vld [vmem:[%s265 + $0x84] sm:$0xf]
        %v326 = vld [vmem:[%s265 + $0x88] sm:$0xf]
        %v327 = vld [vmem:[%s265 + $0x8c] sm:$0xf]
        %v328 = vld [vmem:[%s265 + $0x90] sm:$0xf]
        %v329 = vld [vmem:[%s265 + $0x94] sm:$0xf]
        %v330 = vld [vmem:[%s265 + $0x98] sm:$0xf]
        %v331 = vld [vmem:[%s265 + $0x9c] sm:$0xf]
        %v332 = vld [vmem:[%s265 + $0xa0] sm:$0xf]
        %v333 = vld [vmem:[%s265 + $0xa4] sm:$0xf]
        %v334 = vld [vmem:[%s265 + $0xa8] sm:$0xf]
        %v335 = vld [vmem:[%s265 + $0xac] sm:$0xf]
        %v336 = vld [vmem:[%s265 + $0xb0] sm:$0xf]
        %v337 = vld [vmem:[%s265 + $0xb4] sm:$0xf]
        %v338 = vld [vmem:[%s265 + $0xb8] sm:$0xf]
        %v339 = vld [vmem:[%s265 + $0xbc] sm:$0xf]
        %v340 = vld [vmem:[%s265 + $0xc0] sm:$0xf]
        %v341 = vld [vmem:[%s265 + $0xc4] sm:$0xf]
        %v342 = vld [vmem:[%s265 + $0xc8] sm:$0xf]
        %v343 = vld [vmem:[%s265 + $0xcc] sm:$0xf]
        %v344 = vld [vmem:[%s265 + $0xd0] sm:$0xf]
        %v345 = vld [vmem:[%s265 + $0xd4] sm:$0xf]
        %v346 = vld [vmem:[%s265 + $0xd8] sm:$0xf]
        %v347 = vld [vmem:[%s265 + $0xdc] sm:$0xf]
        %v348 = vld [vmem:[%s265 + $0xe0] sm:$0xf]
        %v349 = vld [vmem:[%s265 + $0xe4] sm:$0xf]
        %v350 = vld [vmem:[%s265 + $0xe8] sm:$0xf]
        %v351 = vld [vmem:[%s265 + $0xec] sm:$0xf]
        %v352 = vld [vmem:[%s265 + $0xf0] sm:$0xf]
        %v353 = vld [vmem:[%s265 + $0xf4] sm:$0xf]
        %v354 = vld [vmem:[%s265 + $0xf8] sm:$0xf]
        %v355 = vld [vmem:[%s265 + $0xfc] sm:$0xf]
        %v360 = vunpack.c.l.b16 %v288
        %v361 = vunpack.c.h.b16 %v288
        %v362 = vunpack.c.l.b16 %v289
        %v363 = vunpack.c.h.b16 %v289
        %v364 = vunpack.c.l.b16 %v290
        %v365 = vunpack.c.h.b16 %v290
        %v366 = vunpack.c.l.b16 %v291
        %v367 = vunpack.c.h.b16 %v291
        %v368 = vpack.c.b16 %v364, %v360
        %v369 = vpack.c.b16 %v365, %v361
        %v370 = vpack.c.b16 %v366, %v362
        %v371 = vpack.c.b16 %v367, %v363
        %v440 = vunpack.c.l.b16 %v292
        %v441 = vunpack.c.l.b16 %v293
        %v442 = vunpack.c.l.b16 %v294
        %v443 = vunpack.c.l.b16 %v295
        %v444 = vunpack.c.l.b16 %v296
        %v445 = vunpack.c.l.b16 %v297
        %v446 = vunpack.c.l.b16 %v298
        %v447 = vunpack.c.l.b16 %v299
        %v448 = vunpack.c.l.b16 %v300
        %v449 = vunpack.c.l.b16 %v301
        %v450 = vunpack.c.l.b16 %v302
        %v451 = vunpack.c.l.b16 %v303
        %v452 = vunpack.c.l.b16 %v304
        %v453 = vunpack.c.l.b16 %v305
        %v454 = vunpack.c.l.b16 %v306
        %v455 = vunpack.c.l.b16 %v307
        %v456 = vunpack.c.l.b16 %v308
        %v457 = vunpack.c.l.b16 %v309
        %v458 = vunpack.c.l.b16 %v310
        %v459 = vunpack.c.l.b16 %v311
        %v460 = vunpack.c.l.b16 %v312
        %v461 = vunpack.c.l.b16 %v313
        %v462 = vunpack.c.l.b16 %v314
        %v463 = vunpack.c.l.b16 %v315
        %v464 = vunpack.c.l.b16 %v316
        %v465 = vunpack.c.l.b16 %v317
        %v466 = vunpack.c.l.b16 %v318
        %v467 = vunpack.c.l.b16 %v319
        %v468 = vunpack.c.l.b16 %v320
        %v469 = vunpack.c.l.b16 %v321
        %v470 = vunpack.c.l.b16 %v322
        %v471 = vunpack.c.l.b16 %v323
        %v472 = vunpack.c.l.b16 %v324
        %v473 = vunpack.c.l.b16 %v325
        %v474 = vunpack.c.l.b16 %v326
        %v475 = vunpack.c.l.b16 %v327
        %v476 = vunpack.c.l.b16 %v328
        %v477 = vunpack.c.l.b16 %v329
        %v478 = vunpack.c.l.b16 %v330
        %v479 = vunpack.c.l.b16 %v331
        %v480 = vunpack.c.l.b16 %v332
        %v481 = vunpack.c.l.b16 %v333
        %v482 = vunpack.c.l.b16 %v334
        %v483 = vunpack.c.l.b16 %v335
        %v484 = vunpack.c.l.b16 %v336
        %v485 = vunpack.c.l.b16 %v337
        %v486 = vunpack.c.l.b16 %v338
        %v487 = vunpack.c.l.b16 %v339
        %v488 = vunpack.c.l.b16 %v340
        %v489 = vunpack.c.l.b16 %v341
        %v490 = vunpack.c.l.b16 %v342
        %v491 = vunpack.c.l.b16 %v343
        %v492 = vunpack.c.l.b16 %v344
        %v493 = vunpack.c.l.b16 %v345
        %v494 = vunpack.c.l.b16 %v346
        %v495 = vunpack.c.l.b16 %v347
        %v496 = vunpack.c.l.b16 %v348
        %v497 = vunpack.c.l.b16 %v349
        %v498 = vunpack.c.l.b16 %v350
        %v499 = vunpack.c.l.b16 %v351
        %v500 = vunpack.c.l.b16 %v352
        %v501 = vunpack.c.l.b16 %v353
        %v502 = vunpack.c.l.b16 %v354
        %v503 = vunpack.c.l.b16 %v355
        %v504 = vpack.c.b16 %v441, %v440
        %v505 = vpack.c.b16 %v443, %v442
        %v506 = vpack.c.b16 %v445, %v444
        %v507 = vpack.c.b16 %v447, %v446
        %v508 = vpack.c.b16 %v449, %v448
        %v509 = vpack.c.b16 %v451, %v450
        %v510 = vpack.c.b16 %v453, %v452
        %v511 = vpack.c.b16 %v455, %v454
        %v512 = vpack.c.b16 %v457, %v456
        %v513 = vpack.c.b16 %v459, %v458
        %v514 = vpack.c.b16 %v461, %v460
        %v515 = vpack.c.b16 %v463, %v462
        %v516 = vpack.c.b16 %v465, %v464
        %v517 = vpack.c.b16 %v467, %v466
        %v518 = vpack.c.b16 %v469, %v468
        %v519 = vpack.c.b16 %v471, %v470
        %v520 = vpack.c.b16 %v473, %v472
        %v521 = vpack.c.b16 %v475, %v474
        %v522 = vpack.c.b16 %v477, %v476
        %v523 = vpack.c.b16 %v479, %v478
        %v524 = vpack.c.b16 %v481, %v480
        %v525 = vpack.c.b16 %v483, %v482
        %v526 = vpack.c.b16 %v485, %v484
        %v527 = vpack.c.b16 %v487, %v486
        %v528 = vpack.c.b16 %v489, %v488
        %v529 = vpack.c.b16 %v491, %v490
        %v530 = vpack.c.b16 %v493, %v492
        %v531 = vpack.c.b16 %v495, %v494
        %v532 = vpack.c.b16 %v497, %v496
        %v533 = vpack.c.b16 %v499, %v498
        %v534 = vpack.c.b16 %v501, %v500
        %v535 = vpack.c.b16 %v503, %v502
        %568 = vmatprep.subr.bf16.mxu0 0
        %569 = vmatpush1.bf16.msra.mxu0 %v511
        %570 = vmatprep.subr.bf16.mxu0 0
        %571 = vmatpush1.bf16.msra.mxu0 %v510
        %572 = vmatprep.subr.bf16.mxu0 0
        %573 = vmatpush1.bf16.msra.mxu0 %v509
        %574 = vmatprep.subr.bf16.mxu0 0
        %575 = vmatpush1.bf16.msra.mxu0 %v508
        %576 = vmatprep.subr.bf16.mxu0 0
        %577 = vmatpush1.bf16.msra.mxu0 %v507
        %578 = vmatprep.subr.bf16.mxu0 0
        %579 = vmatpush1.bf16.msra.mxu0 %v506
        %580 = vmatprep.subr.bf16.mxu0 0
        %581 = vmatpush1.bf16.msra.mxu0 %v505
        %582 = vmatprep.subr.bf16.mxu0 0
        %583 = vmatpush1.bf16.msra.mxu0 %v504
        %584 = vmatprep.subr.bf16.mxu0 0
        %585 = vmatpush2.bf16.msra.mxu0 %v519
        %586 = vmatprep.subr.bf16.mxu0 0
        %587 = vmatpush2.bf16.msra.mxu0 %v518
        %588 = vmatprep.subr.bf16.mxu0 0
        %589 = vmatpush2.bf16.msra.mxu0 %v517
        %590 = vmatprep.subr.bf16.mxu0 0
        %591 = vmatpush2.bf16.msra.mxu0 %v516
        %592 = vmatprep.subr.bf16.mxu0 0
        %593 = vmatpush2.bf16.msra.mxu0 %v515
        %594 = vmatprep.subr.bf16.mxu0 0
        %595 = vmatpush2.bf16.msra.mxu0 %v514
        %596 = vmatprep.subr.bf16.mxu0 0
        %597 = vmatpush2.bf16.msra.mxu0 %v513
        %598 = vmatprep.subr.bf16.mxu0 0
        %599 = vmatpush2.bf16.msra.mxu0 %v512
        %600 = vmatprep.mubr.bf16.mxu0 %v369
        %601 = vmatmul.mubr.bf16.gmra.mxu0 %v368
        %v602 = vpop.f32.mrf.mxu0
        %v603 = vadd.f32 0.0, %v602
        %v604 = vpop.f32.mrf.mxu0
        %v605 = vpop.f32.mrf.mxu0
        %v606 = vadd.f32 0.0, %v605
        %v607 = vpop.f32.mrf.mxu0
        %608 = vdwg.mxu0
        %609 = vmatprep.subr.bf16.mxu0 0
        %610 = vmatpush1.bf16.msra.mxu0 %v527
        %611 = vmatprep.subr.bf16.mxu0 0
        %612 = vmatpush1.bf16.msra.mxu0 %v526
        %613 = vmatprep.subr.bf16.mxu0 0
        %614 = vmatpush1.bf16.msra.mxu0 %v525
        %615 = vmatprep.subr.bf16.mxu0 0
        %616 = vmatpush1.bf16.msra.mxu0 %v524
        %617 = vmatprep.subr.bf16.mxu0 0
        %618 = vmatpush1.bf16.msra.mxu0 %v523
        %619 = vmatprep.subr.bf16.mxu0 0
        %620 = vmatpush1.bf16.msra.mxu0 %v522
        %621 = vmatprep.subr.bf16.mxu0 0
        %622 = vmatpush1.bf16.msra.mxu0 %v521
        %623 = vmatprep.subr.bf16.mxu0 0
        %624 = vmatpush1.bf16.msra.mxu0 %v520
        %625 = vmatprep.subr.bf16.mxu0 0
        %626 = vmatpush2.bf16.msra.mxu0 %v535
        %627 = vmatprep.subr.bf16.mxu0 0
        %628 = vmatpush2.bf16.msra.mxu0 %v534
        %629 = vmatprep.subr.bf16.mxu0 0
        %630 = vmatpush2.bf16.msra.mxu0 %v533
        %631 = vmatprep.subr.bf16.mxu0 0
        %632 = vmatpush2.bf16.msra.mxu0 %v532
        %633 = vmatprep.subr.bf16.mxu0 0
        %634 = vmatpush2.bf16.msra.mxu0 %v531
        %635 = vmatprep.subr.bf16.mxu0 0
        %636 = vmatpush2.bf16.msra.mxu0 %v530
        %637 = vmatprep.subr.bf16.mxu0 0
        %638 = vmatpush2.bf16.msra.mxu0 %v529
        %639 = vmatprep.subr.bf16.mxu0 0
        %640 = vmatpush2.bf16.msra.mxu0 %v528
        %641 = vmatprep.mubr.bf16.mxu0 %v371
        %642 = vmatmul.mubr.bf16.gmra.mxu0 %v370
        %v643 = vpop.f32.mrf.mxu0
        %v644 = vadd.f32 %v603, %v643
        %v645 = vpop.f32.mrf.mxu0
        %v646 = vpop.f32.mrf.mxu0
        %v647 = vadd.f32 %v606, %v646
        %v648 = vpop.f32.mrf.mxu0
        %649 = vdwg.mxu0
        %v650 = vadd.f32 %v286, %v644
        %v651 = vadd.f32 %v287, %v647
        %652 = vst [vmem:[#allocation2] sm:$0xff] %v650
        %653 = vst [vmem:[#allocation2 + $0x8] sm:$0xff] %v651
        %p654 = scmp.eq.s32.totalorder %s21, 17
        // Predicated region
        $region60: #{svae_conv_forward.22} parent=50 // pred_check
          %p655 = pneg %p654
        $region61: #{svae_conv_forward.22} parent=50 // pred_check_branch
          %657 = sbr.rel (%p655) target = $region63
        $region62: #{svae_conv_forward.22} parent=50 // pred_region
          %v658 = vld [vmem:[#allocation2] sm:$0xff]
          %v659 = vld [vmem:[#allocation2 + $0x8] sm:$0xff]
          %v660 = vld [vmem:[%s269] sm:$0x1]
          %v662 = vlaneseq
          %v663 = vshrl.u32 %v662, 7
          %v664 = vsub.s32 0, %v663
          %v665 = vrot.slane %v660, %v664
          %v667 = vadd.f32 %v658, %v665
          %v668 = vadd.f32 %v659, %v665
          %v669 = vmax.f32 %v667, 0.0
          %v670 = vmax.f32 %v668, 0.0
          %671 = vst [vmem:[%s277] sm:$0xff] %v669
          %672 = vst [vmem:[%s277 + $0x8] sm:$0xff] %v670
        $region63: #{svae_conv_forward.22} parent=50 // pred_fallthru
          _
        %s673 = smul.u32 2, %s19
        %p674 = scmp.lt.s32.totalorder %s673, 1
        %s675 = scalar_select %p674, %s673, 1
        %p676 = scmp.lt.s32.totalorder %s20, 0
        %s677 = scalar_select %p676, %s20, 0
        %s678 = sadd.s32 %s677, %s675
        %s679 = smul.addr %s678, 8
        %s680 = scalar_lea.vmem %s3, %s679
        // Predicated region
        $region64: #{svae_conv_forward.22} parent=50 // pred_check
          %p681 = pneg %p135
        $region65: #{svae_conv_forward.22} parent=50 // pred_check_branch
          %683 = sbr.rel (%p681) target = $region67
        $region66: #{svae_conv_forward.22} parent=50 // pred_region
          %s684 = smul.u32 2, %s19
        $region67: #{svae_conv_forward.22} parent=50 // pred_fallthru
          _
        // Predicated region
        $region68: #{svae_conv_forward.22} parent=50 // pred_check
          %p685 = pneg %p135
        $region69: #{svae_conv_forward.22} parent=50 // pred_check_branch
          %687 = sbr.rel (%p685) target = $region71
        $region70: #{svae_conv_forward.22} parent=50 // pred_region
          %s688 = smul.u32 2, %s19
          %p689 = scmp.lt.s32.totalorder %s688, 1
          %s690 = scalar_select %p689, %s688, 1
          %p691 = scmp.lt.s32.totalorder %s20, 0
          %s692 = scalar_select %p691, %s20, 0
          %s693 = sadd.s32 %s692, %s690
          %s694 = smul.addr %s693, 8
          %s695 = scalar_lea.vmem %s3, %s694
        $region71: #{svae_conv_forward.22} parent=50 // pred_fallthru
          _
      $region51: #{svae_conv_forward.22} parent=5 // pred_fallthru
        _
      %p696 = scmp.le.s32.totalorder 2, %s9
      // Predicated region
      $region72: #{svae_conv_forward.22} parent=5 // pred_check
        %p697 = pneg %p696
      $region73: #{svae_conv_forward.22} parent=5 // pred_check_branch
        %699 = sbr.rel (%p697) target = $region75
      $region74: #{svae_conv_forward.22} parent=5 // pred_region
        %s700 = ssub.s32 %s9, 2
      $region75: #{svae_conv_forward.22} parent=5 // pred_fallthru
        _
    $region6: #{svae_conv_forward.22} parent=1 // loop_footer
      %s13 = sadd.s32 1, %s9
    $region7: #{svae_conv_forward.22} parent=1 // loop_footer_branch
      %8 = sbr.rel target = $region3
    $region8: #{svae_conv_forward.22} parent=1 // loop_exit
      _

// kernel: svae_conv_forward.23
$region0: #{svae_conv_forward.23}
  #allocation0 [shape = 'u32[]', space=smem, size = 0x4, offset = 0x4, fixed_abs, tag = 'smem constant byte address 0x4 - core index']
  #allocation1 [shape = 'u32[144,128]{1,0:T(1,128)}', space=vmem, size = 0x12000, scoped, tag = 'internal scratch']
  #allocation2 [shape = 'f32[16,128]{1,0:T(8,128)}', space=vmem, size = 0x2000, scoped, tag = 'scratch operand']
  %s0 = inlined_call_operand.vmem [shape: bf16[16,256], index: 0, kind: input, shape index: {}]
  %s1 = inlined_call_operand.vmem [shape: bf16[256,128], index: 1, kind: input, shape index: {}]
  %s2 = inlined_call_operand.vmem [shape: f32[1,128], index: 2, kind: input, shape index: {}]
  %s3 = inlined_call_operand.vmem [shape: f32[16,128], index: 3, kind: output, shape index: {}]
  %s4 = sld [smem:[#allocation0]]
  $region30: #{svae_conv_forward.23} parent=0
    _
  %s6 = ssub.s32 1, %s4
  %s7 = scalar_select 0, %s6, %s4
  // Predicated region
  $region2: #{svae_conv_forward.23} parent=0 // pred_check
    _
  $region3: #{svae_conv_forward.23} parent=0 // pred_check_branch
    %9 = sbr.rel (0) target = $region5
  $region4: #{svae_conv_forward.23} parent=0 // pred_region
    _
  $region5: #{svae_conv_forward.23} parent=0 // pred_fallthru
    _
  // Predicated region
  $region6: #{svae_conv_forward.23} parent=0 // pred_check
    _
  $region7: #{svae_conv_forward.23} parent=0 // pred_check_branch
    %11 = sbr.rel (0) target = $region9
  $region8: #{svae_conv_forward.23} parent=0 // pred_region
    _
  $region9: #{svae_conv_forward.23} parent=0 // pred_fallthru
    _
  // Predicated region
  $region10: #{svae_conv_forward.23} parent=0 // pred_check
    _
  $region11: #{svae_conv_forward.23} parent=0 // pred_check_branch
    %13 = sbr.rel (0) target = $region13
  $region12: #{svae_conv_forward.23} parent=0 // pred_region
    _
  $region13: #{svae_conv_forward.23} parent=0 // pred_fallthru
    _
  %p15 = scmp.eq.s32.totalorder 0, 0
  // Predicated region
  $region14: #{svae_conv_forward.23} parent=0 // pred_check
    %p16 = pneg %p15
  $region15: #{svae_conv_forward.23} parent=0 // pred_check_branch
    %18 = sbr.rel (%p16) target = $region17
  $region16: #{svae_conv_forward.23} parent=0 // pred_region
    %19 = vst [vmem:[#allocation2] sm:$0xff] 0.0
    %20 = vst [vmem:[#allocation2 + $0x8] sm:$0xff] 0.0
  $region17: #{svae_conv_forward.23} parent=0 // pred_fallthru
    _
  %v21 = vld [vmem:[#allocation2] sm:$0xff]
  %v22 = vld [vmem:[#allocation2 + $0x8] sm:$0xff]
  %v23 = vld [vmem:[%s0] sm:$0xff]
  %v24 = vld [vmem:[%s0 + $0x8] sm:$0xff]
  %v25 = vld [vmem:[%s1] sm:$0xf]
  %v26 = vld [vmem:[%s1 + $0x4] sm:$0xf]
  %v27 = vld [vmem:[%s1 + $0x8] sm:$0xf]
  %v28 = vld [vmem:[%s1 + $0xc] sm:$0xf]
  %v29 = vld [vmem:[%s1 + $0x10] sm:$0xf]
  %v30 = vld [vmem:[%s1 + $0x14] sm:$0xf]
  %v31 = vld [vmem:[%s1 + $0x18] sm:$0xf]
  %v32 = vld [vmem:[%s1 + $0x1c] sm:$0xf]
  %v33 = vld [vmem:[%s1 + $0x20] sm:$0xf]
  %v34 = vld [vmem:[%s1 + $0x24] sm:$0xf]
  %v35 = vld [vmem:[%s1 + $0x28] sm:$0xf]
  %v36 = vld [vmem:[%s1 + $0x2c] sm:$0xf]
  %v37 = vld [vmem:[%s1 + $0x30] sm:$0xf]
  %v38 = vld [vmem:[%s1 + $0x34] sm:$0xf]
  %v39 = vld [vmem:[%s1 + $0x38] sm:$0xf]
  %v40 = vld [vmem:[%s1 + $0x3c] sm:$0xf]
  %v41 = vld [vmem:[%s1 + $0x40] sm:$0xf]
  %v42 = vld [vmem:[%s1 + $0x44] sm:$0xf]
  %v43 = vld [vmem:[%s1 + $0x48] sm:$0xf]
  %v44 = vld [vmem:[%s1 + $0x4c] sm:$0xf]
  %v45 = vld [vmem:[%s1 + $0x50] sm:$0xf]
  %v46 = vld [vmem:[%s1 + $0x54] sm:$0xf]
  %v47 = vld [vmem:[%s1 + $0x58] sm:$0xf]
  %v48 = vld [vmem:[%s1 + $0x5c] sm:$0xf]
  %v49 = vld [vmem:[%s1 + $0x60] sm:$0xf]
  %v50 = vld [vmem:[%s1 + $0x64] sm:$0xf]
  %v51 = vld [vmem:[%s1 + $0x68] sm:$0xf]
  %v52 = vld [vmem:[%s1 + $0x6c] sm:$0xf]
  %v53 = vld [vmem:[%s1 + $0x70] sm:$0xf]
  %v54 = vld [vmem:[%s1 + $0x74] sm:$0xf]
  %v55 = vld [vmem:[%s1 + $0x78] sm:$0xf]
  %v56 = vld [vmem:[%s1 + $0x7c] sm:$0xf]
  %v59 = vunpack.c.l.b16 %v23
  %v60 = vunpack.c.h.b16 %v23
  %v61 = vunpack.c.l.b16 %v24
  %v62 = vunpack.c.h.b16 %v24
  %v63 = vpack.c.b16 %v61, %v59
  %v64 = vpack.c.b16 %v62, %v60
  %v99 = vunpack.c.l.b16 %v25
  %v100 = vunpack.c.l.b16 %v26
  %v101 = vunpack.c.l.b16 %v27
  %v102 = vunpack.c.l.b16 %v28
  %v103 = vunpack.c.l.b16 %v29
  %v104 = vunpack.c.l.b16 %v30
  %v105 = vunpack.c.l.b16 %v31
  %v106 = vunpack.c.l.b16 %v32
  %v107 = vunpack.c.l.b16 %v33
  %v108 = vunpack.c.l.b16 %v34
  %v109 = vunpack.c.l.b16 %v35
  %v110 = vunpack.c.l.b16 %v36
  %v111 = vunpack.c.l.b16 %v37
  %v112 = vunpack.c.l.b16 %v38
  %v113 = vunpack.c.l.b16 %v39
  %v114 = vunpack.c.l.b16 %v40
  %v115 = vunpack.c.l.b16 %v41
  %v116 = vunpack.c.l.b16 %v42
  %v117 = vunpack.c.l.b16 %v43
  %v118 = vunpack.c.l.b16 %v44
  %v119 = vunpack.c.l.b16 %v45
  %v120 = vunpack.c.l.b16 %v46
  %v121 = vunpack.c.l.b16 %v47
  %v122 = vunpack.c.l.b16 %v48
  %v123 = vunpack.c.l.b16 %v49
  %v124 = vunpack.c.l.b16 %v50
  %v125 = vunpack.c.l.b16 %v51
  %v126 = vunpack.c.l.b16 %v52
  %v127 = vunpack.c.l.b16 %v53
  %v128 = vunpack.c.l.b16 %v54
  %v129 = vunpack.c.l.b16 %v55
  %v130 = vunpack.c.l.b16 %v56
  %v131 = vpack.c.b16 %v100, %v99
  %v132 = vpack.c.b16 %v102, %v101
  %v133 = vpack.c.b16 %v104, %v103
  %v134 = vpack.c.b16 %v106, %v105
  %v135 = vpack.c.b16 %v108, %v107
  %v136 = vpack.c.b16 %v110, %v109
  %v137 = vpack.c.b16 %v112, %v111
  %v138 = vpack.c.b16 %v114, %v113
  %v139 = vpack.c.b16 %v116, %v115
  %v140 = vpack.c.b16 %v118, %v117
  %v141 = vpack.c.b16 %v120, %v119
  %v142 = vpack.c.b16 %v122, %v121
  %v143 = vpack.c.b16 %v124, %v123
  %v144 = vpack.c.b16 %v126, %v125
  %v145 = vpack.c.b16 %v128, %v127
  %v146 = vpack.c.b16 %v130, %v129
  %163 = vmatprep.subr.bf16.mxu0 0
  %164 = vmatpush1.bf16.msra.mxu0 %v138
  %165 = vmatprep.subr.bf16.mxu0 0
  %166 = vmatpush1.bf16.msra.mxu0 %v137
  %167 = vmatprep.subr.bf16.mxu0 0
  %168 = vmatpush1.bf16.msra.mxu0 %v136
  %169 = vmatprep.subr.bf16.mxu0 0
  %170 = vmatpush1.bf16.msra.mxu0 %v135
  %171 = vmatprep.subr.bf16.mxu0 0
  %172 = vmatpush1.bf16.msra.mxu0 %v134
  %173 = vmatprep.subr.bf16.mxu0 0
  %174 = vmatpush1.bf16.msra.mxu0 %v133
  %175 = vmatprep.subr.bf16.mxu0 0
  %176 = vmatpush1.bf16.msra.mxu0 %v132
  %177 = vmatprep.subr.bf16.mxu0 0
  %178 = vmatpush1.bf16.msra.mxu0 %v131
  %179 = vmatprep.subr.bf16.mxu0 0
  %180 = vmatpush2.bf16.msra.mxu0 %v146
  %181 = vmatprep.subr.bf16.mxu0 0
  %182 = vmatpush2.bf16.msra.mxu0 %v145
  %183 = vmatprep.subr.bf16.mxu0 0
  %184 = vmatpush2.bf16.msra.mxu0 %v144
  %185 = vmatprep.subr.bf16.mxu0 0
  %186 = vmatpush2.bf16.msra.mxu0 %v143
  %187 = vmatprep.subr.bf16.mxu0 0
  %188 = vmatpush2.bf16.msra.mxu0 %v142
  %189 = vmatprep.subr.bf16.mxu0 0
  %190 = vmatpush2.bf16.msra.mxu0 %v141
  %191 = vmatprep.subr.bf16.mxu0 0
  %192 = vmatpush2.bf16.msra.mxu0 %v140
  %193 = vmatprep.subr.bf16.mxu0 0
  %194 = vmatpush2.bf16.msra.mxu0 %v139
  %195 = vmatprep.mubr.bf16.mxu0 %v64
  %196 = vmatmul.mubr.bf16.gmra.mxu0 %v63
  %v197 = vpop.f32.mrf.mxu0
  %v198 = vadd.f32 0.0, %v197
  %v199 = vpop.f32.mrf.mxu0
  %v200 = vpop.f32.mrf.mxu0
  %v201 = vadd.f32 0.0, %v200
  %v202 = vpop.f32.mrf.mxu0
  %203 = vdwg.mxu0
  %v204 = vadd.f32 %v21, %v198
  %v205 = vadd.f32 %v22, %v201
  %206 = vst [vmem:[#allocation2] sm:$0xff] %v204
  %207 = vst [vmem:[#allocation2 + $0x8] sm:$0xff] %v205
  // Predicated region
  $region18: #{svae_conv_forward.23} parent=0 // pred_check
    %p208 = pneg %p15
  $region19: #{svae_conv_forward.23} parent=0 // pred_check_branch
    %210 = sbr.rel (%p208) target = $region21
  $region20: #{svae_conv_forward.23} parent=0 // pred_region
    %v211 = vld [vmem:[#allocation2] sm:$0xff]
    %v212 = vld [vmem:[#allocation2 + $0x8] sm:$0xff]
    %v213 = vld [vmem:[%s2] sm:$0x1]
    %v215 = vlaneseq
    %v216 = vshrl.u32 %v215, 7
    %v217 = vsub.s32 0, %v216
    %v218 = vrot.slane %v213, %v217
    %v220 = vadd.f32 %v211, %v218
    %v221 = vadd.f32 %v212, %v218
    %v222 = vmax.f32 %v220, 0.0
    %v223 = vmax.f32 %v221, 0.0
    %224 = vst [vmem:[%s3] sm:$0xff] %v222
    %225 = vst [vmem:[%s3 + $0x8] sm:$0xff] %v223
  $region21: #{svae_conv_forward.23} parent=0 // pred_fallthru
    _
  // Predicated region
  $region22: #{svae_conv_forward.23} parent=0 // pred_check
    _
  $region23: #{svae_conv_forward.23} parent=0 // pred_check_branch
    %227 = sbr.rel (0) target = $region25
  $region24: #{svae_conv_forward.23} parent=0 // pred_region
    _
  $region25: #{svae_conv_forward.23} parent=0 // pred_fallthru
    _
  // Predicated region
  $region26: #{svae_conv_forward.23} parent=0 // pred_check
    _
  $region27: #{svae_conv_forward.23} parent=0 // pred_check_branch
    %229 = sbr.rel (0) target = $region29
  $region28: #{svae_conv_forward.23} parent=0 // pred_region
    _
  $region29: #{svae_conv_forward.23} parent=0 // pred_fallthru
    _

// kernel: svae_conv_forward.24
$region0: #{svae_conv_forward.24}
  #allocation0 [shape = 'u32[]', space=smem, size = 0x4, offset = 0x4, fixed_abs, tag = 'smem constant byte address 0x4 - core index']
  #allocation1 [shape = 'u32[144,128]{1,0:T(1,128)}', space=vmem, size = 0x12000, scoped, tag = 'internal scratch']
  #allocation2 [shape = 'f32[16,128]{1,0:T(8,128)}', space=vmem, size = 0x2000, scoped, tag = 'scratch operand']
  %s0 = inlined_call_operand.vmem [shape: bf16[16,384], index: 0, kind: input, shape index: {}]
  %s1 = inlined_call_operand.vmem [shape: bf16[384,128], index: 1, kind: input, shape index: {}]
  %s2 = inlined_call_operand.vmem [shape: f32[1,128], index: 2, kind: input, shape index: {}]
  %s3 = inlined_call_operand.vmem [shape: f32[16,128], index: 3, kind: output, shape index: {}]
  %s4 = sld [smem:[#allocation0]]
  $region30: #{svae_conv_forward.24} parent=0
    _
  %s6 = ssub.s32 1, %s4
  %s7 = scalar_select 0, %s6, %s4
  // Predicated region
  $region2: #{svae_conv_forward.24} parent=0 // pred_check
    _
  $region3: #{svae_conv_forward.24} parent=0 // pred_check_branch
    %9 = sbr.rel (0) target = $region5
  $region4: #{svae_conv_forward.24} parent=0 // pred_region
    _
  $region5: #{svae_conv_forward.24} parent=0 // pred_fallthru
    _
  // Predicated region
  $region6: #{svae_conv_forward.24} parent=0 // pred_check
    _
  $region7: #{svae_conv_forward.24} parent=0 // pred_check_branch
    %11 = sbr.rel (0) target = $region9
  $region8: #{svae_conv_forward.24} parent=0 // pred_region
    _
  $region9: #{svae_conv_forward.24} parent=0 // pred_fallthru
    _
  // Predicated region
  $region10: #{svae_conv_forward.24} parent=0 // pred_check
    _
  $region11: #{svae_conv_forward.24} parent=0 // pred_check_branch
    %13 = sbr.rel (0) target = $region13
  $region12: #{svae_conv_forward.24} parent=0 // pred_region
    _
  $region13: #{svae_conv_forward.24} parent=0 // pred_fallthru
    _
  %p15 = scmp.eq.s32.totalorder 0, 0
  // Predicated region
  $region14: #{svae_conv_forward.24} parent=0 // pred_check
    %p16 = pneg %p15
  $region15: #{svae_conv_forward.24} parent=0 // pred_check_branch
    %18 = sbr.rel (%p16) target = $region17
  $region16: #{svae_conv_forward.24} parent=0 // pred_region
    %19 = vst [vmem:[#allocation2] sm:$0xff] 0.0
    %20 = vst [vmem:[#allocation2 + $0x8] sm:$0xff] 0.0
  $region17: #{svae_conv_forward.24} parent=0 // pred_fallthru
    _
  %v21 = vld [vmem:[#allocation2] sm:$0xff]
  %v22 = vld [vmem:[#allocation2 + $0x8] sm:$0xff]
  %v23 = vld [vmem:[%s0] sm:$0xff]
  %v24 = vld [vmem:[%s0 + $0x8] sm:$0xf]
  %v25 = vld [vmem:[%s0 + $0xc] sm:$0xff]
  %v26 = vld [vmem:[%s0 + $0x14] sm:$0xf]
  %v27 = vld [vmem:[%s1] sm:$0xf]
  %v28 = vld [vmem:[%s1 + $0x4] sm:$0xf]
  %v29 = vld [vmem:[%s1 + $0x8] sm:$0xf]
  %v30 = vld [vmem:[%s1 + $0xc] sm:$0xf]
  %v31 = vld [vmem:[%s1 + $0x10] sm:$0xf]
  %v32 = vld [vmem:[%s1 + $0x14] sm:$0xf]
  %v33 = vld [vmem:[%s1 + $0x18] sm:$0xf]
  %v34 = vld [vmem:[%s1 + $0x1c] sm:$0xf]
  %v35 = vld [vmem:[%s1 + $0x20] sm:$0xf]
  %v36 = vld [vmem:[%s1 + $0x24] sm:$0xf]
  %v37 = vld [vmem:[%s1 + $0x28] sm:$0xf]
  %v38 = vld [vmem:[%s1 + $0x2c] sm:$0xf]
  %v39 = vld [vmem:[%s1 + $0x30] sm:$0xf]
  %v40 = vld [vmem:[%s1 + $0x34] sm:$0xf]
  %v41 = vld [vmem:[%s1 + $0x38] sm:$0xf]
  %v42 = vld [vmem:[%s1 + $0x3c] sm:$0xf]
  %v43 = vld [vmem:[%s1 + $0x40] sm:$0xf]
  %v44 = vld [vmem:[%s1 + $0x44] sm:$0xf]
  %v45 = vld [vmem:[%s1 + $0x48] sm:$0xf]
  %v46 = vld [vmem:[%s1 + $0x4c] sm:$0xf]
  %v47 = vld [vmem:[%s1 + $0x50] sm:$0xf]
  %v48 = vld [vmem:[%s1 + $0x54] sm:$0xf]
  %v49 = vld [vmem:[%s1 + $0x58] sm:$0xf]
  %v50 = vld [vmem:[%s1 + $0x5c] sm:$0xf]
  %v51 = vld [vmem:[%s1 + $0x60] sm:$0xf]
  %v52 = vld [vmem:[%s1 + $0x64] sm:$0xf]
  %v53 = vld [vmem:[%s1 + $0x68] sm:$0xf]
  %v54 = vld [vmem:[%s1 + $0x6c] sm:$0xf]
  %v55 = vld [vmem:[%s1 + $0x70] sm:$0xf]
  %v56 = vld [vmem:[%s1 + $0x74] sm:$0xf]
  %v57 = vld [vmem:[%s1 + $0x78] sm:$0xf]
  %v58 = vld [vmem:[%s1 + $0x7c] sm:$0xf]
  %v59 = vld [vmem:[%s1 + $0x80] sm:$0xf]
  %v60 = vld [vmem:[%s1 + $0x84] sm:$0xf]
  %v61 = vld [vmem:[%s1 + $0x88] sm:$0xf]
  %v62 = vld [vmem:[%s1 + $0x8c] sm:$0xf]
  %v63 = vld [vmem:[%s1 + $0x90] sm:$0xf]
  %v64 = vld [vmem:[%s1 + $0x94] sm:$0xf]
  %v65 = vld [vmem:[%s1 + $0x98] sm:$0xf]
  %v66 = vld [vmem:[%s1 + $0x9c] sm:$0xf]
  %v67 = vld [vmem:[%s1 + $0xa0] sm:$0xf]
  %v68 = vld [vmem:[%s1 + $0xa4] sm:$0xf]
  %v69 = vld [vmem:[%s1 + $0xa8] sm:$0xf]
  %v70 = vld [vmem:[%s1 + $0xac] sm:$0xf]
  %v71 = vld [vmem:[%s1 + $0xb0] sm:$0xf]
  %v72 = vld [vmem:[%s1 + $0xb4] sm:$0xf]
  %v73 = vld [vmem:[%s1 + $0xb8] sm:$0xf]
  %v74 = vld [vmem:[%s1 + $0xbc] sm:$0xf]
  %v79 = vunpack.c.l.b16 %v23
  %v80 = vunpack.c.h.b16 %v23
  %v81 = vunpack.c.l.b16 %v24
  %v82 = vunpack.c.l.b16 %v25
  %v83 = vunpack.c.h.b16 %v25
  %v84 = vunpack.c.l.b16 %v26
  %v85 = vpack.c.b16 %v82, %v79
  %v86 = vpack.c.b16 %v83, %v80
  %v87 = vpack.c.b16 %v84, %v81
  %v139 = vunpack.c.l.b16 %v27
  %v140 = vunpack.c.l.b16 %v28
  %v141 = vunpack.c.l.b16 %v29
  %v142 = vunpack.c.l.b16 %v30
  %v143 = vunpack.c.l.b16 %v31
  %v144 = vunpack.c.l.b16 %v32
  %v145 = vunpack.c.l.b16 %v33
  %v146 = vunpack.c.l.b16 %v34
  %v147 = vunpack.c.l.b16 %v35
  %v148 = vunpack.c.l.b16 %v36
  %v149 = vunpack.c.l.b16 %v37
  %v150 = vunpack.c.l.b16 %v38
  %v151 = vunpack.c.l.b16 %v39
  %v152 = vunpack.c.l.b16 %v40
  %v153 = vunpack.c.l.b16 %v41
  %v154 = vunpack.c.l.b16 %v42
  %v155 = vunpack.c.l.b16 %v43
  %v156 = vunpack.c.l.b16 %v44
  %v157 = vunpack.c.l.b16 %v45
  %v158 = vunpack.c.l.b16 %v46
  %v159 = vunpack.c.l.b16 %v47
  %v160 = vunpack.c.l.b16 %v48
  %v161 = vunpack.c.l.b16 %v49
  %v162 = vunpack.c.l.b16 %v50
  %v163 = vunpack.c.l.b16 %v51
  %v164 = vunpack.c.l.b16 %v52
  %v165 = vunpack.c.l.b16 %v53
  %v166 = vunpack.c.l.b16 %v54
  %v167 = vunpack.c.l.b16 %v55
  %v168 = vunpack.c.l.b16 %v56
  %v169 = vunpack.c.l.b16 %v57
  %v170 = vunpack.c.l.b16 %v58
  %v171 = vunpack.c.l.b16 %v59
  %v172 = vunpack.c.l.b16 %v60
  %v173 = vunpack.c.l.b16 %v61
  %v174 = vunpack.c.l.b16 %v62
  %v175 = vunpack.c.l.b16 %v63
  %v176 = vunpack.c.l.b16 %v64
  %v177 = vunpack.c.l.b16 %v65
  %v178 = vunpack.c.l.b16 %v66
  %v179 = vunpack.c.l.b16 %v67
  %v180 = vunpack.c.l.b16 %v68
  %v181 = vunpack.c.l.b16 %v69
  %v182 = vunpack.c.l.b16 %v70
  %v183 = vunpack.c.l.b16 %v71
  %v184 = vunpack.c.l.b16 %v72
  %v185 = vunpack.c.l.b16 %v73
  %v186 = vunpack.c.l.b16 %v74
  %v187 = vpack.c.b16 %v140, %v139
  %v188 = vpack.c.b16 %v142, %v141
  %v189 = vpack.c.b16 %v144, %v143
  %v190 = vpack.c.b16 %v146, %v145
  %v191 = vpack.c.b16 %v148, %v147
  %v192 = vpack.c.b16 %v150, %v149
  %v193 = vpack.c.b16 %v152, %v151
  %v194 = vpack.c.b16 %v154, %v153
  %v195 = vpack.c.b16 %v156, %v155
  %v196 = vpack.c.b16 %v158, %v157
  %v197 = vpack.c.b16 %v160, %v159
  %v198 = vpack.c.b16 %v162, %v161
  %v199 = vpack.c.b16 %v164, %v163
  %v200 = vpack.c.b16 %v166, %v165
  %v201 = vpack.c.b16 %v168, %v167
  %v202 = vpack.c.b16 %v170, %v169
  %v203 = vpack.c.b16 %v172, %v171
  %v204 = vpack.c.b16 %v174, %v173
  %v205 = vpack.c.b16 %v176, %v175
  %v206 = vpack.c.b16 %v178, %v177
  %v207 = vpack.c.b16 %v180, %v179
  %v208 = vpack.c.b16 %v182, %v181
  %v209 = vpack.c.b16 %v184, %v183
  %v210 = vpack.c.b16 %v186, %v185
  %235 = vmatprep.subr.bf16.mxu0 0
  %236 = vmatpush1.bf16.msra.mxu0 %v194
  %237 = vmatprep.subr.bf16.mxu0 0
  %238 = vmatpush1.bf16.msra.mxu0 %v193
  %239 = vmatprep.subr.bf16.mxu0 0
  %240 = vmatpush1.bf16.msra.mxu0 %v192
  %241 = vmatprep.subr.bf16.mxu0 0
  %242 = vmatpush1.bf16.msra.mxu0 %v191
  %243 = vmatprep.subr.bf16.mxu0 0
  %244 = vmatpush1.bf16.msra.mxu0 %v190
  %245 = vmatprep.subr.bf16.mxu0 0
  %246 = vmatpush1.bf16.msra.mxu0 %v189
  %247 = vmatprep.subr.bf16.mxu0 0
  %248 = vmatpush1.bf16.msra.mxu0 %v188
  %249 = vmatprep.subr.bf16.mxu0 0
  %250 = vmatpush1.bf16.msra.mxu0 %v187
  %251 = vmatprep.subr.bf16.mxu0 0
  %252 = vmatpush2.bf16.msra.mxu0 %v202
  %253 = vmatprep.subr.bf16.mxu0 0
  %254 = vmatpush2.bf16.msra.mxu0 %v201
  %255 = vmatprep.subr.bf16.mxu0 0
  %256 = vmatpush2.bf16.msra.mxu0 %v200
  %257 = vmatprep.subr.bf16.mxu0 0
  %258 = vmatpush2.bf16.msra.mxu0 %v199
  %259 = vmatprep.subr.bf16.mxu0 0
  %260 = vmatpush2.bf16.msra.mxu0 %v198
  %261 = vmatprep.subr.bf16.mxu0 0
  %262 = vmatpush2.bf16.msra.mxu0 %v197
  %263 = vmatprep.subr.bf16.mxu0 0
  %264 = vmatpush2.bf16.msra.mxu0 %v196
  %265 = vmatprep.subr.bf16.mxu0 0
  %266 = vmatpush2.bf16.msra.mxu0 %v195
  %267 = vmatprep.mubr.bf16.mxu0 %v86
  %268 = vmatmul.mubr.bf16.gmra.mxu0 %v85
  %v269 = vpop.f32.mrf.mxu0
  %v270 = vadd.f32 0.0, %v269
  %v271 = vpop.f32.mrf.mxu0
  %v272 = vpop.f32.mrf.mxu0
  %v273 = vadd.f32 0.0, %v272
  %v274 = vpop.f32.mrf.mxu0
  %275 = vdwg.mxu0
  %276 = vmatprep.subr.bf16.mxu0 0
  %277 = vmatpush1.bf16.msra.mxu0 %v210
  %278 = vmatprep.subr.bf16.mxu0 0
  %279 = vmatpush1.bf16.msra.mxu0 %v209
  %280 = vmatprep.subr.bf16.mxu0 0
  %281 = vmatpush1.bf16.msra.mxu0 %v208
  %282 = vmatprep.subr.bf16.mxu0 0
  %283 = vmatpush1.bf16.msra.mxu0 %v207
  %284 = vmatprep.subr.bf16.mxu0 0
  %285 = vmatpush1.bf16.msra.mxu0 %v206
  %286 = vmatprep.subr.bf16.mxu0 0
  %287 = vmatpush1.bf16.msra.mxu0 %v205
  %288 = vmatprep.subr.bf16.mxu0 0
  %289 = vmatpush1.bf16.msra.mxu0 %v204
  %290 = vmatprep.subr.bf16.mxu0 0
  %291 = vmatpush1.bf16.msra.mxu0 %v203
  %292 = vmatprep.subr.bf16.mxu0 0
  %293 = vmatpush2.bf16.msra.mxu0 0
  %294 = vmatprep.subr.bf16.mxu0 0
  %295 = vmatpush2.bf16.msra.mxu0 0
  %296 = vmatprep.subr.bf16.mxu0 0
  %297 = vmatpush2.bf16.msra.mxu0 0
  %298 = vmatprep.subr.bf16.mxu0 0
  %299 = vmatpush2.bf16.msra.mxu0 0
  %300 = vmatprep.subr.bf16.mxu0 0
  %301 = vmatpush2.bf16.msra.mxu0 0
  %302 = vmatprep.subr.bf16.mxu0 0
  %303 = vmatpush2.bf16.msra.mxu0 0
  %304 = vmatprep.subr.bf16.mxu0 0
  %305 = vmatpush2.bf16.msra.mxu0 0
  %306 = vmatprep.subr.bf16.mxu0 0
  %307 = vmatpush2.bf16.msra.mxu0 0
  %308 = vmatprep.mubr.bf16.mxu0 0
  %309 = vmatmul.mubr.bf16.gmra.mxu0 %v87
  %v310 = vpop.f32.mrf.mxu0
  %v311 = vadd.f32 %v270, %v310
  %v312 = vpop.f32.mrf.mxu0
  %v313 = vpop.f32.mrf.mxu0
  %v314 = vadd.f32 %v273, %v313
  %v315 = vpop.f32.mrf.mxu0
  %316 = vdwg.mxu0
  %v317 = vadd.f32 %v21, %v311
  %v318 = vadd.f32 %v22, %v314
  %319 = vst [vmem:[#allocation2] sm:$0xff] %v317
  %320 = vst [vmem:[#allocation2 + $0x8] sm:$0xff] %v318
  // Predicated region
  $region18: #{svae_conv_forward.24} parent=0 // pred_check
    %p321 = pneg %p15
  $region19: #{svae_conv_forward.24} parent=0 // pred_check_branch
    %323 = sbr.rel (%p321) target = $region21
  $region20: #{svae_conv_forward.24} parent=0 // pred_region
    %v324 = vld [vmem:[#allocation2] sm:$0xff]
    %v325 = vld [vmem:[#allocation2 + $0x8] sm:$0xff]
    %v326 = vld [vmem:[%s2] sm:$0x1]
    %v328 = vlaneseq
    %v329 = vshrl.u32 %v328, 7
    %v330 = vsub.s32 0, %v329
    %v331 = vrot.slane %v326, %v330
    %v333 = vadd.f32 %v324, %v331
    %v334 = vadd.f32 %v325, %v331
    %v335 = vmax.f32 %v333, 0.0
    %v336 = vmax.f32 %v334, 0.0
    %337 = vst [vmem:[%s3] sm:$0xff] %v335
    %338 = vst [vmem:[%s3 + $0x8] sm:$0xff] %v336
  $region21: #{svae_conv_forward.24} parent=0 // pred_fallthru
    _
  // Predicated region
  $region22: #{svae_conv_forward.24} parent=0 // pred_check
    _
  $region23: #{svae_conv_forward.24} parent=0 // pred_check_branch
    %340 = sbr.rel (0) target = $region25
  $region24: #{svae_conv_forward.24} parent=0 // pred_region
    _
  $region25: #{svae_conv_forward.24} parent=0 // pred_fallthru
    _
  // Predicated region
  $region26: #{svae_conv_forward.24} parent=0 // pred_check
    _
  $region27: #{svae_conv_forward.24} parent=0 // pred_check_branch
    %342 = sbr.rel (0) target = $region29
  $region28: #{svae_conv_forward.24} parent=0 // pred_region
    _
  $region29: #{svae_conv_forward.24} parent=0 // pred_fallthru
    _

// kernel: svae_conv_forward.26
$region0: #{svae_conv_forward.26}
  #allocation0 [shape = 'u32[]', space=smem, size = 0x4, offset = 0x4, fixed_abs, tag = 'smem constant byte address 0x4 - core index']
  #allocation1 [shape = 'u32[144,128]{1,0:T(1,128)}', space=vmem, size = 0x12000, scoped, tag = 'internal scratch']
  #allocation2 [shape = 'f32[16,128]{1,0:T(8,128)}', space=vmem, size = 0x2000, scoped, tag = 'scratch operand']
  %s0 = inlined_call_operand.vmem [shape: bf16[16,1024], index: 0, kind: input, shape index: {}]
  %s1 = inlined_call_operand.vmem [shape: bf16[1024,128], index: 1, kind: input, shape index: {}]
  %s2 = inlined_call_operand.vmem [shape: f32[1,128], index: 2, kind: input, shape index: {}]
  %s3 = inlined_call_operand.vmem [shape: f32[16,128], index: 3, kind: output, shape index: {}]
  %s4 = sld [smem:[#allocation0]]
  $region76: #{svae_conv_forward.26} parent=0
    _
  %s6 = ssub.s32 1, %s4
  %s7 = scalar_select 0, %s6, %s4
  $region1: #{svae_conv_forward.26} parent=0
    #allocation3 [shape = 'u8[32768]{0}', space=vmem, size = 0x8000, scoped, tag = 'input window, operand 0']
    loop: start=0, step=1, limit=4
    $region2: #{svae_conv_forward.26} parent=1 // loop_pre_header
      _
    $region3: #{svae_conv_forward.26} parent=1 // loop_header
      %s9 = sphi 0, %s13
      %p10 = scmp.ge.s32.totalorder %s9, 4
      %s16 = sphi 0, %s35
      %s17 = sphi 0, %s31
      %s18 = sphi 0, %s27
      %s19 = sphi 0, %s16
      %s20 = sphi 0, %s17
      %s21 = sphi 0, %s18
      %s22 = sphi 0, %s19
      %s23 = sphi 0, %s20
      %s24 = sphi 0, %s21
      %s40 = sphi 0, %s42
      %s43 = sphi 0, %s40
      %s44 = sphi 0, %s43
      %s60 = sphi 0, %s44
      %s68 = sphi 0, %s70
      %s71 = sphi 0, %s68
      %s72 = sphi 0, %s71
      %s88 = sphi 0, %s72
      %s94 = sphi 0, %s96
      %s97 = sphi 0, %s94
      %s98 = sphi 0, %s97
      %s114 = sphi 0, %s98
      %s122 = sphi 0, %s124
      %s125 = sphi 0, %s122
      %s126 = sphi 0, %s125
      %s142 = sphi 0, %s126
    $region4: #{svae_conv_forward.26} parent=1 // loop_header_branch
      %12 = sbr.rel (%p10) target = $region8
    $region5: #{svae_conv_forward.26} parent=1 // loop_body
      %s14 = ssub.s32 %s9, 1
      %s15 = ssub.s32 %s9, 2
      %s25 = sadd.s32 1, %s18
      %p26 = scmp.ge.s32.totalorder %s25, 2
      %s27 = scalar_select %p26, 0, %s25
      %s28 = sadd.s32 1, %s17
      %s29 = scalar_select %p26, %s28, %s17
      %p30 = scmp.ge.s32.totalorder %s29, 1
      %s31 = scalar_select %p30, 0, %s29
      %s32 = sadd.s32 1, %s16
      %s33 = scalar_select %p30, %s32, %s16
      %p34 = scmp.ge.s32.totalorder %s33, 1
      %s35 = scalar_select %p34, 0, %s33
      %s36 = ssub.s32 %s16, %s35
      %s37 = ssub.s32 %s18, %s27
      %s38 = sor.u32 %s36, %s37
      %p39 = scmp.eq.s32.totalorder %s38, 0
      %s41 = sadd.s32 %s40, 1
      %s42 = scalar_select %p39, %s40, %s41
      %p45 = pneg %p39
      %p46 = scmp.eq.s32.totalorder %s9, 1
      %p47 = por %p45, %p46
      %p48 = scmp.ne.s32.totalorder %s40, %s43
      %p49 = scmp.eq.s32.totalorder %s9, 0
      %p50 = por %p48, %p49
      %p51 = scmp.ne.s32.totalorder %s40, %s43
      %p52 = scmp.eq.s32.totalorder %s14, 1
      %p53 = por %p51, %p52
      %p54 = scmp.ne.s32.totalorder %s43, %s44
      %p55 = scmp.eq.s32.totalorder %s14, 0
      %p56 = por %p54, %p55
      %p57 = scmp.ne.s32.totalorder %s43, %s44
      %p58 = scmp.eq.s32.totalorder %s15, 1
      %p59 = por %p57, %p58
      %p61 = scmp.ne.s32.totalorder %s44, %s60
      %p62 = scmp.eq.s32.totalorder %s15, 0
      %p63 = por %p61, %p62
      %s64 = ssub.s32 %s18, %s27
      %s65 = ssub.s32 %s17, %s31
      %s66 = sor.u32 %s64, %s65
      %p67 = scmp.eq.s32.totalorder %s66, 0
      %s69 = sadd.s32 %s68, 1
      %s70 = scalar_select %p67, %s68, %s69
      %p73 = pneg %p67
      %p74 = scmp.eq.s32.totalorder %s9, 1
      %p75 = por %p73, %p74
      %p76 = scmp.ne.s32.totalorder %s68, %s71
      %p77 = scmp.eq.s32.totalorder %s9, 0
      %p78 = por %p76, %p77
      %p79 = scmp.ne.s32.totalorder %s68, %s71
      %p80 = scmp.eq.s32.totalorder %s14, 1
      %p81 = por %p79, %p80
      %p82 = scmp.ne.s32.totalorder %s71, %s72
      %p83 = scmp.eq.s32.totalorder %s14, 0
      %p84 = por %p82, %p83
      %p85 = scmp.ne.s32.totalorder %s71, %s72
      %p86 = scmp.eq.s32.totalorder %s15, 1
      %p87 = por %p85, %p86
      %p89 = scmp.ne.s32.totalorder %s72, %s88
      %p90 = scmp.eq.s32.totalorder %s15, 0
      %p91 = por %p89, %p90
      %s92 = ssub.s32 %s17, %s31
      %p93 = scmp.eq.s32.totalorder %s92, 0
      %s95 = sadd.s32 %s94, 1
      %s96 = scalar_select %p93, %s94, %s95
      %p99 = pneg %p93
      %p100 = scmp.eq.s32.totalorder %s9, 1
      %p101 = por %p99, %p100
      %p102 = scmp.ne.s32.totalorder %s94, %s97
      %p103 = scmp.eq.s32.totalorder %s9, 0
      %p104 = por %p102, %p103
      %p105 = scmp.ne.s32.totalorder %s94, %s97
      %p106 = scmp.eq.s32.totalorder %s14, 1
      %p107 = por %p105, %p106
      %p108 = scmp.ne.s32.totalorder %s97, %s98
      %p109 = scmp.eq.s32.totalorder %s14, 0
      %p110 = por %p108, %p109
      %p111 = scmp.ne.s32.totalorder %s97, %s98
      %p112 = scmp.eq.s32.totalorder %s15, 1
      %p113 = por %p111, %p112
      %p115 = scmp.ne.s32.totalorder %s98, %s114
      %p116 = scmp.eq.s32.totalorder %s15, 0
      %p117 = por %p115, %p116
      %s118 = ssub.s32 %s16, %s35
      %s119 = ssub.s32 %s17, %s31
      %s120 = sor.u32 %s118, %s119
      %p121 = scmp.eq.s32.totalorder %s120, 0
      %s123 = sadd.s32 %s122, 1
      %s124 = scalar_select %p121, %s122, %s123
      %p127 = pneg %p121
      %p128 = scmp.eq.s32.totalorder %s9, 1
      %p129 = por %p127, %p128
      %p130 = scmp.ne.s32.totalorder %s122, %s125
      %p131 = scmp.eq.s32.totalorder %s9, 0
      %p132 = por %p130, %p131
      %p133 = scmp.ne.s32.totalorder %s122, %s125
      %p134 = scmp.eq.s32.totalorder %s14, 1
      %p135 = por %p133, %p134
      %p136 = scmp.ne.s32.totalorder %s125, %s126
      %p137 = scmp.eq.s32.totalorder %s14, 0
      %p138 = por %p136, %p137
      %p139 = scmp.ne.s32.totalorder %s125, %s126
      %p140 = scmp.eq.s32.totalorder %s15, 1
      %p141 = por %p139, %p140
      %p143 = scmp.ne.s32.totalorder %s126, %s142
      %p144 = scmp.eq.s32.totalorder %s15, 0
      %p145 = por %p143, %p144
      %p146 = scmp.le.s32.totalorder 1, %s9
      %p147 = scmp.lt.s32.totalorder %s9, 3
      %p148 = pnand %p146, %p147
      %p149 = pneg %p148
      // Predicated region
      $region9: #{svae_conv_forward.26} parent=5 // pred_check
        _
      $region10: #{svae_conv_forward.26} parent=5 // pred_check_branch
        %151 = sbr.rel (%p148) target = $region12
      $region11: #{svae_conv_forward.26} parent=5 // pred_region
        %s152 = ssub.s32 %s9, 1
        // Predicated region
        $region13: #{svae_conv_forward.26} parent=11 // pred_check
          %p153 = pneg %p110
        $region14: #{svae_conv_forward.26} parent=11 // pred_check_branch
          %155 = sbr.rel (%p153) target = $region16
        $region15: #{svae_conv_forward.26} parent=11 // pred_region
          %p156 = scmp.lt.s32.totalorder %s20, 0
          %s157 = scalar_select %p156, %s20, 0
          %s158 = scalar_lea.vmem %s2, %s157
        $region16: #{svae_conv_forward.26} parent=11 // pred_fallthru
          _
      $region12: #{svae_conv_forward.26} parent=5 // pred_fallthru
        _
      %p159 = scmp.lt.s32.totalorder %s9, 2
      // Predicated region
      $region17: #{svae_conv_forward.26} parent=5 // pred_check
        %p160 = pneg %p159
      $region18: #{svae_conv_forward.26} parent=5 // pred_check_branch
        %162 = sbr.rel (%p160) target = $region20
      $region19: #{svae_conv_forward.26} parent=5 // pred_region
        // Predicated region
        $region21: #{svae_conv_forward.26} parent=19 // pred_check
          %p163 = pneg %p50
        $region22: #{svae_conv_forward.26} parent=19 // pred_check_branch
          %165 = sbr.rel (%p163) target = $region24
        $region23: #{svae_conv_forward.26} parent=19 // pred_region
          %s166 = sand.u32 %s40, 1
          %s167 = sand.u32 %s40, 1
          %s168 = smul.addr %s167, 32
          %s169 = scalar_lea.vmem [#allocation3], %s168
          %s170 = smul.u32 2, %s16
          %s171 = smul.u32 4, %s18
          %s172 = smul.addr %s170, 8
          %s173 = sadd.s32 %s171, %s172
          %s174 = smul.addr %s173, 4
          %s175 = scalar_lea.vmem %s0, %s174
          // Predicated region
          $region25: #{svae_conv_forward.26} parent=23 // pred_check
            _
          $region26: #{svae_conv_forward.26} parent=23 // pred_check_branch
            %177 = sbr.rel (0) target = $region28
          $region27: #{svae_conv_forward.26} parent=23 // pred_region
            // Predicated region
            $region29: #{svae_conv_forward.26} parent=27 // pred_check
              _
            $region30: #{svae_conv_forward.26} parent=27 // pred_check_branch
              %179 = sbr.rel (0) target = $region32
            $region31: #{svae_conv_forward.26} parent=27 // pred_region
              loop: start=0, step=1, limit=1
              $region33: #{svae_conv_forward.26} parent=31 // loop_pre_header
                _
              $region34: #{svae_conv_forward.26} parent=31 // loop_header
                %s181 = sphi 0, %s185
                %p182 = scmp.ge.s32.totalorder %s181, 1
                %s186 = sphi %s175, %s175
                %s187 = sphi %s169, %s169
              $region35: #{svae_conv_forward.26} parent=31 // loop_header_branch
                %184 = sbr.rel (%p182) target = $region39
              $region36: #{svae_conv_forward.26} parent=31 // loop_body
                %v188 = vld [vmem:[%s186] sm:$0xff]
                %189 = vst [vmem:[%s187] sm:$0xff] %v188
                %v190 = vld [vmem:[%s186 + $0x8] sm:$0xff]
                %191 = vst [vmem:[%s187 + $0x8] sm:$0xff] %v190
                %v192 = vld [vmem:[%s186 + $0x20] sm:$0xff]
                %193 = vst [vmem:[%s187 + $0x10] sm:$0xff] %v192
                %v194 = vld [vmem:[%s186 + $0x28] sm:$0xff]
                %195 = vst [vmem:[%s187 + $0x18] sm:$0xff] %v194
              $region37: #{svae_conv_forward.26} parent=31 // loop_footer
                %s185 = sadd.s32 1, %s181
              $region38: #{svae_conv_forward.26} parent=31 // loop_footer_branch
                %180 = sbr.rel target = $region34
              $region39: #{svae_conv_forward.26} parent=31 // loop_exit
                _
            $region32: #{svae_conv_forward.26} parent=27 // pred_fallthru
              _
            // Predicated region
            $region40: #{svae_conv_forward.26} parent=27 // pred_check
              _
            $region41: #{svae_conv_forward.26} parent=27 // pred_check_branch
              %197 = sbr.rel target = $region43
            $region42: #{svae_conv_forward.26} parent=27 // pred_region
              _
            $region43: #{svae_conv_forward.26} parent=27 // pred_fallthru
              _
          $region28: #{svae_conv_forward.26} parent=23 // pred_fallthru
            _
          %198 = vnop
        $region24: #{svae_conv_forward.26} parent=19 // pred_fallthru
          _
        // Predicated region
        $region44: #{svae_conv_forward.26} parent=19 // pred_check
          %p199 = pneg %p78
        $region45: #{svae_conv_forward.26} parent=19 // pred_check_branch
          %201 = sbr.rel (%p199) target = $region47
        $region46: #{svae_conv_forward.26} parent=19 // pred_region
          %s202 = smul.u32 64, %s18
          %p203 = scmp.lt.s32.totalorder %s202, 127
          %s204 = scalar_select %p203, %s202, 127
          %p205 = scmp.lt.s32.totalorder %s17, 0
          %s206 = scalar_select %p205, %s17, 0
          %s207 = sadd.s32 %s206, %s204
          %s208 = smul.addr %s207, 4
          %s209 = scalar_lea.vmem %s1, %s208
          %s210 = smul.u32 64, %s18
        $region47: #{svae_conv_forward.26} parent=19 // pred_fallthru
          _
      $region20: #{svae_conv_forward.26} parent=5 // pred_fallthru
        _
      %p211 = scmp.le.s32.totalorder 1, %s9
      %p212 = scmp.lt.s32.totalorder %s9, 3
      %p213 = pnand %p211, %p212
      %p214 = pneg %p213
      // Predicated region
      $region48: #{svae_conv_forward.26} parent=5 // pred_check
        _
      $region49: #{svae_conv_forward.26} parent=5 // pred_check_branch
        %216 = sbr.rel (%p213) target = $region51
      $region50: #{svae_conv_forward.26} parent=5 // pred_region
        %s217 = ssub.s32 %s9, 1
        %s218 = sand.u32 %s43, 1
        %s219 = sand.u32 %s43, 1
        %s220 = smul.addr %s219, 32
        %s221 = scalar_lea.vmem [#allocation3], %s220
        // Predicated region
        $region52: #{svae_conv_forward.26} parent=50 // pred_check
          %p222 = pneg %p56
        $region53: #{svae_conv_forward.26} parent=50 // pred_check_branch
          %224 = sbr.rel (%p222) target = $region55
        $region54: #{svae_conv_forward.26} parent=50 // pred_region
          _
        $region55: #{svae_conv_forward.26} parent=50 // pred_fallthru
          _
        %s225 = sand.u32 %s43, 1
        %s226 = sand.u32 %s43, 1
        %s227 = smul.addr %s226, 32
        %s228 = scalar_lea.vmem [#allocation3], %s227
        %p229 = pneg %p56
        %p230 = pneg %p53
        %s231 = smul.u32 64, %s21
        %p232 = scmp.lt.s32.totalorder %s231, 127
        %s233 = scalar_select %p232, %s231, 127
        %p234 = scmp.lt.s32.totalorder %s20, 0
        %s235 = scalar_select %p234, %s20, 0
        %s236 = sadd.s32 %s235, %s233
        %s237 = smul.addr %s236, 4
        %s238 = scalar_lea.vmem %s1, %s237
        %p239 = pneg %p84
        %p240 = pneg %p81
        %p241 = scmp.lt.s32.totalorder %s20, 0
        %s242 = scalar_select %p241, %s20, 0
        %s243 = scalar_lea.vmem %s2, %s242
        %p244 = pneg %p110
        %p245 = pneg %p107
        %p246 = pneg %p138
        %p247 = pneg %p135
        %s248 = smul.u32 2, %s19
        %p249 = scmp.lt.s32.totalorder %s248, 1
        %s250 = scalar_select %p249, %s248, 1
        %p251 = scmp.lt.s32.totalorder %s20, 0
        %s252 = scalar_select %p251, %s20, 0
        %s253 = sadd.s32 %s252, %s250
        %s254 = smul.addr %s253, 8
        %s255 = scalar_lea.vmem %s3, %s254
        %s256 = smul.u32 2, %s19
        %s257 = smul.u32 4, %s21
        %s258 = smul.u32 64, %s21
        %p259 = scmp.lt.s32.totalorder %s258, 127
        %s260 = scalar_select %p259, %s258, 127
        %p261 = scmp.lt.s32.totalorder %s20, 0
        %s262 = scalar_select %p261, %s20, 0
        %s263 = sadd.s32 %s262, %s260
        %s264 = smul.addr %s263, 4
        %s265 = scalar_lea.vmem %s1, %s264
        %s266 = smul.u32 64, %s21
        %p267 = scmp.lt.s32.totalorder %s20, 0
        %s268 = scalar_select %p267, %s20, 0
        %s269 = scalar_lea.vmem %s2, %s268
        %s270 = smul.u32 2, %s19
        %p271 = scmp.lt.s32.totalorder %s270, 1
        %s272 = scalar_select %p271, %s270, 1
        %p273 = scmp.lt.s32.totalorder %s20, 0
        %s274 = scalar_select %p273, %s20, 0
        %s275 = sadd.s32 %s274, %s272
        %s276 = smul.addr %s275, 8
        %s277 = scalar_lea.vmem %s3, %s276
        %s278 = smul.u32 2, %s19
        %p280 = scmp.eq.s32.totalorder %s21, 0
        // Predicated region
        $region56: #{svae_conv_forward.26} parent=50 // pred_check
          %p281 = pneg %p280
        $region57: #{svae_conv_forward.26} parent=50 // pred_check_branch
          %283 = sbr.rel (%p281) target = $region59
        $region58: #{svae_conv_forward.26} parent=50 // pred_region
          %284 = vst [vmem:[#allocation2] sm:$0xff] 0.0
          %285 = vst [vmem:[#allocation2 + $0x8] sm:$0xff] 0.0
        $region59: #{svae_conv_forward.26} parent=50 // pred_fallthru
          _
        %v286 = vld [vmem:[#allocation2] sm:$0xff]
        %v287 = vld [vmem:[#allocation2 + $0x8] sm:$0xff]
        %v288 = vld [vmem:[%s221] sm:$0xff]
        %v289 = vld [vmem:[%s221 + $0x8] sm:$0xff]
        %v290 = vld [vmem:[%s221 + $0x10] sm:$0xff]
        %v291 = vld [vmem:[%s221 + $0x18] sm:$0xff]
        %v292 = vld [vmem:[%s265] sm:$0xf]
        %v293 = vld [vmem:[%s265 + $0x4] sm:$0xf]
        %v294 = vld [vmem:[%s265 + $0x8] sm:$0xf]
        %v295 = vld [vmem:[%s265 + $0xc] sm:$0xf]
        %v296 = vld [vmem:[%s265 + $0x10] sm:$0xf]
        %v297 = vld [vmem:[%s265 + $0x14] sm:$0xf]
        %v298 = vld [vmem:[%s265 + $0x18] sm:$0xf]
        %v299 = vld [vmem:[%s265 + $0x1c] sm:$0xf]
        %v300 = vld [vmem:[%s265 + $0x20] sm:$0xf]
        %v301 = vld [vmem:[%s265 + $0x24] sm:$0xf]
        %v302 = vld [vmem:[%s265 + $0x28] sm:$0xf]
        %v303 = vld [vmem:[%s265 + $0x2c] sm:$0xf]
        %v304 = vld [vmem:[%s265 + $0x30] sm:$0xf]
        %v305 = vld [vmem:[%s265 + $0x34] sm:$0xf]
        %v306 = vld [vmem:[%s265 + $0x38] sm:$0xf]
        %v307 = vld [vmem:[%s265 + $0x3c] sm:$0xf]
        %v308 = vld [vmem:[%s265 + $0x40] sm:$0xf]
        %v309 = vld [vmem:[%s265 + $0x44] sm:$0xf]
        %v310 = vld [vmem:[%s265 + $0x48] sm:$0xf]
        %v311 = vld [vmem:[%s265 + $0x4c] sm:$0xf]
        %v312 = vld [vmem:[%s265 + $0x50] sm:$0xf]
        %v313 = vld [vmem:[%s265 + $0x54] sm:$0xf]
        %v314 = vld [vmem:[%s265 + $0x58] sm:$0xf]
        %v315 = vld [vmem:[%s265 + $0x5c] sm:$0xf]
        %v316 = vld [vmem:[%s265 + $0x60] sm:$0xf]
        %v317 = vld [vmem:[%s265 + $0x64] sm:$0xf]
        %v318 = vld [vmem:[%s265 + $0x68] sm:$0xf]
        %v319 = vld [vmem:[%s265 + $0x6c] sm:$0xf]
        %v320 = vld [vmem:[%s265 + $0x70] sm:$0xf]
        %v321 = vld [vmem:[%s265 + $0x74] sm:$0xf]
        %v322 = vld [vmem:[%s265 + $0x78] sm:$0xf]
        %v323 = vld [vmem:[%s265 + $0x7c] sm:$0xf]
        %v324 = vld [vmem:[%s265 + $0x80] sm:$0xf]
        %v325 = vld [vmem:[%s265 + $0x84] sm:$0xf]
        %v326 = vld [vmem:[%s265 + $0x88] sm:$0xf]
        %v327 = vld [vmem:[%s265 + $0x8c] sm:$0xf]
        %v328 = vld [vmem:[%s265 + $0x90] sm:$0xf]
        %v329 = vld [vmem:[%s265 + $0x94] sm:$0xf]
        %v330 = vld [vmem:[%s265 + $0x98] sm:$0xf]
        %v331 = vld [vmem:[%s265 + $0x9c] sm:$0xf]
        %v332 = vld [vmem:[%s265 + $0xa0] sm:$0xf]
        %v333 = vld [vmem:[%s265 + $0xa4] sm:$0xf]
        %v334 = vld [vmem:[%s265 + $0xa8] sm:$0xf]
        %v335 = vld [vmem:[%s265 + $0xac] sm:$0xf]
        %v336 = vld [vmem:[%s265 + $0xb0] sm:$0xf]
        %v337 = vld [vmem:[%s265 + $0xb4] sm:$0xf]
        %v338 = vld [vmem:[%s265 + $0xb8] sm:$0xf]
        %v339 = vld [vmem:[%s265 + $0xbc] sm:$0xf]
        %v340 = vld [vmem:[%s265 + $0xc0] sm:$0xf]
        %v341 = vld [vmem:[%s265 + $0xc4] sm:$0xf]
        %v342 = vld [vmem:[%s265 + $0xc8] sm:$0xf]
        %v343 = vld [vmem:[%s265 + $0xcc] sm:$0xf]
        %v344 = vld [vmem:[%s265 + $0xd0] sm:$0xf]
        %v345 = vld [vmem:[%s265 + $0xd4] sm:$0xf]
        %v346 = vld [vmem:[%s265 + $0xd8] sm:$0xf]
        %v347 = vld [vmem:[%s265 + $0xdc] sm:$0xf]
        %v348 = vld [vmem:[%s265 + $0xe0] sm:$0xf]
        %v349 = vld [vmem:[%s265 + $0xe4] sm:$0xf]
        %v350 = vld [vmem:[%s265 + $0xe8] sm:$0xf]
        %v351 = vld [vmem:[%s265 + $0xec] sm:$0xf]
        %v352 = vld [vmem:[%s265 + $0xf0] sm:$0xf]
        %v353 = vld [vmem:[%s265 + $0xf4] sm:$0xf]
        %v354 = vld [vmem:[%s265 + $0xf8] sm:$0xf]
        %v355 = vld [vmem:[%s265 + $0xfc] sm:$0xf]
        %v360 = vunpack.c.l.b16 %v288
        %v361 = vunpack.c.h.b16 %v288
        %v362 = vunpack.c.l.b16 %v289
        %v363 = vunpack.c.h.b16 %v289
        %v364 = vunpack.c.l.b16 %v290
        %v365 = vunpack.c.h.b16 %v290
        %v366 = vunpack.c.l.b16 %v291
        %v367 = vunpack.c.h.b16 %v291
        %v368 = vpack.c.b16 %v364, %v360
        %v369 = vpack.c.b16 %v365, %v361
        %v370 = vpack.c.b16 %v366, %v362
        %v371 = vpack.c.b16 %v367, %v363
        %v440 = vunpack.c.l.b16 %v292
        %v441 = vunpack.c.l.b16 %v293
        %v442 = vunpack.c.l.b16 %v294
        %v443 = vunpack.c.l.b16 %v295
        %v444 = vunpack.c.l.b16 %v296
        %v445 = vunpack.c.l.b16 %v297
        %v446 = vunpack.c.l.b16 %v298
        %v447 = vunpack.c.l.b16 %v299
        %v448 = vunpack.c.l.b16 %v300
        %v449 = vunpack.c.l.b16 %v301
        %v450 = vunpack.c.l.b16 %v302
        %v451 = vunpack.c.l.b16 %v303
        %v452 = vunpack.c.l.b16 %v304
        %v453 = vunpack.c.l.b16 %v305
        %v454 = vunpack.c.l.b16 %v306
        %v455 = vunpack.c.l.b16 %v307
        %v456 = vunpack.c.l.b16 %v308
        %v457 = vunpack.c.l.b16 %v309
        %v458 = vunpack.c.l.b16 %v310
        %v459 = vunpack.c.l.b16 %v311
        %v460 = vunpack.c.l.b16 %v312
        %v461 = vunpack.c.l.b16 %v313
        %v462 = vunpack.c.l.b16 %v314
        %v463 = vunpack.c.l.b16 %v315
        %v464 = vunpack.c.l.b16 %v316
        %v465 = vunpack.c.l.b16 %v317
        %v466 = vunpack.c.l.b16 %v318
        %v467 = vunpack.c.l.b16 %v319
        %v468 = vunpack.c.l.b16 %v320
        %v469 = vunpack.c.l.b16 %v321
        %v470 = vunpack.c.l.b16 %v322
        %v471 = vunpack.c.l.b16 %v323
        %v472 = vunpack.c.l.b16 %v324
        %v473 = vunpack.c.l.b16 %v325
        %v474 = vunpack.c.l.b16 %v326
        %v475 = vunpack.c.l.b16 %v327
        %v476 = vunpack.c.l.b16 %v328
        %v477 = vunpack.c.l.b16 %v329
        %v478 = vunpack.c.l.b16 %v330
        %v479 = vunpack.c.l.b16 %v331
        %v480 = vunpack.c.l.b16 %v332
        %v481 = vunpack.c.l.b16 %v333
        %v482 = vunpack.c.l.b16 %v334
        %v483 = vunpack.c.l.b16 %v335
        %v484 = vunpack.c.l.b16 %v336
        %v485 = vunpack.c.l.b16 %v337
        %v486 = vunpack.c.l.b16 %v338
        %v487 = vunpack.c.l.b16 %v339
        %v488 = vunpack.c.l.b16 %v340
        %v489 = vunpack.c.l.b16 %v341
        %v490 = vunpack.c.l.b16 %v342
        %v491 = vunpack.c.l.b16 %v343
        %v492 = vunpack.c.l.b16 %v344
        %v493 = vunpack.c.l.b16 %v345
        %v494 = vunpack.c.l.b16 %v346
        %v495 = vunpack.c.l.b16 %v347
        %v496 = vunpack.c.l.b16 %v348
        %v497 = vunpack.c.l.b16 %v349
        %v498 = vunpack.c.l.b16 %v350
        %v499 = vunpack.c.l.b16 %v351
        %v500 = vunpack.c.l.b16 %v352
        %v501 = vunpack.c.l.b16 %v353
        %v502 = vunpack.c.l.b16 %v354
        %v503 = vunpack.c.l.b16 %v355
        %v504 = vpack.c.b16 %v441, %v440
        %v505 = vpack.c.b16 %v443, %v442
        %v506 = vpack.c.b16 %v445, %v444
        %v507 = vpack.c.b16 %v447, %v446
        %v508 = vpack.c.b16 %v449, %v448
        %v509 = vpack.c.b16 %v451, %v450
        %v510 = vpack.c.b16 %v453, %v452
        %v511 = vpack.c.b16 %v455, %v454
        %v512 = vpack.c.b16 %v457, %v456
        %v513 = vpack.c.b16 %v459, %v458
        %v514 = vpack.c.b16 %v461, %v460
        %v515 = vpack.c.b16 %v463, %v462
        %v516 = vpack.c.b16 %v465, %v464
        %v517 = vpack.c.b16 %v467, %v466
        %v518 = vpack.c.b16 %v469, %v468
        %v519 = vpack.c.b16 %v471, %v470
        %v520 = vpack.c.b16 %v473, %v472
        %v521 = vpack.c.b16 %v475, %v474
        %v522 = vpack.c.b16 %v477, %v476
        %v523 = vpack.c.b16 %v479, %v478
        %v524 = vpack.c.b16 %v481, %v480
        %v525 = vpack.c.b16 %v483, %v482
        %v526 = vpack.c.b16 %v485, %v484
        %v527 = vpack.c.b16 %v487, %v486
        %v528 = vpack.c.b16 %v489, %v488
        %v529 = vpack.c.b16 %v491, %v490
        %v530 = vpack.c.b16 %v493, %v492
        %v531 = vpack.c.b16 %v495, %v494
        %v532 = vpack.c.b16 %v497, %v496
        %v533 = vpack.c.b16 %v499, %v498
        %v534 = vpack.c.b16 %v501, %v500
        %v535 = vpack.c.b16 %v503, %v502
        %568 = vmatprep.subr.bf16.mxu0 0
        %569 = vmatpush1.bf16.msra.mxu0 %v511
        %570 = vmatprep.subr.bf16.mxu0 0
        %571 = vmatpush1.bf16.msra.mxu0 %v510
        %572 = vmatprep.subr.bf16.mxu0 0
        %573 = vmatpush1.bf16.msra.mxu0 %v509
        %574 = vmatprep.subr.bf16.mxu0 0
        %575 = vmatpush1.bf16.msra.mxu0 %v508
        %576 = vmatprep.subr.bf16.mxu0 0
        %577 = vmatpush1.bf16.msra.mxu0 %v507
        %578 = vmatprep.subr.bf16.mxu0 0
        %579 = vmatpush1.bf16.msra.mxu0 %v506
        %580 = vmatprep.subr.bf16.mxu0 0
        %581 = vmatpush1.bf16.msra.mxu0 %v505
        %582 = vmatprep.subr.bf16.mxu0 0
        %583 = vmatpush1.bf16.msra.mxu0 %v504
        %584 = vmatprep.subr.bf16.mxu0 0
        %585 = vmatpush2.bf16.msra.mxu0 %v519
        %586 = vmatprep.subr.bf16.mxu0 0
        %587 = vmatpush2.bf16.msra.mxu0 %v518
        %588 = vmatprep.subr.bf16.mxu0 0
        %589 = vmatpush2.bf16.msra.mxu0 %v517
        %590 = vmatprep.subr.bf16.mxu0 0
        %591 = vmatpush2.bf16.msra.mxu0 %v516
        %592 = vmatprep.subr.bf16.mxu0 0
        %593 = vmatpush2.bf16.msra.mxu0 %v515
        %594 = vmatprep.subr.bf16.mxu0 0
        %595 = vmatpush2.bf16.msra.mxu0 %v514
        %596 = vmatprep.subr.bf16.mxu0 0
        %597 = vmatpush2.bf16.msra.mxu0 %v513
        %598 = vmatprep.subr.bf16.mxu0 0
        %599 = vmatpush2.bf16.msra.mxu0 %v512
        %600 = vmatprep.mubr.bf16.mxu0 %v369
        %601 = vmatmul.mubr.bf16.gmra.mxu0 %v368
        %v602 = vpop.f32.mrf.mxu0
        %v603 = vadd.f32 0.0, %v602
        %v604 = vpop.f32.mrf.mxu0
        %v605 = vpop.f32.mrf.mxu0
        %v606 = vadd.f32 0.0, %v605
        %v607 = vpop.f32.mrf.mxu0
        %608 = vdwg.mxu0
        %609 = vmatprep.subr.bf16.mxu0 0
        %610 = vmatpush1.bf16.msra.mxu0 %v527
        %611 = vmatprep.subr.bf16.mxu0 0
        %612 = vmatpush1.bf16.msra.mxu0 %v526
        %613 = vmatprep.subr.bf16.mxu0 0
        %614 = vmatpush1.bf16.msra.mxu0 %v525
        %615 = vmatprep.subr.bf16.mxu0 0
        %616 = vmatpush1.bf16.msra.mxu0 %v524
        %617 = vmatprep.subr.bf16.mxu0 0
        %618 = vmatpush1.bf16.msra.mxu0 %v523
        %619 = vmatprep.subr.bf16.mxu0 0
        %620 = vmatpush1.bf16.msra.mxu0 %v522
        %621 = vmatprep.subr.bf16.mxu0 0
        %622 = vmatpush1.bf16.msra.mxu0 %v521
        %623 = vmatprep.subr.bf16.mxu0 0
        %624 = vmatpush1.bf16.msra.mxu0 %v520
        %625 = vmatprep.subr.bf16.mxu0 0
        %626 = vmatpush2.bf16.msra.mxu0 %v535
        %627 = vmatprep.subr.bf16.mxu0 0
        %628 = vmatpush2.bf16.msra.mxu0 %v534
        %629 = vmatprep.subr.bf16.mxu0 0
        %630 = vmatpush2.bf16.msra.mxu0 %v533
        %631 = vmatprep.subr.bf16.mxu0 0
        %632 = vmatpush2.bf16.msra.mxu0 %v532
        %633 = vmatprep.subr.bf16.mxu0 0
        %634 = vmatpush2.bf16.msra.mxu0 %v531
        %635 = vmatprep.subr.bf16.mxu0 0
        %636 = vmatpush2.bf16.msra.mxu0 %v530
        %637 = vmatprep.subr.bf16.mxu0 0
        %638 = vmatpush2.bf16.msra.mxu0 %v529
        %639 = vmatprep.subr.bf16.mxu0 0
        %640 = vmatpush2.bf16.msra.mxu0 %v528
        %641 = vmatprep.mubr.bf16.mxu0 %v371
        %642 = vmatmul.mubr.bf16.gmra.mxu0 %v370
        %v643 = vpop.f32.mrf.mxu0
        %v644 = vadd.f32 %v603, %v643
        %v645 = vpop.f32.mrf.mxu0
        %v646 = vpop.f32.mrf.mxu0
        %v647 = vadd.f32 %v606, %v646
        %v648 = vpop.f32.mrf.mxu0
        %649 = vdwg.mxu0
        %v650 = vadd.f32 %v286, %v644
        %v651 = vadd.f32 %v287, %v647
        %652 = vst [vmem:[#allocation2] sm:$0xff] %v650
        %653 = vst [vmem:[#allocation2 + $0x8] sm:$0xff] %v651
        %p654 = scmp.eq.s32.totalorder %s21, 1
        // Predicated region
        $region60: #{svae_conv_forward.26} parent=50 // pred_check
          %p655 = pneg %p654
        $region61: #{svae_conv_forward.26} parent=50 // pred_check_branch
          %657 = sbr.rel (%p655) target = $region63
        $region62: #{svae_conv_forward.26} parent=50 // pred_region
          %v658 = vld [vmem:[#allocation2] sm:$0xff]
          %v659 = vld [vmem:[#allocation2 + $0x8] sm:$0xff]
          %v660 = vld [vmem:[%s269] sm:$0x1]
          %v662 = vlaneseq
          %v663 = vshrl.u32 %v662, 7
          %v664 = vsub.s32 0, %v663
          %v665 = vrot.slane %v660, %v664
          %v667 = vadd.f32 %v658, %v665
          %v668 = vadd.f32 %v659, %v665
          %v669 = vmax.f32 %v667, 0.0
          %v670 = vmax.f32 %v668, 0.0
          %671 = vst [vmem:[%s277] sm:$0xff] %v669
          %672 = vst [vmem:[%s277 + $0x8] sm:$0xff] %v670
        $region63: #{svae_conv_forward.26} parent=50 // pred_fallthru
          _
        %s673 = smul.u32 2, %s19
        %p674 = scmp.lt.s32.totalorder %s673, 1
        %s675 = scalar_select %p674, %s673, 1
        %p676 = scmp.lt.s32.totalorder %s20, 0
        %s677 = scalar_select %p676, %s20, 0
        %s678 = sadd.s32 %s677, %s675
        %s679 = smul.addr %s678, 8
        %s680 = scalar_lea.vmem %s3, %s679
        // Predicated region
        $region64: #{svae_conv_forward.26} parent=50 // pred_check
          %p681 = pneg %p135
        $region65: #{svae_conv_forward.26} parent=50 // pred_check_branch
          %683 = sbr.rel (%p681) target = $region67
        $region66: #{svae_conv_forward.26} parent=50 // pred_region
          %s684 = smul.u32 2, %s19
        $region67: #{svae_conv_forward.26} parent=50 // pred_fallthru
          _
        // Predicated region
        $region68: #{svae_conv_forward.26} parent=50 // pred_check
          %p685 = pneg %p135
        $region69: #{svae_conv_forward.26} parent=50 // pred_check_branch
          %687 = sbr.rel (%p685) target = $region71
        $region70: #{svae_conv_forward.26} parent=50 // pred_region
          %s688 = smul.u32 2, %s19
          %p689 = scmp.lt.s32.totalorder %s688, 1
          %s690 = scalar_select %p689, %s688, 1
          %p691 = scmp.lt.s32.totalorder %s20, 0
          %s692 = scalar_select %p691, %s20, 0
          %s693 = sadd.s32 %s692, %s690
          %s694 = smul.addr %s693, 8
          %s695 = scalar_lea.vmem %s3, %s694
        $region71: #{svae_conv_forward.26} parent=50 // pred_fallthru
          _
      $region51: #{svae_conv_forward.26} parent=5 // pred_fallthru
        _
      %p696 = scmp.le.s32.totalorder 2, %s9
      // Predicated region
      $region72: #{svae_conv_forward.26} parent=5 // pred_check
        %p697 = pneg %p696
      $region73: #{svae_conv_forward.26} parent=5 // pred_check_branch
        %699 = sbr.rel (%p697) target = $region75
      $region74: #{svae_conv_forward.26} parent=5 // pred_region
        %s700 = ssub.s32 %s9, 2
      $region75: #{svae_conv_forward.26} parent=5 // pred_fallthru
        _
    $region6: #{svae_conv_forward.26} parent=1 // loop_footer
      %s13 = sadd.s32 1, %s9
    $region7: #{svae_conv_forward.26} parent=1 // loop_footer_branch
      %8 = sbr.rel target = $region3
    $region8: #{svae_conv_forward.26} parent=1 // loop_exit
      _

// kernel: svae_conv_forward.27
$region0: #{svae_conv_forward.27}
  #allocation0 [shape = 'u32[]', space=smem, size = 0x4, offset = 0x4, fixed_abs, tag = 'smem constant byte address 0x4 - core index']
  #allocation1 [shape = 'u32[144,128]{1,0:T(1,128)}', space=vmem, size = 0x12000, scoped, tag = 'internal scratch']
  #allocation2 [shape = 'f32[32,128]{1,0:T(8,128)}', space=vmem, size = 0x4000, scoped, tag = 'scratch operand']
  %s0 = inlined_call_operand.vmem [shape: bf16[32,128], index: 0, kind: input, shape index: {}]
  %s1 = inlined_call_operand.vmem [shape: bf16[128,128], index: 1, kind: input, shape index: {}]
  %s2 = inlined_call_operand.vmem [shape: f32[1,128], index: 2, kind: input, shape index: {}]
  %s3 = inlined_call_operand.vmem [shape: f32[32,128], index: 3, kind: output, shape index: {}]
  %s4 = sld [smem:[#allocation0]]
  $region30: #{svae_conv_forward.27} parent=0
    _
  %s6 = ssub.s32 1, %s4
  %s7 = scalar_select 0, %s6, %s4
  // Predicated region
  $region2: #{svae_conv_forward.27} parent=0 // pred_check
    _
  $region3: #{svae_conv_forward.27} parent=0 // pred_check_branch
    %9 = sbr.rel (0) target = $region5
  $region4: #{svae_conv_forward.27} parent=0 // pred_region
    _
  $region5: #{svae_conv_forward.27} parent=0 // pred_fallthru
    _
  // Predicated region
  $region6: #{svae_conv_forward.27} parent=0 // pred_check
    _
  $region7: #{svae_conv_forward.27} parent=0 // pred_check_branch
    %11 = sbr.rel (0) target = $region9
  $region8: #{svae_conv_forward.27} parent=0 // pred_region
    _
  $region9: #{svae_conv_forward.27} parent=0 // pred_fallthru
    _
  // Predicated region
  $region10: #{svae_conv_forward.27} parent=0 // pred_check
    _
  $region11: #{svae_conv_forward.27} parent=0 // pred_check_branch
    %13 = sbr.rel (0) target = $region13
  $region12: #{svae_conv_forward.27} parent=0 // pred_region
    _
  $region13: #{svae_conv_forward.27} parent=0 // pred_fallthru
    _
  %p15 = scmp.eq.s32.totalorder 0, 0
  // Predicated region
  $region14: #{svae_conv_forward.27} parent=0 // pred_check
    %p16 = pneg %p15
  $region15: #{svae_conv_forward.27} parent=0 // pred_check_branch
    %18 = sbr.rel (%p16) target = $region17
  $region16: #{svae_conv_forward.27} parent=0 // pred_region
    %19 = vst [vmem:[#allocation2] sm:$0xff] 0.0
    %20 = vst [vmem:[#allocation2 + $0x8] sm:$0xff] 0.0
    %21 = vst [vmem:[#allocation2 + $0x10] sm:$0xff] 0.0
    %22 = vst [vmem:[#allocation2 + $0x18] sm:$0xff] 0.0
  $region17: #{svae_conv_forward.27} parent=0 // pred_fallthru
    _
  %v23 = vld [vmem:[#allocation2] sm:$0xff]
  %v24 = vld [vmem:[#allocation2 + $0x8] sm:$0xff]
  %v25 = vld [vmem:[#allocation2 + $0x10] sm:$0xff]
  %v26 = vld [vmem:[#allocation2 + $0x18] sm:$0xff]
  %v27 = vld [vmem:[%s0] sm:$0xf]
  %v28 = vld [vmem:[%s0 + $0x4] sm:$0xf]
  %v29 = vld [vmem:[%s0 + $0x8] sm:$0xf]
  %v30 = vld [vmem:[%s0 + $0xc] sm:$0xf]
  %v31 = vld [vmem:[%s1] sm:$0xf]
  %v32 = vld [vmem:[%s1 + $0x4] sm:$0xf]
  %v33 = vld [vmem:[%s1 + $0x8] sm:$0xf]
  %v34 = vld [vmem:[%s1 + $0xc] sm:$0xf]
  %v35 = vld [vmem:[%s1 + $0x10] sm:$0xf]
  %v36 = vld [vmem:[%s1 + $0x14] sm:$0xf]
  %v37 = vld [vmem:[%s1 + $0x18] sm:$0xf]
  %v38 = vld [vmem:[%s1 + $0x1c] sm:$0xf]
  %v39 = vld [vmem:[%s1 + $0x20] sm:$0xf]
  %v40 = vld [vmem:[%s1 + $0x24] sm:$0xf]
  %v41 = vld [vmem:[%s1 + $0x28] sm:$0xf]
  %v42 = vld [vmem:[%s1 + $0x2c] sm:$0xf]
  %v43 = vld [vmem:[%s1 + $0x30] sm:$0xf]
  %v44 = vld [vmem:[%s1 + $0x34] sm:$0xf]
  %v45 = vld [vmem:[%s1 + $0x38] sm:$0xf]
  %v46 = vld [vmem:[%s1 + $0x3c] sm:$0xf]
  %v51 = vunpack.c.l.b16 %v27
  %v52 = vunpack.c.l.b16 %v28
  %v53 = vunpack.c.l.b16 %v29
  %v54 = vunpack.c.l.b16 %v30
  %v55 = vpack.c.b16 %v52, %v51
  %v56 = vpack.c.b16 %v54, %v53
  %v75 = vunpack.c.l.b16 %v31
  %v76 = vunpack.c.l.b16 %v32
  %v77 = vunpack.c.l.b16 %v33
  %v78 = vunpack.c.l.b16 %v34
  %v79 = vunpack.c.l.b16 %v35
  %v80 = vunpack.c.l.b16 %v36
  %v81 = vunpack.c.l.b16 %v37
  %v82 = vunpack.c.l.b16 %v38
  %v83 = vunpack.c.l.b16 %v39
  %v84 = vunpack.c.l.b16 %v40
  %v85 = vunpack.c.l.b16 %v41
  %v86 = vunpack.c.l.b16 %v42
  %v87 = vunpack.c.l.b16 %v43
  %v88 = vunpack.c.l.b16 %v44
  %v89 = vunpack.c.l.b16 %v45
  %v90 = vunpack.c.l.b16 %v46
  %v91 = vpack.c.b16 %v76, %v75
  %v92 = vpack.c.b16 %v78, %v77
  %v93 = vpack.c.b16 %v80, %v79
  %v94 = vpack.c.b16 %v82, %v81
  %v95 = vpack.c.b16 %v84, %v83
  %v96 = vpack.c.b16 %v86, %v85
  %v97 = vpack.c.b16 %v88, %v87
  %v98 = vpack.c.b16 %v90, %v89
  %107 = vmatprep.subr.bf16.mxu0 0
  %108 = vmatpush1.bf16.msra.mxu0 %v98
  %109 = vmatprep.subr.bf16.mxu0 0
  %110 = vmatpush1.bf16.msra.mxu0 %v97
  %111 = vmatprep.subr.bf16.mxu0 0
  %112 = vmatpush1.bf16.msra.mxu0 %v96
  %113 = vmatprep.subr.bf16.mxu0 0
  %114 = vmatpush1.bf16.msra.mxu0 %v95
  %115 = vmatprep.subr.bf16.mxu0 0
  %116 = vmatpush1.bf16.msra.mxu0 %v94
  %117 = vmatprep.subr.bf16.mxu0 0
  %118 = vmatpush1.bf16.msra.mxu0 %v93
  %119 = vmatprep.subr.bf16.mxu0 0
  %120 = vmatpush1.bf16.msra.mxu0 %v92
  %121 = vmatprep.subr.bf16.mxu0 0
  %122 = vmatpush1.bf16.msra.mxu0 %v91
  %123 = vmatprep.subr.bf16.mxu0 0
  %124 = vmatpush2.bf16.msra.mxu0 0
  %125 = vmatprep.subr.bf16.mxu0 0
  %126 = vmatpush2.bf16.msra.mxu0 0
  %127 = vmatprep.subr.bf16.mxu0 0
  %128 = vmatpush2.bf16.msra.mxu0 0
  %129 = vmatprep.subr.bf16.mxu0 0
  %130 = vmatpush2.bf16.msra.mxu0 0
  %131 = vmatprep.subr.bf16.mxu0 0
  %132 = vmatpush2.bf16.msra.mxu0 0
  %133 = vmatprep.subr.bf16.mxu0 0
  %134 = vmatpush2.bf16.msra.mxu0 0
  %135 = vmatprep.subr.bf16.mxu0 0
  %136 = vmatpush2.bf16.msra.mxu0 0
  %137 = vmatprep.subr.bf16.mxu0 0
  %138 = vmatpush2.bf16.msra.mxu0 0
  %139 = vmatprep.mubr.bf16.mxu0 0
  %140 = vmatmul.mubr.bf16.gmra.mxu0 %v55
  %v141 = vpop.f32.mrf.mxu0
  %v142 = vadd.f32 0.0, %v141
  %v143 = vpop.f32.mrf.mxu0
  %v144 = vpop.f32.mrf.mxu0
  %v145 = vadd.f32 0.0, %v144
  %v146 = vpop.f32.mrf.mxu0
  %147 = vmatprep.mubr.bf16.mxu0 0
  %148 = vmatmul.mubr.bf16.gmra.mxu0 %v56
  %v149 = vpop.f32.mrf.mxu0
  %v150 = vadd.f32 0.0, %v149
  %v151 = vpop.f32.mrf.mxu0
  %v152 = vpop.f32.mrf.mxu0
  %v153 = vadd.f32 0.0, %v152
  %v154 = vpop.f32.mrf.mxu0
  %155 = vdwg.mxu0
  %v156 = vadd.f32 %v23, %v142
  %v157 = vadd.f32 %v24, %v145
  %v158 = vadd.f32 %v25, %v150
  %v159 = vadd.f32 %v26, %v153
  %160 = vst [vmem:[#allocation2] sm:$0xff] %v156
  %161 = vst [vmem:[#allocation2 + $0x8] sm:$0xff] %v157
  %162 = vst [vmem:[#allocation2 + $0x10] sm:$0xff] %v158
  %163 = vst [vmem:[#allocation2 + $0x18] sm:$0xff] %v159
  // Predicated region
  $region18: #{svae_conv_forward.27} parent=0 // pred_check
    %p164 = pneg %p15
  $region19: #{svae_conv_forward.27} parent=0 // pred_check_branch
    %166 = sbr.rel (%p164) target = $region21
  $region20: #{svae_conv_forward.27} parent=0 // pred_region
    %v167 = vld [vmem:[#allocation2] sm:$0xff]
    %v168 = vld [vmem:[#allocation2 + $0x8] sm:$0xff]
    %v169 = vld [vmem:[#allocation2 + $0x10] sm:$0xff]
    %v170 = vld [vmem:[#allocation2 + $0x18] sm:$0xff]
    %v171 = vld [vmem:[%s2] sm:$0x1]
    %v173 = vlaneseq
    %v174 = vshrl.u32 %v173, 7
    %v175 = vsub.s32 0, %v174
    %v176 = vrot.slane %v171, %v175
    %v178 = vadd.f32 %v167, %v176
    %v179 = vadd.f32 %v168, %v176
    %v180 = vadd.f32 %v169, %v176
    %v181 = vadd.f32 %v170, %v176
    %v182 = vmax.f32 %v178, 0.0
    %v183 = vmax.f32 %v179, 0.0
    %v184 = vmax.f32 %v180, 0.0
    %v185 = vmax.f32 %v181, 0.0
    %186 = vst [vmem:[%s3] sm:$0xff] %v182
    %187 = vst [vmem:[%s3 + $0x8] sm:$0xff] %v183
    %188 = vst [vmem:[%s3 + $0x10] sm:$0xff] %v184
    %189 = vst [vmem:[%s3 + $0x18] sm:$0xff] %v185
  $region21: #{svae_conv_forward.27} parent=0 // pred_fallthru
    _
  // Predicated region
  $region22: #{svae_conv_forward.27} parent=0 // pred_check
    _
  $region23: #{svae_conv_forward.27} parent=0 // pred_check_branch
    %191 = sbr.rel (0) target = $region25
  $region24: #{svae_conv_forward.27} parent=0 // pred_region
    _
  $region25: #{svae_conv_forward.27} parent=0 // pred_fallthru
    _
  // Predicated region
  $region26: #{svae_conv_forward.27} parent=0 // pred_check
    _
  $region27: #{svae_conv_forward.27} parent=0 // pred_check_branch
    %193 = sbr.rel (0) target = $region29
  $region28: #{svae_conv_forward.27} parent=0 // pred_region
    _
  $region29: #{svae_conv_forward.27} parent=0 // pred_fallthru
    _

// kernel: svae_conv_forward.28
$region0: #{svae_conv_forward.28}
  #allocation0 [shape = 'u32[]', space=smem, size = 0x4, offset = 0x4, fixed_abs, tag = 'smem constant byte address 0x4 - core index']
  #allocation1 [shape = 'u32[144,128]{1,0:T(1,128)}', space=vmem, size = 0x12000, scoped, tag = 'internal scratch']
  #allocation2 [shape = 'f32[32,128]{1,0:T(8,128)}', space=vmem, size = 0x4000, scoped, tag = 'scratch operand']
  %s0 = inlined_call_operand.vmem [shape: bf16[32,256], index: 0, kind: input, shape index: {}]
  %s1 = inlined_call_operand.vmem [shape: bf16[256,128], index: 1, kind: input, shape index: {}]
  %s2 = inlined_call_operand.vmem [shape: f32[1,128], index: 2, kind: input, shape index: {}]
  %s3 = inlined_call_operand.vmem [shape: f32[32,128], index: 3, kind: output, shape index: {}]
  %s4 = sld [smem:[#allocation0]]
  $region30: #{svae_conv_forward.28} parent=0
    _
  %s6 = ssub.s32 1, %s4
  %s7 = scalar_select 0, %s6, %s4
  // Predicated region
  $region2: #{svae_conv_forward.28} parent=0 // pred_check
    _
  $region3: #{svae_conv_forward.28} parent=0 // pred_check_branch
    %9 = sbr.rel (0) target = $region5
  $region4: #{svae_conv_forward.28} parent=0 // pred_region
    _
  $region5: #{svae_conv_forward.28} parent=0 // pred_fallthru
    _
  // Predicated region
  $region6: #{svae_conv_forward.28} parent=0 // pred_check
    _
  $region7: #{svae_conv_forward.28} parent=0 // pred_check_branch
    %11 = sbr.rel (0) target = $region9
  $region8: #{svae_conv_forward.28} parent=0 // pred_region
    _
  $region9: #{svae_conv_forward.28} parent=0 // pred_fallthru
    _
  // Predicated region
  $region10: #{svae_conv_forward.28} parent=0 // pred_check
    _
  $region11: #{svae_conv_forward.28} parent=0 // pred_check_branch
    %13 = sbr.rel (0) target = $region13
  $region12: #{svae_conv_forward.28} parent=0 // pred_region
    _
  $region13: #{svae_conv_forward.28} parent=0 // pred_fallthru
    _
  %p15 = scmp.eq.s32.totalorder 0, 0
  // Predicated region
  $region14: #{svae_conv_forward.28} parent=0 // pred_check
    %p16 = pneg %p15
  $region15: #{svae_conv_forward.28} parent=0 // pred_check_branch
    %18 = sbr.rel (%p16) target = $region17
  $region16: #{svae_conv_forward.28} parent=0 // pred_region
    %19 = vst [vmem:[#allocation2] sm:$0xff] 0.0
    %20 = vst [vmem:[#allocation2 + $0x8] sm:$0xff] 0.0
    %21 = vst [vmem:[#allocation2 + $0x10] sm:$0xff] 0.0
    %22 = vst [vmem:[#allocation2 + $0x18] sm:$0xff] 0.0
  $region17: #{svae_conv_forward.28} parent=0 // pred_fallthru
    _
  %v23 = vld [vmem:[#allocation2] sm:$0xff]
  %v24 = vld [vmem:[#allocation2 + $0x8] sm:$0xff]
  %v25 = vld [vmem:[#allocation2 + $0x10] sm:$0xff]
  %v26 = vld [vmem:[#allocation2 + $0x18] sm:$0xff]
  %v27 = vld [vmem:[%s0] sm:$0xff]
  %v28 = vld [vmem:[%s0 + $0x8] sm:$0xff]
  %v29 = vld [vmem:[%s0 + $0x10] sm:$0xff]
  %v30 = vld [vmem:[%s0 + $0x18] sm:$0xff]
  %v31 = vld [vmem:[%s1] sm:$0xf]
  %v32 = vld [vmem:[%s1 + $0x4] sm:$0xf]
  %v33 = vld [vmem:[%s1 + $0x8] sm:$0xf]
  %v34 = vld [vmem:[%s1 + $0xc] sm:$0xf]
  %v35 = vld [vmem:[%s1 + $0x10] sm:$0xf]
  %v36 = vld [vmem:[%s1 + $0x14] sm:$0xf]
  %v37 = vld [vmem:[%s1 + $0x18] sm:$0xf]
  %v38 = vld [vmem:[%s1 + $0x1c] sm:$0xf]
  %v39 = vld [vmem:[%s1 + $0x20] sm:$0xf]
  %v40 = vld [vmem:[%s1 + $0x24] sm:$0xf]
  %v41 = vld [vmem:[%s1 + $0x28] sm:$0xf]
  %v42 = vld [vmem:[%s1 + $0x2c] sm:$0xf]
  %v43 = vld [vmem:[%s1 + $0x30] sm:$0xf]
  %v44 = vld [vmem:[%s1 + $0x34] sm:$0xf]
  %v45 = vld [vmem:[%s1 + $0x38] sm:$0xf]
  %v46 = vld [vmem:[%s1 + $0x3c] sm:$0xf]
  %v47 = vld [vmem:[%s1 + $0x40] sm:$0xf]
  %v48 = vld [vmem:[%s1 + $0x44] sm:$0xf]
  %v49 = vld [vmem:[%s1 + $0x48] sm:$0xf]
  %v50 = vld [vmem:[%s1 + $0x4c] sm:$0xf]
  %v51 = vld [vmem:[%s1 + $0x50] sm:$0xf]
  %v52 = vld [vmem:[%s1 + $0x54] sm:$0xf]
  %v53 = vld [vmem:[%s1 + $0x58] sm:$0xf]
  %v54 = vld [vmem:[%s1 + $0x5c] sm:$0xf]
  %v55 = vld [vmem:[%s1 + $0x60] sm:$0xf]
  %v56 = vld [vmem:[%s1 + $0x64] sm:$0xf]
  %v57 = vld [vmem:[%s1 + $0x68] sm:$0xf]
  %v58 = vld [vmem:[%s1 + $0x6c] sm:$0xf]
  %v59 = vld [vmem:[%s1 + $0x70] sm:$0xf]
  %v60 = vld [vmem:[%s1 + $0x74] sm:$0xf]
  %v61 = vld [vmem:[%s1 + $0x78] sm:$0xf]
  %v62 = vld [vmem:[%s1 + $0x7c] sm:$0xf]
  %v67 = vunpack.c.l.b16 %v27
  %v68 = vunpack.c.h.b16 %v27
  %v69 = vunpack.c.l.b16 %v28
  %v70 = vunpack.c.h.b16 %v28
  %v71 = vunpack.c.l.b16 %v29
  %v72 = vunpack.c.h.b16 %v29
  %v73 = vunpack.c.l.b16 %v30
  %v74 = vunpack.c.h.b16 %v30
  %v75 = vpack.c.b16 %v69, %v67
  %v76 = vpack.c.b16 %v70, %v68
  %v77 = vpack.c.b16 %v73, %v71
  %v78 = vpack.c.b16 %v74, %v72
  %v115 = vunpack.c.l.b16 %v31
  %v116 = vunpack.c.l.b16 %v32
  %v117 = vunpack.c.l.b16 %v33
  %v118 = vunpack.c.l.b16 %v34
  %v119 = vunpack.c.l.b16 %v35
  %v120 = vunpack.c.l.b16 %v36
  %v121 = vunpack.c.l.b16 %v37
  %v122 = vunpack.c.l.b16 %v38
  %v123 = vunpack.c.l.b16 %v39
  %v124 = vunpack.c.l.b16 %v40
  %v125 = vunpack.c.l.b16 %v41
  %v126 = vunpack.c.l.b16 %v42
  %v127 = vunpack.c.l.b16 %v43
  %v128 = vunpack.c.l.b16 %v44
  %v129 = vunpack.c.l.b16 %v45
  %v130 = vunpack.c.l.b16 %v46
  %v131 = vunpack.c.l.b16 %v47
  %v132 = vunpack.c.l.b16 %v48
  %v133 = vunpack.c.l.b16 %v49
  %v134 = vunpack.c.l.b16 %v50
  %v135 = vunpack.c.l.b16 %v51
  %v136 = vunpack.c.l.b16 %v52
  %v137 = vunpack.c.l.b16 %v53
  %v138 = vunpack.c.l.b16 %v54
  %v139 = vunpack.c.l.b16 %v55
  %v140 = vunpack.c.l.b16 %v56
  %v141 = vunpack.c.l.b16 %v57
  %v142 = vunpack.c.l.b16 %v58
  %v143 = vunpack.c.l.b16 %v59
  %v144 = vunpack.c.l.b16 %v60
  %v145 = vunpack.c.l.b16 %v61
  %v146 = vunpack.c.l.b16 %v62
  %v147 = vpack.c.b16 %v116, %v115
  %v148 = vpack.c.b16 %v118, %v117
  %v149 = vpack.c.b16 %v120, %v119
  %v150 = vpack.c.b16 %v122, %v121
  %v151 = vpack.c.b16 %v124, %v123
  %v152 = vpack.c.b16 %v126, %v125
  %v153 = vpack.c.b16 %v128, %v127
  %v154 = vpack.c.b16 %v130, %v129
  %v155 = vpack.c.b16 %v132, %v131
  %v156 = vpack.c.b16 %v134, %v133
  %v157 = vpack.c.b16 %v136, %v135
  %v158 = vpack.c.b16 %v138, %v137
  %v159 = vpack.c.b16 %v140, %v139
  %v160 = vpack.c.b16 %v142, %v141
  %v161 = vpack.c.b16 %v144, %v143
  %v162 = vpack.c.b16 %v146, %v145
  %179 = vmatprep.subr.bf16.mxu0 0
  %180 = vmatpush1.bf16.msra.mxu0 %v154
  %181 = vmatprep.subr.bf16.mxu0 0
  %182 = vmatpush1.bf16.msra.mxu0 %v153
  %183 = vmatprep.subr.bf16.mxu0 0
  %184 = vmatpush1.bf16.msra.mxu0 %v152
  %185 = vmatprep.subr.bf16.mxu0 0
  %186 = vmatpush1.bf16.msra.mxu0 %v151
  %187 = vmatprep.subr.bf16.mxu0 0
  %188 = vmatpush1.bf16.msra.mxu0 %v150
  %189 = vmatprep.subr.bf16.mxu0 0
  %190 = vmatpush1.bf16.msra.mxu0 %v149
  %191 = vmatprep.subr.bf16.mxu0 0
  %192 = vmatpush1.bf16.msra.mxu0 %v148
  %193 = vmatprep.subr.bf16.mxu0 0
  %194 = vmatpush1.bf16.msra.mxu0 %v147
  %195 = vmatprep.subr.bf16.mxu0 0
  %196 = vmatpush2.bf16.msra.mxu0 %v162
  %197 = vmatprep.subr.bf16.mxu0 0
  %198 = vmatpush2.bf16.msra.mxu0 %v161
  %199 = vmatprep.subr.bf16.mxu0 0
  %200 = vmatpush2.bf16.msra.mxu0 %v160
  %201 = vmatprep.subr.bf16.mxu0 0
  %202 = vmatpush2.bf16.msra.mxu0 %v159
  %203 = vmatprep.subr.bf16.mxu0 0
  %204 = vmatpush2.bf16.msra.mxu0 %v158
  %205 = vmatprep.subr.bf16.mxu0 0
  %206 = vmatpush2.bf16.msra.mxu0 %v157
  %207 = vmatprep.subr.bf16.mxu0 0
  %208 = vmatpush2.bf16.msra.mxu0 %v156
  %209 = vmatprep.subr.bf16.mxu0 0
  %210 = vmatpush2.bf16.msra.mxu0 %v155
  %211 = vmatprep.mubr.bf16.mxu0 %v76
  %212 = vmatmul.mubr.bf16.gmra.mxu0 %v75
  %v213 = vpop.f32.mrf.mxu0
  %v214 = vadd.f32 0.0, %v213
  %v215 = vpop.f32.mrf.mxu0
  %v216 = vpop.f32.mrf.mxu0
  %v217 = vadd.f32 0.0, %v216
  %v218 = vpop.f32.mrf.mxu0
  %219 = vmatprep.mubr.bf16.mxu0 %v78
  %220 = vmatmul.mubr.bf16.gmra.mxu0 %v77
  %v221 = vpop.f32.mrf.mxu0
  %v222 = vadd.f32 0.0, %v221
  %v223 = vpop.f32.mrf.mxu0
  %v224 = vpop.f32.mrf.mxu0
  %v225 = vadd.f32 0.0, %v224
  %v226 = vpop.f32.mrf.mxu0
  %227 = vdwg.mxu0
  %v228 = vadd.f32 %v23, %v214
  %v229 = vadd.f32 %v24, %v217
  %v230 = vadd.f32 %v25, %v222
  %v231 = vadd.f32 %v26, %v225
  %232 = vst [vmem:[#allocation2] sm:$0xff] %v228
  %233 = vst [vmem:[#allocation2 + $0x8] sm:$0xff] %v229
  %234 = vst [vmem:[#allocation2 + $0x10] sm:$0xff] %v230
  %235 = vst [vmem:[#allocation2 + $0x18] sm:$0xff] %v231
  // Predicated region
  $region18: #{svae_conv_forward.28} parent=0 // pred_check
    %p236 = pneg %p15
  $region19: #{svae_conv_forward.28} parent=0 // pred_check_branch
    %238 = sbr.rel (%p236) target = $region21
  $region20: #{svae_conv_forward.28} parent=0 // pred_region
    %v239 = vld [vmem:[#allocation2] sm:$0xff]
    %v240 = vld [vmem:[#allocation2 + $0x8] sm:$0xff]
    %v241 = vld [vmem:[#allocation2 + $0x10] sm:$0xff]
    %v242 = vld [vmem:[#allocation2 + $0x18] sm:$0xff]
    %v243 = vld [vmem:[%s2] sm:$0x1]
    %v245 = vlaneseq
    %v246 = vshrl.u32 %v245, 7
    %v247 = vsub.s32 0, %v246
    %v248 = vrot.slane %v243, %v247
    %v250 = vadd.f32 %v239, %v248
    %v251 = vadd.f32 %v240, %v248
    %v252 = vadd.f32 %v241, %v248
    %v253 = vadd.f32 %v242, %v248
    %v254 = vmax.f32 %v250, 0.0
    %v255 = vmax.f32 %v251, 0.0
    %v256 = vmax.f32 %v252, 0.0
    %v257 = vmax.f32 %v253, 0.0
    %258 = vst [vmem:[%s3] sm:$0xff] %v254
    %259 = vst [vmem:[%s3 + $0x8] sm:$0xff] %v255
    %260 = vst [vmem:[%s3 + $0x10] sm:$0xff] %v256
    %261 = vst [vmem:[%s3 + $0x18] sm:$0xff] %v257
  $region21: #{svae_conv_forward.28} parent=0 // pred_fallthru
    _
  // Predicated region
  $region22: #{svae_conv_forward.28} parent=0 // pred_check
    _
  $region23: #{svae_conv_forward.28} parent=0 // pred_check_branch
    %263 = sbr.rel (0) target = $region25
  $region24: #{svae_conv_forward.28} parent=0 // pred_region
    _
  $region25: #{svae_conv_forward.28} parent=0 // pred_fallthru
    _
  // Predicated region
  $region26: #{svae_conv_forward.28} parent=0 // pred_check
    _
  $region27: #{svae_conv_forward.28} parent=0 // pred_check_branch
    %265 = sbr.rel (0) target = $region29
  $region28: #{svae_conv_forward.28} parent=0 // pred_region
    _
  $region29: #{svae_conv_forward.28} parent=0 // pred_fallthru
    _

// kernel: svae_conv_forward.30
$region0: #{svae_conv_forward.30}
  #allocation0 [shape = 'u32[]', space=smem, size = 0x4, offset = 0x4, fixed_abs, tag = 'smem constant byte address 0x4 - core index']
  #allocation1 [shape = 'u32[144,128]{1,0:T(1,128)}', space=vmem, size = 0x12000, scoped, tag = 'internal scratch']
  #allocation2 [shape = 'f32[32,128]{1,0:T(8,128)}', space=vmem, size = 0x4000, scoped, tag = 'scratch operand']
  %s0 = inlined_call_operand.vmem [shape: bf16[32,384], index: 0, kind: input, shape index: {}]
  %s1 = inlined_call_operand.vmem [shape: bf16[384,128], index: 1, kind: input, shape index: {}]
  %s2 = inlined_call_operand.vmem [shape: f32[1,128], index: 2, kind: input, shape index: {}]
  %s3 = inlined_call_operand.vmem [shape: f32[32,128], index: 3, kind: output, shape index: {}]
  %s4 = sld [smem:[#allocation0]]
  $region30: #{svae_conv_forward.30} parent=0
    _
  %s6 = ssub.s32 1, %s4
  %s7 = scalar_select 0, %s6, %s4
  // Predicated region
  $region2: #{svae_conv_forward.30} parent=0 // pred_check
    _
  $region3: #{svae_conv_forward.30} parent=0 // pred_check_branch
    %9 = sbr.rel (0) target = $region5
  $region4: #{svae_conv_forward.30} parent=0 // pred_region
    _
  $region5: #{svae_conv_forward.30} parent=0 // pred_fallthru
    _
  // Predicated region
  $region6: #{svae_conv_forward.30} parent=0 // pred_check
    _
  $region7: #{svae_conv_forward.30} parent=0 // pred_check_branch
    %11 = sbr.rel (0) target = $region9
  $region8: #{svae_conv_forward.30} parent=0 // pred_region
    _
  $region9: #{svae_conv_forward.30} parent=0 // pred_fallthru
    _
  // Predicated region
  $region10: #{svae_conv_forward.30} parent=0 // pred_check
    _
  $region11: #{svae_conv_forward.30} parent=0 // pred_check_branch
    %13 = sbr.rel (0) target = $region13
  $region12: #{svae_conv_forward.30} parent=0 // pred_region
    _
  $region13: #{svae_conv_forward.30} parent=0 // pred_fallthru
    _
  %p15 = scmp.eq.s32.totalorder 0, 0
  // Predicated region
  $region14: #{svae_conv_forward.30} parent=0 // pred_check
    %p16 = pneg %p15
  $region15: #{svae_conv_forward.30} parent=0 // pred_check_branch
    %18 = sbr.rel (%p16) target = $region17
  $region16: #{svae_conv_forward.30} parent=0 // pred_region
    %19 = vst [vmem:[#allocation2] sm:$0xff] 0.0
    %20 = vst [vmem:[#allocation2 + $0x8] sm:$0xff] 0.0
    %21 = vst [vmem:[#allocation2 + $0x10] sm:$0xff] 0.0
    %22 = vst [vmem:[#allocation2 + $0x18] sm:$0xff] 0.0
  $region17: #{svae_conv_forward.30} parent=0 // pred_fallthru
    _
  %v23 = vld [vmem:[#allocation2] sm:$0xff]
  %v24 = vld [vmem:[#allocation2 + $0x8] sm:$0xff]
  %v25 = vld [vmem:[#allocation2 + $0x10] sm:$0xff]
  %v26 = vld [vmem:[#allocation2 + $0x18] sm:$0xff]
  %v27 = vld [vmem:[%s0] sm:$0xff]
  %v28 = vld [vmem:[%s0 + $0x8] sm:$0xf]
  %v29 = vld [vmem:[%s0 + $0xc] sm:$0xff]
  %v30 = vld [vmem:[%s0 + $0x14] sm:$0xf]
  %v31 = vld [vmem:[%s0 + $0x18] sm:$0xff]
  %v32 = vld [vmem:[%s0 + $0x20] sm:$0xf]
  %v33 = vld [vmem:[%s0 + $0x24] sm:$0xff]
  %v34 = vld [vmem:[%s0 + $0x2c] sm:$0xf]
  %v35 = vld [vmem:[%s1] sm:$0xf]
  %v36 = vld [vmem:[%s1 + $0x4] sm:$0xf]
  %v37 = vld [vmem:[%s1 + $0x8] sm:$0xf]
  %v38 = vld [vmem:[%s1 + $0xc] sm:$0xf]
  %v39 = vld [vmem:[%s1 + $0x10] sm:$0xf]
  %v40 = vld [vmem:[%s1 + $0x14] sm:$0xf]
  %v41 = vld [vmem:[%s1 + $0x18] sm:$0xf]
  %v42 = vld [vmem:[%s1 + $0x1c] sm:$0xf]
  %v43 = vld [vmem:[%s1 + $0x20] sm:$0xf]
  %v44 = vld [vmem:[%s1 + $0x24] sm:$0xf]
  %v45 = vld [vmem:[%s1 + $0x28] sm:$0xf]
  %v46 = vld [vmem:[%s1 + $0x2c] sm:$0xf]
  %v47 = vld [vmem:[%s1 + $0x30] sm:$0xf]
  %v48 = vld [vmem:[%s1 + $0x34] sm:$0xf]
  %v49 = vld [vmem:[%s1 + $0x38] sm:$0xf]
  %v50 = vld [vmem:[%s1 + $0x3c] sm:$0xf]
  %v51 = vld [vmem:[%s1 + $0x40] sm:$0xf]
  %v52 = vld [vmem:[%s1 + $0x44] sm:$0xf]
  %v53 = vld [vmem:[%s1 + $0x48] sm:$0xf]
  %v54 = vld [vmem:[%s1 + $0x4c] sm:$0xf]
  %v55 = vld [vmem:[%s1 + $0x50] sm:$0xf]
  %v56 = vld [vmem:[%s1 + $0x54] sm:$0xf]
  %v57 = vld [vmem:[%s1 + $0x58] sm:$0xf]
  %v58 = vld [vmem:[%s1 + $0x5c] sm:$0xf]
  %v59 = vld [vmem:[%s1 + $0x60] sm:$0xf]
  %v60 = vld [vmem:[%s1 + $0x64] sm:$0xf]
  %v61 = vld [vmem:[%s1 + $0x68] sm:$0xf]
  %v62 = vld [vmem:[%s1 + $0x6c] sm:$0xf]
  %v63 = vld [vmem:[%s1 + $0x70] sm:$0xf]
  %v64 = vld [vmem:[%s1 + $0x74] sm:$0xf]
  %v65 = vld [vmem:[%s1 + $0x78] sm:$0xf]
  %v66 = vld [vmem:[%s1 + $0x7c] sm:$0xf]
  %v67 = vld [vmem:[%s1 + $0x80] sm:$0xf]
  %v68 = vld [vmem:[%s1 + $0x84] sm:$0xf]
  %v69 = vld [vmem:[%s1 + $0x88] sm:$0xf]
  %v70 = vld [vmem:[%s1 + $0x8c] sm:$0xf]
  %v71 = vld [vmem:[%s1 + $0x90] sm:$0xf]
  %v72 = vld [vmem:[%s1 + $0x94] sm:$0xf]
  %v73 = vld [vmem:[%s1 + $0x98] sm:$0xf]
  %v74 = vld [vmem:[%s1 + $0x9c] sm:$0xf]
  %v75 = vld [vmem:[%s1 + $0xa0] sm:$0xf]
  %v76 = vld [vmem:[%s1 + $0xa4] sm:$0xf]
  %v77 = vld [vmem:[%s1 + $0xa8] sm:$0xf]
  %v78 = vld [vmem:[%s1 + $0xac] sm:$0xf]
  %v79 = vld [vmem:[%s1 + $0xb0] sm:$0xf]
  %v80 = vld [vmem:[%s1 + $0xb4] sm:$0xf]
  %v81 = vld [vmem:[%s1 + $0xb8] sm:$0xf]
  %v82 = vld [vmem:[%s1 + $0xbc] sm:$0xf]
  %v91 = vunpack.c.l.b16 %v27
  %v92 = vunpack.c.h.b16 %v27
  %v93 = vunpack.c.l.b16 %v28
  %v94 = vunpack.c.l.b16 %v29
  %v95 = vunpack.c.h.b16 %v29
  %v96 = vunpack.c.l.b16 %v30
  %v97 = vunpack.c.l.b16 %v31
  %v98 = vunpack.c.h.b16 %v31
  %v99 = vunpack.c.l.b16 %v32
  %v100 = vunpack.c.l.b16 %v33
  %v101 = vunpack.c.h.b16 %v33
  %v102 = vunpack.c.l.b16 %v34
  %v103 = vpack.c.b16 %v94, %v91
  %v104 = vpack.c.b16 %v95, %v92
  %v105 = vpack.c.b16 %v96, %v93
  %v106 = vpack.c.b16 %v100, %v97
  %v107 = vpack.c.b16 %v101, %v98
  %v108 = vpack.c.b16 %v102, %v99
  %v163 = vunpack.c.l.b16 %v35
  %v164 = vunpack.c.l.b16 %v36
  %v165 = vunpack.c.l.b16 %v37
  %v166 = vunpack.c.l.b16 %v38
  %v167 = vunpack.c.l.b16 %v39
  %v168 = vunpack.c.l.b16 %v40
  %v169 = vunpack.c.l.b16 %v41
  %v170 = vunpack.c.l.b16 %v42
  %v171 = vunpack.c.l.b16 %v43
  %v172 = vunpack.c.l.b16 %v44
  %v173 = vunpack.c.l.b16 %v45
  %v174 = vunpack.c.l.b16 %v46
  %v175 = vunpack.c.l.b16 %v47
  %v176 = vunpack.c.l.b16 %v48
  %v177 = vunpack.c.l.b16 %v49
  %v178 = vunpack.c.l.b16 %v50
  %v179 = vunpack.c.l.b16 %v51
  %v180 = vunpack.c.l.b16 %v52
  %v181 = vunpack.c.l.b16 %v53
  %v182 = vunpack.c.l.b16 %v54
  %v183 = vunpack.c.l.b16 %v55
  %v184 = vunpack.c.l.b16 %v56
  %v185 = vunpack.c.l.b16 %v57
  %v186 = vunpack.c.l.b16 %v58
  %v187 = vunpack.c.l.b16 %v59
  %v188 = vunpack.c.l.b16 %v60
  %v189 = vunpack.c.l.b16 %v61
  %v190 = vunpack.c.l.b16 %v62
  %v191 = vunpack.c.l.b16 %v63
  %v192 = vunpack.c.l.b16 %v64
  %v193 = vunpack.c.l.b16 %v65
  %v194 = vunpack.c.l.b16 %v66
  %v195 = vunpack.c.l.b16 %v67
  %v196 = vunpack.c.l.b16 %v68
  %v197 = vunpack.c.l.b16 %v69
  %v198 = vunpack.c.l.b16 %v70
  %v199 = vunpack.c.l.b16 %v71
  %v200 = vunpack.c.l.b16 %v72
  %v201 = vunpack.c.l.b16 %v73
  %v202 = vunpack.c.l.b16 %v74
  %v203 = vunpack.c.l.b16 %v75
  %v204 = vunpack.c.l.b16 %v76
  %v205 = vunpack.c.l.b16 %v77
  %v206 = vunpack.c.l.b16 %v78
  %v207 = vunpack.c.l.b16 %v79
  %v208 = vunpack.c.l.b16 %v80
  %v209 = vunpack.c.l.b16 %v81
  %v210 = vunpack.c.l.b16 %v82
  %v211 = vpack.c.b16 %v164, %v163
  %v212 = vpack.c.b16 %v166, %v165
  %v213 = vpack.c.b16 %v168, %v167
  %v214 = vpack.c.b16 %v170, %v169
  %v215 = vpack.c.b16 %v172, %v171
  %v216 = vpack.c.b16 %v174, %v173
  %v217 = vpack.c.b16 %v176, %v175
  %v218 = vpack.c.b16 %v178, %v177
  %v219 = vpack.c.b16 %v180, %v179
  %v220 = vpack.c.b16 %v182, %v181
  %v221 = vpack.c.b16 %v184, %v183
  %v222 = vpack.c.b16 %v186, %v185
  %v223 = vpack.c.b16 %v188, %v187
  %v224 = vpack.c.b16 %v190, %v189
  %v225 = vpack.c.b16 %v192, %v191
  %v226 = vpack.c.b16 %v194, %v193
  %v227 = vpack.c.b16 %v196, %v195
  %v228 = vpack.c.b16 %v198, %v197
  %v229 = vpack.c.b16 %v200, %v199
  %v230 = vpack.c.b16 %v202, %v201
  %v231 = vpack.c.b16 %v204, %v203
  %v232 = vpack.c.b16 %v206, %v205
  %v233 = vpack.c.b16 %v208, %v207
  %v234 = vpack.c.b16 %v210, %v209
  %259 = vmatprep.subr.bf16.mxu0 0
  %260 = vmatpush1.bf16.msra.mxu0 %v218
  %261 = vmatprep.subr.bf16.mxu0 0
  %262 = vmatpush1.bf16.msra.mxu0 %v217
  %263 = vmatprep.subr.bf16.mxu0 0
  %264 = vmatpush1.bf16.msra.mxu0 %v216
  %265 = vmatprep.subr.bf16.mxu0 0
  %266 = vmatpush1.bf16.msra.mxu0 %v215
  %267 = vmatprep.subr.bf16.mxu0 0
  %268 = vmatpush1.bf16.msra.mxu0 %v214
  %269 = vmatprep.subr.bf16.mxu0 0
  %270 = vmatpush1.bf16.msra.mxu0 %v213
  %271 = vmatprep.subr.bf16.mxu0 0
  %272 = vmatpush1.bf16.msra.mxu0 %v212
  %273 = vmatprep.subr.bf16.mxu0 0
  %274 = vmatpush1.bf16.msra.mxu0 %v211
  %275 = vmatprep.subr.bf16.mxu0 0
  %276 = vmatpush2.bf16.msra.mxu0 %v226
  %277 = vmatprep.subr.bf16.mxu0 0
  %278 = vmatpush2.bf16.msra.mxu0 %v225
  %279 = vmatprep.subr.bf16.mxu0 0
  %280 = vmatpush2.bf16.msra.mxu0 %v224
  %281 = vmatprep.subr.bf16.mxu0 0
  %282 = vmatpush2.bf16.msra.mxu0 %v223
  %283 = vmatprep.subr.bf16.mxu0 0
  %284 = vmatpush2.bf16.msra.mxu0 %v222
  %285 = vmatprep.subr.bf16.mxu0 0
  %286 = vmatpush2.bf16.msra.mxu0 %v221
  %287 = vmatprep.subr.bf16.mxu0 0
  %288 = vmatpush2.bf16.msra.mxu0 %v220
  %289 = vmatprep.subr.bf16.mxu0 0
  %290 = vmatpush2.bf16.msra.mxu0 %v219
  %291 = vmatprep.mubr.bf16.mxu0 %v104
  %292 = vmatmul.mubr.bf16.gmra.mxu0 %v103
  %v293 = vpop.f32.mrf.mxu0
  %v294 = vadd.f32 0.0, %v293
  %v295 = vpop.f32.mrf.mxu0
  %v296 = vpop.f32.mrf.mxu0
  %v297 = vadd.f32 0.0, %v296
  %v298 = vpop.f32.mrf.mxu0
  %299 = vmatprep.mubr.bf16.mxu0 %v107
  %300 = vmatmul.mubr.bf16.gmra.mxu0 %v106
  %v301 = vpop.f32.mrf.mxu0
  %v302 = vadd.f32 0.0, %v301
  %v303 = vpop.f32.mrf.mxu0
  %v304 = vpop.f32.mrf.mxu0
  %v305 = vadd.f32 0.0, %v304
  %v306 = vpop.f32.mrf.mxu0
  %307 = vdwg.mxu0
  %308 = vmatprep.subr.bf16.mxu0 0
  %309 = vmatpush1.bf16.msra.mxu0 %v234
  %310 = vmatprep.subr.bf16.mxu0 0
  %311 = vmatpush1.bf16.msra.mxu0 %v233
  %312 = vmatprep.subr.bf16.mxu0 0
  %313 = vmatpush1.bf16.msra.mxu0 %v232
  %314 = vmatprep.subr.bf16.mxu0 0
  %315 = vmatpush1.bf16.msra.mxu0 %v231
  %316 = vmatprep.subr.bf16.mxu0 0
  %317 = vmatpush1.bf16.msra.mxu0 %v230
  %318 = vmatprep.subr.bf16.mxu0 0
  %319 = vmatpush1.bf16.msra.mxu0 %v229
  %320 = vmatprep.subr.bf16.mxu0 0
  %321 = vmatpush1.bf16.msra.mxu0 %v228
  %322 = vmatprep.subr.bf16.mxu0 0
  %323 = vmatpush1.bf16.msra.mxu0 %v227
  %324 = vmatprep.subr.bf16.mxu0 0
  %325 = vmatpush2.bf16.msra.mxu0 0
  %326 = vmatprep.subr.bf16.mxu0 0
  %327 = vmatpush2.bf16.msra.mxu0 0
  %328 = vmatprep.subr.bf16.mxu0 0
  %329 = vmatpush2.bf16.msra.mxu0 0
  %330 = vmatprep.subr.bf16.mxu0 0
  %331 = vmatpush2.bf16.msra.mxu0 0
  %332 = vmatprep.subr.bf16.mxu0 0
  %333 = vmatpush2.bf16.msra.mxu0 0
  %334 = vmatprep.subr.bf16.mxu0 0
  %335 = vmatpush2.bf16.msra.mxu0 0
  %336 = vmatprep.subr.bf16.mxu0 0
  %337 = vmatpush2.bf16.msra.mxu0 0
  %338 = vmatprep.subr.bf16.mxu0 0
  %339 = vmatpush2.bf16.msra.mxu0 0
  %340 = vmatprep.mubr.bf16.mxu0 0
  %341 = vmatmul.mubr.bf16.gmra.mxu0 %v105
  %v342 = vpop.f32.mrf.mxu0
  %v343 = vadd.f32 %v294, %v342
  %v344 = vpop.f32.mrf.mxu0
  %v345 = vpop.f32.mrf.mxu0
  %v346 = vadd.f32 %v297, %v345
  %v347 = vpop.f32.mrf.mxu0
  %348 = vmatprep.mubr.bf16.mxu0 0
  %349 = vmatmul.mubr.bf16.gmra.mxu0 %v108
  %v350 = vpop.f32.mrf.mxu0
  %v351 = vadd.f32 %v302, %v350
  %v352 = vpop.f32.mrf.mxu0
  %v353 = vpop.f32.mrf.mxu0
  %v354 = vadd.f32 %v305, %v353
  %v355 = vpop.f32.mrf.mxu0
  %356 = vdwg.mxu0
  %v357 = vadd.f32 %v23, %v343
  %v358 = vadd.f32 %v24, %v346
  %v359 = vadd.f32 %v25, %v351
  %v360 = vadd.f32 %v26, %v354
  %361 = vst [vmem:[#allocation2] sm:$0xff] %v357
  %362 = vst [vmem:[#allocation2 + $0x8] sm:$0xff] %v358
  %363 = vst [vmem:[#allocation2 + $0x10] sm:$0xff] %v359
  %364 = vst [vmem:[#allocation2 + $0x18] sm:$0xff] %v360
  // Predicated region
  $region18: #{svae_conv_forward.30} parent=0 // pred_check
    %p365 = pneg %p15
  $region19: #{svae_conv_forward.30} parent=0 // pred_check_branch
    %367 = sbr.rel (%p365) target = $region21
  $region20: #{svae_conv_forward.30} parent=0 // pred_region
    %v368 = vld [vmem:[#allocation2] sm:$0xff]
    %v369 = vld [vmem:[#allocation2 + $0x8] sm:$0xff]
    %v370 = vld [vmem:[#allocation2 + $0x10] sm:$0xff]
    %v371 = vld [vmem:[#allocation2 + $0x18] sm:$0xff]
    %v372 = vld [vmem:[%s2] sm:$0x1]
    %v374 = vlaneseq
    %v375 = vshrl.u32 %v374, 7
    %v376 = vsub.s32 0, %v375
    %v377 = vrot.slane %v372, %v376
    %v379 = vadd.f32 %v368, %v377
    %v380 = vadd.f32 %v369, %v377
    %v381 = vadd.f32 %v370, %v377
    %v382 = vadd.f32 %v371, %v377
    %v383 = vmax.f32 %v379, 0.0
    %v384 = vmax.f32 %v380, 0.0
    %v385 = vmax.f32 %v381, 0.0
    %v386 = vmax.f32 %v382, 0.0
    %387 = vst [vmem:[%s3] sm:$0xff] %v383
    %388 = vst [vmem:[%s3 + $0x8] sm:$0xff] %v384
    %389 = vst [vmem:[%s3 + $0x10] sm:$0xff] %v385
    %390 = vst [vmem:[%s3 + $0x18] sm:$0xff] %v386
  $region21: #{svae_conv_forward.30} parent=0 // pred_fallthru
    _
  // Predicated region
  $region22: #{svae_conv_forward.30} parent=0 // pred_check
    _
  $region23: #{svae_conv_forward.30} parent=0 // pred_check_branch
    %392 = sbr.rel (0) target = $region25
  $region24: #{svae_conv_forward.30} parent=0 // pred_region
    _
  $region25: #{svae_conv_forward.30} parent=0 // pred_fallthru
    _
  // Predicated region
  $region26: #{svae_conv_forward.30} parent=0 // pred_check
    _
  $region27: #{svae_conv_forward.30} parent=0 // pred_check_branch
    %394 = sbr.rel (0) target = $region29
  $region28: #{svae_conv_forward.30} parent=0 // pred_region
    _
  $region29: #{svae_conv_forward.30} parent=0 // pred_fallthru
    _

// kernel: svae_conv_forward.31
$region0: #{svae_conv_forward.31}
  #allocation0 [shape = 'u32[]', space=smem, size = 0x4, offset = 0x4, fixed_abs, tag = 'smem constant byte address 0x4 - core index']
  #allocation1 [shape = 'u32[144,128]{1,0:T(1,128)}', space=vmem, size = 0x12000, scoped, tag = 'internal scratch']
  #allocation2 [shape = 'f32[128,128]{1,0:T(8,128)}', space=vmem, size = 0x10000, scoped, tag = 'scratch operand']
  %s0 = inlined_call_operand.vmem [shape: bf16[128,128], index: 0, kind: input, shape index: {}]
  %s1 = inlined_call_operand.vmem [shape: bf16[128,128], index: 1, kind: input, shape index: {}]
  %s2 = inlined_call_operand.vmem [shape: f32[1,128], index: 2, kind: input, shape index: {}]
  %s3 = inlined_call_operand.vmem [shape: f32[128,128], index: 3, kind: output, shape index: {}]
  %s4 = sld [smem:[#allocation0]]
  $region30: #{svae_conv_forward.31} parent=0
    _
  %s6 = ssub.s32 1, %s4
  %s7 = scalar_select 0, %s6, %s4
  // Predicated region
  $region2: #{svae_conv_forward.31} parent=0 // pred_check
    _
  $region3: #{svae_conv_forward.31} parent=0 // pred_check_branch
    %9 = sbr.rel (0) target = $region5
  $region4: #{svae_conv_forward.31} parent=0 // pred_region
    _
  $region5: #{svae_conv_forward.31} parent=0 // pred_fallthru
    _
  // Predicated region
  $region6: #{svae_conv_forward.31} parent=0 // pred_check
    _
  $region7: #{svae_conv_forward.31} parent=0 // pred_check_branch
    %11 = sbr.rel (0) target = $region9
  $region8: #{svae_conv_forward.31} parent=0 // pred_region
    _
  $region9: #{svae_conv_forward.31} parent=0 // pred_fallthru
    _
  // Predicated region
  $region10: #{svae_conv_forward.31} parent=0 // pred_check
    _
  $region11: #{svae_conv_forward.31} parent=0 // pred_check_branch
    %13 = sbr.rel (0) target = $region13
  $region12: #{svae_conv_forward.31} parent=0 // pred_region
    _
  $region13: #{svae_conv_forward.31} parent=0 // pred_fallthru
    _
  %p15 = scmp.eq.s32.totalorder 0, 0
  // Predicated region
  $region14: #{svae_conv_forward.31} parent=0 // pred_check
    %p16 = pneg %p15
  $region15: #{svae_conv_forward.31} parent=0 // pred_check_branch
    %18 = sbr.rel (%p16) target = $region17
  $region16: #{svae_conv_forward.31} parent=0 // pred_region
    %19 = vst [vmem:[#allocation2] sm:$0xff] 0.0
    %20 = vst [vmem:[#allocation2 + $0x8] sm:$0xff] 0.0
    %21 = vst [vmem:[#allocation2 + $0x10] sm:$0xff] 0.0
    %22 = vst [vmem:[#allocation2 + $0x18] sm:$0xff] 0.0
    %23 = vst [vmem:[#allocation2 + $0x20] sm:$0xff] 0.0
    %24 = vst [vmem:[#allocation2 + $0x28] sm:$0xff] 0.0
    %25 = vst [vmem:[#allocation2 + $0x30] sm:$0xff] 0.0
    %26 = vst [vmem:[#allocation2 + $0x38] sm:$0xff] 0.0
    %27 = vst [vmem:[#allocation2 + $0x40] sm:$0xff] 0.0
    %28 = vst [vmem:[#allocation2 + $0x48] sm:$0xff] 0.0
    %29 = vst [vmem:[#allocation2 + $0x50] sm:$0xff] 0.0
    %30 = vst [vmem:[#allocation2 + $0x58] sm:$0xff] 0.0
    %31 = vst [vmem:[#allocation2 + $0x60] sm:$0xff] 0.0
    %32 = vst [vmem:[#allocation2 + $0x68] sm:$0xff] 0.0
    %33 = vst [vmem:[#allocation2 + $0x70] sm:$0xff] 0.0
    %34 = vst [vmem:[#allocation2 + $0x78] sm:$0xff] 0.0
  $region17: #{svae_conv_forward.31} parent=0 // pred_fallthru
    _
  %v35 = vld [vmem:[#allocation2] sm:$0xff]
  %v36 = vld [vmem:[#allocation2 + $0x8] sm:$0xff]
  %v37 = vld [vmem:[#allocation2 + $0x10] sm:$0xff]
  %v38 = vld [vmem:[#allocation2 + $0x18] sm:$0xff]
  %v39 = vld [vmem:[#allocation2 + $0x20] sm:$0xff]
  %v40 = vld [vmem:[#allocation2 + $0x28] sm:$0xff]
  %v41 = vld [vmem:[#allocation2 + $0x30] sm:$0xff]
  %v42 = vld [vmem:[#allocation2 + $0x38] sm:$0xff]
  %v43 = vld [vmem:[#allocation2 + $0x40] sm:$0xff]
  %v44 = vld [vmem:[#allocation2 + $0x48] sm:$0xff]
  %v45 = vld [vmem:[#allocation2 + $0x50] sm:$0xff]
  %v46 = vld [vmem:[#allocation2 + $0x58] sm:$0xff]
  %v47 = vld [vmem:[#allocation2 + $0x60] sm:$0xff]
  %v48 = vld [vmem:[#allocation2 + $0x68] sm:$0xff]
  %v49 = vld [vmem:[#allocation2 + $0x70] sm:$0xff]
  %v50 = vld [vmem:[#allocation2 + $0x78] sm:$0xff]
  %v51 = vld [vmem:[%s0] sm:$0xf]
  %v52 = vld [vmem:[%s0 + $0x4] sm:$0xf]
  %v53 = vld [vmem:[%s0 + $0x8] sm:$0xf]
  %v54 = vld [vmem:[%s0 + $0xc] sm:$0xf]
  %v55 = vld [vmem:[%s0 + $0x10] sm:$0xf]
  %v56 = vld [vmem:[%s0 + $0x14] sm:$0xf]
  %v57 = vld [vmem:[%s0 + $0x18] sm:$0xf]
  %v58 = vld [vmem:[%s0 + $0x1c] sm:$0xf]
  %v59 = vld [vmem:[%s0 + $0x20] sm:$0xf]
  %v60 = vld [vmem:[%s0 + $0x24] sm:$0xf]
  %v61 = vld [vmem:[%s0 + $0x28] sm:$0xf]
  %v62 = vld [vmem:[%s0 + $0x2c] sm:$0xf]
  %v63 = vld [vmem:[%s0 + $0x30] sm:$0xf]
  %v64 = vld [vmem:[%s0 + $0x34] sm:$0xf]
  %v65 = vld [vmem:[%s0 + $0x38] sm:$0xf]
  %v66 = vld [vmem:[%s0 + $0x3c] sm:$0xf]
  %v67 = vld [vmem:[%s1] sm:$0xf]
  %v68 = vld [vmem:[%s1 + $0x4] sm:$0xf]
  %v69 = vld [vmem:[%s1 + $0x8] sm:$0xf]
  %v70 = vld [vmem:[%s1 + $0xc] sm:$0xf]
  %v71 = vld [vmem:[%s1 + $0x10] sm:$0xf]
  %v72 = vld [vmem:[%s1 + $0x14] sm:$0xf]
  %v73 = vld [vmem:[%s1 + $0x18] sm:$0xf]
  %v74 = vld [vmem:[%s1 + $0x1c] sm:$0xf]
  %v75 = vld [vmem:[%s1 + $0x20] sm:$0xf]
  %v76 = vld [vmem:[%s1 + $0x24] sm:$0xf]
  %v77 = vld [vmem:[%s1 + $0x28] sm:$0xf]
  %v78 = vld [vmem:[%s1 + $0x2c] sm:$0xf]
  %v79 = vld [vmem:[%s1 + $0x30] sm:$0xf]
  %v80 = vld [vmem:[%s1 + $0x34] sm:$0xf]
  %v81 = vld [vmem:[%s1 + $0x38] sm:$0xf]
  %v82 = vld [vmem:[%s1 + $0x3c] sm:$0xf]
  %v99 = vunpack.c.l.b16 %v51
  %v100 = vunpack.c.l.b16 %v52
  %v101 = vunpack.c.l.b16 %v53
  %v102 = vunpack.c.l.b16 %v54
  %v103 = vunpack.c.l.b16 %v55
  %v104 = vunpack.c.l.b16 %v56
  %v105 = vunpack.c.l.b16 %v57
  %v106 = vunpack.c.l.b16 %v58
  %v107 = vunpack.c.l.b16 %v59
  %v108 = vunpack.c.l.b16 %v60
  %v109 = vunpack.c.l.b16 %v61
  %v110 = vunpack.c.l.b16 %v62
  %v111 = vunpack.c.l.b16 %v63
  %v112 = vunpack.c.l.b16 %v64
  %v113 = vunpack.c.l.b16 %v65
  %v114 = vunpack.c.l.b16 %v66
  %v115 = vpack.c.b16 %v100, %v99
  %v116 = vpack.c.b16 %v102, %v101
  %v117 = vpack.c.b16 %v104, %v103
  %v118 = vpack.c.b16 %v106, %v105
  %v119 = vpack.c.b16 %v108, %v107
  %v120 = vpack.c.b16 %v110, %v109
  %v121 = vpack.c.b16 %v112, %v111
  %v122 = vpack.c.b16 %v114, %v113
  %v147 = vunpack.c.l.b16 %v67
  %v148 = vunpack.c.l.b16 %v68
  %v149 = vunpack.c.l.b16 %v69
  %v150 = vunpack.c.l.b16 %v70
  %v151 = vunpack.c.l.b16 %v71
  %v152 = vunpack.c.l.b16 %v72
  %v153 = vunpack.c.l.b16 %v73
  %v154 = vunpack.c.l.b16 %v74
  %v155 = vunpack.c.l.b16 %v75
  %v156 = vunpack.c.l.b16 %v76
  %v157 = vunpack.c.l.b16 %v77
  %v158 = vunpack.c.l.b16 %v78
  %v159 = vunpack.c.l.b16 %v79
  %v160 = vunpack.c.l.b16 %v80
  %v161 = vunpack.c.l.b16 %v81
  %v162 = vunpack.c.l.b16 %v82
  %v163 = vpack.c.b16 %v148, %v147
  %v164 = vpack.c.b16 %v150, %v149
  %v165 = vpack.c.b16 %v152, %v151
  %v166 = vpack.c.b16 %v154, %v153
  %v167 = vpack.c.b16 %v156, %v155
  %v168 = vpack.c.b16 %v158, %v157
  %v169 = vpack.c.b16 %v160, %v159
  %v170 = vpack.c.b16 %v162, %v161
  %179 = vmatprep.subr.bf16.mxu0 0
  %180 = vmatpush1.bf16.msra.mxu0 %v170
  %181 = vmatprep.subr.bf16.mxu0 0
  %182 = vmatpush1.bf16.msra.mxu0 %v169
  %183 = vmatprep.subr.bf16.mxu0 0
  %184 = vmatpush1.bf16.msra.mxu0 %v168
  %185 = vmatprep.subr.bf16.mxu0 0
  %186 = vmatpush1.bf16.msra.mxu0 %v167
  %187 = vmatprep.subr.bf16.mxu0 0
  %188 = vmatpush1.bf16.msra.mxu0 %v166
  %189 = vmatprep.subr.bf16.mxu0 0
  %190 = vmatpush1.bf16.msra.mxu0 %v165
  %191 = vmatprep.subr.bf16.mxu0 0
  %192 = vmatpush1.bf16.msra.mxu0 %v164
  %193 = vmatprep.subr.bf16.mxu0 0
  %194 = vmatpush1.bf16.msra.mxu0 %v163
  %195 = vmatprep.subr.bf16.mxu0 0
  %196 = vmatpush2.bf16.msra.mxu0 0
  %197 = vmatprep.subr.bf16.mxu0 0
  %198 = vmatpush2.bf16.msra.mxu0 0
  %199 = vmatprep.subr.bf16.mxu0 0
  %200 = vmatpush2.bf16.msra.mxu0 0
  %201 = vmatprep.subr.bf16.mxu0 0
  %202 = vmatpush2.bf16.msra.mxu0 0
  %203 = vmatprep.subr.bf16.mxu0 0
  %204 = vmatpush2.bf16.msra.mxu0 0
  %205 = vmatprep.subr.bf16.mxu0 0
  %206 = vmatpush2.bf16.msra.mxu0 0
  %207 = vmatprep.subr.bf16.mxu0 0
  %208 = vmatpush2.bf16.msra.mxu0 0
  %209 = vmatprep.subr.bf16.mxu0 0
  %210 = vmatpush2.bf16.msra.mxu0 0
  %211 = vmatprep.mubr.bf16.mxu0 0
  %212 = vmatmul.mubr.bf16.gmra.mxu0 %v115
  %v213 = vpop.f32.mrf.mxu0
  %v214 = vadd.f32 0.0, %v213
  %v215 = vpop.f32.mrf.mxu0
  %v216 = vpop.f32.mrf.mxu0
  %v217 = vadd.f32 0.0, %v216
  %v218 = vpop.f32.mrf.mxu0
  %219 = vmatprep.mubr.bf16.mxu0 0
  %220 = vmatmul.mubr.bf16.gmra.mxu0 %v116
  %v221 = vpop.f32.mrf.mxu0
  %v222 = vadd.f32 0.0, %v221
  %v223 = vpop.f32.mrf.mxu0
  %v224 = vpop.f32.mrf.mxu0
  %v225 = vadd.f32 0.0, %v224
  %v226 = vpop.f32.mrf.mxu0
  %227 = vmatprep.mubr.bf16.mxu0 0
  %228 = vmatmul.mubr.bf16.gmra.mxu0 %v117
  %v229 = vpop.f32.mrf.mxu0
  %v230 = vadd.f32 0.0, %v229
  %v231 = vpop.f32.mrf.mxu0
  %v232 = vpop.f32.mrf.mxu0
  %v233 = vadd.f32 0.0, %v232
  %v234 = vpop.f32.mrf.mxu0
  %235 = vmatprep.mubr.bf16.mxu0 0
  %236 = vmatmul.mubr.bf16.gmra.mxu0 %v118
  %v237 = vpop.f32.mrf.mxu0
  %v238 = vadd.f32 0.0, %v237
  %v239 = vpop.f32.mrf.mxu0
  %v240 = vpop.f32.mrf.mxu0
  %v241 = vadd.f32 0.0, %v240
  %v242 = vpop.f32.mrf.mxu0
  %243 = vmatprep.mubr.bf16.mxu0 0
  %244 = vmatmul.mubr.bf16.gmra.mxu0 %v119
  %v245 = vpop.f32.mrf.mxu0
  %v246 = vadd.f32 0.0, %v245
  %v247 = vpop.f32.mrf.mxu0
  %v248 = vpop.f32.mrf.mxu0
  %v249 = vadd.f32 0.0, %v248
  %v250 = vpop.f32.mrf.mxu0
  %251 = vmatprep.mubr.bf16.mxu0 0
  %252 = vmatmul.mubr.bf16.gmra.mxu0 %v120
  %v253 = vpop.f32.mrf.mxu0
  %v254 = vadd.f32 0.0, %v253
  %v255 = vpop.f32.mrf.mxu0
  %v256 = vpop.f32.mrf.mxu0
  %v257 = vadd.f32 0.0, %v256
  %v258 = vpop.f32.mrf.mxu0
  %259 = vmatprep.mubr.bf16.mxu0 0
  %260 = vmatmul.mubr.bf16.gmra.mxu0 %v121
  %v261 = vpop.f32.mrf.mxu0
  %v262 = vadd.f32 0.0, %v261
  %v263 = vpop.f32.mrf.mxu0
  %v264 = vpop.f32.mrf.mxu0
  %v265 = vadd.f32 0.0, %v264
  %v266 = vpop.f32.mrf.mxu0
  %267 = vmatprep.mubr.bf16.mxu0 0
  %268 = vmatmul.mubr.bf16.gmra.mxu0 %v122
  %v269 = vpop.f32.mrf.mxu0
  %v270 = vadd.f32 0.0, %v269
  %v271 = vpop.f32.mrf.mxu0
  %v272 = vpop.f32.mrf.mxu0
  %v273 = vadd.f32 0.0, %v272
  %v274 = vpop.f32.mrf.mxu0
  %275 = vdwg.mxu0
  %v276 = vadd.f32 %v35, %v214
  %v277 = vadd.f32 %v36, %v217
  %v278 = vadd.f32 %v37, %v222
  %v279 = vadd.f32 %v38, %v225
  %v280 = vadd.f32 %v39, %v230
  %v281 = vadd.f32 %v40, %v233
  %v282 = vadd.f32 %v41, %v238
  %v283 = vadd.f32 %v42, %v241
  %v284 = vadd.f32 %v43, %v246
  %v285 = vadd.f32 %v44, %v249
  %v286 = vadd.f32 %v45, %v254
  %v287 = vadd.f32 %v46, %v257
  %v288 = vadd.f32 %v47, %v262
  %v289 = vadd.f32 %v48, %v265
  %v290 = vadd.f32 %v49, %v270
  %v291 = vadd.f32 %v50, %v273
  %292 = vst [vmem:[#allocation2] sm:$0xff] %v276
  %293 = vst [vmem:[#allocation2 + $0x8] sm:$0xff] %v277
  %294 = vst [vmem:[#allocation2 + $0x10] sm:$0xff] %v278
  %295 = vst [vmem:[#allocation2 + $0x18] sm:$0xff] %v279
  %296 = vst [vmem:[#allocation2 + $0x20] sm:$0xff] %v280
  %297 = vst [vmem:[#allocation2 + $0x28] sm:$0xff] %v281
  %298 = vst [vmem:[#allocation2 + $0x30] sm:$0xff] %v282
  %299 = vst [vmem:[#allocation2 + $0x38] sm:$0xff] %v283
  %300 = vst [vmem:[#allocation2 + $0x40] sm:$0xff] %v284
  %301 = vst [vmem:[#allocation2 + $0x48] sm:$0xff] %v285
  %302 = vst [vmem:[#allocation2 + $0x50] sm:$0xff] %v286
  %303 = vst [vmem:[#allocation2 + $0x58] sm:$0xff] %v287
  %304 = vst [vmem:[#allocation2 + $0x60] sm:$0xff] %v288
  %305 = vst [vmem:[#allocation2 + $0x68] sm:$0xff] %v289
  %306 = vst [vmem:[#allocation2 + $0x70] sm:$0xff] %v290
  %307 = vst [vmem:[#allocation2 + $0x78] sm:$0xff] %v291
  // Predicated region
  $region18: #{svae_conv_forward.31} parent=0 // pred_check
    %p308 = pneg %p15
  $region19: #{svae_conv_forward.31} parent=0 // pred_check_branch
    %310 = sbr.rel (%p308) target = $region21
  $region20: #{svae_conv_forward.31} parent=0 // pred_region
    %v311 = vld [vmem:[#allocation2] sm:$0xff]
    %v312 = vld [vmem:[#allocation2 + $0x8] sm:$0xff]
    %v313 = vld [vmem:[#allocation2 + $0x10] sm:$0xff]
    %v314 = vld [vmem:[#allocation2 + $0x18] sm:$0xff]
    %v315 = vld [vmem:[#allocation2 + $0x20] sm:$0xff]
    %v316 = vld [vmem:[#allocation2 + $0x28] sm:$0xff]
    %v317 = vld [vmem:[#allocation2 + $0x30] sm:$0xff]
    %v318 = vld [vmem:[#allocation2 + $0x38] sm:$0xff]
    %v319 = vld [vmem:[#allocation2 + $0x40] sm:$0xff]
    %v320 = vld [vmem:[#allocation2 + $0x48] sm:$0xff]
    %v321 = vld [vmem:[#allocation2 + $0x50] sm:$0xff]
    %v322 = vld [vmem:[#allocation2 + $0x58] sm:$0xff]
    %v323 = vld [vmem:[#allocation2 + $0x60] sm:$0xff]
    %v324 = vld [vmem:[#allocation2 + $0x68] sm:$0xff]
    %v325 = vld [vmem:[#allocation2 + $0x70] sm:$0xff]
    %v326 = vld [vmem:[#allocation2 + $0x78] sm:$0xff]
    %v327 = vld [vmem:[%s2] sm:$0x1]
    %v329 = vlaneseq
    %v330 = vshrl.u32 %v329, 7
    %v331 = vsub.s32 0, %v330
    %v332 = vrot.slane %v327, %v331
    %v334 = vadd.f32 %v311, %v332
    %v335 = vadd.f32 %v312, %v332
    %v336 = vadd.f32 %v313, %v332
    %v337 = vadd.f32 %v314, %v332
    %v338 = vadd.f32 %v315, %v332
    %v339 = vadd.f32 %v316, %v332
    %v340 = vadd.f32 %v317, %v332
    %v341 = vadd.f32 %v318, %v332
    %v342 = vadd.f32 %v319, %v332
    %v343 = vadd.f32 %v320, %v332
    %v344 = vadd.f32 %v321, %v332
    %v345 = vadd.f32 %v322, %v332
    %v346 = vadd.f32 %v323, %v332
    %v347 = vadd.f32 %v324, %v332
    %v348 = vadd.f32 %v325, %v332
    %v349 = vadd.f32 %v326, %v332
    %v350 = vmax.f32 %v334, 0.0
    %v351 = vmax.f32 %v335, 0.0
    %v352 = vmax.f32 %v336, 0.0
    %v353 = vmax.f32 %v337, 0.0
    %v354 = vmax.f32 %v338, 0.0
    %v355 = vmax.f32 %v339, 0.0
    %v356 = vmax.f32 %v340, 0.0
    %v357 = vmax.f32 %v341, 0.0
    %v358 = vmax.f32 %v342, 0.0
    %v359 = vmax.f32 %v343, 0.0
    %v360 = vmax.f32 %v344, 0.0
    %v361 = vmax.f32 %v345, 0.0
    %v362 = vmax.f32 %v346, 0.0
    %v363 = vmax.f32 %v347, 0.0
    %v364 = vmax.f32 %v348, 0.0
    %v365 = vmax.f32 %v349, 0.0
    %366 = vst [vmem:[%s3] sm:$0xff] %v350
    %367 = vst [vmem:[%s3 + $0x8] sm:$0xff] %v351
    %368 = vst [vmem:[%s3 + $0x10] sm:$0xff] %v352
    %369 = vst [vmem:[%s3 + $0x18] sm:$0xff] %v353
    %370 = vst [vmem:[%s3 + $0x20] sm:$0xff] %v354
    %371 = vst [vmem:[%s3 + $0x28] sm:$0xff] %v355
    %372 = vst [vmem:[%s3 + $0x30] sm:$0xff] %v356
    %373 = vst [vmem:[%s3 + $0x38] sm:$0xff] %v357
    %374 = vst [vmem:[%s3 + $0x40] sm:$0xff] %v358
    %375 = vst [vmem:[%s3 + $0x48] sm:$0xff] %v359
    %376 = vst [vmem:[%s3 + $0x50] sm:$0xff] %v360
    %377 = vst [vmem:[%s3 + $0x58] sm:$0xff] %v361
    %378 = vst [vmem:[%s3 + $0x60] sm:$0xff] %v362
    %379 = vst [vmem:[%s3 + $0x68] sm:$0xff] %v363
    %380 = vst [vmem:[%s3 + $0x70] sm:$0xff] %v364
    %381 = vst [vmem:[%s3 + $0x78] sm:$0xff] %v365
  $region21: #{svae_conv_forward.31} parent=0 // pred_fallthru
    _
  // Predicated region
  $region22: #{svae_conv_forward.31} parent=0 // pred_check
    _
  $region23: #{svae_conv_forward.31} parent=0 // pred_check_branch
    %383 = sbr.rel (0) target = $region25
  $region24: #{svae_conv_forward.31} parent=0 // pred_region
    _
  $region25: #{svae_conv_forward.31} parent=0 // pred_fallthru
    _
  // Predicated region
  $region26: #{svae_conv_forward.31} parent=0 // pred_check
    _
  $region27: #{svae_conv_forward.31} parent=0 // pred_check_branch
    %385 = sbr.rel (0) target = $region29
  $region28: #{svae_conv_forward.31} parent=0 // pred_region
    _
  $region29: #{svae_conv_forward.31} parent=0 // pred_fallthru
    _

// kernel: svae_conv_forward.32
$region0: #{svae_conv_forward.32}
  #allocation0 [shape = 'u32[]', space=smem, size = 0x4, offset = 0x4, fixed_abs, tag = 'smem constant byte address 0x4 - core index']
  #allocation1 [shape = 'u32[144,128]{1,0:T(1,128)}', space=vmem, size = 0x12000, scoped, tag = 'internal scratch']
  #allocation2 [shape = 'f32[112,128]{1,0:T(8,128)}', space=vmem, size = 0xe000, scoped, tag = 'scratch operand']
  %s0 = inlined_call_operand.vmem [shape: bf16[112,128], index: 0, kind: input, shape index: {}]
  %s1 = inlined_call_operand.vmem [shape: bf16[128,128], index: 1, kind: input, shape index: {}]
  %s2 = inlined_call_operand.vmem [shape: f32[1,128], index: 2, kind: input, shape index: {}]
  %s3 = inlined_call_operand.vmem [shape: f32[112,128], index: 3, kind: output, shape index: {}]
  %s4 = sld [smem:[#allocation0]]
  $region30: #{svae_conv_forward.32} parent=0
    _
  %s6 = ssub.s32 1, %s4
  %s7 = scalar_select 0, %s6, %s4
  // Predicated region
  $region2: #{svae_conv_forward.32} parent=0 // pred_check
    _
  $region3: #{svae_conv_forward.32} parent=0 // pred_check_branch
    %9 = sbr.rel (0) target = $region5
  $region4: #{svae_conv_forward.32} parent=0 // pred_region
    _
  $region5: #{svae_conv_forward.32} parent=0 // pred_fallthru
    _
  // Predicated region
  $region6: #{svae_conv_forward.32} parent=0 // pred_check
    _
  $region7: #{svae_conv_forward.32} parent=0 // pred_check_branch
    %11 = sbr.rel (0) target = $region9
  $region8: #{svae_conv_forward.32} parent=0 // pred_region
    _
  $region9: #{svae_conv_forward.32} parent=0 // pred_fallthru
    _
  // Predicated region
  $region10: #{svae_conv_forward.32} parent=0 // pred_check
    _
  $region11: #{svae_conv_forward.32} parent=0 // pred_check_branch
    %13 = sbr.rel (0) target = $region13
  $region12: #{svae_conv_forward.32} parent=0 // pred_region
    _
  $region13: #{svae_conv_forward.32} parent=0 // pred_fallthru
    _
  %p15 = scmp.eq.s32.totalorder 0, 0
  // Predicated region
  $region14: #{svae_conv_forward.32} parent=0 // pred_check
    %p16 = pneg %p15
  $region15: #{svae_conv_forward.32} parent=0 // pred_check_branch
    %18 = sbr.rel (%p16) target = $region17
  $region16: #{svae_conv_forward.32} parent=0 // pred_region
    %19 = vst [vmem:[#allocation2] sm:$0xff] 0.0
    %20 = vst [vmem:[#allocation2 + $0x8] sm:$0xff] 0.0
    %21 = vst [vmem:[#allocation2 + $0x10] sm:$0xff] 0.0
    %22 = vst [vmem:[#allocation2 + $0x18] sm:$0xff] 0.0
    %23 = vst [vmem:[#allocation2 + $0x20] sm:$0xff] 0.0
    %24 = vst [vmem:[#allocation2 + $0x28] sm:$0xff] 0.0
    %25 = vst [vmem:[#allocation2 + $0x30] sm:$0xff] 0.0
    %26 = vst [vmem:[#allocation2 + $0x38] sm:$0xff] 0.0
    %27 = vst [vmem:[#allocation2 + $0x40] sm:$0xff] 0.0
    %28 = vst [vmem:[#allocation2 + $0x48] sm:$0xff] 0.0
    %29 = vst [vmem:[#allocation2 + $0x50] sm:$0xff] 0.0
    %30 = vst [vmem:[#allocation2 + $0x58] sm:$0xff] 0.0
    %31 = vst [vmem:[#allocation2 + $0x60] sm:$0xff] 0.0
    %32 = vst [vmem:[#allocation2 + $0x68] sm:$0xff] 0.0
  $region17: #{svae_conv_forward.32} parent=0 // pred_fallthru
    _
  %v33 = vld [vmem:[#allocation2] sm:$0xff]
  %v34 = vld [vmem:[#allocation2 + $0x8] sm:$0xff]
  %v35 = vld [vmem:[#allocation2 + $0x10] sm:$0xff]
  %v36 = vld [vmem:[#allocation2 + $0x18] sm:$0xff]
  %v37 = vld [vmem:[#allocation2 + $0x20] sm:$0xff]
  %v38 = vld [vmem:[#allocation2 + $0x28] sm:$0xff]
  %v39 = vld [vmem:[#allocation2 + $0x30] sm:$0xff]
  %v40 = vld [vmem:[#allocation2 + $0x38] sm:$0xff]
  %v41 = vld [vmem:[#allocation2 + $0x40] sm:$0xff]
  %v42 = vld [vmem:[#allocation2 + $0x48] sm:$0xff]
  %v43 = vld [vmem:[#allocation2 + $0x50] sm:$0xff]
  %v44 = vld [vmem:[#allocation2 + $0x58] sm:$0xff]
  %v45 = vld [vmem:[#allocation2 + $0x60] sm:$0xff]
  %v46 = vld [vmem:[#allocation2 + $0x68] sm:$0xff]
  %v47 = vld [vmem:[%s0] sm:$0xf]
  %v48 = vld [vmem:[%s0 + $0x4] sm:$0xf]
  %v49 = vld [vmem:[%s0 + $0x8] sm:$0xf]
  %v50 = vld [vmem:[%s0 + $0xc] sm:$0xf]
  %v51 = vld [vmem:[%s0 + $0x10] sm:$0xf]
  %v52 = vld [vmem:[%s0 + $0x14] sm:$0xf]
  %v53 = vld [vmem:[%s0 + $0x18] sm:$0xf]
  %v54 = vld [vmem:[%s0 + $0x1c] sm:$0xf]
  %v55 = vld [vmem:[%s0 + $0x20] sm:$0xf]
  %v56 = vld [vmem:[%s0 + $0x24] sm:$0xf]
  %v57 = vld [vmem:[%s0 + $0x28] sm:$0xf]
  %v58 = vld [vmem:[%s0 + $0x2c] sm:$0xf]
  %v59 = vld [vmem:[%s0 + $0x30] sm:$0xf]
  %v60 = vld [vmem:[%s0 + $0x34] sm:$0xf]
  %v61 = vld [vmem:[%s1] sm:$0xf]
  %v62 = vld [vmem:[%s1 + $0x4] sm:$0xf]
  %v63 = vld [vmem:[%s1 + $0x8] sm:$0xf]
  %v64 = vld [vmem:[%s1 + $0xc] sm:$0xf]
  %v65 = vld [vmem:[%s1 + $0x10] sm:$0xf]
  %v66 = vld [vmem:[%s1 + $0x14] sm:$0xf]
  %v67 = vld [vmem:[%s1 + $0x18] sm:$0xf]
  %v68 = vld [vmem:[%s1 + $0x1c] sm:$0xf]
  %v69 = vld [vmem:[%s1 + $0x20] sm:$0xf]
  %v70 = vld [vmem:[%s1 + $0x24] sm:$0xf]
  %v71 = vld [vmem:[%s1 + $0x28] sm:$0xf]
  %v72 = vld [vmem:[%s1 + $0x2c] sm:$0xf]
  %v73 = vld [vmem:[%s1 + $0x30] sm:$0xf]
  %v74 = vld [vmem:[%s1 + $0x34] sm:$0xf]
  %v75 = vld [vmem:[%s1 + $0x38] sm:$0xf]
  %v76 = vld [vmem:[%s1 + $0x3c] sm:$0xf]
  %v91 = vunpack.c.l.b16 %v47
  %v92 = vunpack.c.l.b16 %v48
  %v93 = vunpack.c.l.b16 %v49
  %v94 = vunpack.c.l.b16 %v50
  %v95 = vunpack.c.l.b16 %v51
  %v96 = vunpack.c.l.b16 %v52
  %v97 = vunpack.c.l.b16 %v53
  %v98 = vunpack.c.l.b16 %v54
  %v99 = vunpack.c.l.b16 %v55
  %v100 = vunpack.c.l.b16 %v56
  %v101 = vunpack.c.l.b16 %v57
  %v102 = vunpack.c.l.b16 %v58
  %v103 = vunpack.c.l.b16 %v59
  %v104 = vunpack.c.l.b16 %v60
  %v105 = vpack.c.b16 %v92, %v91
  %v106 = vpack.c.b16 %v94, %v93
  %v107 = vpack.c.b16 %v96, %v95
  %v108 = vpack.c.b16 %v98, %v97
  %v109 = vpack.c.b16 %v100, %v99
  %v110 = vpack.c.b16 %v102, %v101
  %v111 = vpack.c.b16 %v104, %v103
  %v135 = vunpack.c.l.b16 %v61
  %v136 = vunpack.c.l.b16 %v62
  %v137 = vunpack.c.l.b16 %v63
  %v138 = vunpack.c.l.b16 %v64
  %v139 = vunpack.c.l.b16 %v65
  %v140 = vunpack.c.l.b16 %v66
  %v141 = vunpack.c.l.b16 %v67
  %v142 = vunpack.c.l.b16 %v68
  %v143 = vunpack.c.l.b16 %v69
  %v144 = vunpack.c.l.b16 %v70
  %v145 = vunpack.c.l.b16 %v71
  %v146 = vunpack.c.l.b16 %v72
  %v147 = vunpack.c.l.b16 %v73
  %v148 = vunpack.c.l.b16 %v74
  %v149 = vunpack.c.l.b16 %v75
  %v150 = vunpack.c.l.b16 %v76
  %v151 = vpack.c.b16 %v136, %v135
  %v152 = vpack.c.b16 %v138, %v137
  %v153 = vpack.c.b16 %v140, %v139
  %v154 = vpack.c.b16 %v142, %v141
  %v155 = vpack.c.b16 %v144, %v143
  %v156 = vpack.c.b16 %v146, %v145
  %v157 = vpack.c.b16 %v148, %v147
  %v158 = vpack.c.b16 %v150, %v149
  %167 = vmatprep.subr.bf16.mxu0 0
  %168 = vmatpush1.bf16.msra.mxu0 %v158
  %169 = vmatprep.subr.bf16.mxu0 0
  %170 = vmatpush1.bf16.msra.mxu0 %v157
  %171 = vmatprep.subr.bf16.mxu0 0
  %172 = vmatpush1.bf16.msra.mxu0 %v156
  %173 = vmatprep.subr.bf16.mxu0 0
  %174 = vmatpush1.bf16.msra.mxu0 %v155
  %175 = vmatprep.subr.bf16.mxu0 0
  %176 = vmatpush1.bf16.msra.mxu0 %v154
  %177 = vmatprep.subr.bf16.mxu0 0
  %178 = vmatpush1.bf16.msra.mxu0 %v153
  %179 = vmatprep.subr.bf16.mxu0 0
  %180 = vmatpush1.bf16.msra.mxu0 %v152
  %181 = vmatprep.subr.bf16.mxu0 0
  %182 = vmatpush1.bf16.msra.mxu0 %v151
  %183 = vmatprep.subr.bf16.mxu0 0
  %184 = vmatpush2.bf16.msra.mxu0 0
  %185 = vmatprep.subr.bf16.mxu0 0
  %186 = vmatpush2.bf16.msra.mxu0 0
  %187 = vmatprep.subr.bf16.mxu0 0
  %188 = vmatpush2.bf16.msra.mxu0 0
  %189 = vmatprep.subr.bf16.mxu0 0
  %190 = vmatpush2.bf16.msra.mxu0 0
  %191 = vmatprep.subr.bf16.mxu0 0
  %192 = vmatpush2.bf16.msra.mxu0 0
  %193 = vmatprep.subr.bf16.mxu0 0
  %194 = vmatpush2.bf16.msra.mxu0 0
  %195 = vmatprep.subr.bf16.mxu0 0
  %196 = vmatpush2.bf16.msra.mxu0 0
  %197 = vmatprep.subr.bf16.mxu0 0
  %198 = vmatpush2.bf16.msra.mxu0 0
  %199 = vmatprep.mubr.bf16.mxu0 0
  %200 = vmatmul.mubr.bf16.gmra.mxu0 %v105
  %v201 = vpop.f32.mrf.mxu0
  %v202 = vadd.f32 0.0, %v201
  %v203 = vpop.f32.mrf.mxu0
  %v204 = vpop.f32.mrf.mxu0
  %v205 = vadd.f32 0.0, %v204
  %v206 = vpop.f32.mrf.mxu0
  %207 = vmatprep.mubr.bf16.mxu0 0
  %208 = vmatmul.mubr.bf16.gmra.mxu0 %v106
  %v209 = vpop.f32.mrf.mxu0
  %v210 = vadd.f32 0.0, %v209
  %v211 = vpop.f32.mrf.mxu0
  %v212 = vpop.f32.mrf.mxu0
  %v213 = vadd.f32 0.0, %v212
  %v214 = vpop.f32.mrf.mxu0
  %215 = vmatprep.mubr.bf16.mxu0 0
  %216 = vmatmul.mubr.bf16.gmra.mxu0 %v107
  %v217 = vpop.f32.mrf.mxu0
  %v218 = vadd.f32 0.0, %v217
  %v219 = vpop.f32.mrf.mxu0
  %v220 = vpop.f32.mrf.mxu0
  %v221 = vadd.f32 0.0, %v220
  %v222 = vpop.f32.mrf.mxu0
  %223 = vmatprep.mubr.bf16.mxu0 0
  %224 = vmatmul.mubr.bf16.gmra.mxu0 %v108
  %v225 = vpop.f32.mrf.mxu0
  %v226 = vadd.f32 0.0, %v225
  %v227 = vpop.f32.mrf.mxu0
  %v228 = vpop.f32.mrf.mxu0
  %v229 = vadd.f32 0.0, %v228
  %v230 = vpop.f32.mrf.mxu0
  %231 = vmatprep.mubr.bf16.mxu0 0
  %232 = vmatmul.mubr.bf16.gmra.mxu0 %v109
  %v233 = vpop.f32.mrf.mxu0
  %v234 = vadd.f32 0.0, %v233
  %v235 = vpop.f32.mrf.mxu0
  %v236 = vpop.f32.mrf.mxu0
  %v237 = vadd.f32 0.0, %v236
  %v238 = vpop.f32.mrf.mxu0
  %239 = vmatprep.mubr.bf16.mxu0 0
  %240 = vmatmul.mubr.bf16.gmra.mxu0 %v110
  %v241 = vpop.f32.mrf.mxu0
  %v242 = vadd.f32 0.0, %v241
  %v243 = vpop.f32.mrf.mxu0
  %v244 = vpop.f32.mrf.mxu0
  %v245 = vadd.f32 0.0, %v244
  %v246 = vpop.f32.mrf.mxu0
  %247 = vmatprep.mubr.bf16.mxu0 0
  %248 = vmatmul.mubr.bf16.gmra.mxu0 %v111
  %v249 = vpop.f32.mrf.mxu0
  %v250 = vadd.f32 0.0, %v249
  %v251 = vpop.f32.mrf.mxu0
  %v252 = vpop.f32.mrf.mxu0
  %v253 = vadd.f32 0.0, %v252
  %v254 = vpop.f32.mrf.mxu0
  %255 = vdwg.mxu0
  %v256 = vadd.f32 %v33, %v202
  %v257 = vadd.f32 %v34, %v205
  %v258 = vadd.f32 %v35, %v210
  %v259 = vadd.f32 %v36, %v213
  %v260 = vadd.f32 %v37, %v218
  %v261 = vadd.f32 %v38, %v221
  %v262 = vadd.f32 %v39, %v226
  %v263 = vadd.f32 %v40, %v229
  %v264 = vadd.f32 %v41, %v234
  %v265 = vadd.f32 %v42, %v237
  %v266 = vadd.f32 %v43, %v242
  %v267 = vadd.f32 %v44, %v245
  %v268 = vadd.f32 %v45, %v250
  %v269 = vadd.f32 %v46, %v253
  %270 = vst [vmem:[#allocation2] sm:$0xff] %v256
  %271 = vst [vmem:[#allocation2 + $0x8] sm:$0xff] %v257
  %272 = vst [vmem:[#allocation2 + $0x10] sm:$0xff] %v258
  %273 = vst [vmem:[#allocation2 + $0x18] sm:$0xff] %v259
  %274 = vst [vmem:[#allocation2 + $0x20] sm:$0xff] %v260
  %275 = vst [vmem:[#allocation2 + $0x28] sm:$0xff] %v261
  %276 = vst [vmem:[#allocation2 + $0x30] sm:$0xff] %v262
  %277 = vst [vmem:[#allocation2 + $0x38] sm:$0xff] %v263
  %278 = vst [vmem:[#allocation2 + $0x40] sm:$0xff] %v264
  %279 = vst [vmem:[#allocation2 + $0x48] sm:$0xff] %v265
  %280 = vst [vmem:[#allocation2 + $0x50] sm:$0xff] %v266
  %281 = vst [vmem:[#allocation2 + $0x58] sm:$0xff] %v267
  %282 = vst [vmem:[#allocation2 + $0x60] sm:$0xff] %v268
  %283 = vst [vmem:[#allocation2 + $0x68] sm:$0xff] %v269
  // Predicated region
  $region18: #{svae_conv_forward.32} parent=0 // pred_check
    %p284 = pneg %p15
  $region19: #{svae_conv_forward.32} parent=0 // pred_check_branch
    %286 = sbr.rel (%p284) target = $region21
  $region20: #{svae_conv_forward.32} parent=0 // pred_region
    %v287 = vld [vmem:[#allocation2] sm:$0xff]
    %v288 = vld [vmem:[#allocation2 + $0x8] sm:$0xff]
    %v289 = vld [vmem:[#allocation2 + $0x10] sm:$0xff]
    %v290 = vld [vmem:[#allocation2 + $0x18] sm:$0xff]
    %v291 = vld [vmem:[#allocation2 + $0x20] sm:$0xff]
    %v292 = vld [vmem:[#allocation2 + $0x28] sm:$0xff]
    %v293 = vld [vmem:[#allocation2 + $0x30] sm:$0xff]
    %v294 = vld [vmem:[#allocation2 + $0x38] sm:$0xff]
    %v295 = vld [vmem:[#allocation2 + $0x40] sm:$0xff]
    %v296 = vld [vmem:[#allocation2 + $0x48] sm:$0xff]
    %v297 = vld [vmem:[#allocation2 + $0x50] sm:$0xff]
    %v298 = vld [vmem:[#allocation2 + $0x58] sm:$0xff]
    %v299 = vld [vmem:[#allocation2 + $0x60] sm:$0xff]
    %v300 = vld [vmem:[#allocation2 + $0x68] sm:$0xff]
    %v301 = vld [vmem:[%s2] sm:$0x1]
    %v303 = vlaneseq
    %v304 = vshrl.u32 %v303, 7
    %v305 = vsub.s32 0, %v304
    %v306 = vrot.slane %v301, %v305
    %v308 = vadd.f32 %v287, %v306
    %v309 = vadd.f32 %v288, %v306
    %v310 = vadd.f32 %v289, %v306
    %v311 = vadd.f32 %v290, %v306
    %v312 = vadd.f32 %v291, %v306
    %v313 = vadd.f32 %v292, %v306
    %v314 = vadd.f32 %v293, %v306
    %v315 = vadd.f32 %v294, %v306
    %v316 = vadd.f32 %v295, %v306
    %v317 = vadd.f32 %v296, %v306
    %v318 = vadd.f32 %v297, %v306
    %v319 = vadd.f32 %v298, %v306
    %v320 = vadd.f32 %v299, %v306
    %v321 = vadd.f32 %v300, %v306
    %v322 = vmax.f32 %v308, 0.0
    %v323 = vmax.f32 %v309, 0.0
    %v324 = vmax.f32 %v310, 0.0
    %v325 = vmax.f32 %v311, 0.0
    %v326 = vmax.f32 %v312, 0.0
    %v327 = vmax.f32 %v313, 0.0
    %v328 = vmax.f32 %v314, 0.0
    %v329 = vmax.f32 %v315, 0.0
    %v330 = vmax.f32 %v316, 0.0
    %v331 = vmax.f32 %v317, 0.0
    %v332 = vmax.f32 %v318, 0.0
    %v333 = vmax.f32 %v319, 0.0
    %v334 = vmax.f32 %v320, 0.0
    %v335 = vmax.f32 %v321, 0.0
    %336 = vst [vmem:[%s3] sm:$0xff] %v322
    %337 = vst [vmem:[%s3 + $0x8] sm:$0xff] %v323
    %338 = vst [vmem:[%s3 + $0x10] sm:$0xff] %v324
    %339 = vst [vmem:[%s3 + $0x18] sm:$0xff] %v325
    %340 = vst [vmem:[%s3 + $0x20] sm:$0xff] %v326
    %341 = vst [vmem:[%s3 + $0x28] sm:$0xff] %v327
    %342 = vst [vmem:[%s3 + $0x30] sm:$0xff] %v328
    %343 = vst [vmem:[%s3 + $0x38] sm:$0xff] %v329
    %344 = vst [vmem:[%s3 + $0x40] sm:$0xff] %v330
    %345 = vst [vmem:[%s3 + $0x48] sm:$0xff] %v331
    %346 = vst [vmem:[%s3 + $0x50] sm:$0xff] %v332
    %347 = vst [vmem:[%s3 + $0x58] sm:$0xff] %v333
    %348 = vst [vmem:[%s3 + $0x60] sm:$0xff] %v334
    %349 = vst [vmem:[%s3 + $0x68] sm:$0xff] %v335
  $region21: #{svae_conv_forward.32} parent=0 // pred_fallthru
    _
  // Predicated region
  $region22: #{svae_conv_forward.32} parent=0 // pred_check
    _
  $region23: #{svae_conv_forward.32} parent=0 // pred_check_branch
    %351 = sbr.rel (0) target = $region25
  $region24: #{svae_conv_forward.32} parent=0 // pred_region
    _
  $region25: #{svae_conv_forward.32} parent=0 // pred_fallthru
    _
  // Predicated region
  $region26: #{svae_conv_forward.32} parent=0 // pred_check
    _
  $region27: #{svae_conv_forward.32} parent=0 // pred_check_branch
    %353 = sbr.rel (0) target = $region29
  $region28: #{svae_conv_forward.32} parent=0 // pred_region
    _
  $region29: #{svae_conv_forward.32} parent=0 // pred_fallthru
    _

// kernel: svae_conv_forward.34
$region0: #{svae_conv_forward.34}
  #allocation0 [shape = 'u32[]', space=smem, size = 0x4, offset = 0x4, fixed_abs, tag = 'smem constant byte address 0x4 - core index']
  #allocation1 [shape = 'u32[144,128]{1,0:T(1,128)}', space=vmem, size = 0x12000, scoped, tag = 'internal scratch']
  #allocation2 [shape = 'f32[112,128]{1,0:T(8,128)}', space=vmem, size = 0xe000, scoped, tag = 'scratch operand']
  %s0 = inlined_call_operand.vmem [shape: bf16[112,256], index: 0, kind: input, shape index: {}]
  %s1 = inlined_call_operand.vmem [shape: bf16[256,128], index: 1, kind: input, shape index: {}]
  %s2 = inlined_call_operand.vmem [shape: f32[1,128], index: 2, kind: input, shape index: {}]
  %s3 = inlined_call_operand.vmem [shape: f32[112,128], index: 3, kind: output, shape index: {}]
  %s4 = sld [smem:[#allocation0]]
  $region30: #{svae_conv_forward.34} parent=0
    _
  %s6 = ssub.s32 1, %s4
  %s7 = scalar_select 0, %s6, %s4
  // Predicated region
  $region2: #{svae_conv_forward.34} parent=0 // pred_check
    _
  $region3: #{svae_conv_forward.34} parent=0 // pred_check_branch
    %9 = sbr.rel (0) target = $region5
  $region4: #{svae_conv_forward.34} parent=0 // pred_region
    _
  $region5: #{svae_conv_forward.34} parent=0 // pred_fallthru
    _
  // Predicated region
  $region6: #{svae_conv_forward.34} parent=0 // pred_check
    _
  $region7: #{svae_conv_forward.34} parent=0 // pred_check_branch
    %11 = sbr.rel (0) target = $region9
  $region8: #{svae_conv_forward.34} parent=0 // pred_region
    _
  $region9: #{svae_conv_forward.34} parent=0 // pred_fallthru
    _
  // Predicated region
  $region10: #{svae_conv_forward.34} parent=0 // pred_check
    _
  $region11: #{svae_conv_forward.34} parent=0 // pred_check_branch
    %13 = sbr.rel (0) target = $region13
  $region12: #{svae_conv_forward.34} parent=0 // pred_region
    _
  $region13: #{svae_conv_forward.34} parent=0 // pred_fallthru
    _
  %p15 = scmp.eq.s32.totalorder 0, 0
  // Predicated region
  $region14: #{svae_conv_forward.34} parent=0 // pred_check
    %p16 = pneg %p15
  $region15: #{svae_conv_forward.34} parent=0 // pred_check_branch
    %18 = sbr.rel (%p16) target = $region17
  $region16: #{svae_conv_forward.34} parent=0 // pred_region
    %19 = vst [vmem:[#allocation2] sm:$0xff] 0.0
    %20 = vst [vmem:[#allocation2 + $0x8] sm:$0xff] 0.0
    %21 = vst [vmem:[#allocation2 + $0x10] sm:$0xff] 0.0
    %22 = vst [vmem:[#allocation2 + $0x18] sm:$0xff] 0.0
    %23 = vst [vmem:[#allocation2 + $0x20] sm:$0xff] 0.0
    %24 = vst [vmem:[#allocation2 + $0x28] sm:$0xff] 0.0
    %25 = vst [vmem:[#allocation2 + $0x30] sm:$0xff] 0.0
    %26 = vst [vmem:[#allocation2 + $0x38] sm:$0xff] 0.0
    %27 = vst [vmem:[#allocation2 + $0x40] sm:$0xff] 0.0
    %28 = vst [vmem:[#allocation2 + $0x48] sm:$0xff] 0.0
    %29 = vst [vmem:[#allocation2 + $0x50] sm:$0xff] 0.0
    %30 = vst [vmem:[#allocation2 + $0x58] sm:$0xff] 0.0
    %31 = vst [vmem:[#allocation2 + $0x60] sm:$0xff] 0.0
    %32 = vst [vmem:[#allocation2 + $0x68] sm:$0xff] 0.0
  $region17: #{svae_conv_forward.34} parent=0 // pred_fallthru
    _
  %v33 = vld [vmem:[#allocation2] sm:$0xff]
  %v34 = vld [vmem:[#allocation2 + $0x8] sm:$0xff]
  %v35 = vld [vmem:[#allocation2 + $0x10] sm:$0xff]
  %v36 = vld [vmem:[#allocation2 + $0x18] sm:$0xff]
  %v37 = vld [vmem:[#allocation2 + $0x20] sm:$0xff]
  %v38 = vld [vmem:[#allocation2 + $0x28] sm:$0xff]
  %v39 = vld [vmem:[#allocation2 + $0x30] sm:$0xff]
  %v40 = vld [vmem:[#allocation2 + $0x38] sm:$0xff]
  %v41 = vld [vmem:[#allocation2 + $0x40] sm:$0xff]
  %v42 = vld [vmem:[#allocation2 + $0x48] sm:$0xff]
  %v43 = vld [vmem:[#allocation2 + $0x50] sm:$0xff]
  %v44 = vld [vmem:[#allocation2 + $0x58] sm:$0xff]
  %v45 = vld [vmem:[#allocation2 + $0x60] sm:$0xff]
  %v46 = vld [vmem:[#allocation2 + $0x68] sm:$0xff]
  %v47 = vld [vmem:[%s0] sm:$0xff]
  %v48 = vld [vmem:[%s0 + $0x8] sm:$0xff]
  %v49 = vld [vmem:[%s0 + $0x10] sm:$0xff]
  %v50 = vld [vmem:[%s0 + $0x18] sm:$0xff]
  %v51 = vld [vmem:[%s0 + $0x20] sm:$0xff]
  %v52 = vld [vmem:[%s0 + $0x28] sm:$0xff]
  %v53 = vld [vmem:[%s0 + $0x30] sm:$0xff]
  %v54 = vld [vmem:[%s0 + $0x38] sm:$0xff]
  %v55 = vld [vmem:[%s0 + $0x40] sm:$0xff]
  %v56 = vld [vmem:[%s0 + $0x48] sm:$0xff]
  %v57 = vld [vmem:[%s0 + $0x50] sm:$0xff]
  %v58 = vld [vmem:[%s0 + $0x58] sm:$0xff]
  %v59 = vld [vmem:[%s0 + $0x60] sm:$0xff]
  %v60 = vld [vmem:[%s0 + $0x68] sm:$0xff]
  %v61 = vld [vmem:[%s1] sm:$0xf]
  %v62 = vld [vmem:[%s1 + $0x4] sm:$0xf]
  %v63 = vld [vmem:[%s1 + $0x8] sm:$0xf]
  %v64 = vld [vmem:[%s1 + $0xc] sm:$0xf]
  %v65 = vld [vmem:[%s1 + $0x10] sm:$0xf]
  %v66 = vld [vmem:[%s1 + $0x14] sm:$0xf]
  %v67 = vld [vmem:[%s1 + $0x18] sm:$0xf]
  %v68 = vld [vmem:[%s1 + $0x1c] sm:$0xf]
  %v69 = vld [vmem:[%s1 + $0x20] sm:$0xf]
  %v70 = vld [vmem:[%s1 + $0x24] sm:$0xf]
  %v71 = vld [vmem:[%s1 + $0x28] sm:$0xf]
  %v72 = vld [vmem:[%s1 + $0x2c] sm:$0xf]
  %v73 = vld [vmem:[%s1 + $0x30] sm:$0xf]
  %v74 = vld [vmem:[%s1 + $0x34] sm:$0xf]
  %v75 = vld [vmem:[%s1 + $0x38] sm:$0xf]
  %v76 = vld [vmem:[%s1 + $0x3c] sm:$0xf]
  %v77 = vld [vmem:[%s1 + $0x40] sm:$0xf]
  %v78 = vld [vmem:[%s1 + $0x44] sm:$0xf]
  %v79 = vld [vmem:[%s1 + $0x48] sm:$0xf]
  %v80 = vld [vmem:[%s1 + $0x4c] sm:$0xf]
  %v81 = vld [vmem:[%s1 + $0x50] sm:$0xf]
  %v82 = vld [vmem:[%s1 + $0x54] sm:$0xf]
  %v83 = vld [vmem:[%s1 + $0x58] sm:$0xf]
  %v84 = vld [vmem:[%s1 + $0x5c] sm:$0xf]
  %v85 = vld [vmem:[%s1 + $0x60] sm:$0xf]
  %v86 = vld [vmem:[%s1 + $0x64] sm:$0xf]
  %v87 = vld [vmem:[%s1 + $0x68] sm:$0xf]
  %v88 = vld [vmem:[%s1 + $0x6c] sm:$0xf]
  %v89 = vld [vmem:[%s1 + $0x70] sm:$0xf]
  %v90 = vld [vmem:[%s1 + $0x74] sm:$0xf]
  %v91 = vld [vmem:[%s1 + $0x78] sm:$0xf]
  %v92 = vld [vmem:[%s1 + $0x7c] sm:$0xf]
  %v107 = vunpack.c.l.b16 %v47
  %v108 = vunpack.c.h.b16 %v47
  %v109 = vunpack.c.l.b16 %v48
  %v110 = vunpack.c.h.b16 %v48
  %v111 = vunpack.c.l.b16 %v49
  %v112 = vunpack.c.h.b16 %v49
  %v113 = vunpack.c.l.b16 %v50
  %v114 = vunpack.c.h.b16 %v50
  %v115 = vunpack.c.l.b16 %v51
  %v116 = vunpack.c.h.b16 %v51
  %v117 = vunpack.c.l.b16 %v52
  %v118 = vunpack.c.h.b16 %v52
  %v119 = vunpack.c.l.b16 %v53
  %v120 = vunpack.c.h.b16 %v53
  %v121 = vunpack.c.l.b16 %v54
  %v122 = vunpack.c.h.b16 %v54
  %v123 = vunpack.c.l.b16 %v55
  %v124 = vunpack.c.h.b16 %v55
  %v125 = vunpack.c.l.b16 %v56
  %v126 = vunpack.c.h.b16 %v56
  %v127 = vunpack.c.l.b16 %v57
  %v128 = vunpack.c.h.b16 %v57
  %v129 = vunpack.c.l.b16 %v58
  %v130 = vunpack.c.h.b16 %v58
  %v131 = vunpack.c.l.b16 %v59
  %v132 = vunpack.c.h.b16 %v59
  %v133 = vunpack.c.l.b16 %v60
  %v134 = vunpack.c.h.b16 %v60
  %v135 = vpack.c.b16 %v109, %v107
  %v136 = vpack.c.b16 %v110, %v108
  %v137 = vpack.c.b16 %v113, %v111
  %v138 = vpack.c.b16 %v114, %v112
  %v139 = vpack.c.b16 %v117, %v115
  %v140 = vpack.c.b16 %v118, %v116
  %v141 = vpack.c.b16 %v121, %v119
  %v142 = vpack.c.b16 %v122, %v120
  %v143 = vpack.c.b16 %v125, %v123
  %v144 = vpack.c.b16 %v126, %v124
  %v145 = vpack.c.b16 %v129, %v127
  %v146 = vpack.c.b16 %v130, %v128
  %v147 = vpack.c.b16 %v133, %v131
  %v148 = vpack.c.b16 %v134, %v132
  %v195 = vunpack.c.l.b16 %v61
  %v196 = vunpack.c.l.b16 %v62
  %v197 = vunpack.c.l.b16 %v63
  %v198 = vunpack.c.l.b16 %v64
  %v199 = vunpack.c.l.b16 %v65
  %v200 = vunpack.c.l.b16 %v66
  %v201 = vunpack.c.l.b16 %v67
  %v202 = vunpack.c.l.b16 %v68
  %v203 = vunpack.c.l.b16 %v69
  %v204 = vunpack.c.l.b16 %v70
  %v205 = vunpack.c.l.b16 %v71
  %v206 = vunpack.c.l.b16 %v72
  %v207 = vunpack.c.l.b16 %v73
  %v208 = vunpack.c.l.b16 %v74
  %v209 = vunpack.c.l.b16 %v75
  %v210 = vunpack.c.l.b16 %v76
  %v211 = vunpack.c.l.b16 %v77
  %v212 = vunpack.c.l.b16 %v78
  %v213 = vunpack.c.l.b16 %v79
  %v214 = vunpack.c.l.b16 %v80
  %v215 = vunpack.c.l.b16 %v81
  %v216 = vunpack.c.l.b16 %v82
  %v217 = vunpack.c.l.b16 %v83
  %v218 = vunpack.c.l.b16 %v84
  %v219 = vunpack.c.l.b16 %v85
  %v220 = vunpack.c.l.b16 %v86
  %v221 = vunpack.c.l.b16 %v87
  %v222 = vunpack.c.l.b16 %v88
  %v223 = vunpack.c.l.b16 %v89
  %v224 = vunpack.c.l.b16 %v90
  %v225 = vunpack.c.l.b16 %v91
  %v226 = vunpack.c.l.b16 %v92
  %v227 = vpack.c.b16 %v196, %v195
  %v228 = vpack.c.b16 %v198, %v197
  %v229 = vpack.c.b16 %v200, %v199
  %v230 = vpack.c.b16 %v202, %v201
  %v231 = vpack.c.b16 %v204, %v203
  %v232 = vpack.c.b16 %v206, %v205
  %v233 = vpack.c.b16 %v208, %v207
  %v234 = vpack.c.b16 %v210, %v209
  %v235 = vpack.c.b16 %v212, %v211
  %v236 = vpack.c.b16 %v214, %v213
  %v237 = vpack.c.b16 %v216, %v215
  %v238 = vpack.c.b16 %v218, %v217
  %v239 = vpack.c.b16 %v220, %v219
  %v240 = vpack.c.b16 %v222, %v221
  %v241 = vpack.c.b16 %v224, %v223
  %v242 = vpack.c.b16 %v226, %v225
  %259 = vmatprep.subr.bf16.mxu0 0
  %260 = vmatpush1.bf16.msra.mxu0 %v234
  %261 = vmatprep.subr.bf16.mxu0 0
  %262 = vmatpush1.bf16.msra.mxu0 %v233
  %263 = vmatprep.subr.bf16.mxu0 0
  %264 = vmatpush1.bf16.msra.mxu0 %v232
  %265 = vmatprep.subr.bf16.mxu0 0
  %266 = vmatpush1.bf16.msra.mxu0 %v231
  %267 = vmatprep.subr.bf16.mxu0 0
  %268 = vmatpush1.bf16.msra.mxu0 %v230
  %269 = vmatprep.subr.bf16.mxu0 0
  %270 = vmatpush1.bf16.msra.mxu0 %v229
  %271 = vmatprep.subr.bf16.mxu0 0
  %272 = vmatpush1.bf16.msra.mxu0 %v228
  %273 = vmatprep.subr.bf16.mxu0 0
  %274 = vmatpush1.bf16.msra.mxu0 %v227
  %275 = vmatprep.subr.bf16.mxu0 0
  %276 = vmatpush2.bf16.msra.mxu0 %v242
  %277 = vmatprep.subr.bf16.mxu0 0
  %278 = vmatpush2.bf16.msra.mxu0 %v241
  %279 = vmatprep.subr.bf16.mxu0 0
  %280 = vmatpush2.bf16.msra.mxu0 %v240
  %281 = vmatprep.subr.bf16.mxu0 0
  %282 = vmatpush2.bf16.msra.mxu0 %v239
  %283 = vmatprep.subr.bf16.mxu0 0
  %284 = vmatpush2.bf16.msra.mxu0 %v238
  %285 = vmatprep.subr.bf16.mxu0 0
  %286 = vmatpush2.bf16.msra.mxu0 %v237
  %287 = vmatprep.subr.bf16.mxu0 0
  %288 = vmatpush2.bf16.msra.mxu0 %v236
  %289 = vmatprep.subr.bf16.mxu0 0
  %290 = vmatpush2.bf16.msra.mxu0 %v235
  %291 = vmatprep.mubr.bf16.mxu0 %v136
  %292 = vmatmul.mubr.bf16.gmra.mxu0 %v135
  %v293 = vpop.f32.mrf.mxu0
  %v294 = vadd.f32 0.0, %v293
  %v295 = vpop.f32.mrf.mxu0
  %v296 = vpop.f32.mrf.mxu0
  %v297 = vadd.f32 0.0, %v296
  %v298 = vpop.f32.mrf.mxu0
  %299 = vmatprep.mubr.bf16.mxu0 %v138
  %300 = vmatmul.mubr.bf16.gmra.mxu0 %v137
  %v301 = vpop.f32.mrf.mxu0
  %v302 = vadd.f32 0.0, %v301
  %v303 = vpop.f32.mrf.mxu0
  %v304 = vpop.f32.mrf.mxu0
  %v305 = vadd.f32 0.0, %v304
  %v306 = vpop.f32.mrf.mxu0
  %307 = vmatprep.mubr.bf16.mxu0 %v140
  %308 = vmatmul.mubr.bf16.gmra.mxu0 %v139
  %v309 = vpop.f32.mrf.mxu0
  %v310 = vadd.f32 0.0, %v309
  %v311 = vpop.f32.mrf.mxu0
  %v312 = vpop.f32.mrf.mxu0
  %v313 = vadd.f32 0.0, %v312
  %v314 = vpop.f32.mrf.mxu0
  %315 = vmatprep.mubr.bf16.mxu0 %v142
  %316 = vmatmul.mubr.bf16.gmra.mxu0 %v141
  %v317 = vpop.f32.mrf.mxu0
  %v318 = vadd.f32 0.0, %v317
  %v319 = vpop.f32.mrf.mxu0
  %v320 = vpop.f32.mrf.mxu0
  %v321 = vadd.f32 0.0, %v320
  %v322 = vpop.f32.mrf.mxu0
  %323 = vmatprep.mubr.bf16.mxu0 %v144
  %324 = vmatmul.mubr.bf16.gmra.mxu0 %v143
  %v325 = vpop.f32.mrf.mxu0
  %v326 = vadd.f32 0.0, %v325
  %v327 = vpop.f32.mrf.mxu0
  %v328 = vpop.f32.mrf.mxu0
  %v329 = vadd.f32 0.0, %v328
  %v330 = vpop.f32.mrf.mxu0
  %331 = vmatprep.mubr.bf16.mxu0 %v146
  %332 = vmatmul.mubr.bf16.gmra.mxu0 %v145
  %v333 = vpop.f32.mrf.mxu0
  %v334 = vadd.f32 0.0, %v333
  %v335 = vpop.f32.mrf.mxu0
  %v336 = vpop.f32.mrf.mxu0
  %v337 = vadd.f32 0.0, %v336
  %v338 = vpop.f32.mrf.mxu0
  %339 = vmatprep.mubr.bf16.mxu0 %v148
  %340 = vmatmul.mubr.bf16.gmra.mxu0 %v147
  %v341 = vpop.f32.mrf.mxu0
  %v342 = vadd.f32 0.0, %v341
  %v343 = vpop.f32.mrf.mxu0
  %v344 = vpop.f32.mrf.mxu0
  %v345 = vadd.f32 0.0, %v344
  %v346 = vpop.f32.mrf.mxu0
  %347 = vdwg.mxu0
  %v348 = vadd.f32 %v33, %v294
  %v349 = vadd.f32 %v34, %v297
  %v350 = vadd.f32 %v35, %v302
  %v351 = vadd.f32 %v36, %v305
  %v352 = vadd.f32 %v37, %v310
  %v353 = vadd.f32 %v38, %v313
  %v354 = vadd.f32 %v39, %v318
  %v355 = vadd.f32 %v40, %v321
  %v356 = vadd.f32 %v41, %v326
  %v357 = vadd.f32 %v42, %v329
  %v358 = vadd.f32 %v43, %v334
  %v359 = vadd.f32 %v44, %v337
  %v360 = vadd.f32 %v45, %v342
  %v361 = vadd.f32 %v46, %v345
  %362 = vst [vmem:[#allocation2] sm:$0xff] %v348
  %363 = vst [vmem:[#allocation2 + $0x8] sm:$0xff] %v349
  %364 = vst [vmem:[#allocation2 + $0x10] sm:$0xff] %v350
  %365 = vst [vmem:[#allocation2 + $0x18] sm:$0xff] %v351
  %366 = vst [vmem:[#allocation2 + $0x20] sm:$0xff] %v352
  %367 = vst [vmem:[#allocation2 + $0x28] sm:$0xff] %v353
  %368 = vst [vmem:[#allocation2 + $0x30] sm:$0xff] %v354
  %369 = vst [vmem:[#allocation2 + $0x38] sm:$0xff] %v355
  %370 = vst [vmem:[#allocation2 + $0x40] sm:$0xff] %v356
  %371 = vst [vmem:[#allocation2 + $0x48] sm:$0xff] %v357
  %372 = vst [vmem:[#allocation2 + $0x50] sm:$0xff] %v358
  %373 = vst [vmem:[#allocation2 + $0x58] sm:$0xff] %v359
  %374 = vst [vmem:[#allocation2 + $0x60] sm:$0xff] %v360
  %375 = vst [vmem:[#allocation2 + $0x68] sm:$0xff] %v361
  // Predicated region
  $region18: #{svae_conv_forward.34} parent=0 // pred_check
    %p376 = pneg %p15
  $region19: #{svae_conv_forward.34} parent=0 // pred_check_branch
    %378 = sbr.rel (%p376) target = $region21
  $region20: #{svae_conv_forward.34} parent=0 // pred_region
    %v379 = vld [vmem:[#allocation2] sm:$0xff]
    %v380 = vld [vmem:[#allocation2 + $0x8] sm:$0xff]
    %v381 = vld [vmem:[#allocation2 + $0x10] sm:$0xff]
    %v382 = vld [vmem:[#allocation2 + $0x18] sm:$0xff]
    %v383 = vld [vmem:[#allocation2 + $0x20] sm:$0xff]
    %v384 = vld [vmem:[#allocation2 + $0x28] sm:$0xff]
    %v385 = vld [vmem:[#allocation2 + $0x30] sm:$0xff]
    %v386 = vld [vmem:[#allocation2 + $0x38] sm:$0xff]
    %v387 = vld [vmem:[#allocation2 + $0x40] sm:$0xff]
    %v388 = vld [vmem:[#allocation2 + $0x48] sm:$0xff]
    %v389 = vld [vmem:[#allocation2 + $0x50] sm:$0xff]
    %v390 = vld [vmem:[#allocation2 + $0x58] sm:$0xff]
    %v391 = vld [vmem:[#allocation2 + $0x60] sm:$0xff]
    %v392 = vld [vmem:[#allocation2 + $0x68] sm:$0xff]
    %v393 = vld [vmem:[%s2] sm:$0x1]
    %v395 = vlaneseq
    %v396 = vshrl.u32 %v395, 7
    %v397 = vsub.s32 0, %v396
    %v398 = vrot.slane %v393, %v397
    %v400 = vadd.f32 %v379, %v398
    %v401 = vadd.f32 %v380, %v398
    %v402 = vadd.f32 %v381, %v398
    %v403 = vadd.f32 %v382, %v398
    %v404 = vadd.f32 %v383, %v398
    %v405 = vadd.f32 %v384, %v398
    %v406 = vadd.f32 %v385, %v398
    %v407 = vadd.f32 %v386, %v398
    %v408 = vadd.f32 %v387, %v398
    %v409 = vadd.f32 %v388, %v398
    %v410 = vadd.f32 %v389, %v398
    %v411 = vadd.f32 %v390, %v398
    %v412 = vadd.f32 %v391, %v398
    %v413 = vadd.f32 %v392, %v398
    %v414 = vmax.f32 %v400, 0.0
    %v415 = vmax.f32 %v401, 0.0
    %v416 = vmax.f32 %v402, 0.0
    %v417 = vmax.f32 %v403, 0.0
    %v418 = vmax.f32 %v404, 0.0
    %v419 = vmax.f32 %v405, 0.0
    %v420 = vmax.f32 %v406, 0.0
    %v421 = vmax.f32 %v407, 0.0
    %v422 = vmax.f32 %v408, 0.0
    %v423 = vmax.f32 %v409, 0.0
    %v424 = vmax.f32 %v410, 0.0
    %v425 = vmax.f32 %v411, 0.0
    %v426 = vmax.f32 %v412, 0.0
    %v427 = vmax.f32 %v413, 0.0
    %428 = vst [vmem:[%s3] sm:$0xff] %v414
    %429 = vst [vmem:[%s3 + $0x8] sm:$0xff] %v415
    %430 = vst [vmem:[%s3 + $0x10] sm:$0xff] %v416
    %431 = vst [vmem:[%s3 + $0x18] sm:$0xff] %v417
    %432 = vst [vmem:[%s3 + $0x20] sm:$0xff] %v418
    %433 = vst [vmem:[%s3 + $0x28] sm:$0xff] %v419
    %434 = vst [vmem:[%s3 + $0x30] sm:$0xff] %v420
    %435 = vst [vmem:[%s3 + $0x38] sm:$0xff] %v421
    %436 = vst [vmem:[%s3 + $0x40] sm:$0xff] %v422
    %437 = vst [vmem:[%s3 + $0x48] sm:$0xff] %v423
    %438 = vst [vmem:[%s3 + $0x50] sm:$0xff] %v424
    %439 = vst [vmem:[%s3 + $0x58] sm:$0xff] %v425
    %440 = vst [vmem:[%s3 + $0x60] sm:$0xff] %v426
    %441 = vst [vmem:[%s3 + $0x68] sm:$0xff] %v427
  $region21: #{svae_conv_forward.34} parent=0 // pred_fallthru
    _
  // Predicated region
  $region22: #{svae_conv_forward.34} parent=0 // pred_check
    _
  $region23: #{svae_conv_forward.34} parent=0 // pred_check_branch
    %443 = sbr.rel (0) target = $region25
  $region24: #{svae_conv_forward.34} parent=0 // pred_region
    _
  $region25: #{svae_conv_forward.34} parent=0 // pred_fallthru
    _
  // Predicated region
  $region26: #{svae_conv_forward.34} parent=0 // pred_check
    _
  $region27: #{svae_conv_forward.34} parent=0 // pred_check_branch
    %445 = sbr.rel (0) target = $region29
  $region28: #{svae_conv_forward.34} parent=0 // pred_region
    _
  $region29: #{svae_conv_forward.34} parent=0 // pred_fallthru
    _

// kernel: svae_conv_forward.35
$region0: #{svae_conv_forward.35}
  #allocation0 [shape = 'u32[]', space=smem, size = 0x4, offset = 0x4, fixed_abs, tag = 'smem constant byte address 0x4 - core index']
  #allocation1 [shape = 'u32[144,128]{1,0:T(1,128)}', space=vmem, size = 0x12000, scoped, tag = 'internal scratch']
  #allocation2 [shape = 'f32[256,128]{1,0:T(8,128)}', space=vmem, size = 0x20000, scoped, tag = 'scratch operand']
  %s0 = inlined_call_operand.vmem [shape: bf16[512,128], index: 0, kind: input, shape index: {}]
  %s1 = inlined_call_operand.vmem [shape: bf16[128,128], index: 1, kind: input, shape index: {}]
  %s2 = inlined_call_operand.vmem [shape: f32[1,128], index: 2, kind: input, shape index: {}]
  %s3 = inlined_call_operand.vmem [shape: f32[512,128], index: 3, kind: output, shape index: {}]
  %s4 = sld [smem:[#allocation0]]
  $region53: #{svae_conv_forward.35} parent=0
    _
  %s6 = ssub.s32 1, %s4
  %s7 = scalar_select 0, %s6, %s4
  loop: start=0, step=1, limit=4
  $region2: #{svae_conv_forward.35} parent=0 // loop_pre_header
    _
  $region3: #{svae_conv_forward.35} parent=0 // loop_header
    %s9 = sphi 0, %s13
    %p10 = scmp.ge.s32.totalorder %s9, 4
    %s16 = sphi 0, %s35
    %s17 = sphi 0, %s31
    %s18 = sphi 0, %s27
    %s19 = sphi 0, %s16
    %s20 = sphi 0, %s17
    %s21 = sphi 0, %s18
    %s22 = sphi 0, %s19
    %s23 = sphi 0, %s20
    %s24 = sphi 0, %s21
    %s40 = sphi 0, %s42
    %s43 = sphi 0, %s40
    %s44 = sphi 0, %s43
    %s60 = sphi 0, %s44
    %s68 = sphi 0, %s70
    %s71 = sphi 0, %s68
    %s72 = sphi 0, %s71
    %s88 = sphi 0, %s72
    %s94 = sphi 0, %s96
    %s97 = sphi 0, %s94
    %s98 = sphi 0, %s97
    %s114 = sphi 0, %s98
    %s122 = sphi 0, %s124
    %s125 = sphi 0, %s122
    %s126 = sphi 0, %s125
    %s142 = sphi 0, %s126
  $region4: #{svae_conv_forward.35} parent=0 // loop_header_branch
    %12 = sbr.rel (%p10) target = $region8
  $region5: #{svae_conv_forward.35} parent=0 // loop_body
    %s14 = ssub.s32 %s9, 1
    %s15 = ssub.s32 %s9, 2
    %s25 = sadd.s32 1, %s18
    %p26 = scmp.ge.s32.totalorder %s25, 1
    %s27 = scalar_select %p26, 0, %s25
    %s28 = sadd.s32 1, %s17
    %s29 = scalar_select %p26, %s28, %s17
    %p30 = scmp.ge.s32.totalorder %s29, 1
    %s31 = scalar_select %p30, 0, %s29
    %s32 = sadd.s32 1, %s16
    %s33 = scalar_select %p30, %s32, %s16
    %p34 = scmp.ge.s32.totalorder %s33, 2
    %s35 = scalar_select %p34, 0, %s33
    %s36 = ssub.s32 %s16, %s35
    %s37 = ssub.s32 %s18, %s27
    %s38 = sor.u32 %s36, %s37
    %p39 = scmp.eq.s32.totalorder %s38, 0
    %s41 = sadd.s32 %s40, 1
    %s42 = scalar_select %p39, %s40, %s41
    %p45 = pneg %p39
    %p46 = scmp.eq.s32.totalorder %s9, 1
    %p47 = por %p45, %p46
    %p48 = scmp.ne.s32.totalorder %s40, %s43
    %p49 = scmp.eq.s32.totalorder %s9, 0
    %p50 = por %p48, %p49
    %p51 = scmp.ne.s32.totalorder %s40, %s43
    %p52 = scmp.eq.s32.totalorder %s14, 1
    %p53 = por %p51, %p52
    %p54 = scmp.ne.s32.totalorder %s43, %s44
    %p55 = scmp.eq.s32.totalorder %s14, 0
    %p56 = por %p54, %p55
    %p57 = scmp.ne.s32.totalorder %s43, %s44
    %p58 = scmp.eq.s32.totalorder %s15, 1
    %p59 = por %p57, %p58
    %p61 = scmp.ne.s32.totalorder %s44, %s60
    %p62 = scmp.eq.s32.totalorder %s15, 0
    %p63 = por %p61, %p62
    %s64 = ssub.s32 %s18, %s27
    %s65 = ssub.s32 %s17, %s31
    %s66 = sor.u32 %s64, %s65
    %p67 = scmp.eq.s32.totalorder %s66, 0
    %s69 = sadd.s32 %s68, 1
    %s70 = scalar_select %p67, %s68, %s69
    %p73 = pneg %p67
    %p74 = scmp.eq.s32.totalorder %s9, 1
    %p75 = por %p73, %p74
    %p76 = scmp.ne.s32.totalorder %s68, %s71
    %p77 = scmp.eq.s32.totalorder %s9, 0
    %p78 = por %p76, %p77
    %p79 = scmp.ne.s32.totalorder %s68, %s71
    %p80 = scmp.eq.s32.totalorder %s14, 1
    %p81 = por %p79, %p80
    %p82 = scmp.ne.s32.totalorder %s71, %s72
    %p83 = scmp.eq.s32.totalorder %s14, 0
    %p84 = por %p82, %p83
    %p85 = scmp.ne.s32.totalorder %s71, %s72
    %p86 = scmp.eq.s32.totalorder %s15, 1
    %p87 = por %p85, %p86
    %p89 = scmp.ne.s32.totalorder %s72, %s88
    %p90 = scmp.eq.s32.totalorder %s15, 0
    %p91 = por %p89, %p90
    %s92 = ssub.s32 %s17, %s31
    %p93 = scmp.eq.s32.totalorder %s92, 0
    %s95 = sadd.s32 %s94, 1
    %s96 = scalar_select %p93, %s94, %s95
    %p99 = pneg %p93
    %p100 = scmp.eq.s32.totalorder %s9, 1
    %p101 = por %p99, %p100
    %p102 = scmp.ne.s32.totalorder %s94, %s97
    %p103 = scmp.eq.s32.totalorder %s9, 0
    %p104 = por %p102, %p103
    %p105 = scmp.ne.s32.totalorder %s94, %s97
    %p106 = scmp.eq.s32.totalorder %s14, 1
    %p107 = por %p105, %p106
    %p108 = scmp.ne.s32.totalorder %s97, %s98
    %p109 = scmp.eq.s32.totalorder %s14, 0
    %p110 = por %p108, %p109
    %p111 = scmp.ne.s32.totalorder %s97, %s98
    %p112 = scmp.eq.s32.totalorder %s15, 1
    %p113 = por %p111, %p112
    %p115 = scmp.ne.s32.totalorder %s98, %s114
    %p116 = scmp.eq.s32.totalorder %s15, 0
    %p117 = por %p115, %p116
    %s118 = ssub.s32 %s16, %s35
    %s119 = ssub.s32 %s17, %s31
    %s120 = sor.u32 %s118, %s119
    %p121 = scmp.eq.s32.totalorder %s120, 0
    %s123 = sadd.s32 %s122, 1
    %s124 = scalar_select %p121, %s122, %s123
    %p127 = pneg %p121
    %p128 = scmp.eq.s32.totalorder %s9, 1
    %p129 = por %p127, %p128
    %p130 = scmp.ne.s32.totalorder %s122, %s125
    %p131 = scmp.eq.s32.totalorder %s9, 0
    %p132 = por %p130, %p131
    %p133 = scmp.ne.s32.totalorder %s122, %s125
    %p134 = scmp.eq.s32.totalorder %s14, 1
    %p135 = por %p133, %p134
    %p136 = scmp.ne.s32.totalorder %s125, %s126
    %p137 = scmp.eq.s32.totalorder %s14, 0
    %p138 = por %p136, %p137
    %p139 = scmp.ne.s32.totalorder %s125, %s126
    %p140 = scmp.eq.s32.totalorder %s15, 1
    %p141 = por %p139, %p140
    %p143 = scmp.ne.s32.totalorder %s126, %s142
    %p144 = scmp.eq.s32.totalorder %s15, 0
    %p145 = por %p143, %p144
    %p146 = scmp.le.s32.totalorder 1, %s9
    %p147 = scmp.lt.s32.totalorder %s9, 3
    %p148 = pnand %p146, %p147
    %p149 = pneg %p148
    // Predicated region
    $region9: #{svae_conv_forward.35} parent=5 // pred_check
      _
    $region10: #{svae_conv_forward.35} parent=5 // pred_check_branch
      %151 = sbr.rel (%p148) target = $region12
    $region11: #{svae_conv_forward.35} parent=5 // pred_region
      %s152 = ssub.s32 %s9, 1
      // Predicated region
      $region13: #{svae_conv_forward.35} parent=11 // pred_check
        %p153 = pneg %p84
      $region14: #{svae_conv_forward.35} parent=11 // pred_check_branch
        %155 = sbr.rel (%p153) target = $region16
      $region15: #{svae_conv_forward.35} parent=11 // pred_region
        %s156 = smul.u32 16, %s21
        %p157 = scmp.lt.s32.totalorder %s156, 15
        %s158 = scalar_select %p157, %s156, 15
        %p159 = scmp.lt.s32.totalorder %s20, 0
        %s160 = scalar_select %p159, %s20, 0
        %s161 = sadd.s32 %s160, %s158
        %s162 = smul.addr %s161, 4
        %s163 = scalar_lea.vmem %s1, %s162
        %s164 = smul.u32 16, %s21
      $region16: #{svae_conv_forward.35} parent=11 // pred_fallthru
        _
      // Predicated region
      $region17: #{svae_conv_forward.35} parent=11 // pred_check
        %p165 = pneg %p110
      $region18: #{svae_conv_forward.35} parent=11 // pred_check_branch
        %167 = sbr.rel (%p165) target = $region20
      $region19: #{svae_conv_forward.35} parent=11 // pred_region
        %p168 = scmp.lt.s32.totalorder %s20, 0
        %s169 = scalar_select %p168, %s20, 0
        %s170 = scalar_lea.vmem %s2, %s169
      $region20: #{svae_conv_forward.35} parent=11 // pred_fallthru
        _
    $region12: #{svae_conv_forward.35} parent=5 // pred_fallthru
      _
    %p171 = scmp.lt.s32.totalorder %s9, 2
    // Predicated region
    $region21: #{svae_conv_forward.35} parent=5 // pred_check
      %p172 = pneg %p171
    $region22: #{svae_conv_forward.35} parent=5 // pred_check_branch
      %174 = sbr.rel (%p172) target = $region24
    $region23: #{svae_conv_forward.35} parent=5 // pred_region
      // Predicated region
      $region25: #{svae_conv_forward.35} parent=23 // pred_check
        %p175 = pneg %p50
      $region26: #{svae_conv_forward.35} parent=23 // pred_check_branch
        %177 = sbr.rel (%p175) target = $region28
      $region27: #{svae_conv_forward.35} parent=23 // pred_region
        %s178 = smul.u32 32, %s16
        %p179 = scmp.lt.s32.totalorder %s178, 63
        %s180 = scalar_select %p179, %s178, 63
        %p181 = scmp.lt.s32.totalorder %s18, 0
        %s182 = scalar_select %p181, %s18, 0
        %s183 = sadd.s32 %s182, %s180
        %s184 = smul.addr %s183, 4
        %s185 = scalar_lea.vmem %s0, %s184
        %s186 = smul.u32 32, %s16
      $region28: #{svae_conv_forward.35} parent=23 // pred_fallthru
        _
    $region24: #{svae_conv_forward.35} parent=5 // pred_fallthru
      _
    %p187 = scmp.le.s32.totalorder 1, %s9
    %p188 = scmp.lt.s32.totalorder %s9, 3
    %p189 = pnand %p187, %p188
    %p190 = pneg %p189
    // Predicated region
    $region29: #{svae_conv_forward.35} parent=5 // pred_check
      _
    $region30: #{svae_conv_forward.35} parent=5 // pred_check_branch
      %192 = sbr.rel (%p189) target = $region32
    $region31: #{svae_conv_forward.35} parent=5 // pred_region
      %s193 = ssub.s32 %s9, 1
      %s194 = smul.u32 32, %s19
      %p195 = scmp.lt.s32.totalorder %s194, 63
      %s196 = scalar_select %p195, %s194, 63
      %p197 = scmp.lt.s32.totalorder %s21, 0
      %s198 = scalar_select %p197, %s21, 0
      %s199 = sadd.s32 %s198, %s196
      %s200 = smul.addr %s199, 4
      %s201 = scalar_lea.vmem %s0, %s200
      %p202 = pneg %p56
      %p203 = pneg %p53
      %s204 = smul.u32 16, %s21
      %p205 = scmp.lt.s32.totalorder %s204, 15
      %s206 = scalar_select %p205, %s204, 15
      %p207 = scmp.lt.s32.totalorder %s20, 0
      %s208 = scalar_select %p207, %s20, 0
      %s209 = sadd.s32 %s208, %s206
      %s210 = smul.addr %s209, 4
      %s211 = scalar_lea.vmem %s1, %s210
      %p212 = pneg %p84
      %p213 = pneg %p81
      %p214 = scmp.lt.s32.totalorder %s20, 0
      %s215 = scalar_select %p214, %s20, 0
      %s216 = scalar_lea.vmem %s2, %s215
      %p217 = pneg %p110
      %p218 = pneg %p107
      %p219 = pneg %p138
      %p220 = pneg %p135
      %s221 = smul.u32 32, %s19
      %p222 = scmp.lt.s32.totalorder %s221, 63
      %s223 = scalar_select %p222, %s221, 63
      %p224 = scmp.lt.s32.totalorder %s20, 0
      %s225 = scalar_select %p224, %s20, 0
      %s226 = sadd.s32 %s225, %s223
      %s227 = smul.addr %s226, 8
      %s228 = scalar_lea.vmem %s3, %s227
      %s229 = smul.u32 32, %s19
      %p230 = scmp.lt.s32.totalorder %s229, 63
      %s231 = scalar_select %p230, %s229, 63
      %p232 = scmp.lt.s32.totalorder %s21, 0
      %s233 = scalar_select %p232, %s21, 0
      %s234 = sadd.s32 %s233, %s231
      %s235 = smul.addr %s234, 4
      %s236 = scalar_lea.vmem %s0, %s235
      %s237 = smul.u32 32, %s19
      %s238 = smul.u32 16, %s21
      %p239 = scmp.lt.s32.totalorder %s238, 15
      %s240 = scalar_select %p239, %s238, 15
      %p241 = scmp.lt.s32.totalorder %s20, 0
      %s242 = scalar_select %p241, %s20, 0
      %s243 = sadd.s32 %s242, %s240
      %s244 = smul.addr %s243, 4
      %s245 = scalar_lea.vmem %s1, %s244
      %s246 = smul.u32 16, %s21
      %p247 = scmp.lt.s32.totalorder %s20, 0
      %s248 = scalar_select %p247, %s20, 0
      %s249 = scalar_lea.vmem %s2, %s248
      %s250 = smul.u32 32, %s19
      %p251 = scmp.lt.s32.totalorder %s250, 63
      %s252 = scalar_select %p251, %s250, 63
      %p253 = scmp.lt.s32.totalorder %s20, 0
      %s254 = scalar_select %p253, %s20, 0
      %s255 = sadd.s32 %s254, %s252
      %s256 = smul.addr %s255, 8
      %s257 = scalar_lea.vmem %s3, %s256
      %s258 = smul.u32 32, %s19
      %p260 = scmp.eq.s32.totalorder %s21, 0
      // Predicated region
      $region33: #{svae_conv_forward.35} parent=31 // pred_check
        %p261 = pneg %p260
      $region34: #{svae_conv_forward.35} parent=31 // pred_check_branch
        %263 = sbr.rel (%p261) target = $region36
      $region35: #{svae_conv_forward.35} parent=31 // pred_region
        %264 = vst [vmem:[#allocation2] sm:$0xff] 0.0
        %265 = vst [vmem:[#allocation2 + $0x8] sm:$0xff] 0.0
        %266 = vst [vmem:[#allocation2 + $0x10] sm:$0xff] 0.0
        %267 = vst [vmem:[#allocation2 + $0x18] sm:$0xff] 0.0
        %268 = vst [vmem:[#allocation2 + $0x20] sm:$0xff] 0.0
        %269 = vst [vmem:[#allocation2 + $0x28] sm:$0xff] 0.0
        %270 = vst [vmem:[#allocation2 + $0x30] sm:$0xff] 0.0
        %271 = vst [vmem:[#allocation2 + $0x38] sm:$0xff] 0.0
        %272 = vst [vmem:[#allocation2 + $0x40] sm:$0xff] 0.0
        %273 = vst [vmem:[#allocation2 + $0x48] sm:$0xff] 0.0
        %274 = vst [vmem:[#allocation2 + $0x50] sm:$0xff] 0.0
        %275 = vst [vmem:[#allocation2 + $0x58] sm:$0xff] 0.0
        %276 = vst [vmem:[#allocation2 + $0x60] sm:$0xff] 0.0
        %277 = vst [vmem:[#allocation2 + $0x68] sm:$0xff] 0.0
        %278 = vst [vmem:[#allocation2 + $0x70] sm:$0xff] 0.0
        %279 = vst [vmem:[#allocation2 + $0x78] sm:$0xff] 0.0
        %280 = vst [vmem:[#allocation2 + $0x80] sm:$0xff] 0.0
        %281 = vst [vmem:[#allocation2 + $0x88] sm:$0xff] 0.0
        %282 = vst [vmem:[#allocation2 + $0x90] sm:$0xff] 0.0
        %283 = vst [vmem:[#allocation2 + $0x98] sm:$0xff] 0.0
        %284 = vst [vmem:[#allocation2 + $0xa0] sm:$0xff] 0.0
        %285 = vst [vmem:[#allocation2 + $0xa8] sm:$0xff] 0.0
        %286 = vst [vmem:[#allocation2 + $0xb0] sm:$0xff] 0.0
        %287 = vst [vmem:[#allocation2 + $0xb8] sm:$0xff] 0.0
        %288 = vst [vmem:[#allocation2 + $0xc0] sm:$0xff] 0.0
        %289 = vst [vmem:[#allocation2 + $0xc8] sm:$0xff] 0.0
        %290 = vst [vmem:[#allocation2 + $0xd0] sm:$0xff] 0.0
        %291 = vst [vmem:[#allocation2 + $0xd8] sm:$0xff] 0.0
        %292 = vst [vmem:[#allocation2 + $0xe0] sm:$0xff] 0.0
        %293 = vst [vmem:[#allocation2 + $0xe8] sm:$0xff] 0.0
        %294 = vst [vmem:[#allocation2 + $0xf0] sm:$0xff] 0.0
        %295 = vst [vmem:[#allocation2 + $0xf8] sm:$0xff] 0.0
      $region36: #{svae_conv_forward.35} parent=31 // pred_fallthru
        _
      %v296 = vld [vmem:[#allocation2] sm:$0xff]
      %v297 = vld [vmem:[#allocation2 + $0x8] sm:$0xff]
      %v298 = vld [vmem:[#allocation2 + $0x10] sm:$0xff]
      %v299 = vld [vmem:[#allocation2 + $0x18] sm:$0xff]
      %v300 = vld [vmem:[#allocation2 + $0x20] sm:$0xff]
      %v301 = vld [vmem:[#allocation2 + $0x28] sm:$0xff]
      %v302 = vld [vmem:[#allocation2 + $0x30] sm:$0xff]
      %v303 = vld [vmem:[#allocation2 + $0x38] sm:$0xff]
      %v304 = vld [vmem:[#allocation2 + $0x40] sm:$0xff]
      %v305 = vld [vmem:[#allocation2 + $0x48] sm:$0xff]
      %v306 = vld [vmem:[#allocation2 + $0x50] sm:$0xff]
      %v307 = vld [vmem:[#allocation2 + $0x58] sm:$0xff]
      %v308 = vld [vmem:[#allocation2 + $0x60] sm:$0xff]
      %v309 = vld [vmem:[#allocation2 + $0x68] sm:$0xff]
      %v310 = vld [vmem:[#allocation2 + $0x70] sm:$0xff]
      %v311 = vld [vmem:[#allocation2 + $0x78] sm:$0xff]
      %v312 = vld [vmem:[#allocation2 + $0x80] sm:$0xff]
      %v313 = vld [vmem:[#allocation2 + $0x88] sm:$0xff]
      %v314 = vld [vmem:[#allocation2 + $0x90] sm:$0xff]
      %v315 = vld [vmem:[#allocation2 + $0x98] sm:$0xff]
      %v316 = vld [vmem:[#allocation2 + $0xa0] sm:$0xff]
      %v317 = vld [vmem:[#allocation2 + $0xa8] sm:$0xff]
      %v318 = vld [vmem:[#allocation2 + $0xb0] sm:$0xff]
      %v319 = vld [vmem:[#allocation2 + $0xb8] sm:$0xff]
      %v320 = vld [vmem:[#allocation2 + $0xc0] sm:$0xff]
      %v321 = vld [vmem:[#allocation2 + $0xc8] sm:$0xff]
      %v322 = vld [vmem:[#allocation2 + $0xd0] sm:$0xff]
      %v323 = vld [vmem:[#allocation2 + $0xd8] sm:$0xff]
      %v324 = vld [vmem:[#allocation2 + $0xe0] sm:$0xff]
      %v325 = vld [vmem:[#allocation2 + $0xe8] sm:$0xff]
      %v326 = vld [vmem:[#allocation2 + $0xf0] sm:$0xff]
      %v327 = vld [vmem:[#allocation2 + $0xf8] sm:$0xff]
      %v328 = vld [vmem:[%s236] sm:$0xf]
      %v329 = vld [vmem:[%s236 + $0x4] sm:$0xf]
      %v330 = vld [vmem:[%s236 + $0x8] sm:$0xf]
      %v331 = vld [vmem:[%s236 + $0xc] sm:$0xf]
      %v332 = vld [vmem:[%s236 + $0x10] sm:$0xf]
      %v333 = vld [vmem:[%s236 + $0x14] sm:$0xf]
      %v334 = vld [vmem:[%s236 + $0x18] sm:$0xf]
      %v335 = vld [vmem:[%s236 + $0x1c] sm:$0xf]
      %v336 = vld [vmem:[%s236 + $0x20] sm:$0xf]
      %v337 = vld [vmem:[%s236 + $0x24] sm:$0xf]
      %v338 = vld [vmem:[%s236 + $0x28] sm:$0xf]
      %v339 = vld [vmem:[%s236 + $0x2c] sm:$0xf]
      %v340 = vld [vmem:[%s236 + $0x30] sm:$0xf]
      %v341 = vld [vmem:[%s236 + $0x34] sm:$0xf]
      %v342 = vld [vmem:[%s236 + $0x38] sm:$0xf]
      %v343 = vld [vmem:[%s236 + $0x3c] sm:$0xf]
      %v344 = vld [vmem:[%s236 + $0x40] sm:$0xf]
      %v345 = vld [vmem:[%s236 + $0x44] sm:$0xf]
      %v346 = vld [vmem:[%s236 + $0x48] sm:$0xf]
      %v347 = vld [vmem:[%s236 + $0x4c] sm:$0xf]
      %v348 = vld [vmem:[%s236 + $0x50] sm:$0xf]
      %v349 = vld [vmem:[%s236 + $0x54] sm:$0xf]
      %v350 = vld [vmem:[%s236 + $0x58] sm:$0xf]
      %v351 = vld [vmem:[%s236 + $0x5c] sm:$0xf]
      %v352 = vld [vmem:[%s236 + $0x60] sm:$0xf]
      %v353 = vld [vmem:[%s236 + $0x64] sm:$0xf]
      %v354 = vld [vmem:[%s236 + $0x68] sm:$0xf]
      %v355 = vld [vmem:[%s236 + $0x6c] sm:$0xf]
      %v356 = vld [vmem:[%s236 + $0x70] sm:$0xf]
      %v357 = vld [vmem:[%s236 + $0x74] sm:$0xf]
      %v358 = vld [vmem:[%s236 + $0x78] sm:$0xf]
      %v359 = vld [vmem:[%s236 + $0x7c] sm:$0xf]
      %v360 = vld [vmem:[%s245] sm:$0xf]
      %v361 = vld [vmem:[%s245 + $0x4] sm:$0xf]
      %v362 = vld [vmem:[%s245 + $0x8] sm:$0xf]
      %v363 = vld [vmem:[%s245 + $0xc] sm:$0xf]
      %v364 = vld [vmem:[%s245 + $0x10] sm:$0xf]
      %v365 = vld [vmem:[%s245 + $0x14] sm:$0xf]
      %v366 = vld [vmem:[%s245 + $0x18] sm:$0xf]
      %v367 = vld [vmem:[%s245 + $0x1c] sm:$0xf]
      %v368 = vld [vmem:[%s245 + $0x20] sm:$0xf]
      %v369 = vld [vmem:[%s245 + $0x24] sm:$0xf]
      %v370 = vld [vmem:[%s245 + $0x28] sm:$0xf]
      %v371 = vld [vmem:[%s245 + $0x2c] sm:$0xf]
      %v372 = vld [vmem:[%s245 + $0x30] sm:$0xf]
      %v373 = vld [vmem:[%s245 + $0x34] sm:$0xf]
      %v374 = vld [vmem:[%s245 + $0x38] sm:$0xf]
      %v375 = vld [vmem:[%s245 + $0x3c] sm:$0xf]
      %v408 = vunpack.c.l.b16 %v328
      %v409 = vunpack.c.l.b16 %v329
      %v410 = vunpack.c.l.b16 %v330
      %v411 = vunpack.c.l.b16 %v331
      %v412 = vunpack.c.l.b16 %v332
      %v413 = vunpack.c.l.b16 %v333
      %v414 = vunpack.c.l.b16 %v334
      %v415 = vunpack.c.l.b16 %v335
      %v416 = vunpack.c.l.b16 %v336
      %v417 = vunpack.c.l.b16 %v337
      %v418 = vunpack.c.l.b16 %v338
      %v419 = vunpack.c.l.b16 %v339
      %v420 = vunpack.c.l.b16 %v340
      %v421 = vunpack.c.l.b16 %v341
      %v422 = vunpack.c.l.b16 %v342
      %v423 = vunpack.c.l.b16 %v343
      %v424 = vunpack.c.l.b16 %v344
      %v425 = vunpack.c.l.b16 %v345
      %v426 = vunpack.c.l.b16 %v346
      %v427 = vunpack.c.l.b16 %v347
      %v428 = vunpack.c.l.b16 %v348
      %v429 = vunpack.c.l.b16 %v349
      %v430 = vunpack.c.l.b16 %v350
      %v431 = vunpack.c.l.b16 %v351
      %v432 = vunpack.c.l.b16 %v352
      %v433 = vunpack.c.l.b16 %v353
      %v434 = vunpack.c.l.b16 %v354
      %v435 = vunpack.c.l.b16 %v355
      %v436 = vunpack.c.l.b16 %v356
      %v437 = vunpack.c.l.b16 %v357
      %v438 = vunpack.c.l.b16 %v358
      %v439 = vunpack.c.l.b16 %v359
      %v440 = vpack.c.b16 %v409, %v408
      %v441 = vpack.c.b16 %v411, %v410
      %v442 = vpack.c.b16 %v413, %v412
      %v443 = vpack.c.b16 %v415, %v414
      %v444 = vpack.c.b16 %v417, %v416
      %v445 = vpack.c.b16 %v419, %v418
      %v446 = vpack.c.b16 %v421, %v420
      %v447 = vpack.c.b16 %v423, %v422
      %v448 = vpack.c.b16 %v425, %v424
      %v449 = vpack.c.b16 %v427, %v426
      %v450 = vpack.c.b16 %v429, %v428
      %v451 = vpack.c.b16 %v431, %v430
      %v452 = vpack.c.b16 %v433, %v432
      %v453 = vpack.c.b16 %v435, %v434
      %v454 = vpack.c.b16 %v437, %v436
      %v455 = vpack.c.b16 %v439, %v438
      %v488 = vunpack.c.l.b16 %v360
      %v489 = vunpack.c.l.b16 %v361
      %v490 = vunpack.c.l.b16 %v362
      %v491 = vunpack.c.l.b16 %v363
      %v492 = vunpack.c.l.b16 %v364
      %v493 = vunpack.c.l.b16 %v365
      %v494 = vunpack.c.l.b16 %v366
      %v495 = vunpack.c.l.b16 %v367
      %v496 = vunpack.c.l.b16 %v368
      %v497 = vunpack.c.l.b16 %v369
      %v498 = vunpack.c.l.b16 %v370
      %v499 = vunpack.c.l.b16 %v371
      %v500 = vunpack.c.l.b16 %v372
      %v501 = vunpack.c.l.b16 %v373
      %v502 = vunpack.c.l.b16 %v374
      %v503 = vunpack.c.l.b16 %v375
      %v504 = vpack.c.b16 %v489, %v488
      %v505 = vpack.c.b16 %v491, %v490
      %v506 = vpack.c.b16 %v493, %v492
      %v507 = vpack.c.b16 %v495, %v494
      %v508 = vpack.c.b16 %v497, %v496
      %v509 = vpack.c.b16 %v499, %v498
      %v510 = vpack.c.b16 %v501, %v500
      %v511 = vpack.c.b16 %v503, %v502
      %520 = vmatprep.subr.bf16.mxu0 0
      %521 = vmatpush1.bf16.msra.mxu0 %v511
      %522 = vmatprep.subr.bf16.mxu0 0
      %523 = vmatpush1.bf16.msra.mxu0 %v510
      %524 = vmatprep.subr.bf16.mxu0 0
      %525 = vmatpush1.bf16.msra.mxu0 %v509
      %526 = vmatprep.subr.bf16.mxu0 0
      %527 = vmatpush1.bf16.msra.mxu0 %v508
      %528 = vmatprep.subr.bf16.mxu0 0
      %529 = vmatpush1.bf16.msra.mxu0 %v507
      %530 = vmatprep.subr.bf16.mxu0 0
      %531 = vmatpush1.bf16.msra.mxu0 %v506
      %532 = vmatprep.subr.bf16.mxu0 0
      %533 = vmatpush1.bf16.msra.mxu0 %v505
      %534 = vmatprep.subr.bf16.mxu0 0
      %535 = vmatpush1.bf16.msra.mxu0 %v504
      %536 = vmatprep.subr.bf16.mxu0 0
      %537 = vmatpush2.bf16.msra.mxu0 0
      %538 = vmatprep.subr.bf16.mxu0 0
      %539 = vmatpush2.bf16.msra.mxu0 0
      %540 = vmatprep.subr.bf16.mxu0 0
      %541 = vmatpush2.bf16.msra.mxu0 0
      %542 = vmatprep.subr.bf16.mxu0 0
      %543 = vmatpush2.bf16.msra.mxu0 0
      %544 = vmatprep.subr.bf16.mxu0 0
      %545 = vmatpush2.bf16.msra.mxu0 0
      %546 = vmatprep.subr.bf16.mxu0 0
      %547 = vmatpush2.bf16.msra.mxu0 0
      %548 = vmatprep.subr.bf16.mxu0 0
      %549 = vmatpush2.bf16.msra.mxu0 0
      %550 = vmatprep.subr.bf16.mxu0 0
      %551 = vmatpush2.bf16.msra.mxu0 0
      %552 = vmatprep.mubr.bf16.mxu0 0
      %553 = vmatmul.mubr.bf16.gmra.mxu0 %v440
      %v554 = vpop.f32.mrf.mxu0
      %v555 = vadd.f32 0.0, %v554
      %v556 = vpop.f32.mrf.mxu0
      %v557 = vpop.f32.mrf.mxu0
      %v558 = vadd.f32 0.0, %v557
      %v559 = vpop.f32.mrf.mxu0
      %560 = vmatprep.mubr.bf16.mxu0 0
      %561 = vmatmul.mubr.bf16.gmra.mxu0 %v441
      %v562 = vpop.f32.mrf.mxu0
      %v563 = vadd.f32 0.0, %v562
      %v564 = vpop.f32.mrf.mxu0
      %v565 = vpop.f32.mrf.mxu0
      %v566 = vadd.f32 0.0, %v565
      %v567 = vpop.f32.mrf.mxu0
      %568 = vmatprep.mubr.bf16.mxu0 0
      %569 = vmatmul.mubr.bf16.gmra.mxu0 %v442
      %v570 = vpop.f32.mrf.mxu0
      %v571 = vadd.f32 0.0, %v570
      %v572 = vpop.f32.mrf.mxu0
      %v573 = vpop.f32.mrf.mxu0
      %v574 = vadd.f32 0.0, %v573
      %v575 = vpop.f32.mrf.mxu0
      %576 = vmatprep.mubr.bf16.mxu0 0
      %577 = vmatmul.mubr.bf16.gmra.mxu0 %v443
      %v578 = vpop.f32.mrf.mxu0
      %v579 = vadd.f32 0.0, %v578
      %v580 = vpop.f32.mrf.mxu0
      %v581 = vpop.f32.mrf.mxu0
      %v582 = vadd.f32 0.0, %v581
      %v583 = vpop.f32.mrf.mxu0
      %584 = vmatprep.mubr.bf16.mxu0 0
      %585 = vmatmul.mubr.bf16.gmra.mxu0 %v444
      %v586 = vpop.f32.mrf.mxu0
      %v587 = vadd.f32 0.0, %v586
      %v588 = vpop.f32.mrf.mxu0
      %v589 = vpop.f32.mrf.mxu0
      %v590 = vadd.f32 0.0, %v589
      %v591 = vpop.f32.mrf.mxu0
      %592 = vmatprep.mubr.bf16.mxu0 0
      %593 = vmatmul.mubr.bf16.gmra.mxu0 %v445
      %v594 = vpop.f32.mrf.mxu0
      %v595 = vadd.f32 0.0, %v594
      %v596 = vpop.f32.mrf.mxu0
      %v597 = vpop.f32.mrf.mxu0
      %v598 = vadd.f32 0.0, %v597
      %v599 = vpop.f32.mrf.mxu0
      %600 = vmatprep.mubr.bf16.mxu0 0
      %601 = vmatmul.mubr.bf16.gmra.mxu0 %v446
      %v602 = vpop.f32.mrf.mxu0
      %v603 = vadd.f32 0.0, %v602
      %v604 = vpop.f32.mrf.mxu0
      %v605 = vpop.f32.mrf.mxu0
      %v606 = vadd.f32 0.0, %v605
      %v607 = vpop.f32.mrf.mxu0
      %608 = vmatprep.mubr.bf16.mxu0 0
      %609 = vmatmul.mubr.bf16.gmra.mxu0 %v447
      %v610 = vpop.f32.mrf.mxu0
      %v611 = vadd.f32 0.0, %v610
      %v612 = vpop.f32.mrf.mxu0
      %v613 = vpop.f32.mrf.mxu0
      %v614 = vadd.f32 0.0, %v613
      %v615 = vpop.f32.mrf.mxu0
      %616 = vmatprep.mubr.bf16.mxu0 0
      %617 = vmatmul.mubr.bf16.gmra.mxu0 %v448
      %v618 = vpop.f32.mrf.mxu0
      %v619 = vadd.f32 0.0, %v618
      %v620 = vpop.f32.mrf.mxu0
      %v621 = vpop.f32.mrf.mxu0
      %v622 = vadd.f32 0.0, %v621
      %v623 = vpop.f32.mrf.mxu0
      %624 = vmatprep.mubr.bf16.mxu0 0
      %625 = vmatmul.mubr.bf16.gmra.mxu0 %v449
      %v626 = vpop.f32.mrf.mxu0
      %v627 = vadd.f32 0.0, %v626
      %v628 = vpop.f32.mrf.mxu0
      %v629 = vpop.f32.mrf.mxu0
      %v630 = vadd.f32 0.0, %v629
      %v631 = vpop.f32.mrf.mxu0
      %632 = vmatprep.mubr.bf16.mxu0 0
      %633 = vmatmul.mubr.bf16.gmra.mxu0 %v450
      %v634 = vpop.f32.mrf.mxu0
      %v635 = vadd.f32 0.0, %v634
      %v636 = vpop.f32.mrf.mxu0
      %v637 = vpop.f32.mrf.mxu0
      %v638 = vadd.f32 0.0, %v637
      %v639 = vpop.f32.mrf.mxu0
      %640 = vmatprep.mubr.bf16.mxu0 0
      %641 = vmatmul.mubr.bf16.gmra.mxu0 %v451
      %v642 = vpop.f32.mrf.mxu0
      %v643 = vadd.f32 0.0, %v642
      %v644 = vpop.f32.mrf.mxu0
      %v645 = vpop.f32.mrf.mxu0
      %v646 = vadd.f32 0.0, %v645
      %v647 = vpop.f32.mrf.mxu0
      %648 = vmatprep.mubr.bf16.mxu0 0
      %649 = vmatmul.mubr.bf16.gmra.mxu0 %v452
      %v650 = vpop.f32.mrf.mxu0
      %v651 = vadd.f32 0.0, %v650
      %v652 = vpop.f32.mrf.mxu0
      %v653 = vpop.f32.mrf.mxu0
      %v654 = vadd.f32 0.0, %v653
      %v655 = vpop.f32.mrf.mxu0
      %656 = vmatprep.mubr.bf16.mxu0 0
      %657 = vmatmul.mubr.bf16.gmra.mxu0 %v453
      %v658 = vpop.f32.mrf.mxu0
      %v659 = vadd.f32 0.0, %v658
      %v660 = vpop.f32.mrf.mxu0
      %v661 = vpop.f32.mrf.mxu0
      %v662 = vadd.f32 0.0, %v661
      %v663 = vpop.f32.mrf.mxu0
      %664 = vmatprep.mubr.bf16.mxu0 0
      %665 = vmatmul.mubr.bf16.gmra.mxu0 %v454
      %v666 = vpop.f32.mrf.mxu0
      %v667 = vadd.f32 0.0, %v666
      %v668 = vpop.f32.mrf.mxu0
      %v669 = vpop.f32.mrf.mxu0
      %v670 = vadd.f32 0.0, %v669
      %v671 = vpop.f32.mrf.mxu0
      %672 = vmatprep.mubr.bf16.mxu0 0
      %673 = vmatmul.mubr.bf16.gmra.mxu0 %v455
      %v674 = vpop.f32.mrf.mxu0
      %v675 = vadd.f32 0.0, %v674
      %v676 = vpop.f32.mrf.mxu0
      %v677 = vpop.f32.mrf.mxu0
      %v678 = vadd.f32 0.0, %v677
      %v679 = vpop.f32.mrf.mxu0
      %680 = vdwg.mxu0
      %v681 = vadd.f32 %v296, %v555
      %v682 = vadd.f32 %v297, %v558
      %v683 = vadd.f32 %v298, %v563
      %v684 = vadd.f32 %v299, %v566
      %v685 = vadd.f32 %v300, %v571
      %v686 = vadd.f32 %v301, %v574
      %v687 = vadd.f32 %v302, %v579
      %v688 = vadd.f32 %v303, %v582
      %v689 = vadd.f32 %v304, %v587
      %v690 = vadd.f32 %v305, %v590
      %v691 = vadd.f32 %v306, %v595
      %v692 = vadd.f32 %v307, %v598
      %v693 = vadd.f32 %v308, %v603
      %v694 = vadd.f32 %v309, %v606
      %v695 = vadd.f32 %v310, %v611
      %v696 = vadd.f32 %v311, %v614
      %v697 = vadd.f32 %v312, %v619
      %v698 = vadd.f32 %v313, %v622
      %v699 = vadd.f32 %v314, %v627
      %v700 = vadd.f32 %v315, %v630
      %v701 = vadd.f32 %v316, %v635
      %v702 = vadd.f32 %v317, %v638
      %v703 = vadd.f32 %v318, %v643
      %v704 = vadd.f32 %v319, %v646
      %v705 = vadd.f32 %v320, %v651
      %v706 = vadd.f32 %v321, %v654
      %v707 = vadd.f32 %v322, %v659
      %v708 = vadd.f32 %v323, %v662
      %v709 = vadd.f32 %v324, %v667
      %v710 = vadd.f32 %v325, %v670
      %v711 = vadd.f32 %v326, %v675
      %v712 = vadd.f32 %v327, %v678
      %713 = vst [vmem:[#allocation2] sm:$0xff] %v681
      %714 = vst [vmem:[#allocation2 + $0x8] sm:$0xff] %v682
      %715 = vst [vmem:[#allocation2 + $0x10] sm:$0xff] %v683
      %716 = vst [vmem:[#allocation2 + $0x18] sm:$0xff] %v684
      %717 = vst [vmem:[#allocation2 + $0x20] sm:$0xff] %v685
      %718 = vst [vmem:[#allocation2 + $0x28] sm:$0xff] %v686
      %719 = vst [vmem:[#allocation2 + $0x30] sm:$0xff] %v687
      %720 = vst [vmem:[#allocation2 + $0x38] sm:$0xff] %v688
      %721 = vst [vmem:[#allocation2 + $0x40] sm:$0xff] %v689
      %722 = vst [vmem:[#allocation2 + $0x48] sm:$0xff] %v690
      %723 = vst [vmem:[#allocation2 + $0x50] sm:$0xff] %v691
      %724 = vst [vmem:[#allocation2 + $0x58] sm:$0xff] %v692
      %725 = vst [vmem:[#allocation2 + $0x60] sm:$0xff] %v693
      %726 = vst [vmem:[#allocation2 + $0x68] sm:$0xff] %v694
      %727 = vst [vmem:[#allocation2 + $0x70] sm:$0xff] %v695
      %728 = vst [vmem:[#allocation2 + $0x78] sm:$0xff] %v696
      %729 = vst [vmem:[#allocation2 + $0x80] sm:$0xff] %v697
      %730 = vst [vmem:[#allocation2 + $0x88] sm:$0xff] %v698
      %731 = vst [vmem:[#allocation2 + $0x90] sm:$0xff] %v699
      %732 = vst [vmem:[#allocation2 + $0x98] sm:$0xff] %v700
      %733 = vst [vmem:[#allocation2 + $0xa0] sm:$0xff] %v701
      %734 = vst [vmem:[#allocation2 + $0xa8] sm:$0xff] %v702
      %735 = vst [vmem:[#allocation2 + $0xb0] sm:$0xff] %v703
      %736 = vst [vmem:[#allocation2 + $0xb8] sm:$0xff] %v704
      %737 = vst [vmem:[#allocation2 + $0xc0] sm:$0xff] %v705
      %738 = vst [vmem:[#allocation2 + $0xc8] sm:$0xff] %v706
      %739 = vst [vmem:[#allocation2 + $0xd0] sm:$0xff] %v707
      %740 = vst [vmem:[#allocation2 + $0xd8] sm:$0xff] %v708
      %741 = vst [vmem:[#allocation2 + $0xe0] sm:$0xff] %v709
      %742 = vst [vmem:[#allocation2 + $0xe8] sm:$0xff] %v710
      %743 = vst [vmem:[#allocation2 + $0xf0] sm:$0xff] %v711
      %744 = vst [vmem:[#allocation2 + $0xf8] sm:$0xff] %v712
      // Predicated region
      $region37: #{svae_conv_forward.35} parent=31 // pred_check
        %p745 = pneg %p260
      $region38: #{svae_conv_forward.35} parent=31 // pred_check_branch
        %747 = sbr.rel (%p745) target = $region40
      $region39: #{svae_conv_forward.35} parent=31 // pred_region
        %v748 = vld [vmem:[#allocation2] sm:$0xff]
        %v749 = vld [vmem:[#allocation2 + $0x8] sm:$0xff]
        %v750 = vld [vmem:[#allocation2 + $0x10] sm:$0xff]
        %v751 = vld [vmem:[#allocation2 + $0x18] sm:$0xff]
        %v752 = vld [vmem:[#allocation2 + $0x20] sm:$0xff]
        %v753 = vld [vmem:[#allocation2 + $0x28] sm:$0xff]
        %v754 = vld [vmem:[#allocation2 + $0x30] sm:$0xff]
        %v755 = vld [vmem:[#allocation2 + $0x38] sm:$0xff]
        %v756 = vld [vmem:[#allocation2 + $0x40] sm:$0xff]
        %v757 = vld [vmem:[#allocation2 + $0x48] sm:$0xff]
        %v758 = vld [vmem:[#allocation2 + $0x50] sm:$0xff]
        %v759 = vld [vmem:[#allocation2 + $0x58] sm:$0xff]
        %v760 = vld [vmem:[#allocation2 + $0x60] sm:$0xff]
        %v761 = vld [vmem:[#allocation2 + $0x68] sm:$0xff]
        %v762 = vld [vmem:[#allocation2 + $0x70] sm:$0xff]
        %v763 = vld [vmem:[#allocation2 + $0x78] sm:$0xff]
        %v764 = vld [vmem:[#allocation2 + $0x80] sm:$0xff]
        %v765 = vld [vmem:[#allocation2 + $0x88] sm:$0xff]
        %v766 = vld [vmem:[#allocation2 + $0x90] sm:$0xff]
        %v767 = vld [vmem:[#allocation2 + $0x98] sm:$0xff]
        %v768 = vld [vmem:[#allocation2 + $0xa0] sm:$0xff]
        %v769 = vld [vmem:[#allocation2 + $0xa8] sm:$0xff]
        %v770 = vld [vmem:[#allocation2 + $0xb0] sm:$0xff]
        %v771 = vld [vmem:[#allocation2 + $0xb8] sm:$0xff]
        %v772 = vld [vmem:[#allocation2 + $0xc0] sm:$0xff]
        %v773 = vld [vmem:[#allocation2 + $0xc8] sm:$0xff]
        %v774 = vld [vmem:[#allocation2 + $0xd0] sm:$0xff]
        %v775 = vld [vmem:[#allocation2 + $0xd8] sm:$0xff]
        %v776 = vld [vmem:[#allocation2 + $0xe0] sm:$0xff]
        %v777 = vld [vmem:[#allocation2 + $0xe8] sm:$0xff]
        %v778 = vld [vmem:[#allocation2 + $0xf0] sm:$0xff]
        %v779 = vld [vmem:[#allocation2 + $0xf8] sm:$0xff]
        %v780 = vld [vmem:[%s249] sm:$0x1]
        %v782 = vlaneseq
        %v783 = vshrl.u32 %v782, 7
        %v784 = vsub.s32 0, %v783
        %v785 = vrot.slane %v780, %v784
        %v787 = vadd.f32 %v748, %v785
        %v788 = vadd.f32 %v749, %v785
        %v789 = vadd.f32 %v750, %v785
        %v790 = vadd.f32 %v751, %v785
        %v791 = vadd.f32 %v752, %v785
        %v792 = vadd.f32 %v753, %v785
        %v793 = vadd.f32 %v754, %v785
        %v794 = vadd.f32 %v755, %v785
        %v795 = vadd.f32 %v756, %v785
        %v796 = vadd.f32 %v757, %v785
        %v797 = vadd.f32 %v758, %v785
        %v798 = vadd.f32 %v759, %v785
        %v799 = vadd.f32 %v760, %v785
        %v800 = vadd.f32 %v761, %v785
        %v801 = vadd.f32 %v762, %v785
        %v802 = vadd.f32 %v763, %v785
        %v803 = vadd.f32 %v764, %v785
        %v804 = vadd.f32 %v765, %v785
        %v805 = vadd.f32 %v766, %v785
        %v806 = vadd.f32 %v767, %v785
        %v807 = vadd.f32 %v768, %v785
        %v808 = vadd.f32 %v769, %v785
        %v809 = vadd.f32 %v770, %v785
        %v810 = vadd.f32 %v771, %v785
        %v811 = vadd.f32 %v772, %v785
        %v812 = vadd.f32 %v773, %v785
        %v813 = vadd.f32 %v774, %v785
        %v814 = vadd.f32 %v775, %v785
        %v815 = vadd.f32 %v776, %v785
        %v816 = vadd.f32 %v777, %v785
        %v817 = vadd.f32 %v778, %v785
        %v818 = vadd.f32 %v779, %v785
        %v819 = vmax.f32 %v787, 0.0
        %v820 = vmax.f32 %v788, 0.0
        %v821 = vmax.f32 %v789, 0.0
        %v822 = vmax.f32 %v790, 0.0
        %v823 = vmax.f32 %v791, 0.0
        %v824 = vmax.f32 %v792, 0.0
        %v825 = vmax.f32 %v793, 0.0
        %v826 = vmax.f32 %v794, 0.0
        %v827 = vmax.f32 %v795, 0.0
        %v828 = vmax.f32 %v796, 0.0
        %v829 = vmax.f32 %v797, 0.0
        %v830 = vmax.f32 %v798, 0.0
        %v831 = vmax.f32 %v799, 0.0
        %v832 = vmax.f32 %v800, 0.0
        %v833 = vmax.f32 %v801, 0.0
        %v834 = vmax.f32 %v802, 0.0
        %v835 = vmax.f32 %v803, 0.0
        %v836 = vmax.f32 %v804, 0.0
        %v837 = vmax.f32 %v805, 0.0
        %v838 = vmax.f32 %v806, 0.0
        %v839 = vmax.f32 %v807, 0.0
        %v840 = vmax.f32 %v808, 0.0
        %v841 = vmax.f32 %v809, 0.0
        %v842 = vmax.f32 %v810, 0.0
        %v843 = vmax.f32 %v811, 0.0
        %v844 = vmax.f32 %v812, 0.0
        %v845 = vmax.f32 %v813, 0.0
        %v846 = vmax.f32 %v814, 0.0
        %v847 = vmax.f32 %v815, 0.0
        %v848 = vmax.f32 %v816, 0.0
        %v849 = vmax.f32 %v817, 0.0
        %v850 = vmax.f32 %v818, 0.0
        %851 = vst [vmem:[%s257] sm:$0xff] %v819
        %852 = vst [vmem:[%s257 + $0x8] sm:$0xff] %v820
        %853 = vst [vmem:[%s257 + $0x10] sm:$0xff] %v821
        %854 = vst [vmem:[%s257 + $0x18] sm:$0xff] %v822
        %855 = vst [vmem:[%s257 + $0x20] sm:$0xff] %v823
        %856 = vst [vmem:[%s257 + $0x28] sm:$0xff] %v824
        %857 = vst [vmem:[%s257 + $0x30] sm:$0xff] %v825
        %858 = vst [vmem:[%s257 + $0x38] sm:$0xff] %v826
        %859 = vst [vmem:[%s257 + $0x40] sm:$0xff] %v827
        %860 = vst [vmem:[%s257 + $0x48] sm:$0xff] %v828
        %861 = vst [vmem:[%s257 + $0x50] sm:$0xff] %v829
        %862 = vst [vmem:[%s257 + $0x58] sm:$0xff] %v830
        %863 = vst [vmem:[%s257 + $0x60] sm:$0xff] %v831
        %864 = vst [vmem:[%s257 + $0x68] sm:$0xff] %v832
        %865 = vst [vmem:[%s257 + $0x70] sm:$0xff] %v833
        %866 = vst [vmem:[%s257 + $0x78] sm:$0xff] %v834
        %867 = vst [vmem:[%s257 + $0x80] sm:$0xff] %v835
        %868 = vst [vmem:[%s257 + $0x88] sm:$0xff] %v836
        %869 = vst [vmem:[%s257 + $0x90] sm:$0xff] %v837
        %870 = vst [vmem:[%s257 + $0x98] sm:$0xff] %v838
        %871 = vst [vmem:[%s257 + $0xa0] sm:$0xff] %v839
        %872 = vst [vmem:[%s257 + $0xa8] sm:$0xff] %v840
        %873 = vst [vmem:[%s257 + $0xb0] sm:$0xff] %v841
        %874 = vst [vmem:[%s257 + $0xb8] sm:$0xff] %v842
        %875 = vst [vmem:[%s257 + $0xc0] sm:$0xff] %v843
        %876 = vst [vmem:[%s257 + $0xc8] sm:$0xff] %v844
        %877 = vst [vmem:[%s257 + $0xd0] sm:$0xff] %v845
        %878 = vst [vmem:[%s257 + $0xd8] sm:$0xff] %v846
        %879 = vst [vmem:[%s257 + $0xe0] sm:$0xff] %v847
        %880 = vst [vmem:[%s257 + $0xe8] sm:$0xff] %v848
        %881 = vst [vmem:[%s257 + $0xf0] sm:$0xff] %v849
        %882 = vst [vmem:[%s257 + $0xf8] sm:$0xff] %v850
      $region40: #{svae_conv_forward.35} parent=31 // pred_fallthru
        _
      %s883 = smul.u32 32, %s19
      %p884 = scmp.lt.s32.totalorder %s883, 63
      %s885 = scalar_select %p884, %s883, 63
      %p886 = scmp.lt.s32.totalorder %s20, 0
      %s887 = scalar_select %p886, %s20, 0
      %s888 = sadd.s32 %s887, %s885
      %s889 = smul.addr %s888, 8
      %s890 = scalar_lea.vmem %s3, %s889
      // Predicated region
      $region41: #{svae_conv_forward.35} parent=31 // pred_check
        %p891 = pneg %p135
      $region42: #{svae_conv_forward.35} parent=31 // pred_check_branch
        %893 = sbr.rel (%p891) target = $region44
      $region43: #{svae_conv_forward.35} parent=31 // pred_region
        %s894 = smul.u32 32, %s19
      $region44: #{svae_conv_forward.35} parent=31 // pred_fallthru
        _
    $region32: #{svae_conv_forward.35} parent=5 // pred_fallthru
      _
    %p895 = scmp.le.s32.totalorder 2, %s9
    // Predicated region
    $region45: #{svae_conv_forward.35} parent=5 // pred_check
      %p896 = pneg %p895
    $region46: #{svae_conv_forward.35} parent=5 // pred_check_branch
      %898 = sbr.rel (%p896) target = $region48
    $region47: #{svae_conv_forward.35} parent=5 // pred_region
      %s899 = ssub.s32 %s9, 2
      // Predicated region
      $region49: #{svae_conv_forward.35} parent=47 // pred_check
        %p900 = pneg %p141
      $region50: #{svae_conv_forward.35} parent=47 // pred_check_branch
        %902 = sbr.rel (%p900) target = $region52
      $region51: #{svae_conv_forward.35} parent=47 // pred_region
        %s903 = smul.u32 32, %s22
        %p904 = scmp.lt.s32.totalorder %s903, 63
        %s905 = scalar_select %p904, %s903, 63
        %p906 = scmp.lt.s32.totalorder %s23, 0
        %s907 = scalar_select %p906, %s23, 0
        %s908 = sadd.s32 %s907, %s905
        %s909 = smul.addr %s908, 8
        %s910 = scalar_lea.vmem %s3, %s909
      $region52: #{svae_conv_forward.35} parent=47 // pred_fallthru
        _
    $region48: #{svae_conv_forward.35} parent=5 // pred_fallthru
      _
  $region6: #{svae_conv_forward.35} parent=0 // loop_footer
    %s13 = sadd.s32 1, %s9
  $region7: #{svae_conv_forward.35} parent=0 // loop_footer_branch
    %8 = sbr.rel target = $region3
  $region8: #{svae_conv_forward.35} parent=0 // loop_exit
    _

// kernel: svae_conv_forward.39
$region0: #{svae_conv_forward.39}
  #allocation0 [shape = 'u32[]', space=smem, size = 0x4, offset = 0x4, fixed_abs, tag = 'smem constant byte address 0x4 - core index']
  #allocation1 [shape = 'u32[144,128]{1,0:T(1,128)}', space=vmem, size = 0x12000, scoped, tag = 'internal scratch']
  #allocation2 [shape = 'f32[256,128]{1,0:T(8,128)}', space=vmem, size = 0x20000, scoped, tag = 'scratch operand']
  %s0 = inlined_call_operand.vmem [shape: bf16[2048,384], index: 0, kind: input, shape index: {}]
  %s1 = inlined_call_operand.vmem [shape: bf16[384,128], index: 1, kind: input, shape index: {}]
  %s2 = inlined_call_operand.vmem [shape: f32[1,128], index: 2, kind: input, shape index: {}]
  %s3 = inlined_call_operand.vmem [shape: f32[2048,128], index: 3, kind: output, shape index: {}]
  %s4 = sld [smem:[#allocation0]]
  $region53: #{svae_conv_forward.39} parent=0
    _
  %s6 = ssub.s32 1, %s4
  %s7 = scalar_select 0, %s6, %s4
  loop: start=0, step=1, limit=10
  $region2: #{svae_conv_forward.39} parent=0 // loop_pre_header
    _
  $region3: #{svae_conv_forward.39} parent=0 // loop_header
    %s9 = sphi 0, %s13
    %p10 = scmp.ge.s32.totalorder %s9, 10
    %s16 = sphi 0, %s35
    %s17 = sphi 0, %s31
    %s18 = sphi 0, %s27
    %s19 = sphi 0, %s16
    %s20 = sphi 0, %s17
    %s21 = sphi 0, %s18
    %s22 = sphi 0, %s19
    %s23 = sphi 0, %s20
    %s24 = sphi 0, %s21
    %s40 = sphi 0, %s42
    %s43 = sphi 0, %s40
    %s44 = sphi 0, %s43
    %s60 = sphi 0, %s44
    %s68 = sphi 0, %s70
    %s71 = sphi 0, %s68
    %s72 = sphi 0, %s71
    %s88 = sphi 0, %s72
    %s94 = sphi 0, %s96
    %s97 = sphi 0, %s94
    %s98 = sphi 0, %s97
    %s114 = sphi 0, %s98
    %s122 = sphi 0, %s124
    %s125 = sphi 0, %s122
    %s126 = sphi 0, %s125
    %s142 = sphi 0, %s126
  $region4: #{svae_conv_forward.39} parent=0 // loop_header_branch
    %12 = sbr.rel (%p10) target = $region8
  $region5: #{svae_conv_forward.39} parent=0 // loop_body
    %s14 = ssub.s32 %s9, 1
    %s15 = ssub.s32 %s9, 2
    %s25 = sadd.s32 1, %s18
    %p26 = scmp.ge.s32.totalorder %s25, 1
    %s27 = scalar_select %p26, 0, %s25
    %s28 = sadd.s32 1, %s17
    %s29 = scalar_select %p26, %s28, %s17
    %p30 = scmp.ge.s32.totalorder %s29, 1
    %s31 = scalar_select %p30, 0, %s29
    %s32 = sadd.s32 1, %s16
    %s33 = scalar_select %p30, %s32, %s16
    %p34 = scmp.ge.s32.totalorder %s33, 8
    %s35 = scalar_select %p34, 0, %s33
    %s36 = ssub.s32 %s16, %s35
    %s37 = ssub.s32 %s18, %s27
    %s38 = sor.u32 %s36, %s37
    %p39 = scmp.eq.s32.totalorder %s38, 0
    %s41 = sadd.s32 %s40, 1
    %s42 = scalar_select %p39, %s40, %s41
    %p45 = pneg %p39
    %p46 = scmp.eq.s32.totalorder %s9, 7
    %p47 = por %p45, %p46
    %p48 = scmp.ne.s32.totalorder %s40, %s43
    %p49 = scmp.eq.s32.totalorder %s9, 0
    %p50 = por %p48, %p49
    %p51 = scmp.ne.s32.totalorder %s40, %s43
    %p52 = scmp.eq.s32.totalorder %s14, 7
    %p53 = por %p51, %p52
    %p54 = scmp.ne.s32.totalorder %s43, %s44
    %p55 = scmp.eq.s32.totalorder %s14, 0
    %p56 = por %p54, %p55
    %p57 = scmp.ne.s32.totalorder %s43, %s44
    %p58 = scmp.eq.s32.totalorder %s15, 7
    %p59 = por %p57, %p58
    %p61 = scmp.ne.s32.totalorder %s44, %s60
    %p62 = scmp.eq.s32.totalorder %s15, 0
    %p63 = por %p61, %p62
    %s64 = ssub.s32 %s18, %s27
    %s65 = ssub.s32 %s17, %s31
    %s66 = sor.u32 %s64, %s65
    %p67 = scmp.eq.s32.totalorder %s66, 0
    %s69 = sadd.s32 %s68, 1
    %s70 = scalar_select %p67, %s68, %s69
    %p73 = pneg %p67
    %p74 = scmp.eq.s32.totalorder %s9, 7
    %p75 = por %p73, %p74
    %p76 = scmp.ne.s32.totalorder %s68, %s71
    %p77 = scmp.eq.s32.totalorder %s9, 0
    %p78 = por %p76, %p77
    %p79 = scmp.ne.s32.totalorder %s68, %s71
    %p80 = scmp.eq.s32.totalorder %s14, 7
    %p81 = por %p79, %p80
    %p82 = scmp.ne.s32.totalorder %s71, %s72
    %p83 = scmp.eq.s32.totalorder %s14, 0
    %p84 = por %p82, %p83
    %p85 = scmp.ne.s32.totalorder %s71, %s72
    %p86 = scmp.eq.s32.totalorder %s15, 7
    %p87 = por %p85, %p86
    %p89 = scmp.ne.s32.totalorder %s72, %s88
    %p90 = scmp.eq.s32.totalorder %s15, 0
    %p91 = por %p89, %p90
    %s92 = ssub.s32 %s17, %s31
    %p93 = scmp.eq.s32.totalorder %s92, 0
    %s95 = sadd.s32 %s94, 1
    %s96 = scalar_select %p93, %s94, %s95
    %p99 = pneg %p93
    %p100 = scmp.eq.s32.totalorder %s9, 7
    %p101 = por %p99, %p100
    %p102 = scmp.ne.s32.totalorder %s94, %s97
    %p103 = scmp.eq.s32.totalorder %s9, 0
    %p104 = por %p102, %p103
    %p105 = scmp.ne.s32.totalorder %s94, %s97
    %p106 = scmp.eq.s32.totalorder %s14, 7
    %p107 = por %p105, %p106
    %p108 = scmp.ne.s32.totalorder %s97, %s98
    %p109 = scmp.eq.s32.totalorder %s14, 0
    %p110 = por %p108, %p109
    %p111 = scmp.ne.s32.totalorder %s97, %s98
    %p112 = scmp.eq.s32.totalorder %s15, 7
    %p113 = por %p111, %p112
    %p115 = scmp.ne.s32.totalorder %s98, %s114
    %p116 = scmp.eq.s32.totalorder %s15, 0
    %p117 = por %p115, %p116
    %s118 = ssub.s32 %s16, %s35
    %s119 = ssub.s32 %s17, %s31
    %s120 = sor.u32 %s118, %s119
    %p121 = scmp.eq.s32.totalorder %s120, 0
    %s123 = sadd.s32 %s122, 1
    %s124 = scalar_select %p121, %s122, %s123
    %p127 = pneg %p121
    %p128 = scmp.eq.s32.totalorder %s9, 7
    %p129 = por %p127, %p128
    %p130 = scmp.ne.s32.totalorder %s122, %s125
    %p131 = scmp.eq.s32.totalorder %s9, 0
    %p132 = por %p130, %p131
    %p133 = scmp.ne.s32.totalorder %s122, %s125
    %p134 = scmp.eq.s32.totalorder %s14, 7
    %p135 = por %p133, %p134
    %p136 = scmp.ne.s32.totalorder %s125, %s126
    %p137 = scmp.eq.s32.totalorder %s14, 0
    %p138 = por %p136, %p137
    %p139 = scmp.ne.s32.totalorder %s125, %s126
    %p140 = scmp.eq.s32.totalorder %s15, 7
    %p141 = por %p139, %p140
    %p143 = scmp.ne.s32.totalorder %s126, %s142
    %p144 = scmp.eq.s32.totalorder %s15, 0
    %p145 = por %p143, %p144
    %p146 = scmp.le.s32.totalorder 1, %s9
    %p147 = scmp.lt.s32.totalorder %s9, 9
    %p148 = pnand %p146, %p147
    %p149 = pneg %p148
    // Predicated region
    $region9: #{svae_conv_forward.39} parent=5 // pred_check
      _
    $region10: #{svae_conv_forward.39} parent=5 // pred_check_branch
      %151 = sbr.rel (%p148) target = $region12
    $region11: #{svae_conv_forward.39} parent=5 // pred_region
      %s152 = ssub.s32 %s9, 1
      // Predicated region
      $region13: #{svae_conv_forward.39} parent=11 // pred_check
        %p153 = pneg %p84
      $region14: #{svae_conv_forward.39} parent=11 // pred_check_branch
        %155 = sbr.rel (%p153) target = $region16
      $region15: #{svae_conv_forward.39} parent=11 // pred_region
        %s156 = smul.u32 48, %s21
        %p157 = scmp.lt.s32.totalorder %s156, 47
        %s158 = scalar_select %p157, %s156, 47
        %p159 = scmp.lt.s32.totalorder %s20, 0
        %s160 = scalar_select %p159, %s20, 0
        %s161 = sadd.s32 %s160, %s158
        %s162 = smul.addr %s161, 4
        %s163 = scalar_lea.vmem %s1, %s162
        %s164 = smul.u32 48, %s21
      $region16: #{svae_conv_forward.39} parent=11 // pred_fallthru
        _
      // Predicated region
      $region17: #{svae_conv_forward.39} parent=11 // pred_check
        %p165 = pneg %p110
      $region18: #{svae_conv_forward.39} parent=11 // pred_check_branch
        %167 = sbr.rel (%p165) target = $region20
      $region19: #{svae_conv_forward.39} parent=11 // pred_region
        %p168 = scmp.lt.s32.totalorder %s20, 0
        %s169 = scalar_select %p168, %s20, 0
        %s170 = scalar_lea.vmem %s2, %s169
      $region20: #{svae_conv_forward.39} parent=11 // pred_fallthru
        _
    $region12: #{svae_conv_forward.39} parent=5 // pred_fallthru
      _
    %p171 = scmp.lt.s32.totalorder %s9, 8
    // Predicated region
    $region21: #{svae_conv_forward.39} parent=5 // pred_check
      %p172 = pneg %p171
    $region22: #{svae_conv_forward.39} parent=5 // pred_check_branch
      %174 = sbr.rel (%p172) target = $region24
    $region23: #{svae_conv_forward.39} parent=5 // pred_region
      // Predicated region
      $region25: #{svae_conv_forward.39} parent=23 // pred_check
        %p175 = pneg %p50
      $region26: #{svae_conv_forward.39} parent=23 // pred_check_branch
        %177 = sbr.rel (%p175) target = $region28
      $region27: #{svae_conv_forward.39} parent=23 // pred_region
        %s178 = smul.u32 32, %s16
        %s179 = smul.u32 3, %s18
        %p180 = scmp.lt.s32.totalorder %s178, 255
        %s181 = scalar_select %p180, %s178, 255
        %p182 = scmp.lt.s32.totalorder %s179, 2
        %s183 = scalar_select %p182, %s179, 2
        %s184 = smul.addr %s181, 3
        %s185 = sadd.s32 %s183, %s184
        %s186 = smul.addr %s185, 4
        %s187 = scalar_lea.vmem %s0, %s186
        %s188 = smul.u32 32, %s16
        %s189 = smul.u32 3, %s18
      $region28: #{svae_conv_forward.39} parent=23 // pred_fallthru
        _
    $region24: #{svae_conv_forward.39} parent=5 // pred_fallthru
      _
    %p190 = scmp.le.s32.totalorder 1, %s9
    %p191 = scmp.lt.s32.totalorder %s9, 9
    %p192 = pnand %p190, %p191
    %p193 = pneg %p192
    // Predicated region
    $region29: #{svae_conv_forward.39} parent=5 // pred_check
      _
    $region30: #{svae_conv_forward.39} parent=5 // pred_check_branch
      %195 = sbr.rel (%p192) target = $region32
    $region31: #{svae_conv_forward.39} parent=5 // pred_region
      %s196 = ssub.s32 %s9, 1
      %s197 = smul.u32 32, %s19
      %s198 = smul.u32 3, %s21
      %p199 = scmp.lt.s32.totalorder %s197, 255
      %s200 = scalar_select %p199, %s197, 255
      %p201 = scmp.lt.s32.totalorder %s198, 2
      %s202 = scalar_select %p201, %s198, 2
      %s203 = smul.addr %s200, 3
      %s204 = sadd.s32 %s202, %s203
      %s205 = smul.addr %s204, 4
      %s206 = scalar_lea.vmem %s0, %s205
      %p207 = pneg %p56
      %p208 = pneg %p53
      %s209 = smul.u32 48, %s21
      %p210 = scmp.lt.s32.totalorder %s209, 47
      %s211 = scalar_select %p210, %s209, 47
      %p212 = scmp.lt.s32.totalorder %s20, 0
      %s213 = scalar_select %p212, %s20, 0
      %s214 = sadd.s32 %s213, %s211
      %s215 = smul.addr %s214, 4
      %s216 = scalar_lea.vmem %s1, %s215
      %p217 = pneg %p84
      %p218 = pneg %p81
      %p219 = scmp.lt.s32.totalorder %s20, 0
      %s220 = scalar_select %p219, %s20, 0
      %s221 = scalar_lea.vmem %s2, %s220
      %p222 = pneg %p110
      %p223 = pneg %p107
      %p224 = pneg %p138
      %p225 = pneg %p135
      %s226 = smul.u32 32, %s19
      %p227 = scmp.lt.s32.totalorder %s226, 255
      %s228 = scalar_select %p227, %s226, 255
      %p229 = scmp.lt.s32.totalorder %s20, 0
      %s230 = scalar_select %p229, %s20, 0
      %s231 = sadd.s32 %s230, %s228
      %s232 = smul.addr %s231, 8
      %s233 = scalar_lea.vmem %s3, %s232
      %s234 = smul.u32 32, %s19
      %s235 = smul.u32 3, %s21
      %p236 = scmp.lt.s32.totalorder %s234, 255
      %s237 = scalar_select %p236, %s234, 255
      %p238 = scmp.lt.s32.totalorder %s235, 2
      %s239 = scalar_select %p238, %s235, 2
      %s240 = smul.addr %s237, 3
      %s241 = sadd.s32 %s239, %s240
      %s242 = smul.addr %s241, 4
      %s243 = scalar_lea.vmem %s0, %s242
      %s244 = smul.u32 32, %s19
      %s245 = smul.u32 3, %s21
      %s246 = smul.u32 48, %s21
      %p247 = scmp.lt.s32.totalorder %s246, 47
      %s248 = scalar_select %p247, %s246, 47
      %p249 = scmp.lt.s32.totalorder %s20, 0
      %s250 = scalar_select %p249, %s20, 0
      %s251 = sadd.s32 %s250, %s248
      %s252 = smul.addr %s251, 4
      %s253 = scalar_lea.vmem %s1, %s252
      %s254 = smul.u32 48, %s21
      %p255 = scmp.lt.s32.totalorder %s20, 0
      %s256 = scalar_select %p255, %s20, 0
      %s257 = scalar_lea.vmem %s2, %s256
      %s258 = smul.u32 32, %s19
      %p259 = scmp.lt.s32.totalorder %s258, 255
      %s260 = scalar_select %p259, %s258, 255
      %p261 = scmp.lt.s32.totalorder %s20, 0
      %s262 = scalar_select %p261, %s20, 0
      %s263 = sadd.s32 %s262, %s260
      %s264 = smul.addr %s263, 8
      %s265 = scalar_lea.vmem %s3, %s264
      %s266 = smul.u32 32, %s19
      %p268 = scmp.eq.s32.totalorder %s21, 0
      // Predicated region
      $region33: #{svae_conv_forward.39} parent=31 // pred_check
        %p269 = pneg %p268
      $region34: #{svae_conv_forward.39} parent=31 // pred_check_branch
        %271 = sbr.rel (%p269) target = $region36
      $region35: #{svae_conv_forward.39} parent=31 // pred_region
        %272 = vst [vmem:[#allocation2] sm:$0xff] 0.0
        %273 = vst [vmem:[#allocation2 + $0x8] sm:$0xff] 0.0
        %274 = vst [vmem:[#allocation2 + $0x10] sm:$0xff] 0.0
        %275 = vst [vmem:[#allocation2 + $0x18] sm:$0xff] 0.0
        %276 = vst [vmem:[#allocation2 + $0x20] sm:$0xff] 0.0
        %277 = vst [vmem:[#allocation2 + $0x28] sm:$0xff] 0.0
        %278 = vst [vmem:[#allocation2 + $0x30] sm:$0xff] 0.0
        %279 = vst [vmem:[#allocation2 + $0x38] sm:$0xff] 0.0
        %280 = vst [vmem:[#allocation2 + $0x40] sm:$0xff] 0.0
        %281 = vst [vmem:[#allocation2 + $0x48] sm:$0xff] 0.0
        %282 = vst [vmem:[#allocation2 + $0x50] sm:$0xff] 0.0
        %283 = vst [vmem:[#allocation2 + $0x58] sm:$0xff] 0.0
        %284 = vst [vmem:[#allocation2 + $0x60] sm:$0xff] 0.0
        %285 = vst [vmem:[#allocation2 + $0x68] sm:$0xff] 0.0
        %286 = vst [vmem:[#allocation2 + $0x70] sm:$0xff] 0.0
        %287 = vst [vmem:[#allocation2 + $0x78] sm:$0xff] 0.0
        %288 = vst [vmem:[#allocation2 + $0x80] sm:$0xff] 0.0
        %289 = vst [vmem:[#allocation2 + $0x88] sm:$0xff] 0.0
        %290 = vst [vmem:[#allocation2 + $0x90] sm:$0xff] 0.0
        %291 = vst [vmem:[#allocation2 + $0x98] sm:$0xff] 0.0
        %292 = vst [vmem:[#allocation2 + $0xa0] sm:$0xff] 0.0
        %293 = vst [vmem:[#allocation2 + $0xa8] sm:$0xff] 0.0
        %294 = vst [vmem:[#allocation2 + $0xb0] sm:$0xff] 0.0
        %295 = vst [vmem:[#allocation2 + $0xb8] sm:$0xff] 0.0
        %296 = vst [vmem:[#allocation2 + $0xc0] sm:$0xff] 0.0
        %297 = vst [vmem:[#allocation2 + $0xc8] sm:$0xff] 0.0
        %298 = vst [vmem:[#allocation2 + $0xd0] sm:$0xff] 0.0
        %299 = vst [vmem:[#allocation2 + $0xd8] sm:$0xff] 0.0
        %300 = vst [vmem:[#allocation2 + $0xe0] sm:$0xff] 0.0
        %301 = vst [vmem:[#allocation2 + $0xe8] sm:$0xff] 0.0
        %302 = vst [vmem:[#allocation2 + $0xf0] sm:$0xff] 0.0
        %303 = vst [vmem:[#allocation2 + $0xf8] sm:$0xff] 0.0
      $region36: #{svae_conv_forward.39} parent=31 // pred_fallthru
        _
      %v304 = vld [vmem:[#allocation2] sm:$0xff]
      %v305 = vld [vmem:[#allocation2 + $0x8] sm:$0xff]
      %v306 = vld [vmem:[#allocation2 + $0x10] sm:$0xff]
      %v307 = vld [vmem:[#allocation2 + $0x18] sm:$0xff]
      %v308 = vld [vmem:[#allocation2 + $0x20] sm:$0xff]
      %v309 = vld [vmem:[#allocation2 + $0x28] sm:$0xff]
      %v310 = vld [vmem:[#allocation2 + $0x30] sm:$0xff]
      %v311 = vld [vmem:[#allocation2 + $0x38] sm:$0xff]
      %v312 = vld [vmem:[#allocation2 + $0x40] sm:$0xff]
      %v313 = vld [vmem:[#allocation2 + $0x48] sm:$0xff]
      %v314 = vld [vmem:[#allocation2 + $0x50] sm:$0xff]
      %v315 = vld [vmem:[#allocation2 + $0x58] sm:$0xff]
      %v316 = vld [vmem:[#allocation2 + $0x60] sm:$0xff]
      %v317 = vld [vmem:[#allocation2 + $0x68] sm:$0xff]
      %v318 = vld [vmem:[#allocation2 + $0x70] sm:$0xff]
      %v319 = vld [vmem:[#allocation2 + $0x78] sm:$0xff]
      %v320 = vld [vmem:[#allocation2 + $0x80] sm:$0xff]
      %v321 = vld [vmem:[#allocation2 + $0x88] sm:$0xff]
      %v322 = vld [vmem:[#allocation2 + $0x90] sm:$0xff]
      %v323 = vld [vmem:[#allocation2 + $0x98] sm:$0xff]
      %v324 = vld [vmem:[#allocation2 + $0xa0] sm:$0xff]
      %v325 = vld [vmem:[#allocation2 + $0xa8] sm:$0xff]
      %v326 = vld [vmem:[#allocation2 + $0xb0] sm:$0xff]
      %v327 = vld [vmem:[#allocation2 + $0xb8] sm:$0xff]
      %v328 = vld [vmem:[#allocation2 + $0xc0] sm:$0xff]
      %v329 = vld [vmem:[#allocation2 + $0xc8] sm:$0xff]
      %v330 = vld [vmem:[#allocation2 + $0xd0] sm:$0xff]
      %v331 = vld [vmem:[#allocation2 + $0xd8] sm:$0xff]
      %v332 = vld [vmem:[#allocation2 + $0xe0] sm:$0xff]
      %v333 = vld [vmem:[#allocation2 + $0xe8] sm:$0xff]
      %v334 = vld [vmem:[#allocation2 + $0xf0] sm:$0xff]
      %v335 = vld [vmem:[#allocation2 + $0xf8] sm:$0xff]
      %v336 = vld [vmem:[%s243] sm:$0xff]
      %v337 = vld [vmem:[%s243 + $0x8] sm:$0xf]
      %v338 = vld [vmem:[%s243 + $0xc] sm:$0xff]
      %v339 = vld [vmem:[%s243 + $0x14] sm:$0xf]
      %v340 = vld [vmem:[%s243 + $0x18] sm:$0xff]
      %v341 = vld [vmem:[%s243 + $0x20] sm:$0xf]
      %v342 = vld [vmem:[%s243 + $0x24] sm:$0xff]
      %v343 = vld [vmem:[%s243 + $0x2c] sm:$0xf]
      %v344 = vld [vmem:[%s243 + $0x30] sm:$0xff]
      %v345 = vld [vmem:[%s243 + $0x38] sm:$0xf]
      %v346 = vld [vmem:[%s243 + $0x3c] sm:$0xff]
      %v347 = vld [vmem:[%s243 + $0x44] sm:$0xf]
      %v348 = vld [vmem:[%s243 + $0x48] sm:$0xff]
      %v349 = vld [vmem:[%s243 + $0x50] sm:$0xf]
      %v350 = vld [vmem:[%s243 + $0x54] sm:$0xff]
      %v351 = vld [vmem:[%s243 + $0x5c] sm:$0xf]
      %v352 = vld [vmem:[%s243 + $0x60] sm:$0xff]
      %v353 = vld [vmem:[%s243 + $0x68] sm:$0xf]
      %v354 = vld [vmem:[%s243 + $0x6c] sm:$0xff]
      %v355 = vld [vmem:[%s243 + $0x74] sm:$0xf]
      %v356 = vld [vmem:[%s243 + $0x78] sm:$0xff]
      %v357 = vld [vmem:[%s243 + $0x80] sm:$0xf]
      %v358 = vld [vmem:[%s243 + $0x84] sm:$0xff]
      %v359 = vld [vmem:[%s243 + $0x8c] sm:$0xf]
      %v360 = vld [vmem:[%s243 + $0x90] sm:$0xff]
      %v361 = vld [vmem:[%s243 + $0x98] sm:$0xf]
      %v362 = vld [vmem:[%s243 + $0x9c] sm:$0xff]
      %v363 = vld [vmem:[%s243 + $0xa4] sm:$0xf]
      %v364 = vld [vmem:[%s243 + $0xa8] sm:$0xff]
      %v365 = vld [vmem:[%s243 + $0xb0] sm:$0xf]
      %v366 = vld [vmem:[%s243 + $0xb4] sm:$0xff]
      %v367 = vld [vmem:[%s243 + $0xbc] sm:$0xf]
      %v368 = vld [vmem:[%s243 + $0xc0] sm:$0xff]
      %v369 = vld [vmem:[%s243 + $0xc8] sm:$0xf]
      %v370 = vld [vmem:[%s243 + $0xcc] sm:$0xff]
      %v371 = vld [vmem:[%s243 + $0xd4] sm:$0xf]
      %v372 = vld [vmem:[%s243 + $0xd8] sm:$0xff]
      %v373 = vld [vmem:[%s243 + $0xe0] sm:$0xf]
      %v374 = vld [vmem:[%s243 + $0xe4] sm:$0xff]
      %v375 = vld [vmem:[%s243 + $0xec] sm:$0xf]
      %v376 = vld [vmem:[%s243 + $0xf0] sm:$0xff]
      %v377 = vld [vmem:[%s243 + $0xf8] sm:$0xf]
      %v378 = vld [vmem:[%s243 + $0xfc] sm:$0xff]
      %v379 = vld [vmem:[%s243 + $0x104] sm:$0xf]
      %v380 = vld [vmem:[%s243 + $0x108] sm:$0xff]
      %v381 = vld [vmem:[%s243 + $0x110] sm:$0xf]
      %v382 = vld [vmem:[%s243 + $0x114] sm:$0xff]
      %v383 = vld [vmem:[%s243 + $0x11c] sm:$0xf]
      %v384 = vld [vmem:[%s243 + $0x120] sm:$0xff]
      %v385 = vld [vmem:[%s243 + $0x128] sm:$0xf]
      %v386 = vld [vmem:[%s243 + $0x12c] sm:$0xff]
      %v387 = vld [vmem:[%s243 + $0x134] sm:$0xf]
      %v388 = vld [vmem:[%s243 + $0x138] sm:$0xff]
      %v389 = vld [vmem:[%s243 + $0x140] sm:$0xf]
      %v390 = vld [vmem:[%s243 + $0x144] sm:$0xff]
      %v391 = vld [vmem:[%s243 + $0x14c] sm:$0xf]
      %v392 = vld [vmem:[%s243 + $0x150] sm:$0xff]
      %v393 = vld [vmem:[%s243 + $0x158] sm:$0xf]
      %v394 = vld [vmem:[%s243 + $0x15c] sm:$0xff]
      %v395 = vld [vmem:[%s243 + $0x164] sm:$0xf]
      %v396 = vld [vmem:[%s243 + $0x168] sm:$0xff]
      %v397 = vld [vmem:[%s243 + $0x170] sm:$0xf]
      %v398 = vld [vmem:[%s243 + $0x174] sm:$0xff]
      %v399 = vld [vmem:[%s243 + $0x17c] sm:$0xf]
      %v400 = vld [vmem:[%s253] sm:$0xf]
      %v401 = vld [vmem:[%s253 + $0x4] sm:$0xf]
      %v402 = vld [vmem:[%s253 + $0x8] sm:$0xf]
      %v403 = vld [vmem:[%s253 + $0xc] sm:$0xf]
      %v404 = vld [vmem:[%s253 + $0x10] sm:$0xf]
      %v405 = vld [vmem:[%s253 + $0x14] sm:$0xf]
      %v406 = vld [vmem:[%s253 + $0x18] sm:$0xf]
      %v407 = vld [vmem:[%s253 + $0x1c] sm:$0xf]
      %v408 = vld [vmem:[%s253 + $0x20] sm:$0xf]
      %v409 = vld [vmem:[%s253 + $0x24] sm:$0xf]
      %v410 = vld [vmem:[%s253 + $0x28] sm:$0xf]
      %v411 = vld [vmem:[%s253 + $0x2c] sm:$0xf]
      %v412 = vld [vmem:[%s253 + $0x30] sm:$0xf]
      %v413 = vld [vmem:[%s253 + $0x34] sm:$0xf]
      %v414 = vld [vmem:[%s253 + $0x38] sm:$0xf]
      %v415 = vld [vmem:[%s253 + $0x3c] sm:$0xf]
      %v416 = vld [vmem:[%s253 + $0x40] sm:$0xf]
      %v417 = vld [vmem:[%s253 + $0x44] sm:$0xf]
      %v418 = vld [vmem:[%s253 + $0x48] sm:$0xf]
      %v419 = vld [vmem:[%s253 + $0x4c] sm:$0xf]
      %v420 = vld [vmem:[%s253 + $0x50] sm:$0xf]
      %v421 = vld [vmem:[%s253 + $0x54] sm:$0xf]
      %v422 = vld [vmem:[%s253 + $0x58] sm:$0xf]
      %v423 = vld [vmem:[%s253 + $0x5c] sm:$0xf]
      %v424 = vld [vmem:[%s253 + $0x60] sm:$0xf]
      %v425 = vld [vmem:[%s253 + $0x64] sm:$0xf]
      %v426 = vld [vmem:[%s253 + $0x68] sm:$0xf]
      %v427 = vld [vmem:[%s253 + $0x6c] sm:$0xf]
      %v428 = vld [vmem:[%s253 + $0x70] sm:$0xf]
      %v429 = vld [vmem:[%s253 + $0x74] sm:$0xf]
      %v430 = vld [vmem:[%s253 + $0x78] sm:$0xf]
      %v431 = vld [vmem:[%s253 + $0x7c] sm:$0xf]
      %v432 = vld [vmem:[%s253 + $0x80] sm:$0xf]
      %v433 = vld [vmem:[%s253 + $0x84] sm:$0xf]
      %v434 = vld [vmem:[%s253 + $0x88] sm:$0xf]
      %v435 = vld [vmem:[%s253 + $0x8c] sm:$0xf]
      %v436 = vld [vmem:[%s253 + $0x90] sm:$0xf]
      %v437 = vld [vmem:[%s253 + $0x94] sm:$0xf]
      %v438 = vld [vmem:[%s253 + $0x98] sm:$0xf]
      %v439 = vld [vmem:[%s253 + $0x9c] sm:$0xf]
      %v440 = vld [vmem:[%s253 + $0xa0] sm:$0xf]
      %v441 = vld [vmem:[%s253 + $0xa4] sm:$0xf]
      %v442 = vld [vmem:[%s253 + $0xa8] sm:$0xf]
      %v443 = vld [vmem:[%s253 + $0xac] sm:$0xf]
      %v444 = vld [vmem:[%s253 + $0xb0] sm:$0xf]
      %v445 = vld [vmem:[%s253 + $0xb4] sm:$0xf]
      %v446 = vld [vmem:[%s253 + $0xb8] sm:$0xf]
      %v447 = vld [vmem:[%s253 + $0xbc] sm:$0xf]
      %v512 = vunpack.c.l.b16 %v336
      %v513 = vunpack.c.h.b16 %v336
      %v514 = vunpack.c.l.b16 %v337
      %v515 = vunpack.c.l.b16 %v338
      %v516 = vunpack.c.h.b16 %v338
      %v517 = vunpack.c.l.b16 %v339
      %v518 = vunpack.c.l.b16 %v340
      %v519 = vunpack.c.h.b16 %v340
      %v520 = vunpack.c.l.b16 %v341
      %v521 = vunpack.c.l.b16 %v342
      %v522 = vunpack.c.h.b16 %v342
      %v523 = vunpack.c.l.b16 %v343
      %v524 = vunpack.c.l.b16 %v344
      %v525 = vunpack.c.h.b16 %v344
      %v526 = vunpack.c.l.b16 %v345
      %v527 = vunpack.c.l.b16 %v346
      %v528 = vunpack.c.h.b16 %v346
      %v529 = vunpack.c.l.b16 %v347
      %v530 = vunpack.c.l.b16 %v348
      %v531 = vunpack.c.h.b16 %v348
      %v532 = vunpack.c.l.b16 %v349
      %v533 = vunpack.c.l.b16 %v350
      %v534 = vunpack.c.h.b16 %v350
      %v535 = vunpack.c.l.b16 %v351
      %v536 = vunpack.c.l.b16 %v352
      %v537 = vunpack.c.h.b16 %v352
      %v538 = vunpack.c.l.b16 %v353
      %v539 = vunpack.c.l.b16 %v354
      %v540 = vunpack.c.h.b16 %v354
      %v541 = vunpack.c.l.b16 %v355
      %v542 = vunpack.c.l.b16 %v356
      %v543 = vunpack.c.h.b16 %v356
      %v544 = vunpack.c.l.b16 %v357
      %v545 = vunpack.c.l.b16 %v358
      %v546 = vunpack.c.h.b16 %v358
      %v547 = vunpack.c.l.b16 %v359
      %v548 = vunpack.c.l.b16 %v360
      %v549 = vunpack.c.h.b16 %v360
      %v550 = vunpack.c.l.b16 %v361
      %v551 = vunpack.c.l.b16 %v362
      %v552 = vunpack.c.h.b16 %v362
      %v553 = vunpack.c.l.b16 %v363
      %v554 = vunpack.c.l.b16 %v364
      %v555 = vunpack.c.h.b16 %v364
      %v556 = vunpack.c.l.b16 %v365
      %v557 = vunpack.c.l.b16 %v366
      %v558 = vunpack.c.h.b16 %v366
      %v559 = vunpack.c.l.b16 %v367
      %v560 = vunpack.c.l.b16 %v368
      %v561 = vunpack.c.h.b16 %v368
      %v562 = vunpack.c.l.b16 %v369
      %v563 = vunpack.c.l.b16 %v370
      %v564 = vunpack.c.h.b16 %v370
      %v565 = vunpack.c.l.b16 %v371
      %v566 = vunpack.c.l.b16 %v372
      %v567 = vunpack.c.h.b16 %v372
      %v568 = vunpack.c.l.b16 %v373
      %v569 = vunpack.c.l.b16 %v374
      %v570 = vunpack.c.h.b16 %v374
      %v571 = vunpack.c.l.b16 %v375
      %v572 = vunpack.c.l.b16 %v376
      %v573 = vunpack.c.h.b16 %v376
      %v574 = vunpack.c.l.b16 %v377
      %v575 = vunpack.c.l.b16 %v378
      %v576 = vunpack.c.h.b16 %v378
      %v577 = vunpack.c.l.b16 %v379
      %v578 = vunpack.c.l.b16 %v380
      %v579 = vunpack.c.h.b16 %v380
      %v580 = vunpack.c.l.b16 %v381
      %v581 = vunpack.c.l.b16 %v382
      %v582 = vunpack.c.h.b16 %v382
      %v583 = vunpack.c.l.b16 %v383
      %v584 = vunpack.c.l.b16 %v384
      %v585 = vunpack.c.h.b16 %v384
      %v586 = vunpack.c.l.b16 %v385
      %v587 = vunpack.c.l.b16 %v386
      %v588 = vunpack.c.h.b16 %v386
      %v589 = vunpack.c.l.b16 %v387
      %v590 = vunpack.c.l.b16 %v388
      %v591 = vunpack.c.h.b16 %v388
      %v592 = vunpack.c.l.b16 %v389
      %v593 = vunpack.c.l.b16 %v390
      %v594 = vunpack.c.h.b16 %v390
      %v595 = vunpack.c.l.b16 %v391
      %v596 = vunpack.c.l.b16 %v392
      %v597 = vunpack.c.h.b16 %v392
      %v598 = vunpack.c.l.b16 %v393
      %v599 = vunpack.c.l.b16 %v394
      %v600 = vunpack.c.h.b16 %v394
      %v601 = vunpack.c.l.b16 %v395
      %v602 = vunpack.c.l.b16 %v396
      %v603 = vunpack.c.h.b16 %v396
      %v604 = vunpack.c.l.b16 %v397
      %v605 = vunpack.c.l.b16 %v398
      %v606 = vunpack.c.h.b16 %v398
      %v607 = vunpack.c.l.b16 %v399
      %v608 = vpack.c.b16 %v515, %v512
      %v609 = vpack.c.b16 %v516, %v513
      %v610 = vpack.c.b16 %v517, %v514
      %v611 = vpack.c.b16 %v521, %v518
      %v612 = vpack.c.b16 %v522, %v519
      %v613 = vpack.c.b16 %v523, %v520
      %v614 = vpack.c.b16 %v527, %v524
      %v615 = vpack.c.b16 %v528, %v525
      %v616 = vpack.c.b16 %v529, %v526
      %v617 = vpack.c.b16 %v533, %v530
      %v618 = vpack.c.b16 %v534, %v531
      %v619 = vpack.c.b16 %v535, %v532
      %v620 = vpack.c.b16 %v539, %v536
      %v621 = vpack.c.b16 %v540, %v537
      %v622 = vpack.c.b16 %v541, %v538
      %v623 = vpack.c.b16 %v545, %v542
      %v624 = vpack.c.b16 %v546, %v543
      %v625 = vpack.c.b16 %v547, %v544
      %v626 = vpack.c.b16 %v551, %v548
      %v627 = vpack.c.b16 %v552, %v549
      %v628 = vpack.c.b16 %v553, %v550
      %v629 = vpack.c.b16 %v557, %v554
      %v630 = vpack.c.b16 %v558, %v555
      %v631 = vpack.c.b16 %v559, %v556
      %v632 = vpack.c.b16 %v563, %v560
      %v633 = vpack.c.b16 %v564, %v561
      %v634 = vpack.c.b16 %v565, %v562
      %v635 = vpack.c.b16 %v569, %v566
      %v636 = vpack.c.b16 %v570, %v567
      %v637 = vpack.c.b16 %v571, %v568
      %v638 = vpack.c.b16 %v575, %v572
      %v639 = vpack.c.b16 %v576, %v573
      %v640 = vpack.c.b16 %v577, %v574
      %v641 = vpack.c.b16 %v581, %v578
      %v642 = vpack.c.b16 %v582, %v579
      %v643 = vpack.c.b16 %v583, %v580
      %v644 = vpack.c.b16 %v587, %v584
      %v645 = vpack.c.b16 %v588, %v585
      %v646 = vpack.c.b16 %v589, %v586
      %v647 = vpack.c.b16 %v593, %v590
      %v648 = vpack.c.b16 %v594, %v591
      %v649 = vpack.c.b16 %v595, %v592
      %v650 = vpack.c.b16 %v599, %v596
      %v651 = vpack.c.b16 %v600, %v597
      %v652 = vpack.c.b16 %v601, %v598
      %v653 = vpack.c.b16 %v605, %v602
      %v654 = vpack.c.b16 %v606, %v603
      %v655 = vpack.c.b16 %v607, %v604
      %v752 = vunpack.c.l.b16 %v400
      %v753 = vunpack.c.l.b16 %v401
      %v754 = vunpack.c.l.b16 %v402
      %v755 = vunpack.c.l.b16 %v403
      %v756 = vunpack.c.l.b16 %v404
      %v757 = vunpack.c.l.b16 %v405
      %v758 = vunpack.c.l.b16 %v406
      %v759 = vunpack.c.l.b16 %v407
      %v760 = vunpack.c.l.b16 %v408
      %v761 = vunpack.c.l.b16 %v409
      %v762 = vunpack.c.l.b16 %v410
      %v763 = vunpack.c.l.b16 %v411
      %v764 = vunpack.c.l.b16 %v412
      %v765 = vunpack.c.l.b16 %v413
      %v766 = vunpack.c.l.b16 %v414
      %v767 = vunpack.c.l.b16 %v415
      %v768 = vunpack.c.l.b16 %v416
      %v769 = vunpack.c.l.b16 %v417
      %v770 = vunpack.c.l.b16 %v418
      %v771 = vunpack.c.l.b16 %v419
      %v772 = vunpack.c.l.b16 %v420
      %v773 = vunpack.c.l.b16 %v421
      %v774 = vunpack.c.l.b16 %v422
      %v775 = vunpack.c.l.b16 %v423
      %v776 = vunpack.c.l.b16 %v424
      %v777 = vunpack.c.l.b16 %v425
      %v778 = vunpack.c.l.b16 %v426
      %v779 = vunpack.c.l.b16 %v427
      %v780 = vunpack.c.l.b16 %v428
      %v781 = vunpack.c.l.b16 %v429
      %v782 = vunpack.c.l.b16 %v430
      %v783 = vunpack.c.l.b16 %v431
      %v784 = vunpack.c.l.b16 %v432
      %v785 = vunpack.c.l.b16 %v433
      %v786 = vunpack.c.l.b16 %v434
      %v787 = vunpack.c.l.b16 %v435
      %v788 = vunpack.c.l.b16 %v436
      %v789 = vunpack.c.l.b16 %v437
      %v790 = vunpack.c.l.b16 %v438
      %v791 = vunpack.c.l.b16 %v439
      %v792 = vunpack.c.l.b16 %v440
      %v793 = vunpack.c.l.b16 %v441
      %v794 = vunpack.c.l.b16 %v442
      %v795 = vunpack.c.l.b16 %v443
      %v796 = vunpack.c.l.b16 %v444
      %v797 = vunpack.c.l.b16 %v445
      %v798 = vunpack.c.l.b16 %v446
      %v799 = vunpack.c.l.b16 %v447
      %v800 = vpack.c.b16 %v753, %v752
      %v801 = vpack.c.b16 %v755, %v754
      %v802 = vpack.c.b16 %v757, %v756
      %v803 = vpack.c.b16 %v759, %v758
      %v804 = vpack.c.b16 %v761, %v760
      %v805 = vpack.c.b16 %v763, %v762
      %v806 = vpack.c.b16 %v765, %v764
      %v807 = vpack.c.b16 %v767, %v766
      %v808 = vpack.c.b16 %v769, %v768
      %v809 = vpack.c.b16 %v771, %v770
      %v810 = vpack.c.b16 %v773, %v772
      %v811 = vpack.c.b16 %v775, %v774
      %v812 = vpack.c.b16 %v777, %v776
      %v813 = vpack.c.b16 %v779, %v778
      %v814 = vpack.c.b16 %v781, %v780
      %v815 = vpack.c.b16 %v783, %v782
      %v816 = vpack.c.b16 %v785, %v784
      %v817 = vpack.c.b16 %v787, %v786
      %v818 = vpack.c.b16 %v789, %v788
      %v819 = vpack.c.b16 %v791, %v790
      %v820 = vpack.c.b16 %v793, %v792
      %v821 = vpack.c.b16 %v795, %v794
      %v822 = vpack.c.b16 %v797, %v796
      %v823 = vpack.c.b16 %v799, %v798
      %848 = vmatprep.subr.bf16.mxu0 0
      %849 = vmatpush1.bf16.msra.mxu0 %v807
      %850 = vmatprep.subr.bf16.mxu0 0
      %851 = vmatpush1.bf16.msra.mxu0 %v806
      %852 = vmatprep.subr.bf16.mxu0 0
      %853 = vmatpush1.bf16.msra.mxu0 %v805
      %854 = vmatprep.subr.bf16.mxu0 0
      %855 = vmatpush1.bf16.msra.mxu0 %v804
      %856 = vmatprep.subr.bf16.mxu0 0
      %857 = vmatpush1.bf16.msra.mxu0 %v803
      %858 = vmatprep.subr.bf16.mxu0 0
      %859 = vmatpush1.bf16.msra.mxu0 %v802
      %860 = vmatprep.subr.bf16.mxu0 0
      %861 = vmatpush1.bf16.msra.mxu0 %v801
      %862 = vmatprep.subr.bf16.mxu0 0
      %863 = vmatpush1.bf16.msra.mxu0 %v800
      %864 = vmatprep.subr.bf16.mxu0 0
      %865 = vmatpush2.bf16.msra.mxu0 %v815
      %866 = vmatprep.subr.bf16.mxu0 0
      %867 = vmatpush2.bf16.msra.mxu0 %v814
      %868 = vmatprep.subr.bf16.mxu0 0
      %869 = vmatpush2.bf16.msra.mxu0 %v813
      %870 = vmatprep.subr.bf16.mxu0 0
      %871 = vmatpush2.bf16.msra.mxu0 %v812
      %872 = vmatprep.subr.bf16.mxu0 0
      %873 = vmatpush2.bf16.msra.mxu0 %v811
      %874 = vmatprep.subr.bf16.mxu0 0
      %875 = vmatpush2.bf16.msra.mxu0 %v810
      %876 = vmatprep.subr.bf16.mxu0 0
      %877 = vmatpush2.bf16.msra.mxu0 %v809
      %878 = vmatprep.subr.bf16.mxu0 0
      %879 = vmatpush2.bf16.msra.mxu0 %v808
      %880 = vmatprep.mubr.bf16.mxu0 %v609
      %881 = vmatmul.mubr.bf16.gmra.mxu0 %v608
      %v882 = vpop.f32.mrf.mxu0
      %v883 = vadd.f32 0.0, %v882
      %v884 = vpop.f32.mrf.mxu0
      %v885 = vpop.f32.mrf.mxu0
      %v886 = vadd.f32 0.0, %v885
      %v887 = vpop.f32.mrf.mxu0
      %888 = vmatprep.mubr.bf16.mxu0 %v612
      %889 = vmatmul.mubr.bf16.gmra.mxu0 %v611
      %v890 = vpop.f32.mrf.mxu0
      %v891 = vadd.f32 0.0, %v890
      %v892 = vpop.f32.mrf.mxu0
      %v893 = vpop.f32.mrf.mxu0
      %v894 = vadd.f32 0.0, %v893
      %v895 = vpop.f32.mrf.mxu0
      %896 = vmatprep.mubr.bf16.mxu0 %v615
      %897 = vmatmul.mubr.bf16.gmra.mxu0 %v614
      %v898 = vpop.f32.mrf.mxu0
      %v899 = vadd.f32 0.0, %v898
      %v900 = vpop.f32.mrf.mxu0
      %v901 = vpop.f32.mrf.mxu0
      %v902 = vadd.f32 0.0, %v901
      %v903 = vpop.f32.mrf.mxu0
      %904 = vmatprep.mubr.bf16.mxu0 %v618
      %905 = vmatmul.mubr.bf16.gmra.mxu0 %v617
      %v906 = vpop.f32.mrf.mxu0
      %v907 = vadd.f32 0.0, %v906
      %v908 = vpop.f32.mrf.mxu0
      %v909 = vpop.f32.mrf.mxu0
      %v910 = vadd.f32 0.0, %v909
      %v911 = vpop.f32.mrf.mxu0
      %912 = vmatprep.mubr.bf16.mxu0 %v621
      %913 = vmatmul.mubr.bf16.gmra.mxu0 %v620
      %v914 = vpop.f32.mrf.mxu0
      %v915 = vadd.f32 0.0, %v914
      %v916 = vpop.f32.mrf.mxu0
      %v917 = vpop.f32.mrf.mxu0
      %v918 = vadd.f32 0.0, %v917
      %v919 = vpop.f32.mrf.mxu0
      %920 = vmatprep.mubr.bf16.mxu0 %v624
      %921 = vmatmul.mubr.bf16.gmra.mxu0 %v623
      %v922 = vpop.f32.mrf.mxu0
      %v923 = vadd.f32 0.0, %v922
      %v924 = vpop.f32.mrf.mxu0
      %v925 = vpop.f32.mrf.mxu0
      %v926 = vadd.f32 0.0, %v925
      %v927 = vpop.f32.mrf.mxu0
      %928 = vmatprep.mubr.bf16.mxu0 %v627
      %929 = vmatmul.mubr.bf16.gmra.mxu0 %v626
      %v930 = vpop.f32.mrf.mxu0
      %v931 = vadd.f32 0.0, %v930
      %v932 = vpop.f32.mrf.mxu0
      %v933 = vpop.f32.mrf.mxu0
      %v934 = vadd.f32 0.0, %v933
      %v935 = vpop.f32.mrf.mxu0
      %936 = vmatprep.mubr.bf16.mxu0 %v630
      %937 = vmatmul.mubr.bf16.gmra.mxu0 %v629
      %v938 = vpop.f32.mrf.mxu0
      %v939 = vadd.f32 0.0, %v938
      %v940 = vpop.f32.mrf.mxu0
      %v941 = vpop.f32.mrf.mxu0
      %v942 = vadd.f32 0.0, %v941
      %v943 = vpop.f32.mrf.mxu0
      %944 = vmatprep.mubr.bf16.mxu0 %v633
      %945 = vmatmul.mubr.bf16.gmra.mxu0 %v632
      %v946 = vpop.f32.mrf.mxu0
      %v947 = vadd.f32 0.0, %v946
      %v948 = vpop.f32.mrf.mxu0
      %v949 = vpop.f32.mrf.mxu0
      %v950 = vadd.f32 0.0, %v949
      %v951 = vpop.f32.mrf.mxu0
      %952 = vmatprep.mubr.bf16.mxu0 %v636
      %953 = vmatmul.mubr.bf16.gmra.mxu0 %v635
      %v954 = vpop.f32.mrf.mxu0
      %v955 = vadd.f32 0.0, %v954
      %v956 = vpop.f32.mrf.mxu0
      %v957 = vpop.f32.mrf.mxu0
      %v958 = vadd.f32 0.0, %v957
      %v959 = vpop.f32.mrf.mxu0
      %960 = vmatprep.mubr.bf16.mxu0 %v639
      %961 = vmatmul.mubr.bf16.gmra.mxu0 %v638
      %v962 = vpop.f32.mrf.mxu0
      %v963 = vadd.f32 0.0, %v962
      %v964 = vpop.f32.mrf.mxu0
      %v965 = vpop.f32.mrf.mxu0
      %v966 = vadd.f32 0.0, %v965
      %v967 = vpop.f32.mrf.mxu0
      %968 = vmatprep.mubr.bf16.mxu0 %v642
      %969 = vmatmul.mubr.bf16.gmra.mxu0 %v641
      %v970 = vpop.f32.mrf.mxu0
      %v971 = vadd.f32 0.0, %v970
      %v972 = vpop.f32.mrf.mxu0
      %v973 = vpop.f32.mrf.mxu0
      %v974 = vadd.f32 0.0, %v973
      %v975 = vpop.f32.mrf.mxu0
      %976 = vmatprep.mubr.bf16.mxu0 %v645
      %977 = vmatmul.mubr.bf16.gmra.mxu0 %v644
      %v978 = vpop.f32.mrf.mxu0
      %v979 = vadd.f32 0.0, %v978
      %v980 = vpop.f32.mrf.mxu0
      %v981 = vpop.f32.mrf.mxu0
      %v982 = vadd.f32 0.0, %v981
      %v983 = vpop.f32.mrf.mxu0
      %984 = vmatprep.mubr.bf16.mxu0 %v648
      %985 = vmatmul.mubr.bf16.gmra.mxu0 %v647
      %v986 = vpop.f32.mrf.mxu0
      %v987 = vadd.f32 0.0, %v986
      %v988 = vpop.f32.mrf.mxu0
      %v989 = vpop.f32.mrf.mxu0
      %v990 = vadd.f32 0.0, %v989
      %v991 = vpop.f32.mrf.mxu0
      %992 = vmatprep.mubr.bf16.mxu0 %v651
      %993 = vmatmul.mubr.bf16.gmra.mxu0 %v650
      %v994 = vpop.f32.mrf.mxu0
      %v995 = vadd.f32 0.0, %v994
      %v996 = vpop.f32.mrf.mxu0
      %v997 = vpop.f32.mrf.mxu0
      %v998 = vadd.f32 0.0, %v997
      %v999 = vpop.f32.mrf.mxu0
      %1000 = vmatprep.mubr.bf16.mxu0 %v654
      %1001 = vmatmul.mubr.bf16.gmra.mxu0 %v653
      %v1002 = vpop.f32.mrf.mxu0
      %v1003 = vadd.f32 0.0, %v1002
      %v1004 = vpop.f32.mrf.mxu0
      %v1005 = vpop.f32.mrf.mxu0
      %v1006 = vadd.f32 0.0, %v1005
      %v1007 = vpop.f32.mrf.mxu0
      %1008 = vdwg.mxu0
      %1009 = vmatprep.subr.bf16.mxu0 0
      %1010 = vmatpush1.bf16.msra.mxu0 %v823
      %1011 = vmatprep.subr.bf16.mxu0 0
      %1012 = vmatpush1.bf16.msra.mxu0 %v822
      %1013 = vmatprep.subr.bf16.mxu0 0
      %1014 = vmatpush1.bf16.msra.mxu0 %v821
      %1015 = vmatprep.subr.bf16.mxu0 0
      %1016 = vmatpush1.bf16.msra.mxu0 %v820
      %1017 = vmatprep.subr.bf16.mxu0 0
      %1018 = vmatpush1.bf16.msra.mxu0 %v819
      %1019 = vmatprep.subr.bf16.mxu0 0
      %1020 = vmatpush1.bf16.msra.mxu0 %v818
      %1021 = vmatprep.subr.bf16.mxu0 0
      %1022 = vmatpush1.bf16.msra.mxu0 %v817
      %1023 = vmatprep.subr.bf16.mxu0 0
      %1024 = vmatpush1.bf16.msra.mxu0 %v816
      %1025 = vmatprep.subr.bf16.mxu0 0
      %1026 = vmatpush2.bf16.msra.mxu0 0
      %1027 = vmatprep.subr.bf16.mxu0 0
      %1028 = vmatpush2.bf16.msra.mxu0 0
      %1029 = vmatprep.subr.bf16.mxu0 0
      %1030 = vmatpush2.bf16.msra.mxu0 0
      %1031 = vmatprep.subr.bf16.mxu0 0
      %1032 = vmatpush2.bf16.msra.mxu0 0
      %1033 = vmatprep.subr.bf16.mxu0 0
      %1034 = vmatpush2.bf16.msra.mxu0 0
      %1035 = vmatprep.subr.bf16.mxu0 0
      %1036 = vmatpush2.bf16.msra.mxu0 0
      %1037 = vmatprep.subr.bf16.mxu0 0
      %1038 = vmatpush2.bf16.msra.mxu0 0
      %1039 = vmatprep.subr.bf16.mxu0 0
      %1040 = vmatpush2.bf16.msra.mxu0 0
      %1041 = vmatprep.mubr.bf16.mxu0 0
      %1042 = vmatmul.mubr.bf16.gmra.mxu0 %v610
      %v1043 = vpop.f32.mrf.mxu0
      %v1044 = vadd.f32 %v883, %v1043
      %v1045 = vpop.f32.mrf.mxu0
      %v1046 = vpop.f32.mrf.mxu0
      %v1047 = vadd.f32 %v886, %v1046
      %v1048 = vpop.f32.mrf.mxu0
      %1049 = vmatprep.mubr.bf16.mxu0 0
      %1050 = vmatmul.mubr.bf16.gmra.mxu0 %v613
      %v1051 = vpop.f32.mrf.mxu0
      %v1052 = vadd.f32 %v891, %v1051
      %v1053 = vpop.f32.mrf.mxu0
      %v1054 = vpop.f32.mrf.mxu0
      %v1055 = vadd.f32 %v894, %v1054
      %v1056 = vpop.f32.mrf.mxu0
      %1057 = vmatprep.mubr.bf16.mxu0 0
      %1058 = vmatmul.mubr.bf16.gmra.mxu0 %v616
      %v1059 = vpop.f32.mrf.mxu0
      %v1060 = vadd.f32 %v899, %v1059
      %v1061 = vpop.f32.mrf.mxu0
      %v1062 = vpop.f32.mrf.mxu0
      %v1063 = vadd.f32 %v902, %v1062
      %v1064 = vpop.f32.mrf.mxu0
      %1065 = vmatprep.mubr.bf16.mxu0 0
      %1066 = vmatmul.mubr.bf16.gmra.mxu0 %v619
      %v1067 = vpop.f32.mrf.mxu0
      %v1068 = vadd.f32 %v907, %v1067
      %v1069 = vpop.f32.mrf.mxu0
      %v1070 = vpop.f32.mrf.mxu0
      %v1071 = vadd.f32 %v910, %v1070
      %v1072 = vpop.f32.mrf.mxu0
      %1073 = vmatprep.mubr.bf16.mxu0 0
      %1074 = vmatmul.mubr.bf16.gmra.mxu0 %v622
      %v1075 = vpop.f32.mrf.mxu0
      %v1076 = vadd.f32 %v915, %v1075
      %v1077 = vpop.f32.mrf.mxu0
      %v1078 = vpop.f32.mrf.mxu0
      %v1079 = vadd.f32 %v918, %v1078
      %v1080 = vpop.f32.mrf.mxu0
      %1081 = vmatprep.mubr.bf16.mxu0 0
      %1082 = vmatmul.mubr.bf16.gmra.mxu0 %v625
      %v1083 = vpop.f32.mrf.mxu0
      %v1084 = vadd.f32 %v923, %v1083
      %v1085 = vpop.f32.mrf.mxu0
      %v1086 = vpop.f32.mrf.mxu0
      %v1087 = vadd.f32 %v926, %v1086
      %v1088 = vpop.f32.mrf.mxu0
      %1089 = vmatprep.mubr.bf16.mxu0 0
      %1090 = vmatmul.mubr.bf16.gmra.mxu0 %v628
      %v1091 = vpop.f32.mrf.mxu0
      %v1092 = vadd.f32 %v931, %v1091
      %v1093 = vpop.f32.mrf.mxu0
      %v1094 = vpop.f32.mrf.mxu0
      %v1095 = vadd.f32 %v934, %v1094
      %v1096 = vpop.f32.mrf.mxu0
      %1097 = vmatprep.mubr.bf16.mxu0 0
      %1098 = vmatmul.mubr.bf16.gmra.mxu0 %v631
      %v1099 = vpop.f32.mrf.mxu0
      %v1100 = vadd.f32 %v939, %v1099
      %v1101 = vpop.f32.mrf.mxu0
      %v1102 = vpop.f32.mrf.mxu0
      %v1103 = vadd.f32 %v942, %v1102
      %v1104 = vpop.f32.mrf.mxu0
      %1105 = vmatprep.mubr.bf16.mxu0 0
      %1106 = vmatmul.mubr.bf16.gmra.mxu0 %v634
      %v1107 = vpop.f32.mrf.mxu0
      %v1108 = vadd.f32 %v947, %v1107
      %v1109 = vpop.f32.mrf.mxu0
      %v1110 = vpop.f32.mrf.mxu0
      %v1111 = vadd.f32 %v950, %v1110
      %v1112 = vpop.f32.mrf.mxu0
      %1113 = vmatprep.mubr.bf16.mxu0 0
      %1114 = vmatmul.mubr.bf16.gmra.mxu0 %v637
      %v1115 = vpop.f32.mrf.mxu0
      %v1116 = vadd.f32 %v955, %v1115
      %v1117 = vpop.f32.mrf.mxu0
      %v1118 = vpop.f32.mrf.mxu0
      %v1119 = vadd.f32 %v958, %v1118
      %v1120 = vpop.f32.mrf.mxu0
      %1121 = vmatprep.mubr.bf16.mxu0 0
      %1122 = vmatmul.mubr.bf16.gmra.mxu0 %v640
      %v1123 = vpop.f32.mrf.mxu0
      %v1124 = vadd.f32 %v963, %v1123
      %v1125 = vpop.f32.mrf.mxu0
      %v1126 = vpop.f32.mrf.mxu0
      %v1127 = vadd.f32 %v966, %v1126
      %v1128 = vpop.f32.mrf.mxu0
      %1129 = vmatprep.mubr.bf16.mxu0 0
      %1130 = vmatmul.mubr.bf16.gmra.mxu0 %v643
      %v1131 = vpop.f32.mrf.mxu0
      %v1132 = vadd.f32 %v971, %v1131
      %v1133 = vpop.f32.mrf.mxu0
      %v1134 = vpop.f32.mrf.mxu0
      %v1135 = vadd.f32 %v974, %v1134
      %v1136 = vpop.f32.mrf.mxu0
      %1137 = vmatprep.mubr.bf16.mxu0 0
      %1138 = vmatmul.mubr.bf16.gmra.mxu0 %v646
      %v1139 = vpop.f32.mrf.mxu0
      %v1140 = vadd.f32 %v979, %v1139
      %v1141 = vpop.f32.mrf.mxu0
      %v1142 = vpop.f32.mrf.mxu0
      %v1143 = vadd.f32 %v982, %v1142
      %v1144 = vpop.f32.mrf.mxu0
      %1145 = vmatprep.mubr.bf16.mxu0 0
      %1146 = vmatmul.mubr.bf16.gmra.mxu0 %v649
      %v1147 = vpop.f32.mrf.mxu0
      %v1148 = vadd.f32 %v987, %v1147
      %v1149 = vpop.f32.mrf.mxu0
      %v1150 = vpop.f32.mrf.mxu0
      %v1151 = vadd.f32 %v990, %v1150
      %v1152 = vpop.f32.mrf.mxu0
      %1153 = vmatprep.mubr.bf16.mxu0 0
      %1154 = vmatmul.mubr.bf16.gmra.mxu0 %v652
      %v1155 = vpop.f32.mrf.mxu0
      %v1156 = vadd.f32 %v995, %v1155
      %v1157 = vpop.f32.mrf.mxu0
      %v1158 = vpop.f32.mrf.mxu0
      %v1159 = vadd.f32 %v998, %v1158
      %v1160 = vpop.f32.mrf.mxu0
      %1161 = vmatprep.mubr.bf16.mxu0 0
      %1162 = vmatmul.mubr.bf16.gmra.mxu0 %v655
      %v1163 = vpop.f32.mrf.mxu0
      %v1164 = vadd.f32 %v1003, %v1163
      %v1165 = vpop.f32.mrf.mxu0
      %v1166 = vpop.f32.mrf.mxu0
      %v1167 = vadd.f32 %v1006, %v1166
      %v1168 = vpop.f32.mrf.mxu0
      %1169 = vdwg.mxu0
      %v1170 = vadd.f32 %v304, %v1044
      %v1171 = vadd.f32 %v305, %v1047
      %v1172 = vadd.f32 %v306, %v1052
      %v1173 = vadd.f32 %v307, %v1055
      %v1174 = vadd.f32 %v308, %v1060
      %v1175 = vadd.f32 %v309, %v1063
      %v1176 = vadd.f32 %v310, %v1068
      %v1177 = vadd.f32 %v311, %v1071
      %v1178 = vadd.f32 %v312, %v1076
      %v1179 = vadd.f32 %v313, %v1079
      %v1180 = vadd.f32 %v314, %v1084
      %v1181 = vadd.f32 %v315, %v1087
      %v1182 = vadd.f32 %v316, %v1092
      %v1183 = vadd.f32 %v317, %v1095
      %v1184 = vadd.f32 %v318, %v1100
      %v1185 = vadd.f32 %v319, %v1103
      %v1186 = vadd.f32 %v320, %v1108
      %v1187 = vadd.f32 %v321, %v1111
      %v1188 = vadd.f32 %v322, %v1116
      %v1189 = vadd.f32 %v323, %v1119
      %v1190 = vadd.f32 %v324, %v1124
      %v1191 = vadd.f32 %v325, %v1127
      %v1192 = vadd.f32 %v326, %v1132
      %v1193 = vadd.f32 %v327, %v1135
      %v1194 = vadd.f32 %v328, %v1140
      %v1195 = vadd.f32 %v329, %v1143
      %v1196 = vadd.f32 %v330, %v1148
      %v1197 = vadd.f32 %v331, %v1151
      %v1198 = vadd.f32 %v332, %v1156
      %v1199 = vadd.f32 %v333, %v1159
      %v1200 = vadd.f32 %v334, %v1164
      %v1201 = vadd.f32 %v335, %v1167
      %1202 = vst [vmem:[#allocation2] sm:$0xff] %v1170
      %1203 = vst [vmem:[#allocation2 + $0x8] sm:$0xff] %v1171
      %1204 = vst [vmem:[#allocation2 + $0x10] sm:$0xff] %v1172
      %1205 = vst [vmem:[#allocation2 + $0x18] sm:$0xff] %v1173
      %1206 = vst [vmem:[#allocation2 + $0x20] sm:$0xff] %v1174
      %1207 = vst [vmem:[#allocation2 + $0x28] sm:$0xff] %v1175
      %1208 = vst [vmem:[#allocation2 + $0x30] sm:$0xff] %v1176
      %1209 = vst [vmem:[#allocation2 + $0x38] sm:$0xff] %v1177
      %1210 = vst [vmem:[#allocation2 + $0x40] sm:$0xff] %v1178
      %1211 = vst [vmem:[#allocation2 + $0x48] sm:$0xff] %v1179
      %1212 = vst [vmem:[#allocation2 + $0x50] sm:$0xff] %v1180
      %1213 = vst [vmem:[#allocation2 + $0x58] sm:$0xff] %v1181
      %1214 = vst [vmem:[#allocation2 + $0x60] sm:$0xff] %v1182
      %1215 = vst [vmem:[#allocation2 + $0x68] sm:$0xff] %v1183
      %1216 = vst [vmem:[#allocation2 + $0x70] sm:$0xff] %v1184
      %1217 = vst [vmem:[#allocation2 + $0x78] sm:$0xff] %v1185
      %1218 = vst [vmem:[#allocation2 + $0x80] sm:$0xff] %v1186
      %1219 = vst [vmem:[#allocation2 + $0x88] sm:$0xff] %v1187
      %1220 = vst [vmem:[#allocation2 + $0x90] sm:$0xff] %v1188
      %1221 = vst [vmem:[#allocation2 + $0x98] sm:$0xff] %v1189
      %1222 = vst [vmem:[#allocation2 + $0xa0] sm:$0xff] %v1190
      %1223 = vst [vmem:[#allocation2 + $0xa8] sm:$0xff] %v1191
      %1224 = vst [vmem:[#allocation2 + $0xb0] sm:$0xff] %v1192
      %1225 = vst [vmem:[#allocation2 + $0xb8] sm:$0xff] %v1193
      %1226 = vst [vmem:[#allocation2 + $0xc0] sm:$0xff] %v1194
      %1227 = vst [vmem:[#allocation2 + $0xc8] sm:$0xff] %v1195
      %1228 = vst [vmem:[#allocation2 + $0xd0] sm:$0xff] %v1196
      %1229 = vst [vmem:[#allocation2 + $0xd8] sm:$0xff] %v1197
      %1230 = vst [vmem:[#allocation2 + $0xe0] sm:$0xff] %v1198
      %1231 = vst [vmem:[#allocation2 + $0xe8] sm:$0xff] %v1199
      %1232 = vst [vmem:[#allocation2 + $0xf0] sm:$0xff] %v1200
      %1233 = vst [vmem:[#allocation2 + $0xf8] sm:$0xff] %v1201
      // Predicated region
      $region37: #{svae_conv_forward.39} parent=31 // pred_check
        %p1234 = pneg %p268
      $region38: #{svae_conv_forward.39} parent=31 // pred_check_branch
        %1236 = sbr.rel (%p1234) target = $region40
      $region39: #{svae_conv_forward.39} parent=31 // pred_region
        %v1237 = vld [vmem:[#allocation2] sm:$0xff]
        %v1238 = vld [vmem:[#allocation2 + $0x8] sm:$0xff]
        %v1239 = vld [vmem:[#allocation2 + $0x10] sm:$0xff]
        %v1240 = vld [vmem:[#allocation2 + $0x18] sm:$0xff]
        %v1241 = vld [vmem:[#allocation2 + $0x20] sm:$0xff]
        %v1242 = vld [vmem:[#allocation2 + $0x28] sm:$0xff]
        %v1243 = vld [vmem:[#allocation2 + $0x30] sm:$0xff]
        %v1244 = vld [vmem:[#allocation2 + $0x38] sm:$0xff]
        %v1245 = vld [vmem:[#allocation2 + $0x40] sm:$0xff]
        %v1246 = vld [vmem:[#allocation2 + $0x48] sm:$0xff]
        %v1247 = vld [vmem:[#allocation2 + $0x50] sm:$0xff]
        %v1248 = vld [vmem:[#allocation2 + $0x58] sm:$0xff]
        %v1249 = vld [vmem:[#allocation2 + $0x60] sm:$0xff]
        %v1250 = vld [vmem:[#allocation2 + $0x68] sm:$0xff]
        %v1251 = vld [vmem:[#allocation2 + $0x70] sm:$0xff]
        %v1252 = vld [vmem:[#allocation2 + $0x78] sm:$0xff]
        %v1253 = vld [vmem:[#allocation2 + $0x80] sm:$0xff]
        %v1254 = vld [vmem:[#allocation2 + $0x88] sm:$0xff]
        %v1255 = vld [vmem:[#allocation2 + $0x90] sm:$0xff]
        %v1256 = vld [vmem:[#allocation2 + $0x98] sm:$0xff]
        %v1257 = vld [vmem:[#allocation2 + $0xa0] sm:$0xff]
        %v1258 = vld [vmem:[#allocation2 + $0xa8] sm:$0xff]
        %v1259 = vld [vmem:[#allocation2 + $0xb0] sm:$0xff]
        %v1260 = vld [vmem:[#allocation2 + $0xb8] sm:$0xff]
        %v1261 = vld [vmem:[#allocation2 + $0xc0] sm:$0xff]
        %v1262 = vld [vmem:[#allocation2 + $0xc8] sm:$0xff]
        %v1263 = vld [vmem:[#allocation2 + $0xd0] sm:$0xff]
        %v1264 = vld [vmem:[#allocation2 + $0xd8] sm:$0xff]
        %v1265 = vld [vmem:[#allocation2 + $0xe0] sm:$0xff]
        %v1266 = vld [vmem:[#allocation2 + $0xe8] sm:$0xff]
        %v1267 = vld [vmem:[#allocation2 + $0xf0] sm:$0xff]
        %v1268 = vld [vmem:[#allocation2 + $0xf8] sm:$0xff]
        %v1269 = vld [vmem:[%s257] sm:$0x1]
        %v1271 = vlaneseq
        %v1272 = vshrl.u32 %v1271, 7
        %v1273 = vsub.s32 0, %v1272
        %v1274 = vrot.slane %v1269, %v1273
        %v1276 = vadd.f32 %v1237, %v1274
        %v1277 = vadd.f32 %v1238, %v1274
        %v1278 = vadd.f32 %v1239, %v1274
        %v1279 = vadd.f32 %v1240, %v1274
        %v1280 = vadd.f32 %v1241, %v1274
        %v1281 = vadd.f32 %v1242, %v1274
        %v1282 = vadd.f32 %v1243, %v1274
        %v1283 = vadd.f32 %v1244, %v1274
        %v1284 = vadd.f32 %v1245, %v1274
        %v1285 = vadd.f32 %v1246, %v1274
        %v1286 = vadd.f32 %v1247, %v1274
        %v1287 = vadd.f32 %v1248, %v1274
        %v1288 = vadd.f32 %v1249, %v1274
        %v1289 = vadd.f32 %v1250, %v1274
        %v1290 = vadd.f32 %v1251, %v1274
        %v1291 = vadd.f32 %v1252, %v1274
        %v1292 = vadd.f32 %v1253, %v1274
        %v1293 = vadd.f32 %v1254, %v1274
        %v1294 = vadd.f32 %v1255, %v1274
        %v1295 = vadd.f32 %v1256, %v1274
        %v1296 = vadd.f32 %v1257, %v1274
        %v1297 = vadd.f32 %v1258, %v1274
        %v1298 = vadd.f32 %v1259, %v1274
        %v1299 = vadd.f32 %v1260, %v1274
        %v1300 = vadd.f32 %v1261, %v1274
        %v1301 = vadd.f32 %v1262, %v1274
        %v1302 = vadd.f32 %v1263, %v1274
        %v1303 = vadd.f32 %v1264, %v1274
        %v1304 = vadd.f32 %v1265, %v1274
        %v1305 = vadd.f32 %v1266, %v1274
        %v1306 = vadd.f32 %v1267, %v1274
        %v1307 = vadd.f32 %v1268, %v1274
        %v1308 = vxor.u32 %v1276, 2147483648
        %v1309 = vxor.u32 %v1277, 2147483648
        %v1310 = vxor.u32 %v1278, 2147483648
        %v1311 = vxor.u32 %v1279, 2147483648
        %v1312 = vxor.u32 %v1280, 2147483648
        %v1313 = vxor.u32 %v1281, 2147483648
        %v1314 = vxor.u32 %v1282, 2147483648
        %v1315 = vxor.u32 %v1283, 2147483648
        %v1316 = vxor.u32 %v1284, 2147483648
        %v1317 = vxor.u32 %v1285, 2147483648
        %v1318 = vxor.u32 %v1286, 2147483648
        %v1319 = vxor.u32 %v1287, 2147483648
        %v1320 = vxor.u32 %v1288, 2147483648
        %v1321 = vxor.u32 %v1289, 2147483648
        %v1322 = vxor.u32 %v1290, 2147483648
        %v1323 = vxor.u32 %v1291, 2147483648
        %v1324 = vxor.u32 %v1292, 2147483648
        %v1325 = vxor.u32 %v1293, 2147483648
        %v1326 = vxor.u32 %v1294, 2147483648
        %v1327 = vxor.u32 %v1295, 2147483648
        %v1328 = vxor.u32 %v1296, 2147483648
        %v1329 = vxor.u32 %v1297, 2147483648
        %v1330 = vxor.u32 %v1298, 2147483648
        %v1331 = vxor.u32 %v1299, 2147483648
        %v1332 = vxor.u32 %v1300, 2147483648
        %v1333 = vxor.u32 %v1301, 2147483648
        %v1334 = vxor.u32 %v1302, 2147483648
        %v1335 = vxor.u32 %v1303, 2147483648
        %v1336 = vxor.u32 %v1304, 2147483648
        %v1337 = vxor.u32 %v1305, 2147483648
        %v1338 = vxor.u32 %v1306, 2147483648
        %v1339 = vxor.u32 %v1307, 2147483648
        %v1340 = vmul.f32 %v1308, 1.442695
        %v1341 = vpow.pop %v1340
        %v1342 = vmul.f32 %v1309, 1.442695
        %v1343 = vpow.pop %v1342
        %v1344 = vmul.f32 %v1310, 1.442695
        %v1345 = vpow.pop %v1344
        %v1346 = vmul.f32 %v1311, 1.442695
        %v1347 = vpow.pop %v1346
        %v1348 = vmul.f32 %v1312, 1.442695
        %v1349 = vpow.pop %v1348
        %v1350 = vmul.f32 %v1313, 1.442695
        %v1351 = vpow.pop %v1350
        %v1352 = vmul.f32 %v1314, 1.442695
        %v1353 = vpow.pop %v1352
        %v1354 = vmul.f32 %v1315, 1.442695
        %v1355 = vpow.pop %v1354
        %v1356 = vmul.f32 %v1316, 1.442695
        %v1357 = vpow.pop %v1356
        %v1358 = vmul.f32 %v1317, 1.442695
        %v1359 = vpow.pop %v1358
        %v1360 = vmul.f32 %v1318, 1.442695
        %v1361 = vpow.pop %v1360
        %v1362 = vmul.f32 %v1319, 1.442695
        %v1363 = vpow.pop %v1362
        %v1364 = vmul.f32 %v1320, 1.442695
        %v1365 = vpow.pop %v1364
        %v1366 = vmul.f32 %v1321, 1.442695
        %v1367 = vpow.pop %v1366
        %v1368 = vmul.f32 %v1322, 1.442695
        %v1369 = vpow.pop %v1368
        %v1370 = vmul.f32 %v1323, 1.442695
        %v1371 = vpow.pop %v1370
        %v1372 = vmul.f32 %v1324, 1.442695
        %v1373 = vpow.pop %v1372
        %v1374 = vmul.f32 %v1325, 1.442695
        %v1375 = vpow.pop %v1374
        %v1376 = vmul.f32 %v1326, 1.442695
        %v1377 = vpow.pop %v1376
        %v1378 = vmul.f32 %v1327, 1.442695
        %v1379 = vpow.pop %v1378
        %v1380 = vmul.f32 %v1328, 1.442695
        %v1381 = vpow.pop %v1380
        %v1382 = vmul.f32 %v1329, 1.442695
        %v1383 = vpow.pop %v1382
        %v1384 = vmul.f32 %v1330, 1.442695
        %v1385 = vpow.pop %v1384
        %v1386 = vmul.f32 %v1331, 1.442695
        %v1387 = vpow.pop %v1386
        %v1388 = vmul.f32 %v1332, 1.442695
        %v1389 = vpow.pop %v1388
        %v1390 = vmul.f32 %v1333, 1.442695
        %v1391 = vpow.pop %v1390
        %v1392 = vmul.f32 %v1334, 1.442695
        %v1393 = vpow.pop %v1392
        %v1394 = vmul.f32 %v1335, 1.442695
        %v1395 = vpow.pop %v1394
        %v1396 = vmul.f32 %v1336, 1.442695
        %v1397 = vpow.pop %v1396
        %v1398 = vmul.f32 %v1337, 1.442695
        %v1399 = vpow.pop %v1398
        %v1400 = vmul.f32 %v1338, 1.442695
        %v1401 = vpow.pop %v1400
        %v1402 = vmul.f32 %v1339, 1.442695
        %v1403 = vpow.pop %v1402
        %v1404 = vadd.f32 %v1341, 1.0
        %v1405 = vadd.f32 %v1343, 1.0
        %v1406 = vadd.f32 %v1345, 1.0
        %v1407 = vadd.f32 %v1347, 1.0
        %v1408 = vadd.f32 %v1349, 1.0
        %v1409 = vadd.f32 %v1351, 1.0
        %v1410 = vadd.f32 %v1353, 1.0
        %v1411 = vadd.f32 %v1355, 1.0
        %v1412 = vadd.f32 %v1357, 1.0
        %v1413 = vadd.f32 %v1359, 1.0
        %v1414 = vadd.f32 %v1361, 1.0
        %v1415 = vadd.f32 %v1363, 1.0
        %v1416 = vadd.f32 %v1365, 1.0
        %v1417 = vadd.f32 %v1367, 1.0
        %v1418 = vadd.f32 %v1369, 1.0
        %v1419 = vadd.f32 %v1371, 1.0
        %v1420 = vadd.f32 %v1373, 1.0
        %v1421 = vadd.f32 %v1375, 1.0
        %v1422 = vadd.f32 %v1377, 1.0
        %v1423 = vadd.f32 %v1379, 1.0
        %v1424 = vadd.f32 %v1381, 1.0
        %v1425 = vadd.f32 %v1383, 1.0
        %v1426 = vadd.f32 %v1385, 1.0
        %v1427 = vadd.f32 %v1387, 1.0
        %v1428 = vadd.f32 %v1389, 1.0
        %v1429 = vadd.f32 %v1391, 1.0
        %v1430 = vadd.f32 %v1393, 1.0
        %v1431 = vadd.f32 %v1395, 1.0
        %v1432 = vadd.f32 %v1397, 1.0
        %v1433 = vadd.f32 %v1399, 1.0
        %v1434 = vadd.f32 %v1401, 1.0
        %v1435 = vadd.f32 %v1403, 1.0
        %v1436 = vrcp.pop %v1404
        %v1437 = vmul.f32 1.0, %v1436
        %v1438 = vrcp.pop %v1405
        %v1439 = vmul.f32 1.0, %v1438
        %v1440 = vrcp.pop %v1406
        %v1441 = vmul.f32 1.0, %v1440
        %v1442 = vrcp.pop %v1407
        %v1443 = vmul.f32 1.0, %v1442
        %v1444 = vrcp.pop %v1408
        %v1445 = vmul.f32 1.0, %v1444
        %v1446 = vrcp.pop %v1409
        %v1447 = vmul.f32 1.0, %v1446
        %v1448 = vrcp.pop %v1410
        %v1449 = vmul.f32 1.0, %v1448
        %v1450 = vrcp.pop %v1411
        %v1451 = vmul.f32 1.0, %v1450
        %v1452 = vrcp.pop %v1412
        %v1453 = vmul.f32 1.0, %v1452
        %v1454 = vrcp.pop %v1413
        %v1455 = vmul.f32 1.0, %v1454
        %v1456 = vrcp.pop %v1414
        %v1457 = vmul.f32 1.0, %v1456
        %v1458 = vrcp.pop %v1415
        %v1459 = vmul.f32 1.0, %v1458
        %v1460 = vrcp.pop %v1416
        %v1461 = vmul.f32 1.0, %v1460
        %v1462 = vrcp.pop %v1417
        %v1463 = vmul.f32 1.0, %v1462
        %v1464 = vrcp.pop %v1418
        %v1465 = vmul.f32 1.0, %v1464
        %v1466 = vrcp.pop %v1419
        %v1467 = vmul.f32 1.0, %v1466
        %v1468 = vrcp.pop %v1420
        %v1469 = vmul.f32 1.0, %v1468
        %v1470 = vrcp.pop %v1421
        %v1471 = vmul.f32 1.0, %v1470
        %v1472 = vrcp.pop %v1422
        %v1473 = vmul.f32 1.0, %v1472
        %v1474 = vrcp.pop %v1423
        %v1475 = vmul.f32 1.0, %v1474
        %v1476 = vrcp.pop %v1424
        %v1477 = vmul.f32 1.0, %v1476
        %v1478 = vrcp.pop %v1425
        %v1479 = vmul.f32 1.0, %v1478
        %v1480 = vrcp.pop %v1426
        %v1481 = vmul.f32 1.0, %v1480
        %v1482 = vrcp.pop %v1427
        %v1483 = vmul.f32 1.0, %v1482
        %v1484 = vrcp.pop %v1428
        %v1485 = vmul.f32 1.0, %v1484
        %v1486 = vrcp.pop %v1429
        %v1487 = vmul.f32 1.0, %v1486
        %v1488 = vrcp.pop %v1430
        %v1489 = vmul.f32 1.0, %v1488
        %v1490 = vrcp.pop %v1431
        %v1491 = vmul.f32 1.0, %v1490
        %v1492 = vrcp.pop %v1432
        %v1493 = vmul.f32 1.0, %v1492
        %v1494 = vrcp.pop %v1433
        %v1495 = vmul.f32 1.0, %v1494
        %v1496 = vrcp.pop %v1434
        %v1497 = vmul.f32 1.0, %v1496
        %v1498 = vrcp.pop %v1435
        %v1499 = vmul.f32 1.0, %v1498
        %1500 = vst [vmem:[%s265] sm:$0xff] %v1437
        %1501 = vst [vmem:[%s265 + $0x8] sm:$0xff] %v1439
        %1502 = vst [vmem:[%s265 + $0x10] sm:$0xff] %v1441
        %1503 = vst [vmem:[%s265 + $0x18] sm:$0xff] %v1443
        %1504 = vst [vmem:[%s265 + $0x20] sm:$0xff] %v1445
        %1505 = vst [vmem:[%s265 + $0x28] sm:$0xff] %v1447
        %1506 = vst [vmem:[%s265 + $0x30] sm:$0xff] %v1449
        %1507 = vst [vmem:[%s265 + $0x38] sm:$0xff] %v1451
        %1508 = vst [vmem:[%s265 + $0x40] sm:$0xff] %v1453
        %1509 = vst [vmem:[%s265 + $0x48] sm:$0xff] %v1455
        %1510 = vst [vmem:[%s265 + $0x50] sm:$0xff] %v1457
        %1511 = vst [vmem:[%s265 + $0x58] sm:$0xff] %v1459
        %1512 = vst [vmem:[%s265 + $0x60] sm:$0xff] %v1461
        %1513 = vst [vmem:[%s265 + $0x68] sm:$0xff] %v1463
        %1514 = vst [vmem:[%s265 + $0x70] sm:$0xff] %v1465
        %1515 = vst [vmem:[%s265 + $0x78] sm:$0xff] %v1467
        %1516 = vst [vmem:[%s265 + $0x80] sm:$0xff] %v1469
        %1517 = vst [vmem:[%s265 + $0x88] sm:$0xff] %v1471
        %1518 = vst [vmem:[%s265 + $0x90] sm:$0xff] %v1473
        %1519 = vst [vmem:[%s265 + $0x98] sm:$0xff] %v1475
        %1520 = vst [vmem:[%s265 + $0xa0] sm:$0xff] %v1477
        %1521 = vst [vmem:[%s265 + $0xa8] sm:$0xff] %v1479
        %1522 = vst [vmem:[%s265 + $0xb0] sm:$0xff] %v1481
        %1523 = vst [vmem:[%s265 + $0xb8] sm:$0xff] %v1483
        %1524 = vst [vmem:[%s265 + $0xc0] sm:$0xff] %v1485
        %1525 = vst [vmem:[%s265 + $0xc8] sm:$0xff] %v1487
        %1526 = vst [vmem:[%s265 + $0xd0] sm:$0xff] %v1489
        %1527 = vst [vmem:[%s265 + $0xd8] sm:$0xff] %v1491
        %1528 = vst [vmem:[%s265 + $0xe0] sm:$0xff] %v1493
        %1529 = vst [vmem:[%s265 + $0xe8] sm:$0xff] %v1495
        %1530 = vst [vmem:[%s265 + $0xf0] sm:$0xff] %v1497
        %1531 = vst [vmem:[%s265 + $0xf8] sm:$0xff] %v1499
      $region40: #{svae_conv_forward.39} parent=31 // pred_fallthru
        _
      %s1532 = smul.u32 32, %s19
      %p1533 = scmp.lt.s32.totalorder %s1532, 255
      %s1534 = scalar_select %p1533, %s1532, 255
      %p1535 = scmp.lt.s32.totalorder %s20, 0
      %s1536 = scalar_select %p1535, %s20, 0
      %s1537 = sadd.s32 %s1536, %s1534
      %s1538 = smul.addr %s1537, 8
      %s1539 = scalar_lea.vmem %s3, %s1538
      // Predicated region
      $region41: #{svae_conv_forward.39} parent=31 // pred_check
        %p1540 = pneg %p135
      $region42: #{svae_conv_forward.39} parent=31 // pred_check_branch
        %1542 = sbr.rel (%p1540) target = $region44
      $region43: #{svae_conv_forward.39} parent=31 // pred_region
        %s1543 = smul.u32 32, %s19
      $region44: #{svae_conv_forward.39} parent=31 // pred_fallthru
        _
    $region32: #{svae_conv_forward.39} parent=5 // pred_fallthru
      _
    %p1544 = scmp.le.s32.totalorder 2, %s9
    // Predicated region
    $region45: #{svae_conv_forward.39} parent=5 // pred_check
      %p1545 = pneg %p1544
    $region46: #{svae_conv_forward.39} parent=5 // pred_check_branch
      %1547 = sbr.rel (%p1545) target = $region48
    $region47: #{svae_conv_forward.39} parent=5 // pred_region
      %s1548 = ssub.s32 %s9, 2
      // Predicated region
      $region49: #{svae_conv_forward.39} parent=47 // pred_check
        %p1549 = pneg %p141
      $region50: #{svae_conv_forward.39} parent=47 // pred_check_branch
        %1551 = sbr.rel (%p1549) target = $region52
      $region51: #{svae_conv_forward.39} parent=47 // pred_region
        %s1552 = smul.u32 32, %s22
        %p1553 = scmp.lt.s32.totalorder %s1552, 255
        %s1554 = scalar_select %p1553, %s1552, 255
        %p1555 = scmp.lt.s32.totalorder %s23, 0
        %s1556 = scalar_select %p1555, %s23, 0
        %s1557 = sadd.s32 %s1556, %s1554
        %s1558 = smul.addr %s1557, 8
        %s1559 = scalar_lea.vmem %s3, %s1558
      $region52: #{svae_conv_forward.39} parent=47 // pred_fallthru
        _
    $region48: #{svae_conv_forward.39} parent=5 // pred_fallthru
      _
  $region6: #{svae_conv_forward.39} parent=0 // loop_footer
    %s13 = sadd.s32 1, %s9
  $region7: #{svae_conv_forward.39} parent=0 // loop_footer_branch
    %8 = sbr.rel target = $region3
  $region8: #{svae_conv_forward.39} parent=0 // loop_exit
    _

</llo_original>
